<compile_context>
chip_gen: v5e
topology: v5e:2x2
jax: 0.10.0
libtpu: 0.0.40
codegen_flags: <defaults>
</compile_context>

<pallas_src>
import jax
import jax.numpy as jnp
from jax.experimental import pallas as pl
from jax.experimental.pallas import tpu as pltpu


CHANNELS = [(1024, 512), (512, 256), (256, 64), (64, 3)]
OUT_CHANNELS = CHANNELS[-1][1]   # 3
_TAPS = 4                        # 2x2 transposed-conv kernel -> 4 output taps


def _round_up(x, m):
    return ((x + m - 1) // m) * m


# ----------------------------- fused Pallas kernel ---------------------------
def _decoder_kernel(x_ref, w1_hbm, b1_ref, w2_hbm, b2_ref, w3_hbm, b3_ref,
                    w4_hbm, b4_ref, o_ref,
                    w1_v, w2_v, w3_v, w4_v, a1_s, a2_s, a3_s, sem):
    """Whole 4-block decoder in one grid step.

    Weights live in HBM (memory_space=pl.ANY) and are streamed into
    single-buffered VMEM scratch via async copies issued up front; each copy is
    waited on right before its block's dot so block-k compute overlaps the
    w_{k+1} DMA.  Each block is one (m, K)bf16 @ (K, 4*tw)bf16 -> f32 matmul
    with fused f32 bias + tanh; the 4 tap column groups of block k become 4
    row groups of block k+1's activation scratch (quad-tree row ordering that
    the wrapper unscrambles with one cheap reshape/transpose).
    """
    cp1 = pltpu.make_async_copy(w1_hbm, w1_v, sem.at[0])
    cp2 = pltpu.make_async_copy(w2_hbm, w2_v, sem.at[1])
    cp3 = pltpu.make_async_copy(w3_hbm, w3_v, sem.at[2])
    cp4 = pltpu.make_async_copy(w4_hbm, w4_v, sem.at[3])
    cp1.start(); cp2.start(); cp3.start(); cp4.start()

    f32 = jnp.float32
    bf16 = jnp.bfloat16

    def block(a_f32, w_v, b_ref, dst):
        # One dot per block (bf16 x bf16 -> f32 accumulation), then 4
        # lane-aligned column-group copies into the row-grouped f32 scratch.
        m = a_f32.shape[0]
        tw = w_v.shape[1] // _TAPS
        y = jnp.tanh(jnp.dot(a_f32.astype(bf16), w_v[...],
                             preferred_element_type=f32) + b_ref[...])
        for t in range(_TAPS):
            dst[t * m:(t + 1) * m, :] = y[:, t * tw:(t + 1) * tw]

    cp1.wait()
    block(x_ref[...], w1_v, b1_ref, a1_s)      # (m, 1024)  -> ( 4m, 512)
    cp2.wait()
    block(a1_s[...], w2_v, b2_ref, a2_s)       # (4m, 512)  -> (16m, 256)
    cp3.wait()
    block(a2_s[...], w3_v, b3_ref, a3_s)       # (16m, 256) -> (64m, 128)
    cp4.wait()
    # Last block: the 4 taps (cout padded 3->32) fill the lane-dense 128-wide output.
    o_ref[...] = jnp.tanh(
        jnp.dot(a3_s[...].astype(bf16), w4_v[...],
                preferred_element_type=f32) + b4_ref[...])


# ------------------------------ parameter packing ----------------------------
def init_params(key):
    params = []
    for cin, cout in CHANNELS:
        key, kw, kb = jax.random.split(key, 3)
        w = 0.02 * jax.random.normal(kw, (cin, cout, 2, 2), dtype=jnp.float32)
        b = 0.1 * jax.random.normal(kb, (cout,), dtype=jnp.float32)
        params.append((w, b))
    return params


def pack_decoder_params(params):
    """Pack PyTorch-layout params (w:(Cin,Cout,2,2), b:(Cout,)) for the kernel.

    Columns ordered (tap = kh*2+kw, cout); cout zero-padded to a multiple of 128
    (32 for the last block so 4 taps give a 128-wide lane-dense output); cin
    zero-padded to the previous block's padded cout; weights cast to bf16.
    Zero padding is exact: padded outputs are tanh(0)=0 and padded input rows
    multiply zeros, so results are unchanged.
    """
    packed = []
    prev_cout_pad = params[0][0].shape[0]
    for idx, (w, b) in enumerate(params):
        cin, cout = w.shape[0], w.shape[1]
        last = idx == len(params) - 1
        cout_pad = _round_up(cout, 32 if last else 128)
        cin_pad = prev_cout_pad
        wt = jnp.transpose(w, (0, 2, 3, 1))                     # (Cin, kh, kw, Cout)
        wt = jnp.pad(wt, ((0, cin_pad - cin), (0, 0), (0, 0), (0, cout_pad - cout)))
        w2d = wt.reshape(cin_pad, _TAPS * cout_pad).astype(jnp.bfloat16)
        bt = jnp.broadcast_to(b, (2, 2, cout))
        bt = jnp.pad(bt, ((0, 0), (0, 0), (0, cout_pad - cout)))
        b2d = bt.reshape(1, _TAPS * cout_pad).astype(jnp.float32)
        packed.append((w2d, b2d))
        prev_cout_pad = cout_pad
    return packed


# --------------------------------- forward -----------------------------------
@jax.jit
def decoder_forward(x_nchw, packed):
    """x_nchw: (N, 1024, H, W) f32 -> (N, 3, 16H, 16W) f32 (PyTorch NCHW I/O)."""
    (w1, b1), (w2, b2), (w3, b3), (w4, b4) = packed
    N, cin, H0, W0 = x_nchw.shape
    m0 = N * H0 * W0
    m_pad = _round_up(m0, 8)   # keep scratch row-group offsets (8,128)-aligned
    c1 = w1.shape[1] // _TAPS
    c2 = w2.shape[1] // _TAPS
    c3 = w3.shape[1] // _TAPS
    c4 = w4.shape[1] // _TAPS
    m3 = 64 * m_pad

    x2d = jnp.transpose(x_nchw, (0, 2, 3, 1)).reshape(m0, cin).astype(jnp.float32)
    if m_pad != m0:
        x2d = jnp.pad(x2d, ((0, m_pad - m0), (0, 0)))

    def vmem_full(shape):
        return pl.BlockSpec(shape, lambda i: (0,) * len(shape))

    def hbm():
        return pl.BlockSpec(memory_space=pl.ANY)

    out = pl.pallas_call(
        _decoder_kernel,
        out_shape=jax.ShapeDtypeStruct((m3, _TAPS * c4), jnp.float32),
        grid_spec=pltpu.PrefetchScalarGridSpec(
            num_scalar_prefetch=0,
            grid=(1,),
            in_specs=[vmem_full(x2d.shape),
                      hbm(), vmem_full(b1.shape),
                      hbm(), vmem_full(b2.shape),
                      hbm(), vmem_full(b3.shape),
                      hbm(), vmem_full(b4.shape)],
            out_specs=vmem_full((m3, _TAPS * c4)),
            scratch_shapes=[pltpu.VMEM(w1.shape, jnp.bfloat16),   # single-buffered weights
                            pltpu.VMEM(w2.shape, jnp.bfloat16),
                            pltpu.VMEM(w3.shape, jnp.bfloat16),
                            pltpu.VMEM(w4.shape, jnp.bfloat16),
                            pltpu.VMEM((4 * m_pad, c1), jnp.float32),   # f32 activations
                            pltpu.VMEM((16 * m_pad, c2), jnp.float32),
                            pltpu.VMEM((64 * m_pad, c3), jnp.float32),
                            pltpu.SemaphoreType.DMA((4,))],
        ),
        compiler_params=pltpu.CompilerParams(
            dimension_semantics=("arbitrary",),
            vmem_limit_bytes=14 * 1024 * 1024,
        ),
    )(x2d, w1, b1, w2, b2, w3, b3, w4, b4)

    # Undo the quad-tree row ordering, drop row padding and channel padding.
    # rows: (kh3, kw3, kh2, kw2, kh1, kw1, r_pad)  columns: (kh4, kw4, co_pad)
    y = out.reshape(2, 2, 2, 2, 2, 2, m_pad, 2, 2, c4)
    y = y[:, :, :, :, :, :, :m0, :, :, :OUT_CHANNELS]
    y = y.reshape(2, 2, 2, 2, 2, 2, N, H0, W0, 2, 2, OUT_CHANNELS)
    y = jnp.transpose(y, (6, 11, 7, 4, 2, 0, 9, 8, 5, 3, 1, 10))
    # -> (n, co, h0, kh1, kh2, kh3, kh4, w0, kw1, kw2, kw3, kw4)
    return y.reshape(N, OUT_CHANNELS, 16 * H0, 16 * W0)


# --------------------------- pure-JAX reference -------------------------------
def decoder_reference(x_nchw, params):
    x = jnp.transpose(x_nchw, (0, 2, 3, 1))
    for w, b in params:
        N, H, W, _ = x.shape
        cout = w.shape[1]
        y = jnp.tanh(jnp.einsum("nhwi,iokl->nhwklo", x, w) + b)   # (N,H,W,2,2,Cout)
        x = jnp.transpose(y, (0, 1, 3, 2, 4, 5)).reshape(N, 2 * H, 2 * W, cout)
    return jnp.transpose(x, (0, 3, 1, 2))


# ----------------------------------- main -------------------------------------
if __name__ == "__main__":
    key = jax.random.PRNGKey(0)
    key, kx = jax.random.split(key)

    # Small input consistent with the module: NCHW with Cin = 1024.
    x = jax.random.normal(kx, (2, 1024, 2, 2), dtype=jnp.float32)
    params = init_params(key)
    packed = pack_decoder_params(params)   # one-time host-side weight packing (bf16)

    out = decoder_forward(x, packed)
    out = jax.block_until_ready(out)
    assert out.shape == (2, 3, 32, 32), out.shape

    ref = decoder_reference(x, params)     # full-f32 reference of the module
    max_err = float(jnp.max(jnp.abs(out - ref)))
    # Tolerance accounts for bf16 weight/activation quantization in the kernel
    # (outputs are tanh-bounded; layout bugs would produce O(0.1-1) errors).
    assert max_err < 5e-2, f"mismatch vs reference: max abs err {max_err}"

    print("KERNEL_OK")
</pallas_src>

<mosaic_0001>
module attributes {stable_mosaic.version = 11 : i64} {
  func.func @_decoder_kernel(%arg0: i32, %arg1: memref<8x1024xf32, #tpu.memory_space<vmem>>, %arg2: memref<1024x2048xbf16, #tpu.memory_space<any>>, %arg3: memref<1x2048xf32, #tpu.memory_space<vmem>>, %arg4: memref<512x1024xbf16, #tpu.memory_space<any>>, %arg5: memref<1x1024xf32, #tpu.memory_space<vmem>>, %arg6: memref<256x512xbf16, #tpu.memory_space<any>>, %arg7: memref<1x512xf32, #tpu.memory_space<vmem>>, %arg8: memref<128x128xbf16, #tpu.memory_space<any>>, %arg9: memref<1x128xf32, #tpu.memory_space<vmem>>, %arg10: memref<512x128xf32, #tpu.memory_space<vmem>>, %arg11: memref<1024x2048xbf16, #tpu.memory_space<vmem>>, %arg12: memref<512x1024xbf16, #tpu.memory_space<vmem>>, %arg13: memref<256x512xbf16, #tpu.memory_space<vmem>>, %arg14: memref<128x128xbf16, #tpu.memory_space<vmem>>, %arg15: memref<32x512xf32, #tpu.memory_space<vmem>>, %arg16: memref<128x256xf32, #tpu.memory_space<vmem>>, %arg17: memref<512x128xf32, #tpu.memory_space<vmem>>, %arg18: memref<4x!tpu.dma_semaphore, #tpu.memory_space<semaphore_mem>>) attributes {dimension_semantics = [#tpu.dimension_semantics<arbitrary>], iteration_bounds = array<i64: 1>, scalar_prefetch = 0 : i64, scratch_operands = 8 : i64, tpu.core_type = #tpu.core_type<tc>, window_params = [{pipeline_mode = #tpu.pipeline_mode<synchronous>, transform_indices = @transform_0, window_bounds = array<i64: 8, 1024>}, {}, {pipeline_mode = #tpu.pipeline_mode<synchronous>, transform_indices = @transform_2, window_bounds = array<i64: 1, 2048>}, {}, {pipeline_mode = #tpu.pipeline_mode<synchronous>, transform_indices = @transform_4, window_bounds = array<i64: 1, 1024>}, {}, {pipeline_mode = #tpu.pipeline_mode<synchronous>, transform_indices = @transform_6, window_bounds = array<i64: 1, 512>}, {}, {pipeline_mode = #tpu.pipeline_mode<synchronous>, transform_indices = @transform_8, window_bounds = array<i64: 1, 128>}, {pipeline_mode = #tpu.pipeline_mode<synchronous>, transform_indices = @transform_9, window_bounds = array<i64: 512, 128>}]} {
    %c0_i32 = arith.constant 0 : i32
    %0 = tpu.memref_slice %arg18[%c0_i32] : memref<4x!tpu.dma_semaphore, #tpu.memory_space<semaphore_mem>> -> memref<1x!tpu.dma_semaphore, #tpu.memory_space<semaphore_mem>>
    %1 = tpu.memref_squeeze %0 : memref<1x!tpu.dma_semaphore, #tpu.memory_space<semaphore_mem>> -> memref<!tpu.dma_semaphore, #tpu.memory_space<semaphore_mem>>
    tpu.enqueue_dma source(%arg2 : memref<1024x2048xbf16, #tpu.memory_space<any>>) target(%arg11 : memref<1024x2048xbf16, #tpu.memory_space<vmem>>) target_semaphore(%1 : memref<!tpu.dma_semaphore, #tpu.memory_space<semaphore_mem>>)
    %c1_i32 = arith.constant 1 : i32
    %2 = tpu.memref_slice %arg18[%c1_i32] : memref<4x!tpu.dma_semaphore, #tpu.memory_space<semaphore_mem>> -> memref<1x!tpu.dma_semaphore, #tpu.memory_space<semaphore_mem>>
    %3 = tpu.memref_squeeze %2 : memref<1x!tpu.dma_semaphore, #tpu.memory_space<semaphore_mem>> -> memref<!tpu.dma_semaphore, #tpu.memory_space<semaphore_mem>>
    tpu.enqueue_dma source(%arg4 : memref<512x1024xbf16, #tpu.memory_space<any>>) target(%arg12 : memref<512x1024xbf16, #tpu.memory_space<vmem>>) target_semaphore(%3 : memref<!tpu.dma_semaphore, #tpu.memory_space<semaphore_mem>>)
    %c2_i32 = arith.constant 2 : i32
    %4 = tpu.memref_slice %arg18[%c2_i32] : memref<4x!tpu.dma_semaphore, #tpu.memory_space<semaphore_mem>> -> memref<1x!tpu.dma_semaphore, #tpu.memory_space<semaphore_mem>>
    %5 = tpu.memref_squeeze %4 : memref<1x!tpu.dma_semaphore, #tpu.memory_space<semaphore_mem>> -> memref<!tpu.dma_semaphore, #tpu.memory_space<semaphore_mem>>
    tpu.enqueue_dma source(%arg6 : memref<256x512xbf16, #tpu.memory_space<any>>) target(%arg13 : memref<256x512xbf16, #tpu.memory_space<vmem>>) target_semaphore(%5 : memref<!tpu.dma_semaphore, #tpu.memory_space<semaphore_mem>>)
    %c3_i32 = arith.constant 3 : i32
    %6 = tpu.memref_slice %arg18[%c3_i32] : memref<4x!tpu.dma_semaphore, #tpu.memory_space<semaphore_mem>> -> memref<1x!tpu.dma_semaphore, #tpu.memory_space<semaphore_mem>>
    %7 = tpu.memref_squeeze %6 : memref<1x!tpu.dma_semaphore, #tpu.memory_space<semaphore_mem>> -> memref<!tpu.dma_semaphore, #tpu.memory_space<semaphore_mem>>
    tpu.enqueue_dma source(%arg8 : memref<128x128xbf16, #tpu.memory_space<any>>) target(%arg14 : memref<128x128xbf16, #tpu.memory_space<vmem>>) target_semaphore(%7 : memref<!tpu.dma_semaphore, #tpu.memory_space<semaphore_mem>>)
    %c0_i32_0 = arith.constant 0 : i32
    %8 = tpu.memref_slice %arg18[%c0_i32_0] : memref<4x!tpu.dma_semaphore, #tpu.memory_space<semaphore_mem>> -> memref<1x!tpu.dma_semaphore, #tpu.memory_space<semaphore_mem>>
    %9 = tpu.memref_squeeze %8 : memref<1x!tpu.dma_semaphore, #tpu.memory_space<semaphore_mem>> -> memref<!tpu.dma_semaphore, #tpu.memory_space<semaphore_mem>>
    tpu.wait_dma2 semaphore(%9 : memref<!tpu.dma_semaphore, #tpu.memory_space<semaphore_mem>>) src(%arg2 : memref<1024x2048xbf16, #tpu.memory_space<any>>) dst(%arg11 : memref<1024x2048xbf16, #tpu.memory_space<vmem>>)
    %c0 = arith.constant 0 : index
    %c0_1 = arith.constant 0 : index
    %10 = vector.load %arg1[%c0, %c0_1] : memref<8x1024xf32, #tpu.memory_space<vmem>>, vector<8x1024xf32>
    %11 = arith.truncf %10 : vector<8x1024xf32> to vector<8x1024xbf16>
    %c0_2 = arith.constant 0 : index
    %c0_3 = arith.constant 0 : index
    %12 = vector.load %arg11[%c0_2, %c0_3] : memref<1024x2048xbf16, #tpu.memory_space<vmem>>, vector<1024x2048xbf16>
    %cst = arith.constant dense<0.000000e+00> : vector<8x2048xf32>
    %13 = tpu.matmul %11, %12, %cst {dimension_numbers = #tpu.dot_dimension_numbers<[1], [0], [0], [1], [0, 0, 1, 1], [], []>} : vector<8x1024xbf16>, vector<1024x2048xbf16>, vector<8x2048xf32> -> vector<8x2048xf32>
    %c0_4 = arith.constant 0 : index
    %c0_5 = arith.constant 0 : index
    %14 = vector.load %arg3[%c0_4, %c0_5] : memref<1x2048xf32, #tpu.memory_space<vmem>>, vector<1x2048xf32>
    %15 = vector.broadcast %14 : vector<1x2048xf32> to vector<8x2048xf32>
    %16 = arith.addf %13, %15 : vector<8x2048xf32>
    %17 = math.tanh %16 : vector<8x2048xf32>
    %18 = vector.extract_strided_slice %17 {offsets = [0, 0], sizes = [8, 512], strides = [1, 1]} : vector<8x2048xf32> to vector<8x512xf32>
    %c0_6 = arith.constant 0 : index
    %c0_7 = arith.constant 0 : index
    %19 = vector.load %arg15[%c0_6, %c0_7] : memref<32x512xf32, #tpu.memory_space<vmem>>, vector<8x512xf32>
    tpu.vector_store %arg15[%c0_6, %c0_7], %18 {strides = array<i32>} : memref<32x512xf32, #tpu.memory_space<vmem>>, vector<8x512xf32>,
    %20 = vector.extract_strided_slice %17 {offsets = [0, 512], sizes = [8, 512], strides = [1, 1]} : vector<8x2048xf32> to vector<8x512xf32>
    %c8 = arith.constant 8 : index
    %c0_8 = arith.constant 0 : index
    %21 = vector.load %arg15[%c8, %c0_8] : memref<32x512xf32, #tpu.memory_space<vmem>>, vector<8x512xf32>
    tpu.vector_store %arg15[%c8, %c0_8], %20 {strides = array<i32>} : memref<32x512xf32, #tpu.memory_space<vmem>>, vector<8x512xf32>,
    %22 = vector.extract_strided_slice %17 {offsets = [0, 1024], sizes = [8, 512], strides = [1, 1]} : vector<8x2048xf32> to vector<8x512xf32>
    %c16 = arith.constant 16 : index
    %c0_9 = arith.constant 0 : index
    %23 = vector.load %arg15[%c16, %c0_9] : memref<32x512xf32, #tpu.memory_space<vmem>>, vector<8x512xf32>
    tpu.vector_store %arg15[%c16, %c0_9], %22 {strides = array<i32>} : memref<32x512xf32, #tpu.memory_space<vmem>>, vector<8x512xf32>,
    %24 = vector.extract_strided_slice %17 {offsets = [0, 1536], sizes = [8, 512], strides = [1, 1]} : vector<8x2048xf32> to vector<8x512xf32>
    %c24 = arith.constant 24 : index
    %c0_10 = arith.constant 0 : index
    %25 = vector.load %arg15[%c24, %c0_10] : memref<32x512xf32, #tpu.memory_space<vmem>>, vector<8x512xf32>
    tpu.vector_store %arg15[%c24, %c0_10], %24 {strides = array<i32>} : memref<32x512xf32, #tpu.memory_space<vmem>>, vector<8x512xf32>,
    %c1_i32_11 = arith.constant 1 : i32
    %26 = tpu.memref_slice %arg18[%c1_i32_11] : memref<4x!tpu.dma_semaphore, #tpu.memory_space<semaphore_mem>> -> memref<1x!tpu.dma_semaphore, #tpu.memory_space<semaphore_mem>>
    %27 = tpu.memref_squeeze %26 : memref<1x!tpu.dma_semaphore, #tpu.memory_space<semaphore_mem>> -> memref<!tpu.dma_semaphore, #tpu.memory_space<semaphore_mem>>
    tpu.wait_dma2 semaphore(%27 : memref<!tpu.dma_semaphore, #tpu.memory_space<semaphore_mem>>) src(%arg4 : memref<512x1024xbf16, #tpu.memory_space<any>>) dst(%arg12 : memref<512x1024xbf16, #tpu.memory_space<vmem>>)
    %c0_12 = arith.constant 0 : index
    %c0_13 = arith.constant 0 : index
    %28 = vector.load %arg15[%c0_12, %c0_13] : memref<32x512xf32, #tpu.memory_space<vmem>>, vector<32x512xf32>
    %29 = arith.truncf %28 : vector<32x512xf32> to vector<32x512xbf16>
    %c0_14 = arith.constant 0 : index
    %c0_15 = arith.constant 0 : index
    %30 = vector.load %arg12[%c0_14, %c0_15] : memref<512x1024xbf16, #tpu.memory_space<vmem>>, vector<512x1024xbf16>
    %cst_16 = arith.constant dense<0.000000e+00> : vector<32x1024xf32>
    %31 = tpu.matmul %29, %30, %cst_16 {dimension_numbers = #tpu.dot_dimension_numbers<[1], [0], [0], [1], [0, 0, 1, 1], [], []>} : vector<32x512xbf16>, vector<512x1024xbf16>, vector<32x1024xf32> -> vector<32x1024xf32>
    %c0_17 = arith.constant 0 : index
    %c0_18 = arith.constant 0 : index
    %32 = vector.load %arg5[%c0_17, %c0_18] : memref<1x1024xf32, #tpu.memory_space<vmem>>, vector<1x1024xf32>
    %33 = vector.broadcast %32 : vector<1x1024xf32> to vector<32x1024xf32>
    %34 = arith.addf %31, %33 : vector<32x1024xf32>
    %35 = math.tanh %34 : vector<32x1024xf32>
    %36 = vector.extract_strided_slice %35 {offsets = [0, 0], sizes = [32, 256], strides = [1, 1]} : vector<32x1024xf32> to vector<32x256xf32>
    %c0_19 = arith.constant 0 : index
    %c0_20 = arith.constant 0 : index
    %37 = vector.load %arg16[%c0_19, %c0_20] : memref<128x256xf32, #tpu.memory_space<vmem>>, vector<32x256xf32>
    tpu.vector_store %arg16[%c0_19, %c0_20], %36 {strides = array<i32>} : memref<128x256xf32, #tpu.memory_space<vmem>>, vector<32x256xf32>,
    %38 = vector.extract_strided_slice %35 {offsets = [0, 256], sizes = [32, 256], strides = [1, 1]} : vector<32x1024xf32> to vector<32x256xf32>
    %c32 = arith.constant 32 : index
    %c0_21 = arith.constant 0 : index
    %39 = vector.load %arg16[%c32, %c0_21] : memref<128x256xf32, #tpu.memory_space<vmem>>, vector<32x256xf32>
    tpu.vector_store %arg16[%c32, %c0_21], %38 {strides = array<i32>} : memref<128x256xf32, #tpu.memory_space<vmem>>, vector<32x256xf32>,
    %40 = vector.extract_strided_slice %35 {offsets = [0, 512], sizes = [32, 256], strides = [1, 1]} : vector<32x1024xf32> to vector<32x256xf32>
    %c64 = arith.constant 64 : index
    %c0_22 = arith.constant 0 : index
    %41 = vector.load %arg16[%c64, %c0_22] : memref<128x256xf32, #tpu.memory_space<vmem>>, vector<32x256xf32>
    tpu.vector_store %arg16[%c64, %c0_22], %40 {strides = array<i32>} : memref<128x256xf32, #tpu.memory_space<vmem>>, vector<32x256xf32>,
    %42 = vector.extract_strided_slice %35 {offsets = [0, 768], sizes = [32, 256], strides = [1, 1]} : vector<32x1024xf32> to vector<32x256xf32>
    %c96 = arith.constant 96 : index
    %c0_23 = arith.constant 0 : index
    %43 = vector.load %arg16[%c96, %c0_23] : memref<128x256xf32, #tpu.memory_space<vmem>>, vector<32x256xf32>
    tpu.vector_store %arg16[%c96, %c0_23], %42 {strides = array<i32>} : memref<128x256xf32, #tpu.memory_space<vmem>>, vector<32x256xf32>,
    %c2_i32_24 = arith.constant 2 : i32
    %44 = tpu.memref_slice %arg18[%c2_i32_24] : memref<4x!tpu.dma_semaphore, #tpu.memory_space<semaphore_mem>> -> memref<1x!tpu.dma_semaphore, #tpu.memory_space<semaphore_mem>>
    %45 = tpu.memref_squeeze %44 : memref<1x!tpu.dma_semaphore, #tpu.memory_space<semaphore_mem>> -> memref<!tpu.dma_semaphore, #tpu.memory_space<semaphore_mem>>
    tpu.wait_dma2 semaphore(%45 : memref<!tpu.dma_semaphore, #tpu.memory_space<semaphore_mem>>) src(%arg6 : memref<256x512xbf16, #tpu.memory_space<any>>) dst(%arg13 : memref<256x512xbf16, #tpu.memory_space<vmem>>)
    %c0_25 = arith.constant 0 : index
    %c0_26 = arith.constant 0 : index
    %46 = vector.load %arg16[%c0_25, %c0_26] : memref<128x256xf32, #tpu.memory_space<vmem>>, vector<128x256xf32>
    %47 = arith.truncf %46 : vector<128x256xf32> to vector<128x256xbf16>
    %c0_27 = arith.constant 0 : index
    %c0_28 = arith.constant 0 : index
    %48 = vector.load %arg13[%c0_27, %c0_28] : memref<256x512xbf16, #tpu.memory_space<vmem>>, vector<256x512xbf16>
    %cst_29 = arith.constant dense<0.000000e+00> : vector<128x512xf32>
    %49 = tpu.matmul %47, %48, %cst_29 {dimension_numbers = #tpu.dot_dimension_numbers<[1], [0], [0], [1], [0, 0, 1, 1], [], []>} : vector<128x256xbf16>, vector<256x512xbf16>, vector<128x512xf32> -> vector<128x512xf32>
    %c0_30 = arith.constant 0 : index
    %c0_31 = arith.constant 0 : index
    %50 = vector.load %arg7[%c0_30, %c0_31] : memref<1x512xf32, #tpu.memory_space<vmem>>, vector<1x512xf32>
    %51 = vector.broadcast %50 : vector<1x512xf32> to vector<128x512xf32>
    %52 = arith.addf %49, %51 : vector<128x512xf32>
    %53 = math.tanh %52 : vector<128x512xf32>
    %54 = vector.extract_strided_slice %53 {offsets = [0, 0], sizes = [128, 128], strides = [1, 1]} : vector<128x512xf32> to vector<128x128xf32>
    %c0_32 = arith.constant 0 : index
    %c0_33 = arith.constant 0 : index
    %55 = vector.load %arg17[%c0_32, %c0_33] : memref<512x128xf32, #tpu.memory_space<vmem>>, vector<128x128xf32>
    tpu.vector_store %arg17[%c0_32, %c0_33], %54 {strides = array<i32>} : memref<512x128xf32, #tpu.memory_space<vmem>>, vector<128x128xf32>,
    %56 = vector.extract_strided_slice %53 {offsets = [0, 128], sizes = [128, 128], strides = [1, 1]} : vector<128x512xf32> to vector<128x128xf32>
    %c128 = arith.constant 128 : index
    %c0_34 = arith.constant 0 : index
    %57 = vector.load %arg17[%c128, %c0_34] : memref<512x128xf32, #tpu.memory_space<vmem>>, vector<128x128xf32>
    tpu.vector_store %arg17[%c128, %c0_34], %56 {strides = array<i32>} : memref<512x128xf32, #tpu.memory_space<vmem>>, vector<128x128xf32>,
    %58 = vector.extract_strided_slice %53 {offsets = [0, 256], sizes = [128, 128], strides = [1, 1]} : vector<128x512xf32> to vector<128x128xf32>
    %c256 = arith.constant 256 : index
    %c0_35 = arith.constant 0 : index
    %59 = vector.load %arg17[%c256, %c0_35] : memref<512x128xf32, #tpu.memory_space<vmem>>, vector<128x128xf32>
    tpu.vector_store %arg17[%c256, %c0_35], %58 {strides = array<i32>} : memref<512x128xf32, #tpu.memory_space<vmem>>, vector<128x128xf32>,
    %60 = vector.extract_strided_slice %53 {offsets = [0, 384], sizes = [128, 128], strides = [1, 1]} : vector<128x512xf32> to vector<128x128xf32>
    %c384 = arith.constant 384 : index
    %c0_36 = arith.constant 0 : index
    %61 = vector.load %arg17[%c384, %c0_36] : memref<512x128xf32, #tpu.memory_space<vmem>>, vector<128x128xf32>
    tpu.vector_store %arg17[%c384, %c0_36], %60 {strides = array<i32>} : memref<512x128xf32, #tpu.memory_space<vmem>>, vector<128x128xf32>,
    %c3_i32_37 = arith.constant 3 : i32
    %62 = tpu.memref_slice %arg18[%c3_i32_37] : memref<4x!tpu.dma_semaphore, #tpu.memory_space<semaphore_mem>> -> memref<1x!tpu.dma_semaphore, #tpu.memory_space<semaphore_mem>>
    %63 = tpu.memref_squeeze %62 : memref<1x!tpu.dma_semaphore, #tpu.memory_space<semaphore_mem>> -> memref<!tpu.dma_semaphore, #tpu.memory_space<semaphore_mem>>
    tpu.wait_dma2 semaphore(%63 : memref<!tpu.dma_semaphore, #tpu.memory_space<semaphore_mem>>) src(%arg8 : memref<128x128xbf16, #tpu.memory_space<any>>) dst(%arg14 : memref<128x128xbf16, #tpu.memory_space<vmem>>)
    %c0_38 = arith.constant 0 : index
    %c0_39 = arith.constant 0 : index
    %64 = vector.load %arg17[%c0_38, %c0_39] : memref<512x128xf32, #tpu.memory_space<vmem>>, vector<512x128xf32>
    %65 = arith.truncf %64 : vector<512x128xf32> to vector<512x128xbf16>
    %c0_40 = arith.constant 0 : index
    %c0_41 = arith.constant 0 : index
    %66 = vector.load %arg14[%c0_40, %c0_41] : memref<128x128xbf16, #tpu.memory_space<vmem>>, vector<128x128xbf16>
    %cst_42 = arith.constant dense<0.000000e+00> : vector<512x128xf32>
    %67 = tpu.matmul %65, %66, %cst_42 {dimension_numbers = #tpu.dot_dimension_numbers<[1], [0], [0], [1], [0, 0, 1, 1], [], []>} : vector<512x128xbf16>, vector<128x128xbf16>, vector<512x128xf32> -> vector<512x128xf32>
    %c0_43 = arith.constant 0 : index
    %c0_44 = arith.constant 0 : index
    %68 = vector.load %arg9[%c0_43, %c0_44] : memref<1x128xf32, #tpu.memory_space<vmem>>, vector<1x128xf32>
    %69 = vector.broadcast %68 : vector<1x128xf32> to vector<512x128xf32>
    %70 = arith.addf %67, %69 : vector<512x128xf32>
    %71 = math.tanh %70 : vector<512x128xf32>
    %c0_45 = arith.constant 0 : index
    %c0_46 = arith.constant 0 : index
    %72 = vector.load %arg10[%c0_45, %c0_46] : memref<512x128xf32, #tpu.memory_space<vmem>>, vector<512x128xf32>
    tpu.vector_store %arg10[%c0_45, %c0_46], %71 {strides = array<i32>} : memref<512x128xf32, #tpu.memory_space<vmem>>, vector<512x128xf32>,
    return
  }
  func.func @transform_0(%arg0: i32) -> (i32, i32) {
    %c0_i32 = arith.constant 0 : i32
    %c0_i32_0 = arith.constant 0 : i32
    %c0_i32_1 = arith.constant 0 : i32
    return %c0_i32, %c0_i32_0 : i32, i32
  }
  func.func @transform_2(%arg0: i32) -> (i32, i32) {
    %c0_i32 = arith.constant 0 : i32
    %c0_i32_0 = arith.constant 0 : i32
    %c0_i32_1 = arith.constant 0 : i32
    return %c0_i32, %c0_i32_0 : i32, i32
  }
  func.func @transform_4(%arg0: i32) -> (i32, i32) {
    %c0_i32 = arith.constant 0 : i32
    %c0_i32_0 = arith.constant 0 : i32
    %c0_i32_1 = arith.constant 0 : i32
    return %c0_i32, %c0_i32_0 : i32, i32
  }
  func.func @transform_6(%arg0: i32) -> (i32, i32) {
    %c0_i32 = arith.constant 0 : i32
    %c0_i32_0 = arith.constant 0 : i32
    %c0_i32_1 = arith.constant 0 : i32
    return %c0_i32, %c0_i32_0 : i32, i32
  }
  func.func @transform_8(%arg0: i32) -> (i32, i32) {
    %c0_i32 = arith.constant 0 : i32
    %c0_i32_0 = arith.constant 0 : i32
    %c0_i32_1 = arith.constant 0 : i32
    return %c0_i32, %c0_i32_0 : i32, i32
  }
  func.func @transform_9(%arg0: i32) -> (i32, i32) {
    %c0_i32 = arith.constant 0 : i32
    %c0_i32_0 = arith.constant 0 : i32
    %c0_i32_1 = arith.constant 0 : i32
    return %c0_i32, %c0_i32_0 : i32, i32
  }
}

</mosaic_0001>

<llo_original>
// kernel: decoder_forward.1
$region0: #{decoder_forward.1}
  #allocation0 [shape = 'u32[]', space=smem, size = 0x4, offset = 0x4, fixed_abs, tag = 'smem constant byte address 0x4 - core index']
  #allocation1 [shape = 'u32[72,128]{1,0:T(1,128)}', space=vmem, size = 0x9000, scoped, tag = 'internal scratch']
  #allocation2 [shape = 'bf16[1024,2048]{1,0:T(8,128)(2,1)}', space=vmem, size = 0x400000, scoped, tag = 'scratch operand']
  #allocation3 [shape = 'bf16[512,1024]{1,0:T(8,128)(2,1)}', space=vmem, size = 0x100000, scoped, tag = 'scratch operand']
  #allocation4 [shape = 'bf16[256,512]{1,0:T(8,128)(2,1)}', space=vmem, size = 0x40000, scoped, tag = 'scratch operand']
  #allocation5 [shape = 'bf16[128,128]{1,0:T(8,128)(2,1)}', space=vmem, size = 0x8000, scoped, tag = 'scratch operand']
  #allocation6 [shape = 'f32[32,512]{1,0:T(8,128)}', space=vmem, size = 0x10000, scoped, tag = 'scratch operand']
  #allocation7 [shape = 'f32[128,256]{1,0:T(8,128)}', space=vmem, size = 0x20000, scoped, tag = 'scratch operand']
  #allocation8 [shape = 'f32[512,128]{1,0:T(8,128)}', space=vmem, size = 0x40000, scoped, tag = 'scratch operand']
  #allocation9 [shape = 's32[4]{0}', space=sflag, size = 0x10, scoped, tag = 'scratch operand']
  #allocation17 [shape = 's32[]', space=sflag, size = 0x4, offset = 0, fixed_abs, tag = 'sflag constant byte address 0x0 - dummy sync flag']
  #allocation18 [shape = 's32[]', space=sflag, size = 0x4, offset = 0, fixed_abs, tag = 'sflag constant byte address 0x0 - dummy sync flag']
  #allocation19 [shape = 'u32[]', space=smem, size = 0x4, offset = 0x44, fixed_abs, tag = 'smem constant byte address 0x44 - assertion arg 0']
  #allocation20 [shape = 'u32[]', space=smem, size = 0x4, offset = 0x48, fixed_abs, tag = 'smem constant byte address 0x48 - assertion arg 1']
  #allocation21 [shape = 's32[]', space=sflag, size = 0x4, offset = 0, fixed_abs, tag = 'sflag constant byte address 0x0 - dummy sync flag']
  #allocation22 [shape = 's32[]', space=sflag, size = 0x4, offset = 0, fixed_abs, tag = 'sflag constant byte address 0x0 - dummy sync flag']
  #allocation23 [shape = 's32[]', space=sflag, size = 0x4, offset = 0, fixed_abs, tag = 'sflag constant byte address 0x0 - dummy sync flag']
  #allocation24 [shape = 's32[]', space=sflag, size = 0x4, offset = 0, fixed_abs, tag = 'sflag constant byte address 0x0 - dummy sync flag']
  #allocation25 [shape = 's32[]', space=sflag, size = 0x4, offset = 0, fixed_abs, tag = 'sflag constant byte address 0x0 - dummy sync flag']
  #allocation26 [shape = 's32[]', space=sflag, size = 0x4, offset = 0, fixed_abs, tag = 'sflag constant byte address 0x0 - dummy sync flag']
  %s0 = inlined_call_operand.vmem [shape: f32[8,1024], index: 0, kind: input, shape index: {}]
  %s1 = inlined_call_operand.hbm [shape: bf16[1024,2048], index: 1, kind: input, shape index: {}]
  %s2 = inlined_call_operand.hbm [shape: f32[1,2048], index: 2, kind: input, shape index: {}]
  %s3 = inlined_call_operand.hbm [shape: bf16[512,1024], index: 3, kind: input, shape index: {}]
  %s4 = inlined_call_operand.hbm [shape: f32[1,1024], index: 4, kind: input, shape index: {}]
  %s5 = inlined_call_operand.hbm [shape: bf16[256,512], index: 5, kind: input, shape index: {}]
  %s6 = inlined_call_operand.hbm [shape: f32[1,512], index: 6, kind: input, shape index: {}]
  %s7 = inlined_call_operand.hbm [shape: bf16[128,128], index: 7, kind: input, shape index: {}]
  %s8 = inlined_call_operand.hbm [shape: f32[1,128], index: 8, kind: input, shape index: {}]
  %s9 = inlined_call_operand.vmem [shape: f32[512,128], index: 9, kind: output, shape index: {}]
  %s10 = sld [smem:[#allocation0]]
  $region62: #{decoder_forward.1} parent=0
    _
  %s12 = ssub.s32 1, %s10
  %s13 = scalar_select 0, %s12, %s10
  $region1: #{decoder_forward.1} parent=0
    #allocation10 [shape = 'u8[8192]{0}', space=vmem, size = 0x2000, scoped, tag = 'input window, operand 2, single buffered']
    #allocation11 [shape = 's32[1]{0}', space=sflag, size = 0x4, scoped, tag = 'scoped memory for decoder_forward.1']
    #allocation12 [shape = 'u8[4096]{0}', space=vmem, size = 0x1000, scoped, tag = 'input window, operand 4, single buffered']
    #allocation13 [shape = 's32[1]{0}', space=sflag, size = 0x4, scoped, tag = 'scoped memory for decoder_forward.1']
    #allocation14 [shape = 'u8[2048]{0}', space=vmem, size = 0x800, scoped, tag = 'input window, operand 6, single buffered']
    #allocation15 [shape = 'u8[512]{0}', space=vmem, size = 0x400, scoped, tag = 'input window, operand 8, single buffered']
    #allocation16 [shape = 's32[1]{0}', space=sflag, size = 0x4, scoped, tag = 'scoped memory for decoder_forward.1']
    %14 = vsyncpa [#allocation11], 0
    %15 = vsyncpa [#allocation13], 0
    %16 = vsyncpa [#allocation16], 0
    // Predicated region
    $region2: #{decoder_forward.1} parent=1 // pred_check
      _
    $region3: #{decoder_forward.1} parent=1 // pred_check_branch
      %18 = sbr.rel (0) target = $region5
    $region4: #{decoder_forward.1} parent=1 // pred_region
      _
    $region5: #{decoder_forward.1} parent=1 // pred_fallthru
      _
    // Predicated region
    $region6: #{decoder_forward.1} parent=1 // pred_check
      _
    $region7: #{decoder_forward.1} parent=1 // pred_check_branch
      %20 = sbr.rel (0) target = $region9
    $region8: #{decoder_forward.1} parent=1 // pred_region
      %22 = vsyncadd [#allocation11], 0
      %s24 = sshll.u32 %s2, 4
      %s25 = int_to_ptr.hbm [resolvable:$true] %s24
      %s26 = sshll.u32 [#allocation10], 4
      %s27 = int_to_ptr.vmem [resolvable:$true] %s26
      %29 = dma.hbm_to_vmem [thread:$0]  %s25, 256, %s27, [#allocation11]
    $region9: #{decoder_forward.1} parent=1 // pred_fallthru
      _
    // Predicated region
    $region10: #{decoder_forward.1} parent=1 // pred_check
      _
    $region11: #{decoder_forward.1} parent=1 // pred_check_branch
      %31 = sbr.rel (0) target = $region13
    $region12: #{decoder_forward.1} parent=1 // pred_region
      %33 = vsyncadd [#allocation13], 0
      %s35 = sshll.u32 %s4, 4
      %s36 = int_to_ptr.hbm [resolvable:$true] %s35
      %s37 = sshll.u32 [#allocation12], 4
      %s38 = int_to_ptr.vmem [resolvable:$true] %s37
      %40 = dma.hbm_to_vmem [thread:$0]  %s36, 128, %s38, [#allocation13]
    $region13: #{decoder_forward.1} parent=1 // pred_fallthru
      _
    // Predicated region
    $region14: #{decoder_forward.1} parent=1 // pred_check
      _
    $region15: #{decoder_forward.1} parent=1 // pred_check_branch
      %42 = sbr.rel (0) target = $region17
    $region16: #{decoder_forward.1} parent=1 // pred_region
      %44 = vsyncadd [#allocation13], 0
      %s46 = sshll.u32 %s6, 4
      %s47 = int_to_ptr.hbm [resolvable:$true] %s46
      %s48 = sshll.u32 [#allocation14], 4
      %s49 = int_to_ptr.vmem [resolvable:$true] %s48
      %51 = dma.hbm_to_vmem [thread:$0]  %s47, 64, %s49, [#allocation13]
    $region17: #{decoder_forward.1} parent=1 // pred_fallthru
      _
    // Predicated region
    $region18: #{decoder_forward.1} parent=1 // pred_check
      _
    $region19: #{decoder_forward.1} parent=1 // pred_check_branch
      %53 = sbr.rel (0) target = $region21
    $region20: #{decoder_forward.1} parent=1 // pred_region
      %55 = vsyncadd [#allocation16], 0
      %s57 = sshll.u32 %s8, 4
      %s58 = int_to_ptr.hbm [resolvable:$true] %s57
      %s59 = sshll.u32 [#allocation15], 4
      %s60 = int_to_ptr.vmem [resolvable:$true] %s59
      %62 = dma.hbm_to_vmem [thread:$0]  %s58, 16, %s60, [#allocation16]
    $region21: #{decoder_forward.1} parent=1 // pred_fallthru
      _
    // Predicated region
    $region22: #{decoder_forward.1} parent=1 // pred_check
      _
    $region23: #{decoder_forward.1} parent=1 // pred_check_branch
      %64 = sbr.rel (0) target = $region25
    $region24: #{decoder_forward.1} parent=1 // pred_region
      %66 = dma.done [#allocation11], 256
    $region25: #{decoder_forward.1} parent=1 // pred_fallthru
      _
    // Predicated region
    $region26: #{decoder_forward.1} parent=1 // pred_check
      _
    $region27: #{decoder_forward.1} parent=1 // pred_check_branch
      %68 = sbr.rel (0) target = $region29
    $region28: #{decoder_forward.1} parent=1 // pred_region
      %70 = dma.done [#allocation13], 128
    $region29: #{decoder_forward.1} parent=1 // pred_fallthru
      _
    // Predicated region
    $region30: #{decoder_forward.1} parent=1 // pred_check
      _
    $region31: #{decoder_forward.1} parent=1 // pred_check_branch
      %72 = sbr.rel (0) target = $region33
    $region32: #{decoder_forward.1} parent=1 // pred_region
      %74 = dma.done [#allocation13], 64
    $region33: #{decoder_forward.1} parent=1 // pred_fallthru
      _
    // Predicated region
    $region34: #{decoder_forward.1} parent=1 // pred_check
      _
    $region35: #{decoder_forward.1} parent=1 // pred_check_branch
      %76 = sbr.rel (0) target = $region37
    $region36: #{decoder_forward.1} parent=1 // pred_region
      %78 = dma.done [#allocation16], 16
    $region37: #{decoder_forward.1} parent=1 // pred_fallthru
      _
    // Predicated region
    $region38: #{decoder_forward.1} parent=1 // pred_check
      _
    $region39: #{decoder_forward.1} parent=1 // pred_check_branch
      %80 = sbr.rel target = $region41
    $region40: #{decoder_forward.1} parent=1 // pred_region
      %81 = sst [smem:[#allocation19]] [#allocation18]
      %82 = sst [smem:[#allocation20]] [#allocation17]
    $region41: #{decoder_forward.1} parent=1 // pred_fallthru
      _
    %84 = shalt.err (0)
    %s86 = sshll.u32 %s1, 4
    %s87 = int_to_ptr.hbm [resolvable:$true] %s86
    %s88 = sshll.u32 [#allocation2], 4
    %s89 = int_to_ptr.vmem [resolvable:$true] %s88
    %91 = dma.hbm_to_vmem [thread:$0]  %s87, 131072, %s89, [#allocation9]
    %s92 = scalar_lea.sflag [#allocation9], 1
    // Predicated region
    $region42: #{decoder_forward.1} parent=1 // pred_check
      _
    $region43: #{decoder_forward.1} parent=1 // pred_check_branch
      %94 = sbr.rel target = $region45
    $region44: #{decoder_forward.1} parent=1 // pred_region
      %95 = sst [smem:[#allocation19]] [#allocation22]
      %96 = sst [smem:[#allocation20]] [#allocation21]
    $region45: #{decoder_forward.1} parent=1 // pred_fallthru
      _
    %98 = shalt.err (0)
    %s100 = sshll.u32 %s3, 4
    %s101 = int_to_ptr.hbm [resolvable:$true] %s100
    %s102 = sshll.u32 [#allocation3], 4
    %s103 = int_to_ptr.vmem [resolvable:$true] %s102
    %105 = dma.hbm_to_vmem [thread:$0]  %s101, 32768, %s103, %s92
    %s106 = scalar_lea.sflag [#allocation9], 2
    // Predicated region
    $region46: #{decoder_forward.1} parent=1 // pred_check
      _
    $region47: #{decoder_forward.1} parent=1 // pred_check_branch
      %108 = sbr.rel target = $region49
    $region48: #{decoder_forward.1} parent=1 // pred_region
      %109 = sst [smem:[#allocation19]] [#allocation24]
      %110 = sst [smem:[#allocation20]] [#allocation23]
    $region49: #{decoder_forward.1} parent=1 // pred_fallthru
      _
    %112 = shalt.err (0)
    %s114 = sshll.u32 %s5, 4
    %s115 = int_to_ptr.hbm [resolvable:$true] %s114
    %s116 = sshll.u32 [#allocation4], 4
    %s117 = int_to_ptr.vmem [resolvable:$true] %s116
    %119 = dma.hbm_to_vmem [thread:$0]  %s115, 8192, %s117, %s106
    %s120 = scalar_lea.sflag [#allocation9], 3
    // Predicated region
    $region50: #{decoder_forward.1} parent=1 // pred_check
      _
    $region51: #{decoder_forward.1} parent=1 // pred_check_branch
      %122 = sbr.rel target = $region53
    $region52: #{decoder_forward.1} parent=1 // pred_region
      %123 = sst [smem:[#allocation19]] [#allocation26]
      %124 = sst [smem:[#allocation20]] [#allocation25]
    $region53: #{decoder_forward.1} parent=1 // pred_fallthru
      _
    %126 = shalt.err (0)
    %s128 = sshll.u32 %s7, 4
    %s129 = int_to_ptr.hbm [resolvable:$true] %s128
    %s130 = sshll.u32 [#allocation5], 4
    %s131 = int_to_ptr.vmem [resolvable:$true] %s130
    %133 = dma.hbm_to_vmem [thread:$0]  %s129, 1024, %s131, %s120
    %s134 = smul.u32 4, 128
    %s135 = smul.u32 %s134, 16
    %s136 = sshll.u32 %s135, 4
    %137 = dma.done [#allocation9], %s136
    %v138 = vld [vmem:[%s0] sm:$0xff]
    %v139 = vld [vmem:[%s0 + $0x8] sm:$0xff]
    %v140 = vld [vmem:[%s0 + $0x10] sm:$0xff]
    %v141 = vld [vmem:[%s0 + $0x18] sm:$0xff]
    %v142 = vld [vmem:[%s0 + $0x20] sm:$0xff]
    %v143 = vld [vmem:[%s0 + $0x28] sm:$0xff]
    %v144 = vld [vmem:[%s0 + $0x30] sm:$0xff]
    %v145 = vld [vmem:[%s0 + $0x38] sm:$0xff]
    %v146 = vpack.c.bf16 %v138, %v138
    %v147 = vpack.c.bf16 %v139, %v139
    %v148 = vpack.c.bf16 %v140, %v140
    %v149 = vpack.c.bf16 %v141, %v141
    %v150 = vpack.c.bf16 %v142, %v142
    %v151 = vpack.c.bf16 %v143, %v143
    %v152 = vpack.c.bf16 %v144, %v144
    %v153 = vpack.c.bf16 %v145, %v145
    %v154 = vld [vmem:[#allocation2] sm:$0xff]
    %v155 = vld [vmem:[#allocation2 + $0x8] sm:$0xff]
    %v156 = vld [vmem:[#allocation2 + $0x10] sm:$0xff]
    %v157 = vld [vmem:[#allocation2 + $0x18] sm:$0xff]
    %v158 = vld [vmem:[#allocation2 + $0x20] sm:$0xff]
    %v159 = vld [vmem:[#allocation2 + $0x28] sm:$0xff]
    %v160 = vld [vmem:[#allocation2 + $0x30] sm:$0xff]
    %v161 = vld [vmem:[#allocation2 + $0x38] sm:$0xff]
    %v162 = vld [vmem:[#allocation2 + $0x40] sm:$0xff]
    %v163 = vld [vmem:[#allocation2 + $0x48] sm:$0xff]
    %v164 = vld [vmem:[#allocation2 + $0x50] sm:$0xff]
    %v165 = vld [vmem:[#allocation2 + $0x58] sm:$0xff]
    %v166 = vld [vmem:[#allocation2 + $0x60] sm:$0xff]
    %v167 = vld [vmem:[#allocation2 + $0x68] sm:$0xff]
    %v168 = vld [vmem:[#allocation2 + $0x70] sm:$0xff]
    %v169 = vld [vmem:[#allocation2 + $0x78] sm:$0xff]
    %v170 = vld [vmem:[#allocation2 + $0x80] sm:$0xff]
    %v171 = vld [vmem:[#allocation2 + $0x88] sm:$0xff]
    %v172 = vld [vmem:[#allocation2 + $0x90] sm:$0xff]
    %v173 = vld [vmem:[#allocation2 + $0x98] sm:$0xff]
    %v174 = vld [vmem:[#allocation2 + $0xa0] sm:$0xff]
    %v175 = vld [vmem:[#allocation2 + $0xa8] sm:$0xff]
    %v176 = vld [vmem:[#allocation2 + $0xb0] sm:$0xff]
    %v177 = vld [vmem:[#allocation2 + $0xb8] sm:$0xff]
    %v178 = vld [vmem:[#allocation2 + $0xc0] sm:$0xff]
    %v179 = vld [vmem:[#allocation2 + $0xc8] sm:$0xff]
    %v180 = vld [vmem:[#allocation2 + $0xd0] sm:$0xff]
    %v181 = vld [vmem:[#allocation2 + $0xd8] sm:$0xff]
    %v182 = vld [vmem:[#allocation2 + $0xe0] sm:$0xff]
    %v183 = vld [vmem:[#allocation2 + $0xe8] sm:$0xff]
    %v184 = vld [vmem:[#allocation2 + $0xf0] sm:$0xff]
    %v185 = vld [vmem:[#allocation2 + $0xf8] sm:$0xff]
    %v186 = vld [vmem:[#allocation2 + $0x100] sm:$0xff]
    %v187 = vld [vmem:[#allocation2 + $0x108] sm:$0xff]
    %v188 = vld [vmem:[#allocation2 + $0x110] sm:$0xff]
    %v189 = vld [vmem:[#allocation2 + $0x118] sm:$0xff]
    %v190 = vld [vmem:[#allocation2 + $0x120] sm:$0xff]
    %v191 = vld [vmem:[#allocation2 + $0x128] sm:$0xff]
    %v192 = vld [vmem:[#allocation2 + $0x130] sm:$0xff]
    %v193 = vld [vmem:[#allocation2 + $0x138] sm:$0xff]
    %v194 = vld [vmem:[#allocation2 + $0x140] sm:$0xff]
    %v195 = vld [vmem:[#allocation2 + $0x148] sm:$0xff]
    %v196 = vld [vmem:[#allocation2 + $0x150] sm:$0xff]
    %v197 = vld [vmem:[#allocation2 + $0x158] sm:$0xff]
    %v198 = vld [vmem:[#allocation2 + $0x160] sm:$0xff]
    %v199 = vld [vmem:[#allocation2 + $0x168] sm:$0xff]
    %v200 = vld [vmem:[#allocation2 + $0x170] sm:$0xff]
    %v201 = vld [vmem:[#allocation2 + $0x178] sm:$0xff]
    %v202 = vld [vmem:[#allocation2 + $0x180] sm:$0xff]
    %v203 = vld [vmem:[#allocation2 + $0x188] sm:$0xff]
    %v204 = vld [vmem:[#allocation2 + $0x190] sm:$0xff]
    %v205 = vld [vmem:[#allocation2 + $0x198] sm:$0xff]
    %v206 = vld [vmem:[#allocation2 + $0x1a0] sm:$0xff]
    %v207 = vld [vmem:[#allocation2 + $0x1a8] sm:$0xff]
    %v208 = vld [vmem:[#allocation2 + $0x1b0] sm:$0xff]
    %v209 = vld [vmem:[#allocation2 + $0x1b8] sm:$0xff]
    %v210 = vld [vmem:[#allocation2 + $0x1c0] sm:$0xff]
    %v211 = vld [vmem:[#allocation2 + $0x1c8] sm:$0xff]
    %v212 = vld [vmem:[#allocation2 + $0x1d0] sm:$0xff]
    %v213 = vld [vmem:[#allocation2 + $0x1d8] sm:$0xff]
    %v214 = vld [vmem:[#allocation2 + $0x1e0] sm:$0xff]
    %v215 = vld [vmem:[#allocation2 + $0x1e8] sm:$0xff]
    %v216 = vld [vmem:[#allocation2 + $0x1f0] sm:$0xff]
    %v217 = vld [vmem:[#allocation2 + $0x1f8] sm:$0xff]
    %v218 = vld [vmem:[#allocation2 + $0x200] sm:$0xff]
    %v219 = vld [vmem:[#allocation2 + $0x208] sm:$0xff]
    %v220 = vld [vmem:[#allocation2 + $0x210] sm:$0xff]
    %v221 = vld [vmem:[#allocation2 + $0x218] sm:$0xff]
    %v222 = vld [vmem:[#allocation2 + $0x220] sm:$0xff]
    %v223 = vld [vmem:[#allocation2 + $0x228] sm:$0xff]
    %v224 = vld [vmem:[#allocation2 + $0x230] sm:$0xff]
    %v225 = vld [vmem:[#allocation2 + $0x238] sm:$0xff]
    %v226 = vld [vmem:[#allocation2 + $0x240] sm:$0xff]
    %v227 = vld [vmem:[#allocation2 + $0x248] sm:$0xff]
    %v228 = vld [vmem:[#allocation2 + $0x250] sm:$0xff]
    %v229 = vld [vmem:[#allocation2 + $0x258] sm:$0xff]
    %v230 = vld [vmem:[#allocation2 + $0x260] sm:$0xff]
    %v231 = vld [vmem:[#allocation2 + $0x268] sm:$0xff]
    %v232 = vld [vmem:[#allocation2 + $0x270] sm:$0xff]
    %v233 = vld [vmem:[#allocation2 + $0x278] sm:$0xff]
    %v234 = vld [vmem:[#allocation2 + $0x280] sm:$0xff]
    %v235 = vld [vmem:[#allocation2 + $0x288] sm:$0xff]
    %v236 = vld [vmem:[#allocation2 + $0x290] sm:$0xff]
    %v237 = vld [vmem:[#allocation2 + $0x298] sm:$0xff]
    %v238 = vld [vmem:[#allocation2 + $0x2a0] sm:$0xff]
    %v239 = vld [vmem:[#allocation2 + $0x2a8] sm:$0xff]
    %v240 = vld [vmem:[#allocation2 + $0x2b0] sm:$0xff]
    %v241 = vld [vmem:[#allocation2 + $0x2b8] sm:$0xff]
    %v242 = vld [vmem:[#allocation2 + $0x2c0] sm:$0xff]
    %v243 = vld [vmem:[#allocation2 + $0x2c8] sm:$0xff]
    %v244 = vld [vmem:[#allocation2 + $0x2d0] sm:$0xff]
    %v245 = vld [vmem:[#allocation2 + $0x2d8] sm:$0xff]
    %v246 = vld [vmem:[#allocation2 + $0x2e0] sm:$0xff]
    %v247 = vld [vmem:[#allocation2 + $0x2e8] sm:$0xff]
    %v248 = vld [vmem:[#allocation2 + $0x2f0] sm:$0xff]
    %v249 = vld [vmem:[#allocation2 + $0x2f8] sm:$0xff]
    %v250 = vld [vmem:[#allocation2 + $0x300] sm:$0xff]
    %v251 = vld [vmem:[#allocation2 + $0x308] sm:$0xff]
    %v252 = vld [vmem:[#allocation2 + $0x310] sm:$0xff]
    %v253 = vld [vmem:[#allocation2 + $0x318] sm:$0xff]
    %v254 = vld [vmem:[#allocation2 + $0x320] sm:$0xff]
    %v255 = vld [vmem:[#allocation2 + $0x328] sm:$0xff]
    %v256 = vld [vmem:[#allocation2 + $0x330] sm:$0xff]
    %v257 = vld [vmem:[#allocation2 + $0x338] sm:$0xff]
    %v258 = vld [vmem:[#allocation2 + $0x340] sm:$0xff]
    %v259 = vld [vmem:[#allocation2 + $0x348] sm:$0xff]
    %v260 = vld [vmem:[#allocation2 + $0x350] sm:$0xff]
    %v261 = vld [vmem:[#allocation2 + $0x358] sm:$0xff]
    %v262 = vld [vmem:[#allocation2 + $0x360] sm:$0xff]
    %v263 = vld [vmem:[#allocation2 + $0x368] sm:$0xff]
    %v264 = vld [vmem:[#allocation2 + $0x370] sm:$0xff]
    %v265 = vld [vmem:[#allocation2 + $0x378] sm:$0xff]
    %v266 = vld [vmem:[#allocation2 + $0x380] sm:$0xff]
    %v267 = vld [vmem:[#allocation2 + $0x388] sm:$0xff]
    %v268 = vld [vmem:[#allocation2 + $0x390] sm:$0xff]
    %v269 = vld [vmem:[#allocation2 + $0x398] sm:$0xff]
    %v270 = vld [vmem:[#allocation2 + $0x3a0] sm:$0xff]
    %v271 = vld [vmem:[#allocation2 + $0x3a8] sm:$0xff]
    %v272 = vld [vmem:[#allocation2 + $0x3b0] sm:$0xff]
    %v273 = vld [vmem:[#allocation2 + $0x3b8] sm:$0xff]
    %v274 = vld [vmem:[#allocation2 + $0x3c0] sm:$0xff]
    %v275 = vld [vmem:[#allocation2 + $0x3c8] sm:$0xff]
    %v276 = vld [vmem:[#allocation2 + $0x3d0] sm:$0xff]
    %v277 = vld [vmem:[#allocation2 + $0x3d8] sm:$0xff]
    %v278 = vld [vmem:[#allocation2 + $0x3e0] sm:$0xff]
    %v279 = vld [vmem:[#allocation2 + $0x3e8] sm:$0xff]
    %v280 = vld [vmem:[#allocation2 + $0x3f0] sm:$0xff]
    %v281 = vld [vmem:[#allocation2 + $0x3f8] sm:$0xff]
    %v282 = vld [vmem:[#allocation2 + $0x400] sm:$0xff]
    %v283 = vld [vmem:[#allocation2 + $0x408] sm:$0xff]
    %v284 = vld [vmem:[#allocation2 + $0x410] sm:$0xff]
    %v285 = vld [vmem:[#allocation2 + $0x418] sm:$0xff]
    %v286 = vld [vmem:[#allocation2 + $0x420] sm:$0xff]
    %v287 = vld [vmem:[#allocation2 + $0x428] sm:$0xff]
    %v288 = vld [vmem:[#allocation2 + $0x430] sm:$0xff]
    %v289 = vld [vmem:[#allocation2 + $0x438] sm:$0xff]
    %v290 = vld [vmem:[#allocation2 + $0x440] sm:$0xff]
    %v291 = vld [vmem:[#allocation2 + $0x448] sm:$0xff]
    %v292 = vld [vmem:[#allocation2 + $0x450] sm:$0xff]
    %v293 = vld [vmem:[#allocation2 + $0x458] sm:$0xff]
    %v294 = vld [vmem:[#allocation2 + $0x460] sm:$0xff]
    %v295 = vld [vmem:[#allocation2 + $0x468] sm:$0xff]
    %v296 = vld [vmem:[#allocation2 + $0x470] sm:$0xff]
    %v297 = vld [vmem:[#allocation2 + $0x478] sm:$0xff]
    %v298 = vld [vmem:[#allocation2 + $0x480] sm:$0xff]
    %v299 = vld [vmem:[#allocation2 + $0x488] sm:$0xff]
    %v300 = vld [vmem:[#allocation2 + $0x490] sm:$0xff]
    %v301 = vld [vmem:[#allocation2 + $0x498] sm:$0xff]
    %v302 = vld [vmem:[#allocation2 + $0x4a0] sm:$0xff]
    %v303 = vld [vmem:[#allocation2 + $0x4a8] sm:$0xff]
    %v304 = vld [vmem:[#allocation2 + $0x4b0] sm:$0xff]
    %v305 = vld [vmem:[#allocation2 + $0x4b8] sm:$0xff]
    %v306 = vld [vmem:[#allocation2 + $0x4c0] sm:$0xff]
    %v307 = vld [vmem:[#allocation2 + $0x4c8] sm:$0xff]
    %v308 = vld [vmem:[#allocation2 + $0x4d0] sm:$0xff]
    %v309 = vld [vmem:[#allocation2 + $0x4d8] sm:$0xff]
    %v310 = vld [vmem:[#allocation2 + $0x4e0] sm:$0xff]
    %v311 = vld [vmem:[#allocation2 + $0x4e8] sm:$0xff]
    %v312 = vld [vmem:[#allocation2 + $0x4f0] sm:$0xff]
    %v313 = vld [vmem:[#allocation2 + $0x4f8] sm:$0xff]
    %v314 = vld [vmem:[#allocation2 + $0x500] sm:$0xff]
    %v315 = vld [vmem:[#allocation2 + $0x508] sm:$0xff]
    %v316 = vld [vmem:[#allocation2 + $0x510] sm:$0xff]
    %v317 = vld [vmem:[#allocation2 + $0x518] sm:$0xff]
    %v318 = vld [vmem:[#allocation2 + $0x520] sm:$0xff]
    %v319 = vld [vmem:[#allocation2 + $0x528] sm:$0xff]
    %v320 = vld [vmem:[#allocation2 + $0x530] sm:$0xff]
    %v321 = vld [vmem:[#allocation2 + $0x538] sm:$0xff]
    %v322 = vld [vmem:[#allocation2 + $0x540] sm:$0xff]
    %v323 = vld [vmem:[#allocation2 + $0x548] sm:$0xff]
    %v324 = vld [vmem:[#allocation2 + $0x550] sm:$0xff]
    %v325 = vld [vmem:[#allocation2 + $0x558] sm:$0xff]
    %v326 = vld [vmem:[#allocation2 + $0x560] sm:$0xff]
    %v327 = vld [vmem:[#allocation2 + $0x568] sm:$0xff]
    %v328 = vld [vmem:[#allocation2 + $0x570] sm:$0xff]
    %v329 = vld [vmem:[#allocation2 + $0x578] sm:$0xff]
    %v330 = vld [vmem:[#allocation2 + $0x580] sm:$0xff]
    %v331 = vld [vmem:[#allocation2 + $0x588] sm:$0xff]
    %v332 = vld [vmem:[#allocation2 + $0x590] sm:$0xff]
    %v333 = vld [vmem:[#allocation2 + $0x598] sm:$0xff]
    %v334 = vld [vmem:[#allocation2 + $0x5a0] sm:$0xff]
    %v335 = vld [vmem:[#allocation2 + $0x5a8] sm:$0xff]
    %v336 = vld [vmem:[#allocation2 + $0x5b0] sm:$0xff]
    %v337 = vld [vmem:[#allocation2 + $0x5b8] sm:$0xff]
    %v338 = vld [vmem:[#allocation2 + $0x5c0] sm:$0xff]
    %v339 = vld [vmem:[#allocation2 + $0x5c8] sm:$0xff]
    %v340 = vld [vmem:[#allocation2 + $0x5d0] sm:$0xff]
    %v341 = vld [vmem:[#allocation2 + $0x5d8] sm:$0xff]
    %v342 = vld [vmem:[#allocation2 + $0x5e0] sm:$0xff]
    %v343 = vld [vmem:[#allocation2 + $0x5e8] sm:$0xff]
    %v344 = vld [vmem:[#allocation2 + $0x5f0] sm:$0xff]
    %v345 = vld [vmem:[#allocation2 + $0x5f8] sm:$0xff]
    %v346 = vld [vmem:[#allocation2 + $0x600] sm:$0xff]
    %v347 = vld [vmem:[#allocation2 + $0x608] sm:$0xff]
    %v348 = vld [vmem:[#allocation2 + $0x610] sm:$0xff]
    %v349 = vld [vmem:[#allocation2 + $0x618] sm:$0xff]
    %v350 = vld [vmem:[#allocation2 + $0x620] sm:$0xff]
    %v351 = vld [vmem:[#allocation2 + $0x628] sm:$0xff]
    %v352 = vld [vmem:[#allocation2 + $0x630] sm:$0xff]
    %v353 = vld [vmem:[#allocation2 + $0x638] sm:$0xff]
    %v354 = vld [vmem:[#allocation2 + $0x640] sm:$0xff]
    %v355 = vld [vmem:[#allocation2 + $0x648] sm:$0xff]
    %v356 = vld [vmem:[#allocation2 + $0x650] sm:$0xff]
    %v357 = vld [vmem:[#allocation2 + $0x658] sm:$0xff]
    %v358 = vld [vmem:[#allocation2 + $0x660] sm:$0xff]
    %v359 = vld [vmem:[#allocation2 + $0x668] sm:$0xff]
    %v360 = vld [vmem:[#allocation2 + $0x670] sm:$0xff]
    %v361 = vld [vmem:[#allocation2 + $0x678] sm:$0xff]
    %v362 = vld [vmem:[#allocation2 + $0x680] sm:$0xff]
    %v363 = vld [vmem:[#allocation2 + $0x688] sm:$0xff]
    %v364 = vld [vmem:[#allocation2 + $0x690] sm:$0xff]
    %v365 = vld [vmem:[#allocation2 + $0x698] sm:$0xff]
    %v366 = vld [vmem:[#allocation2 + $0x6a0] sm:$0xff]
    %v367 = vld [vmem:[#allocation2 + $0x6a8] sm:$0xff]
    %v368 = vld [vmem:[#allocation2 + $0x6b0] sm:$0xff]
    %v369 = vld [vmem:[#allocation2 + $0x6b8] sm:$0xff]
    %v370 = vld [vmem:[#allocation2 + $0x6c0] sm:$0xff]
    %v371 = vld [vmem:[#allocation2 + $0x6c8] sm:$0xff]
    %v372 = vld [vmem:[#allocation2 + $0x6d0] sm:$0xff]
    %v373 = vld [vmem:[#allocation2 + $0x6d8] sm:$0xff]
    %v374 = vld [vmem:[#allocation2 + $0x6e0] sm:$0xff]
    %v375 = vld [vmem:[#allocation2 + $0x6e8] sm:$0xff]
    %v376 = vld [vmem:[#allocation2 + $0x6f0] sm:$0xff]
    %v377 = vld [vmem:[#allocation2 + $0x6f8] sm:$0xff]
    %v378 = vld [vmem:[#allocation2 + $0x700] sm:$0xff]
    %v379 = vld [vmem:[#allocation2 + $0x708] sm:$0xff]
    %v380 = vld [vmem:[#allocation2 + $0x710] sm:$0xff]
    %v381 = vld [vmem:[#allocation2 + $0x718] sm:$0xff]
    %v382 = vld [vmem:[#allocation2 + $0x720] sm:$0xff]
    %v383 = vld [vmem:[#allocation2 + $0x728] sm:$0xff]
    %v384 = vld [vmem:[#allocation2 + $0x730] sm:$0xff]
    %v385 = vld [vmem:[#allocation2 + $0x738] sm:$0xff]
    %v386 = vld [vmem:[#allocation2 + $0x740] sm:$0xff]
    %v387 = vld [vmem:[#allocation2 + $0x748] sm:$0xff]
    %v388 = vld [vmem:[#allocation2 + $0x750] sm:$0xff]
    %v389 = vld [vmem:[#allocation2 + $0x758] sm:$0xff]
    %v390 = vld [vmem:[#allocation2 + $0x760] sm:$0xff]
    %v391 = vld [vmem:[#allocation2 + $0x768] sm:$0xff]
    %v392 = vld [vmem:[#allocation2 + $0x770] sm:$0xff]
    %v393 = vld [vmem:[#allocation2 + $0x778] sm:$0xff]
    %v394 = vld [vmem:[#allocation2 + $0x780] sm:$0xff]
    %v395 = vld [vmem:[#allocation2 + $0x788] sm:$0xff]
    %v396 = vld [vmem:[#allocation2 + $0x790] sm:$0xff]
    %v397 = vld [vmem:[#allocation2 + $0x798] sm:$0xff]
    %v398 = vld [vmem:[#allocation2 + $0x7a0] sm:$0xff]
    %v399 = vld [vmem:[#allocation2 + $0x7a8] sm:$0xff]
    %v400 = vld [vmem:[#allocation2 + $0x7b0] sm:$0xff]
    %v401 = vld [vmem:[#allocation2 + $0x7b8] sm:$0xff]
    %v402 = vld [vmem:[#allocation2 + $0x7c0] sm:$0xff]
    %v403 = vld [vmem:[#allocation2 + $0x7c8] sm:$0xff]
    %v404 = vld [vmem:[#allocation2 + $0x7d0] sm:$0xff]
    %v405 = vld [vmem:[#allocation2 + $0x7d8] sm:$0xff]
    %v406 = vld [vmem:[#allocation2 + $0x7e0] sm:$0xff]
    %v407 = vld [vmem:[#allocation2 + $0x7e8] sm:$0xff]
    %v408 = vld [vmem:[#allocation2 + $0x7f0] sm:$0xff]
    %v409 = vld [vmem:[#allocation2 + $0x7f8] sm:$0xff]
    %v410 = vld [vmem:[#allocation2 + $0x800] sm:$0xff]
    %v411 = vld [vmem:[#allocation2 + $0x808] sm:$0xff]
    %v412 = vld [vmem:[#allocation2 + $0x810] sm:$0xff]
    %v413 = vld [vmem:[#allocation2 + $0x818] sm:$0xff]
    %v414 = vld [vmem:[#allocation2 + $0x820] sm:$0xff]
    %v415 = vld [vmem:[#allocation2 + $0x828] sm:$0xff]
    %v416 = vld [vmem:[#allocation2 + $0x830] sm:$0xff]
    %v417 = vld [vmem:[#allocation2 + $0x838] sm:$0xff]
    %v418 = vld [vmem:[#allocation2 + $0x840] sm:$0xff]
    %v419 = vld [vmem:[#allocation2 + $0x848] sm:$0xff]
    %v420 = vld [vmem:[#allocation2 + $0x850] sm:$0xff]
    %v421 = vld [vmem:[#allocation2 + $0x858] sm:$0xff]
    %v422 = vld [vmem:[#allocation2 + $0x860] sm:$0xff]
    %v423 = vld [vmem:[#allocation2 + $0x868] sm:$0xff]
    %v424 = vld [vmem:[#allocation2 + $0x870] sm:$0xff]
    %v425 = vld [vmem:[#allocation2 + $0x878] sm:$0xff]
    %v426 = vld [vmem:[#allocation2 + $0x880] sm:$0xff]
    %v427 = vld [vmem:[#allocation2 + $0x888] sm:$0xff]
    %v428 = vld [vmem:[#allocation2 + $0x890] sm:$0xff]
    %v429 = vld [vmem:[#allocation2 + $0x898] sm:$0xff]
    %v430 = vld [vmem:[#allocation2 + $0x8a0] sm:$0xff]
    %v431 = vld [vmem:[#allocation2 + $0x8a8] sm:$0xff]
    %v432 = vld [vmem:[#allocation2 + $0x8b0] sm:$0xff]
    %v433 = vld [vmem:[#allocation2 + $0x8b8] sm:$0xff]
    %v434 = vld [vmem:[#allocation2 + $0x8c0] sm:$0xff]
    %v435 = vld [vmem:[#allocation2 + $0x8c8] sm:$0xff]
    %v436 = vld [vmem:[#allocation2 + $0x8d0] sm:$0xff]
    %v437 = vld [vmem:[#allocation2 + $0x8d8] sm:$0xff]
    %v438 = vld [vmem:[#allocation2 + $0x8e0] sm:$0xff]
    %v439 = vld [vmem:[#allocation2 + $0x8e8] sm:$0xff]
    %v440 = vld [vmem:[#allocation2 + $0x8f0] sm:$0xff]
    %v441 = vld [vmem:[#allocation2 + $0x8f8] sm:$0xff]
    %v442 = vld [vmem:[#allocation2 + $0x900] sm:$0xff]
    %v443 = vld [vmem:[#allocation2 + $0x908] sm:$0xff]
    %v444 = vld [vmem:[#allocation2 + $0x910] sm:$0xff]
    %v445 = vld [vmem:[#allocation2 + $0x918] sm:$0xff]
    %v446 = vld [vmem:[#allocation2 + $0x920] sm:$0xff]
    %v447 = vld [vmem:[#allocation2 + $0x928] sm:$0xff]
    %v448 = vld [vmem:[#allocation2 + $0x930] sm:$0xff]
    %v449 = vld [vmem:[#allocation2 + $0x938] sm:$0xff]
    %v450 = vld [vmem:[#allocation2 + $0x940] sm:$0xff]
    %v451 = vld [vmem:[#allocation2 + $0x948] sm:$0xff]
    %v452 = vld [vmem:[#allocation2 + $0x950] sm:$0xff]
    %v453 = vld [vmem:[#allocation2 + $0x958] sm:$0xff]
    %v454 = vld [vmem:[#allocation2 + $0x960] sm:$0xff]
    %v455 = vld [vmem:[#allocation2 + $0x968] sm:$0xff]
    %v456 = vld [vmem:[#allocation2 + $0x970] sm:$0xff]
    %v457 = vld [vmem:[#allocation2 + $0x978] sm:$0xff]
    %v458 = vld [vmem:[#allocation2 + $0x980] sm:$0xff]
    %v459 = vld [vmem:[#allocation2 + $0x988] sm:$0xff]
    %v460 = vld [vmem:[#allocation2 + $0x990] sm:$0xff]
    %v461 = vld [vmem:[#allocation2 + $0x998] sm:$0xff]
    %v462 = vld [vmem:[#allocation2 + $0x9a0] sm:$0xff]
    %v463 = vld [vmem:[#allocation2 + $0x9a8] sm:$0xff]
    %v464 = vld [vmem:[#allocation2 + $0x9b0] sm:$0xff]
    %v465 = vld [vmem:[#allocation2 + $0x9b8] sm:$0xff]
    %v466 = vld [vmem:[#allocation2 + $0x9c0] sm:$0xff]
    %v467 = vld [vmem:[#allocation2 + $0x9c8] sm:$0xff]
    %v468 = vld [vmem:[#allocation2 + $0x9d0] sm:$0xff]
    %v469 = vld [vmem:[#allocation2 + $0x9d8] sm:$0xff]
    %v470 = vld [vmem:[#allocation2 + $0x9e0] sm:$0xff]
    %v471 = vld [vmem:[#allocation2 + $0x9e8] sm:$0xff]
    %v472 = vld [vmem:[#allocation2 + $0x9f0] sm:$0xff]
    %v473 = vld [vmem:[#allocation2 + $0x9f8] sm:$0xff]
    %v474 = vld [vmem:[#allocation2 + $0xa00] sm:$0xff]
    %v475 = vld [vmem:[#allocation2 + $0xa08] sm:$0xff]
    %v476 = vld [vmem:[#allocation2 + $0xa10] sm:$0xff]
    %v477 = vld [vmem:[#allocation2 + $0xa18] sm:$0xff]
    %v478 = vld [vmem:[#allocation2 + $0xa20] sm:$0xff]
    %v479 = vld [vmem:[#allocation2 + $0xa28] sm:$0xff]
    %v480 = vld [vmem:[#allocation2 + $0xa30] sm:$0xff]
    %v481 = vld [vmem:[#allocation2 + $0xa38] sm:$0xff]
    %v482 = vld [vmem:[#allocation2 + $0xa40] sm:$0xff]
    %v483 = vld [vmem:[#allocation2 + $0xa48] sm:$0xff]
    %v484 = vld [vmem:[#allocation2 + $0xa50] sm:$0xff]
    %v485 = vld [vmem:[#allocation2 + $0xa58] sm:$0xff]
    %v486 = vld [vmem:[#allocation2 + $0xa60] sm:$0xff]
    %v487 = vld [vmem:[#allocation2 + $0xa68] sm:$0xff]
    %v488 = vld [vmem:[#allocation2 + $0xa70] sm:$0xff]
    %v489 = vld [vmem:[#allocation2 + $0xa78] sm:$0xff]
    %v490 = vld [vmem:[#allocation2 + $0xa80] sm:$0xff]
    %v491 = vld [vmem:[#allocation2 + $0xa88] sm:$0xff]
    %v492 = vld [vmem:[#allocation2 + $0xa90] sm:$0xff]
    %v493 = vld [vmem:[#allocation2 + $0xa98] sm:$0xff]
    %v494 = vld [vmem:[#allocation2 + $0xaa0] sm:$0xff]
    %v495 = vld [vmem:[#allocation2 + $0xaa8] sm:$0xff]
    %v496 = vld [vmem:[#allocation2 + $0xab0] sm:$0xff]
    %v497 = vld [vmem:[#allocation2 + $0xab8] sm:$0xff]
    %v498 = vld [vmem:[#allocation2 + $0xac0] sm:$0xff]
    %v499 = vld [vmem:[#allocation2 + $0xac8] sm:$0xff]
    %v500 = vld [vmem:[#allocation2 + $0xad0] sm:$0xff]
    %v501 = vld [vmem:[#allocation2 + $0xad8] sm:$0xff]
    %v502 = vld [vmem:[#allocation2 + $0xae0] sm:$0xff]
    %v503 = vld [vmem:[#allocation2 + $0xae8] sm:$0xff]
    %v504 = vld [vmem:[#allocation2 + $0xaf0] sm:$0xff]
    %v505 = vld [vmem:[#allocation2 + $0xaf8] sm:$0xff]
    %v506 = vld [vmem:[#allocation2 + $0xb00] sm:$0xff]
    %v507 = vld [vmem:[#allocation2 + $0xb08] sm:$0xff]
    %v508 = vld [vmem:[#allocation2 + $0xb10] sm:$0xff]
    %v509 = vld [vmem:[#allocation2 + $0xb18] sm:$0xff]
    %v510 = vld [vmem:[#allocation2 + $0xb20] sm:$0xff]
    %v511 = vld [vmem:[#allocation2 + $0xb28] sm:$0xff]
    %v512 = vld [vmem:[#allocation2 + $0xb30] sm:$0xff]
    %v513 = vld [vmem:[#allocation2 + $0xb38] sm:$0xff]
    %v514 = vld [vmem:[#allocation2 + $0xb40] sm:$0xff]
    %v515 = vld [vmem:[#allocation2 + $0xb48] sm:$0xff]
    %v516 = vld [vmem:[#allocation2 + $0xb50] sm:$0xff]
    %v517 = vld [vmem:[#allocation2 + $0xb58] sm:$0xff]
    %v518 = vld [vmem:[#allocation2 + $0xb60] sm:$0xff]
    %v519 = vld [vmem:[#allocation2 + $0xb68] sm:$0xff]
    %v520 = vld [vmem:[#allocation2 + $0xb70] sm:$0xff]
    %v521 = vld [vmem:[#allocation2 + $0xb78] sm:$0xff]
    %v522 = vld [vmem:[#allocation2 + $0xb80] sm:$0xff]
    %v523 = vld [vmem:[#allocation2 + $0xb88] sm:$0xff]
    %v524 = vld [vmem:[#allocation2 + $0xb90] sm:$0xff]
    %v525 = vld [vmem:[#allocation2 + $0xb98] sm:$0xff]
    %v526 = vld [vmem:[#allocation2 + $0xba0] sm:$0xff]
    %v527 = vld [vmem:[#allocation2 + $0xba8] sm:$0xff]
    %v528 = vld [vmem:[#allocation2 + $0xbb0] sm:$0xff]
    %v529 = vld [vmem:[#allocation2 + $0xbb8] sm:$0xff]
    %v530 = vld [vmem:[#allocation2 + $0xbc0] sm:$0xff]
    %v531 = vld [vmem:[#allocation2 + $0xbc8] sm:$0xff]
    %v532 = vld [vmem:[#allocation2 + $0xbd0] sm:$0xff]
    %v533 = vld [vmem:[#allocation2 + $0xbd8] sm:$0xff]
    %v534 = vld [vmem:[#allocation2 + $0xbe0] sm:$0xff]
    %v535 = vld [vmem:[#allocation2 + $0xbe8] sm:$0xff]
    %v536 = vld [vmem:[#allocation2 + $0xbf0] sm:$0xff]
    %v537 = vld [vmem:[#allocation2 + $0xbf8] sm:$0xff]
    %v538 = vld [vmem:[#allocation2 + $0xc00] sm:$0xff]
    %v539 = vld [vmem:[#allocation2 + $0xc08] sm:$0xff]
    %v540 = vld [vmem:[#allocation2 + $0xc10] sm:$0xff]
    %v541 = vld [vmem:[#allocation2 + $0xc18] sm:$0xff]
    %v542 = vld [vmem:[#allocation2 + $0xc20] sm:$0xff]
    %v543 = vld [vmem:[#allocation2 + $0xc28] sm:$0xff]
    %v544 = vld [vmem:[#allocation2 + $0xc30] sm:$0xff]
    %v545 = vld [vmem:[#allocation2 + $0xc38] sm:$0xff]
    %v546 = vld [vmem:[#allocation2 + $0xc40] sm:$0xff]
    %v547 = vld [vmem:[#allocation2 + $0xc48] sm:$0xff]
    %v548 = vld [vmem:[#allocation2 + $0xc50] sm:$0xff]
    %v549 = vld [vmem:[#allocation2 + $0xc58] sm:$0xff]
    %v550 = vld [vmem:[#allocation2 + $0xc60] sm:$0xff]
    %v551 = vld [vmem:[#allocation2 + $0xc68] sm:$0xff]
    %v552 = vld [vmem:[#allocation2 + $0xc70] sm:$0xff]
    %v553 = vld [vmem:[#allocation2 + $0xc78] sm:$0xff]
    %v554 = vld [vmem:[#allocation2 + $0xc80] sm:$0xff]
    %v555 = vld [vmem:[#allocation2 + $0xc88] sm:$0xff]
    %v556 = vld [vmem:[#allocation2 + $0xc90] sm:$0xff]
    %v557 = vld [vmem:[#allocation2 + $0xc98] sm:$0xff]
    %v558 = vld [vmem:[#allocation2 + $0xca0] sm:$0xff]
    %v559 = vld [vmem:[#allocation2 + $0xca8] sm:$0xff]
    %v560 = vld [vmem:[#allocation2 + $0xcb0] sm:$0xff]
    %v561 = vld [vmem:[#allocation2 + $0xcb8] sm:$0xff]
    %v562 = vld [vmem:[#allocation2 + $0xcc0] sm:$0xff]
    %v563 = vld [vmem:[#allocation2 + $0xcc8] sm:$0xff]
    %v564 = vld [vmem:[#allocation2 + $0xcd0] sm:$0xff]
    %v565 = vld [vmem:[#allocation2 + $0xcd8] sm:$0xff]
    %v566 = vld [vmem:[#allocation2 + $0xce0] sm:$0xff]
    %v567 = vld [vmem:[#allocation2 + $0xce8] sm:$0xff]
    %v568 = vld [vmem:[#allocation2 + $0xcf0] sm:$0xff]
    %v569 = vld [vmem:[#allocation2 + $0xcf8] sm:$0xff]
    %v570 = vld [vmem:[#allocation2 + $0xd00] sm:$0xff]
    %v571 = vld [vmem:[#allocation2 + $0xd08] sm:$0xff]
    %v572 = vld [vmem:[#allocation2 + $0xd10] sm:$0xff]
    %v573 = vld [vmem:[#allocation2 + $0xd18] sm:$0xff]
    %v574 = vld [vmem:[#allocation2 + $0xd20] sm:$0xff]
    %v575 = vld [vmem:[#allocation2 + $0xd28] sm:$0xff]
    %v576 = vld [vmem:[#allocation2 + $0xd30] sm:$0xff]
    %v577 = vld [vmem:[#allocation2 + $0xd38] sm:$0xff]
    %v578 = vld [vmem:[#allocation2 + $0xd40] sm:$0xff]
    %v579 = vld [vmem:[#allocation2 + $0xd48] sm:$0xff]
    %v580 = vld [vmem:[#allocation2 + $0xd50] sm:$0xff]
    %v581 = vld [vmem:[#allocation2 + $0xd58] sm:$0xff]
    %v582 = vld [vmem:[#allocation2 + $0xd60] sm:$0xff]
    %v583 = vld [vmem:[#allocation2 + $0xd68] sm:$0xff]
    %v584 = vld [vmem:[#allocation2 + $0xd70] sm:$0xff]
    %v585 = vld [vmem:[#allocation2 + $0xd78] sm:$0xff]
    %v586 = vld [vmem:[#allocation2 + $0xd80] sm:$0xff]
    %v587 = vld [vmem:[#allocation2 + $0xd88] sm:$0xff]
    %v588 = vld [vmem:[#allocation2 + $0xd90] sm:$0xff]
    %v589 = vld [vmem:[#allocation2 + $0xd98] sm:$0xff]
    %v590 = vld [vmem:[#allocation2 + $0xda0] sm:$0xff]
    %v591 = vld [vmem:[#allocation2 + $0xda8] sm:$0xff]
    %v592 = vld [vmem:[#allocation2 + $0xdb0] sm:$0xff]
    %v593 = vld [vmem:[#allocation2 + $0xdb8] sm:$0xff]
    %v594 = vld [vmem:[#allocation2 + $0xdc0] sm:$0xff]
    %v595 = vld [vmem:[#allocation2 + $0xdc8] sm:$0xff]
    %v596 = vld [vmem:[#allocation2 + $0xdd0] sm:$0xff]
    %v597 = vld [vmem:[#allocation2 + $0xdd8] sm:$0xff]
    %v598 = vld [vmem:[#allocation2 + $0xde0] sm:$0xff]
    %v599 = vld [vmem:[#allocation2 + $0xde8] sm:$0xff]
    %v600 = vld [vmem:[#allocation2 + $0xdf0] sm:$0xff]
    %v601 = vld [vmem:[#allocation2 + $0xdf8] sm:$0xff]
    %v602 = vld [vmem:[#allocation2 + $0xe00] sm:$0xff]
    %v603 = vld [vmem:[#allocation2 + $0xe08] sm:$0xff]
    %v604 = vld [vmem:[#allocation2 + $0xe10] sm:$0xff]
    %v605 = vld [vmem:[#allocation2 + $0xe18] sm:$0xff]
    %v606 = vld [vmem:[#allocation2 + $0xe20] sm:$0xff]
    %v607 = vld [vmem:[#allocation2 + $0xe28] sm:$0xff]
    %v608 = vld [vmem:[#allocation2 + $0xe30] sm:$0xff]
    %v609 = vld [vmem:[#allocation2 + $0xe38] sm:$0xff]
    %v610 = vld [vmem:[#allocation2 + $0xe40] sm:$0xff]
    %v611 = vld [vmem:[#allocation2 + $0xe48] sm:$0xff]
    %v612 = vld [vmem:[#allocation2 + $0xe50] sm:$0xff]
    %v613 = vld [vmem:[#allocation2 + $0xe58] sm:$0xff]
    %v614 = vld [vmem:[#allocation2 + $0xe60] sm:$0xff]
    %v615 = vld [vmem:[#allocation2 + $0xe68] sm:$0xff]
    %v616 = vld [vmem:[#allocation2 + $0xe70] sm:$0xff]
    %v617 = vld [vmem:[#allocation2 + $0xe78] sm:$0xff]
    %v618 = vld [vmem:[#allocation2 + $0xe80] sm:$0xff]
    %v619 = vld [vmem:[#allocation2 + $0xe88] sm:$0xff]
    %v620 = vld [vmem:[#allocation2 + $0xe90] sm:$0xff]
    %v621 = vld [vmem:[#allocation2 + $0xe98] sm:$0xff]
    %v622 = vld [vmem:[#allocation2 + $0xea0] sm:$0xff]
    %v623 = vld [vmem:[#allocation2 + $0xea8] sm:$0xff]
    %v624 = vld [vmem:[#allocation2 + $0xeb0] sm:$0xff]
    %v625 = vld [vmem:[#allocation2 + $0xeb8] sm:$0xff]
    %v626 = vld [vmem:[#allocation2 + $0xec0] sm:$0xff]
    %v627 = vld [vmem:[#allocation2 + $0xec8] sm:$0xff]
    %v628 = vld [vmem:[#allocation2 + $0xed0] sm:$0xff]
    %v629 = vld [vmem:[#allocation2 + $0xed8] sm:$0xff]
    %v630 = vld [vmem:[#allocation2 + $0xee0] sm:$0xff]
    %v631 = vld [vmem:[#allocation2 + $0xee8] sm:$0xff]
    %v632 = vld [vmem:[#allocation2 + $0xef0] sm:$0xff]
    %v633 = vld [vmem:[#allocation2 + $0xef8] sm:$0xff]
    %v634 = vld [vmem:[#allocation2 + $0xf00] sm:$0xff]
    %v635 = vld [vmem:[#allocation2 + $0xf08] sm:$0xff]
    %v636 = vld [vmem:[#allocation2 + $0xf10] sm:$0xff]
    %v637 = vld [vmem:[#allocation2 + $0xf18] sm:$0xff]
    %v638 = vld [vmem:[#allocation2 + $0xf20] sm:$0xff]
    %v639 = vld [vmem:[#allocation2 + $0xf28] sm:$0xff]
    %v640 = vld [vmem:[#allocation2 + $0xf30] sm:$0xff]
    %v641 = vld [vmem:[#allocation2 + $0xf38] sm:$0xff]
    %v642 = vld [vmem:[#allocation2 + $0xf40] sm:$0xff]
    %v643 = vld [vmem:[#allocation2 + $0xf48] sm:$0xff]
    %v644 = vld [vmem:[#allocation2 + $0xf50] sm:$0xff]
    %v645 = vld [vmem:[#allocation2 + $0xf58] sm:$0xff]
    %v646 = vld [vmem:[#allocation2 + $0xf60] sm:$0xff]
    %v647 = vld [vmem:[#allocation2 + $0xf68] sm:$0xff]
    %v648 = vld [vmem:[#allocation2 + $0xf70] sm:$0xff]
    %v649 = vld [vmem:[#allocation2 + $0xf78] sm:$0xff]
    %v650 = vld [vmem:[#allocation2 + $0xf80] sm:$0xff]
    %v651 = vld [vmem:[#allocation2 + $0xf88] sm:$0xff]
    %v652 = vld [vmem:[#allocation2 + $0xf90] sm:$0xff]
    %v653 = vld [vmem:[#allocation2 + $0xf98] sm:$0xff]
    %v654 = vld [vmem:[#allocation2 + $0xfa0] sm:$0xff]
    %v655 = vld [vmem:[#allocation2 + $0xfa8] sm:$0xff]
    %v656 = vld [vmem:[#allocation2 + $0xfb0] sm:$0xff]
    %v657 = vld [vmem:[#allocation2 + $0xfb8] sm:$0xff]
    %v658 = vld [vmem:[#allocation2 + $0xfc0] sm:$0xff]
    %v659 = vld [vmem:[#allocation2 + $0xfc8] sm:$0xff]
    %v660 = vld [vmem:[#allocation2 + $0xfd0] sm:$0xff]
    %v661 = vld [vmem:[#allocation2 + $0xfd8] sm:$0xff]
    %v662 = vld [vmem:[#allocation2 + $0xfe0] sm:$0xff]
    %v663 = vld [vmem:[#allocation2 + $0xfe8] sm:$0xff]
    %v664 = vld [vmem:[#allocation2 + $0xff0] sm:$0xff]
    %v665 = vld [vmem:[#allocation2 + $0xff8] sm:$0xff]
    %v666 = vld [vmem:[#allocation2 + $0x1000] sm:$0xff]
    %v667 = vld [vmem:[#allocation2 + $0x1008] sm:$0xff]
    %v668 = vld [vmem:[#allocation2 + $0x1010] sm:$0xff]
    %v669 = vld [vmem:[#allocation2 + $0x1018] sm:$0xff]
    %v670 = vld [vmem:[#allocation2 + $0x1020] sm:$0xff]
    %v671 = vld [vmem:[#allocation2 + $0x1028] sm:$0xff]
    %v672 = vld [vmem:[#allocation2 + $0x1030] sm:$0xff]
    %v673 = vld [vmem:[#allocation2 + $0x1038] sm:$0xff]
    %v674 = vld [vmem:[#allocation2 + $0x1040] sm:$0xff]
    %v675 = vld [vmem:[#allocation2 + $0x1048] sm:$0xff]
    %v676 = vld [vmem:[#allocation2 + $0x1050] sm:$0xff]
    %v677 = vld [vmem:[#allocation2 + $0x1058] sm:$0xff]
    %v678 = vld [vmem:[#allocation2 + $0x1060] sm:$0xff]
    %v679 = vld [vmem:[#allocation2 + $0x1068] sm:$0xff]
    %v680 = vld [vmem:[#allocation2 + $0x1070] sm:$0xff]
    %v681 = vld [vmem:[#allocation2 + $0x1078] sm:$0xff]
    %v682 = vld [vmem:[#allocation2 + $0x1080] sm:$0xff]
    %v683 = vld [vmem:[#allocation2 + $0x1088] sm:$0xff]
    %v684 = vld [vmem:[#allocation2 + $0x1090] sm:$0xff]
    %v685 = vld [vmem:[#allocation2 + $0x1098] sm:$0xff]
    %v686 = vld [vmem:[#allocation2 + $0x10a0] sm:$0xff]
    %v687 = vld [vmem:[#allocation2 + $0x10a8] sm:$0xff]
    %v688 = vld [vmem:[#allocation2 + $0x10b0] sm:$0xff]
    %v689 = vld [vmem:[#allocation2 + $0x10b8] sm:$0xff]
    %v690 = vld [vmem:[#allocation2 + $0x10c0] sm:$0xff]
    %v691 = vld [vmem:[#allocation2 + $0x10c8] sm:$0xff]
    %v692 = vld [vmem:[#allocation2 + $0x10d0] sm:$0xff]
    %v693 = vld [vmem:[#allocation2 + $0x10d8] sm:$0xff]
    %v694 = vld [vmem:[#allocation2 + $0x10e0] sm:$0xff]
    %v695 = vld [vmem:[#allocation2 + $0x10e8] sm:$0xff]
    %v696 = vld [vmem:[#allocation2 + $0x10f0] sm:$0xff]
    %v697 = vld [vmem:[#allocation2 + $0x10f8] sm:$0xff]
    %v698 = vld [vmem:[#allocation2 + $0x1100] sm:$0xff]
    %v699 = vld [vmem:[#allocation2 + $0x1108] sm:$0xff]
    %v700 = vld [vmem:[#allocation2 + $0x1110] sm:$0xff]
    %v701 = vld [vmem:[#allocation2 + $0x1118] sm:$0xff]
    %v702 = vld [vmem:[#allocation2 + $0x1120] sm:$0xff]
    %v703 = vld [vmem:[#allocation2 + $0x1128] sm:$0xff]
    %v704 = vld [vmem:[#allocation2 + $0x1130] sm:$0xff]
    %v705 = vld [vmem:[#allocation2 + $0x1138] sm:$0xff]
    %v706 = vld [vmem:[#allocation2 + $0x1140] sm:$0xff]
    %v707 = vld [vmem:[#allocation2 + $0x1148] sm:$0xff]
    %v708 = vld [vmem:[#allocation2 + $0x1150] sm:$0xff]
    %v709 = vld [vmem:[#allocation2 + $0x1158] sm:$0xff]
    %v710 = vld [vmem:[#allocation2 + $0x1160] sm:$0xff]
    %v711 = vld [vmem:[#allocation2 + $0x1168] sm:$0xff]
    %v712 = vld [vmem:[#allocation2 + $0x1170] sm:$0xff]
    %v713 = vld [vmem:[#allocation2 + $0x1178] sm:$0xff]
    %v714 = vld [vmem:[#allocation2 + $0x1180] sm:$0xff]
    %v715 = vld [vmem:[#allocation2 + $0x1188] sm:$0xff]
    %v716 = vld [vmem:[#allocation2 + $0x1190] sm:$0xff]
    %v717 = vld [vmem:[#allocation2 + $0x1198] sm:$0xff]
    %v718 = vld [vmem:[#allocation2 + $0x11a0] sm:$0xff]
    %v719 = vld [vmem:[#allocation2 + $0x11a8] sm:$0xff]
    %v720 = vld [vmem:[#allocation2 + $0x11b0] sm:$0xff]
    %v721 = vld [vmem:[#allocation2 + $0x11b8] sm:$0xff]
    %v722 = vld [vmem:[#allocation2 + $0x11c0] sm:$0xff]
    %v723 = vld [vmem:[#allocation2 + $0x11c8] sm:$0xff]
    %v724 = vld [vmem:[#allocation2 + $0x11d0] sm:$0xff]
    %v725 = vld [vmem:[#allocation2 + $0x11d8] sm:$0xff]
    %v726 = vld [vmem:[#allocation2 + $0x11e0] sm:$0xff]
    %v727 = vld [vmem:[#allocation2 + $0x11e8] sm:$0xff]
    %v728 = vld [vmem:[#allocation2 + $0x11f0] sm:$0xff]
    %v729 = vld [vmem:[#allocation2 + $0x11f8] sm:$0xff]
    %v730 = vld [vmem:[#allocation2 + $0x1200] sm:$0xff]
    %v731 = vld [vmem:[#allocation2 + $0x1208] sm:$0xff]
    %v732 = vld [vmem:[#allocation2 + $0x1210] sm:$0xff]
    %v733 = vld [vmem:[#allocation2 + $0x1218] sm:$0xff]
    %v734 = vld [vmem:[#allocation2 + $0x1220] sm:$0xff]
    %v735 = vld [vmem:[#allocation2 + $0x1228] sm:$0xff]
    %v736 = vld [vmem:[#allocation2 + $0x1230] sm:$0xff]
    %v737 = vld [vmem:[#allocation2 + $0x1238] sm:$0xff]
    %v738 = vld [vmem:[#allocation2 + $0x1240] sm:$0xff]
    %v739 = vld [vmem:[#allocation2 + $0x1248] sm:$0xff]
    %v740 = vld [vmem:[#allocation2 + $0x1250] sm:$0xff]
    %v741 = vld [vmem:[#allocation2 + $0x1258] sm:$0xff]
    %v742 = vld [vmem:[#allocation2 + $0x1260] sm:$0xff]
    %v743 = vld [vmem:[#allocation2 + $0x1268] sm:$0xff]
    %v744 = vld [vmem:[#allocation2 + $0x1270] sm:$0xff]
    %v745 = vld [vmem:[#allocation2 + $0x1278] sm:$0xff]
    %v746 = vld [vmem:[#allocation2 + $0x1280] sm:$0xff]
    %v747 = vld [vmem:[#allocation2 + $0x1288] sm:$0xff]
    %v748 = vld [vmem:[#allocation2 + $0x1290] sm:$0xff]
    %v749 = vld [vmem:[#allocation2 + $0x1298] sm:$0xff]
    %v750 = vld [vmem:[#allocation2 + $0x12a0] sm:$0xff]
    %v751 = vld [vmem:[#allocation2 + $0x12a8] sm:$0xff]
    %v752 = vld [vmem:[#allocation2 + $0x12b0] sm:$0xff]
    %v753 = vld [vmem:[#allocation2 + $0x12b8] sm:$0xff]
    %v754 = vld [vmem:[#allocation2 + $0x12c0] sm:$0xff]
    %v755 = vld [vmem:[#allocation2 + $0x12c8] sm:$0xff]
    %v756 = vld [vmem:[#allocation2 + $0x12d0] sm:$0xff]
    %v757 = vld [vmem:[#allocation2 + $0x12d8] sm:$0xff]
    %v758 = vld [vmem:[#allocation2 + $0x12e0] sm:$0xff]
    %v759 = vld [vmem:[#allocation2 + $0x12e8] sm:$0xff]
    %v760 = vld [vmem:[#allocation2 + $0x12f0] sm:$0xff]
    %v761 = vld [vmem:[#allocation2 + $0x12f8] sm:$0xff]
    %v762 = vld [vmem:[#allocation2 + $0x1300] sm:$0xff]
    %v763 = vld [vmem:[#allocation2 + $0x1308] sm:$0xff]
    %v764 = vld [vmem:[#allocation2 + $0x1310] sm:$0xff]
    %v765 = vld [vmem:[#allocation2 + $0x1318] sm:$0xff]
    %v766 = vld [vmem:[#allocation2 + $0x1320] sm:$0xff]
    %v767 = vld [vmem:[#allocation2 + $0x1328] sm:$0xff]
    %v768 = vld [vmem:[#allocation2 + $0x1330] sm:$0xff]
    %v769 = vld [vmem:[#allocation2 + $0x1338] sm:$0xff]
    %v770 = vld [vmem:[#allocation2 + $0x1340] sm:$0xff]
    %v771 = vld [vmem:[#allocation2 + $0x1348] sm:$0xff]
    %v772 = vld [vmem:[#allocation2 + $0x1350] sm:$0xff]
    %v773 = vld [vmem:[#allocation2 + $0x1358] sm:$0xff]
    %v774 = vld [vmem:[#allocation2 + $0x1360] sm:$0xff]
    %v775 = vld [vmem:[#allocation2 + $0x1368] sm:$0xff]
    %v776 = vld [vmem:[#allocation2 + $0x1370] sm:$0xff]
    %v777 = vld [vmem:[#allocation2 + $0x1378] sm:$0xff]
    %v778 = vld [vmem:[#allocation2 + $0x1380] sm:$0xff]
    %v779 = vld [vmem:[#allocation2 + $0x1388] sm:$0xff]
    %v780 = vld [vmem:[#allocation2 + $0x1390] sm:$0xff]
    %v781 = vld [vmem:[#allocation2 + $0x1398] sm:$0xff]
    %v782 = vld [vmem:[#allocation2 + $0x13a0] sm:$0xff]
    %v783 = vld [vmem:[#allocation2 + $0x13a8] sm:$0xff]
    %v784 = vld [vmem:[#allocation2 + $0x13b0] sm:$0xff]
    %v785 = vld [vmem:[#allocation2 + $0x13b8] sm:$0xff]
    %v786 = vld [vmem:[#allocation2 + $0x13c0] sm:$0xff]
    %v787 = vld [vmem:[#allocation2 + $0x13c8] sm:$0xff]
    %v788 = vld [vmem:[#allocation2 + $0x13d0] sm:$0xff]
    %v789 = vld [vmem:[#allocation2 + $0x13d8] sm:$0xff]
    %v790 = vld [vmem:[#allocation2 + $0x13e0] sm:$0xff]
    %v791 = vld [vmem:[#allocation2 + $0x13e8] sm:$0xff]
    %v792 = vld [vmem:[#allocation2 + $0x13f0] sm:$0xff]
    %v793 = vld [vmem:[#allocation2 + $0x13f8] sm:$0xff]
    %v794 = vld [vmem:[#allocation2 + $0x1400] sm:$0xff]
    %v795 = vld [vmem:[#allocation2 + $0x1408] sm:$0xff]
    %v796 = vld [vmem:[#allocation2 + $0x1410] sm:$0xff]
    %v797 = vld [vmem:[#allocation2 + $0x1418] sm:$0xff]
    %v798 = vld [vmem:[#allocation2 + $0x1420] sm:$0xff]
    %v799 = vld [vmem:[#allocation2 + $0x1428] sm:$0xff]
    %v800 = vld [vmem:[#allocation2 + $0x1430] sm:$0xff]
    %v801 = vld [vmem:[#allocation2 + $0x1438] sm:$0xff]
    %v802 = vld [vmem:[#allocation2 + $0x1440] sm:$0xff]
    %v803 = vld [vmem:[#allocation2 + $0x1448] sm:$0xff]
    %v804 = vld [vmem:[#allocation2 + $0x1450] sm:$0xff]
    %v805 = vld [vmem:[#allocation2 + $0x1458] sm:$0xff]
    %v806 = vld [vmem:[#allocation2 + $0x1460] sm:$0xff]
    %v807 = vld [vmem:[#allocation2 + $0x1468] sm:$0xff]
    %v808 = vld [vmem:[#allocation2 + $0x1470] sm:$0xff]
    %v809 = vld [vmem:[#allocation2 + $0x1478] sm:$0xff]
    %v810 = vld [vmem:[#allocation2 + $0x1480] sm:$0xff]
    %v811 = vld [vmem:[#allocation2 + $0x1488] sm:$0xff]
    %v812 = vld [vmem:[#allocation2 + $0x1490] sm:$0xff]
    %v813 = vld [vmem:[#allocation2 + $0x1498] sm:$0xff]
    %v814 = vld [vmem:[#allocation2 + $0x14a0] sm:$0xff]
    %v815 = vld [vmem:[#allocation2 + $0x14a8] sm:$0xff]
    %v816 = vld [vmem:[#allocation2 + $0x14b0] sm:$0xff]
    %v817 = vld [vmem:[#allocation2 + $0x14b8] sm:$0xff]
    %v818 = vld [vmem:[#allocation2 + $0x14c0] sm:$0xff]
    %v819 = vld [vmem:[#allocation2 + $0x14c8] sm:$0xff]
    %v820 = vld [vmem:[#allocation2 + $0x14d0] sm:$0xff]
    %v821 = vld [vmem:[#allocation2 + $0x14d8] sm:$0xff]
    %v822 = vld [vmem:[#allocation2 + $0x14e0] sm:$0xff]
    %v823 = vld [vmem:[#allocation2 + $0x14e8] sm:$0xff]
    %v824 = vld [vmem:[#allocation2 + $0x14f0] sm:$0xff]
    %v825 = vld [vmem:[#allocation2 + $0x14f8] sm:$0xff]
    %v826 = vld [vmem:[#allocation2 + $0x1500] sm:$0xff]
    %v827 = vld [vmem:[#allocation2 + $0x1508] sm:$0xff]
    %v828 = vld [vmem:[#allocation2 + $0x1510] sm:$0xff]
    %v829 = vld [vmem:[#allocation2 + $0x1518] sm:$0xff]
    %v830 = vld [vmem:[#allocation2 + $0x1520] sm:$0xff]
    %v831 = vld [vmem:[#allocation2 + $0x1528] sm:$0xff]
    %v832 = vld [vmem:[#allocation2 + $0x1530] sm:$0xff]
    %v833 = vld [vmem:[#allocation2 + $0x1538] sm:$0xff]
    %v834 = vld [vmem:[#allocation2 + $0x1540] sm:$0xff]
    %v835 = vld [vmem:[#allocation2 + $0x1548] sm:$0xff]
    %v836 = vld [vmem:[#allocation2 + $0x1550] sm:$0xff]
    %v837 = vld [vmem:[#allocation2 + $0x1558] sm:$0xff]
    %v838 = vld [vmem:[#allocation2 + $0x1560] sm:$0xff]
    %v839 = vld [vmem:[#allocation2 + $0x1568] sm:$0xff]
    %v840 = vld [vmem:[#allocation2 + $0x1570] sm:$0xff]
    %v841 = vld [vmem:[#allocation2 + $0x1578] sm:$0xff]
    %v842 = vld [vmem:[#allocation2 + $0x1580] sm:$0xff]
    %v843 = vld [vmem:[#allocation2 + $0x1588] sm:$0xff]
    %v844 = vld [vmem:[#allocation2 + $0x1590] sm:$0xff]
    %v845 = vld [vmem:[#allocation2 + $0x1598] sm:$0xff]
    %v846 = vld [vmem:[#allocation2 + $0x15a0] sm:$0xff]
    %v847 = vld [vmem:[#allocation2 + $0x15a8] sm:$0xff]
    %v848 = vld [vmem:[#allocation2 + $0x15b0] sm:$0xff]
    %v849 = vld [vmem:[#allocation2 + $0x15b8] sm:$0xff]
    %v850 = vld [vmem:[#allocation2 + $0x15c0] sm:$0xff]
    %v851 = vld [vmem:[#allocation2 + $0x15c8] sm:$0xff]
    %v852 = vld [vmem:[#allocation2 + $0x15d0] sm:$0xff]
    %v853 = vld [vmem:[#allocation2 + $0x15d8] sm:$0xff]
    %v854 = vld [vmem:[#allocation2 + $0x15e0] sm:$0xff]
    %v855 = vld [vmem:[#allocation2 + $0x15e8] sm:$0xff]
    %v856 = vld [vmem:[#allocation2 + $0x15f0] sm:$0xff]
    %v857 = vld [vmem:[#allocation2 + $0x15f8] sm:$0xff]
    %v858 = vld [vmem:[#allocation2 + $0x1600] sm:$0xff]
    %v859 = vld [vmem:[#allocation2 + $0x1608] sm:$0xff]
    %v860 = vld [vmem:[#allocation2 + $0x1610] sm:$0xff]
    %v861 = vld [vmem:[#allocation2 + $0x1618] sm:$0xff]
    %v862 = vld [vmem:[#allocation2 + $0x1620] sm:$0xff]
    %v863 = vld [vmem:[#allocation2 + $0x1628] sm:$0xff]
    %v864 = vld [vmem:[#allocation2 + $0x1630] sm:$0xff]
    %v865 = vld [vmem:[#allocation2 + $0x1638] sm:$0xff]
    %v866 = vld [vmem:[#allocation2 + $0x1640] sm:$0xff]
    %v867 = vld [vmem:[#allocation2 + $0x1648] sm:$0xff]
    %v868 = vld [vmem:[#allocation2 + $0x1650] sm:$0xff]
    %v869 = vld [vmem:[#allocation2 + $0x1658] sm:$0xff]
    %v870 = vld [vmem:[#allocation2 + $0x1660] sm:$0xff]
    %v871 = vld [vmem:[#allocation2 + $0x1668] sm:$0xff]
    %v872 = vld [vmem:[#allocation2 + $0x1670] sm:$0xff]
    %v873 = vld [vmem:[#allocation2 + $0x1678] sm:$0xff]
    %v874 = vld [vmem:[#allocation2 + $0x1680] sm:$0xff]
    %v875 = vld [vmem:[#allocation2 + $0x1688] sm:$0xff]
    %v876 = vld [vmem:[#allocation2 + $0x1690] sm:$0xff]
    %v877 = vld [vmem:[#allocation2 + $0x1698] sm:$0xff]
    %v878 = vld [vmem:[#allocation2 + $0x16a0] sm:$0xff]
    %v879 = vld [vmem:[#allocation2 + $0x16a8] sm:$0xff]
    %v880 = vld [vmem:[#allocation2 + $0x16b0] sm:$0xff]
    %v881 = vld [vmem:[#allocation2 + $0x16b8] sm:$0xff]
    %v882 = vld [vmem:[#allocation2 + $0x16c0] sm:$0xff]
    %v883 = vld [vmem:[#allocation2 + $0x16c8] sm:$0xff]
    %v884 = vld [vmem:[#allocation2 + $0x16d0] sm:$0xff]
    %v885 = vld [vmem:[#allocation2 + $0x16d8] sm:$0xff]
    %v886 = vld [vmem:[#allocation2 + $0x16e0] sm:$0xff]
    %v887 = vld [vmem:[#allocation2 + $0x16e8] sm:$0xff]
    %v888 = vld [vmem:[#allocation2 + $0x16f0] sm:$0xff]
    %v889 = vld [vmem:[#allocation2 + $0x16f8] sm:$0xff]
    %v890 = vld [vmem:[#allocation2 + $0x1700] sm:$0xff]
    %v891 = vld [vmem:[#allocation2 + $0x1708] sm:$0xff]
    %v892 = vld [vmem:[#allocation2 + $0x1710] sm:$0xff]
    %v893 = vld [vmem:[#allocation2 + $0x1718] sm:$0xff]
    %v894 = vld [vmem:[#allocation2 + $0x1720] sm:$0xff]
    %v895 = vld [vmem:[#allocation2 + $0x1728] sm:$0xff]
    %v896 = vld [vmem:[#allocation2 + $0x1730] sm:$0xff]
    %v897 = vld [vmem:[#allocation2 + $0x1738] sm:$0xff]
    %v898 = vld [vmem:[#allocation2 + $0x1740] sm:$0xff]
    %v899 = vld [vmem:[#allocation2 + $0x1748] sm:$0xff]
    %v900 = vld [vmem:[#allocation2 + $0x1750] sm:$0xff]
    %v901 = vld [vmem:[#allocation2 + $0x1758] sm:$0xff]
    %v902 = vld [vmem:[#allocation2 + $0x1760] sm:$0xff]
    %v903 = vld [vmem:[#allocation2 + $0x1768] sm:$0xff]
    %v904 = vld [vmem:[#allocation2 + $0x1770] sm:$0xff]
    %v905 = vld [vmem:[#allocation2 + $0x1778] sm:$0xff]
    %v906 = vld [vmem:[#allocation2 + $0x1780] sm:$0xff]
    %v907 = vld [vmem:[#allocation2 + $0x1788] sm:$0xff]
    %v908 = vld [vmem:[#allocation2 + $0x1790] sm:$0xff]
    %v909 = vld [vmem:[#allocation2 + $0x1798] sm:$0xff]
    %v910 = vld [vmem:[#allocation2 + $0x17a0] sm:$0xff]
    %v911 = vld [vmem:[#allocation2 + $0x17a8] sm:$0xff]
    %v912 = vld [vmem:[#allocation2 + $0x17b0] sm:$0xff]
    %v913 = vld [vmem:[#allocation2 + $0x17b8] sm:$0xff]
    %v914 = vld [vmem:[#allocation2 + $0x17c0] sm:$0xff]
    %v915 = vld [vmem:[#allocation2 + $0x17c8] sm:$0xff]
    %v916 = vld [vmem:[#allocation2 + $0x17d0] sm:$0xff]
    %v917 = vld [vmem:[#allocation2 + $0x17d8] sm:$0xff]
    %v918 = vld [vmem:[#allocation2 + $0x17e0] sm:$0xff]
    %v919 = vld [vmem:[#allocation2 + $0x17e8] sm:$0xff]
    %v920 = vld [vmem:[#allocation2 + $0x17f0] sm:$0xff]
    %v921 = vld [vmem:[#allocation2 + $0x17f8] sm:$0xff]
    %v922 = vld [vmem:[#allocation2 + $0x1800] sm:$0xff]
    %v923 = vld [vmem:[#allocation2 + $0x1808] sm:$0xff]
    %v924 = vld [vmem:[#allocation2 + $0x1810] sm:$0xff]
    %v925 = vld [vmem:[#allocation2 + $0x1818] sm:$0xff]
    %v926 = vld [vmem:[#allocation2 + $0x1820] sm:$0xff]
    %v927 = vld [vmem:[#allocation2 + $0x1828] sm:$0xff]
    %v928 = vld [vmem:[#allocation2 + $0x1830] sm:$0xff]
    %v929 = vld [vmem:[#allocation2 + $0x1838] sm:$0xff]
    %v930 = vld [vmem:[#allocation2 + $0x1840] sm:$0xff]
    %v931 = vld [vmem:[#allocation2 + $0x1848] sm:$0xff]
    %v932 = vld [vmem:[#allocation2 + $0x1850] sm:$0xff]
    %v933 = vld [vmem:[#allocation2 + $0x1858] sm:$0xff]
    %v934 = vld [vmem:[#allocation2 + $0x1860] sm:$0xff]
    %v935 = vld [vmem:[#allocation2 + $0x1868] sm:$0xff]
    %v936 = vld [vmem:[#allocation2 + $0x1870] sm:$0xff]
    %v937 = vld [vmem:[#allocation2 + $0x1878] sm:$0xff]
    %v938 = vld [vmem:[#allocation2 + $0x1880] sm:$0xff]
    %v939 = vld [vmem:[#allocation2 + $0x1888] sm:$0xff]
    %v940 = vld [vmem:[#allocation2 + $0x1890] sm:$0xff]
    %v941 = vld [vmem:[#allocation2 + $0x1898] sm:$0xff]
    %v942 = vld [vmem:[#allocation2 + $0x18a0] sm:$0xff]
    %v943 = vld [vmem:[#allocation2 + $0x18a8] sm:$0xff]
    %v944 = vld [vmem:[#allocation2 + $0x18b0] sm:$0xff]
    %v945 = vld [vmem:[#allocation2 + $0x18b8] sm:$0xff]
    %v946 = vld [vmem:[#allocation2 + $0x18c0] sm:$0xff]
    %v947 = vld [vmem:[#allocation2 + $0x18c8] sm:$0xff]
    %v948 = vld [vmem:[#allocation2 + $0x18d0] sm:$0xff]
    %v949 = vld [vmem:[#allocation2 + $0x18d8] sm:$0xff]
    %v950 = vld [vmem:[#allocation2 + $0x18e0] sm:$0xff]
    %v951 = vld [vmem:[#allocation2 + $0x18e8] sm:$0xff]
    %v952 = vld [vmem:[#allocation2 + $0x18f0] sm:$0xff]
    %v953 = vld [vmem:[#allocation2 + $0x18f8] sm:$0xff]
    %v954 = vld [vmem:[#allocation2 + $0x1900] sm:$0xff]
    %v955 = vld [vmem:[#allocation2 + $0x1908] sm:$0xff]
    %v956 = vld [vmem:[#allocation2 + $0x1910] sm:$0xff]
    %v957 = vld [vmem:[#allocation2 + $0x1918] sm:$0xff]
    %v958 = vld [vmem:[#allocation2 + $0x1920] sm:$0xff]
    %v959 = vld [vmem:[#allocation2 + $0x1928] sm:$0xff]
    %v960 = vld [vmem:[#allocation2 + $0x1930] sm:$0xff]
    %v961 = vld [vmem:[#allocation2 + $0x1938] sm:$0xff]
    %v962 = vld [vmem:[#allocation2 + $0x1940] sm:$0xff]
    %v963 = vld [vmem:[#allocation2 + $0x1948] sm:$0xff]
    %v964 = vld [vmem:[#allocation2 + $0x1950] sm:$0xff]
    %v965 = vld [vmem:[#allocation2 + $0x1958] sm:$0xff]
    %v966 = vld [vmem:[#allocation2 + $0x1960] sm:$0xff]
    %v967 = vld [vmem:[#allocation2 + $0x1968] sm:$0xff]
    %v968 = vld [vmem:[#allocation2 + $0x1970] sm:$0xff]
    %v969 = vld [vmem:[#allocation2 + $0x1978] sm:$0xff]
    %v970 = vld [vmem:[#allocation2 + $0x1980] sm:$0xff]
    %v971 = vld [vmem:[#allocation2 + $0x1988] sm:$0xff]
    %v972 = vld [vmem:[#allocation2 + $0x1990] sm:$0xff]
    %v973 = vld [vmem:[#allocation2 + $0x1998] sm:$0xff]
    %v974 = vld [vmem:[#allocation2 + $0x19a0] sm:$0xff]
    %v975 = vld [vmem:[#allocation2 + $0x19a8] sm:$0xff]
    %v976 = vld [vmem:[#allocation2 + $0x19b0] sm:$0xff]
    %v977 = vld [vmem:[#allocation2 + $0x19b8] sm:$0xff]
    %v978 = vld [vmem:[#allocation2 + $0x19c0] sm:$0xff]
    %v979 = vld [vmem:[#allocation2 + $0x19c8] sm:$0xff]
    %v980 = vld [vmem:[#allocation2 + $0x19d0] sm:$0xff]
    %v981 = vld [vmem:[#allocation2 + $0x19d8] sm:$0xff]
    %v982 = vld [vmem:[#allocation2 + $0x19e0] sm:$0xff]
    %v983 = vld [vmem:[#allocation2 + $0x19e8] sm:$0xff]
    %v984 = vld [vmem:[#allocation2 + $0x19f0] sm:$0xff]
    %v985 = vld [vmem:[#allocation2 + $0x19f8] sm:$0xff]
    %v986 = vld [vmem:[#allocation2 + $0x1a00] sm:$0xff]
    %v987 = vld [vmem:[#allocation2 + $0x1a08] sm:$0xff]
    %v988 = vld [vmem:[#allocation2 + $0x1a10] sm:$0xff]
    %v989 = vld [vmem:[#allocation2 + $0x1a18] sm:$0xff]
    %v990 = vld [vmem:[#allocation2 + $0x1a20] sm:$0xff]
    %v991 = vld [vmem:[#allocation2 + $0x1a28] sm:$0xff]
    %v992 = vld [vmem:[#allocation2 + $0x1a30] sm:$0xff]
    %v993 = vld [vmem:[#allocation2 + $0x1a38] sm:$0xff]
    %v994 = vld [vmem:[#allocation2 + $0x1a40] sm:$0xff]
    %v995 = vld [vmem:[#allocation2 + $0x1a48] sm:$0xff]
    %v996 = vld [vmem:[#allocation2 + $0x1a50] sm:$0xff]
    %v997 = vld [vmem:[#allocation2 + $0x1a58] sm:$0xff]
    %v998 = vld [vmem:[#allocation2 + $0x1a60] sm:$0xff]
    %v999 = vld [vmem:[#allocation2 + $0x1a68] sm:$0xff]
    %v1000 = vld [vmem:[#allocation2 + $0x1a70] sm:$0xff]
    %v1001 = vld [vmem:[#allocation2 + $0x1a78] sm:$0xff]
    %v1002 = vld [vmem:[#allocation2 + $0x1a80] sm:$0xff]
    %v1003 = vld [vmem:[#allocation2 + $0x1a88] sm:$0xff]
    %v1004 = vld [vmem:[#allocation2 + $0x1a90] sm:$0xff]
    %v1005 = vld [vmem:[#allocation2 + $0x1a98] sm:$0xff]
    %v1006 = vld [vmem:[#allocation2 + $0x1aa0] sm:$0xff]
    %v1007 = vld [vmem:[#allocation2 + $0x1aa8] sm:$0xff]
    %v1008 = vld [vmem:[#allocation2 + $0x1ab0] sm:$0xff]
    %v1009 = vld [vmem:[#allocation2 + $0x1ab8] sm:$0xff]
    %v1010 = vld [vmem:[#allocation2 + $0x1ac0] sm:$0xff]
    %v1011 = vld [vmem:[#allocation2 + $0x1ac8] sm:$0xff]
    %v1012 = vld [vmem:[#allocation2 + $0x1ad0] sm:$0xff]
    %v1013 = vld [vmem:[#allocation2 + $0x1ad8] sm:$0xff]
    %v1014 = vld [vmem:[#allocation2 + $0x1ae0] sm:$0xff]
    %v1015 = vld [vmem:[#allocation2 + $0x1ae8] sm:$0xff]
    %v1016 = vld [vmem:[#allocation2 + $0x1af0] sm:$0xff]
    %v1017 = vld [vmem:[#allocation2 + $0x1af8] sm:$0xff]
    %v1018 = vld [vmem:[#allocation2 + $0x1b00] sm:$0xff]
    %v1019 = vld [vmem:[#allocation2 + $0x1b08] sm:$0xff]
    %v1020 = vld [vmem:[#allocation2 + $0x1b10] sm:$0xff]
    %v1021 = vld [vmem:[#allocation2 + $0x1b18] sm:$0xff]
    %v1022 = vld [vmem:[#allocation2 + $0x1b20] sm:$0xff]
    %v1023 = vld [vmem:[#allocation2 + $0x1b28] sm:$0xff]
    %v1024 = vld [vmem:[#allocation2 + $0x1b30] sm:$0xff]
    %v1025 = vld [vmem:[#allocation2 + $0x1b38] sm:$0xff]
    %v1026 = vld [vmem:[#allocation2 + $0x1b40] sm:$0xff]
    %v1027 = vld [vmem:[#allocation2 + $0x1b48] sm:$0xff]
    %v1028 = vld [vmem:[#allocation2 + $0x1b50] sm:$0xff]
    %v1029 = vld [vmem:[#allocation2 + $0x1b58] sm:$0xff]
    %v1030 = vld [vmem:[#allocation2 + $0x1b60] sm:$0xff]
    %v1031 = vld [vmem:[#allocation2 + $0x1b68] sm:$0xff]
    %v1032 = vld [vmem:[#allocation2 + $0x1b70] sm:$0xff]
    %v1033 = vld [vmem:[#allocation2 + $0x1b78] sm:$0xff]
    %v1034 = vld [vmem:[#allocation2 + $0x1b80] sm:$0xff]
    %v1035 = vld [vmem:[#allocation2 + $0x1b88] sm:$0xff]
    %v1036 = vld [vmem:[#allocation2 + $0x1b90] sm:$0xff]
    %v1037 = vld [vmem:[#allocation2 + $0x1b98] sm:$0xff]
    %v1038 = vld [vmem:[#allocation2 + $0x1ba0] sm:$0xff]
    %v1039 = vld [vmem:[#allocation2 + $0x1ba8] sm:$0xff]
    %v1040 = vld [vmem:[#allocation2 + $0x1bb0] sm:$0xff]
    %v1041 = vld [vmem:[#allocation2 + $0x1bb8] sm:$0xff]
    %v1042 = vld [vmem:[#allocation2 + $0x1bc0] sm:$0xff]
    %v1043 = vld [vmem:[#allocation2 + $0x1bc8] sm:$0xff]
    %v1044 = vld [vmem:[#allocation2 + $0x1bd0] sm:$0xff]
    %v1045 = vld [vmem:[#allocation2 + $0x1bd8] sm:$0xff]
    %v1046 = vld [vmem:[#allocation2 + $0x1be0] sm:$0xff]
    %v1047 = vld [vmem:[#allocation2 + $0x1be8] sm:$0xff]
    %v1048 = vld [vmem:[#allocation2 + $0x1bf0] sm:$0xff]
    %v1049 = vld [vmem:[#allocation2 + $0x1bf8] sm:$0xff]
    %v1050 = vld [vmem:[#allocation2 + $0x1c00] sm:$0xff]
    %v1051 = vld [vmem:[#allocation2 + $0x1c08] sm:$0xff]
    %v1052 = vld [vmem:[#allocation2 + $0x1c10] sm:$0xff]
    %v1053 = vld [vmem:[#allocation2 + $0x1c18] sm:$0xff]
    %v1054 = vld [vmem:[#allocation2 + $0x1c20] sm:$0xff]
    %v1055 = vld [vmem:[#allocation2 + $0x1c28] sm:$0xff]
    %v1056 = vld [vmem:[#allocation2 + $0x1c30] sm:$0xff]
    %v1057 = vld [vmem:[#allocation2 + $0x1c38] sm:$0xff]
    %v1058 = vld [vmem:[#allocation2 + $0x1c40] sm:$0xff]
    %v1059 = vld [vmem:[#allocation2 + $0x1c48] sm:$0xff]
    %v1060 = vld [vmem:[#allocation2 + $0x1c50] sm:$0xff]
    %v1061 = vld [vmem:[#allocation2 + $0x1c58] sm:$0xff]
    %v1062 = vld [vmem:[#allocation2 + $0x1c60] sm:$0xff]
    %v1063 = vld [vmem:[#allocation2 + $0x1c68] sm:$0xff]
    %v1064 = vld [vmem:[#allocation2 + $0x1c70] sm:$0xff]
    %v1065 = vld [vmem:[#allocation2 + $0x1c78] sm:$0xff]
    %v1066 = vld [vmem:[#allocation2 + $0x1c80] sm:$0xff]
    %v1067 = vld [vmem:[#allocation2 + $0x1c88] sm:$0xff]
    %v1068 = vld [vmem:[#allocation2 + $0x1c90] sm:$0xff]
    %v1069 = vld [vmem:[#allocation2 + $0x1c98] sm:$0xff]
    %v1070 = vld [vmem:[#allocation2 + $0x1ca0] sm:$0xff]
    %v1071 = vld [vmem:[#allocation2 + $0x1ca8] sm:$0xff]
    %v1072 = vld [vmem:[#allocation2 + $0x1cb0] sm:$0xff]
    %v1073 = vld [vmem:[#allocation2 + $0x1cb8] sm:$0xff]
    %v1074 = vld [vmem:[#allocation2 + $0x1cc0] sm:$0xff]
    %v1075 = vld [vmem:[#allocation2 + $0x1cc8] sm:$0xff]
    %v1076 = vld [vmem:[#allocation2 + $0x1cd0] sm:$0xff]
    %v1077 = vld [vmem:[#allocation2 + $0x1cd8] sm:$0xff]
    %v1078 = vld [vmem:[#allocation2 + $0x1ce0] sm:$0xff]
    %v1079 = vld [vmem:[#allocation2 + $0x1ce8] sm:$0xff]
    %v1080 = vld [vmem:[#allocation2 + $0x1cf0] sm:$0xff]
    %v1081 = vld [vmem:[#allocation2 + $0x1cf8] sm:$0xff]
    %v1082 = vld [vmem:[#allocation2 + $0x1d00] sm:$0xff]
    %v1083 = vld [vmem:[#allocation2 + $0x1d08] sm:$0xff]
    %v1084 = vld [vmem:[#allocation2 + $0x1d10] sm:$0xff]
    %v1085 = vld [vmem:[#allocation2 + $0x1d18] sm:$0xff]
    %v1086 = vld [vmem:[#allocation2 + $0x1d20] sm:$0xff]
    %v1087 = vld [vmem:[#allocation2 + $0x1d28] sm:$0xff]
    %v1088 = vld [vmem:[#allocation2 + $0x1d30] sm:$0xff]
    %v1089 = vld [vmem:[#allocation2 + $0x1d38] sm:$0xff]
    %v1090 = vld [vmem:[#allocation2 + $0x1d40] sm:$0xff]
    %v1091 = vld [vmem:[#allocation2 + $0x1d48] sm:$0xff]
    %v1092 = vld [vmem:[#allocation2 + $0x1d50] sm:$0xff]
    %v1093 = vld [vmem:[#allocation2 + $0x1d58] sm:$0xff]
    %v1094 = vld [vmem:[#allocation2 + $0x1d60] sm:$0xff]
    %v1095 = vld [vmem:[#allocation2 + $0x1d68] sm:$0xff]
    %v1096 = vld [vmem:[#allocation2 + $0x1d70] sm:$0xff]
    %v1097 = vld [vmem:[#allocation2 + $0x1d78] sm:$0xff]
    %v1098 = vld [vmem:[#allocation2 + $0x1d80] sm:$0xff]
    %v1099 = vld [vmem:[#allocation2 + $0x1d88] sm:$0xff]
    %v1100 = vld [vmem:[#allocation2 + $0x1d90] sm:$0xff]
    %v1101 = vld [vmem:[#allocation2 + $0x1d98] sm:$0xff]
    %v1102 = vld [vmem:[#allocation2 + $0x1da0] sm:$0xff]
    %v1103 = vld [vmem:[#allocation2 + $0x1da8] sm:$0xff]
    %v1104 = vld [vmem:[#allocation2 + $0x1db0] sm:$0xff]
    %v1105 = vld [vmem:[#allocation2 + $0x1db8] sm:$0xff]
    %v1106 = vld [vmem:[#allocation2 + $0x1dc0] sm:$0xff]
    %v1107 = vld [vmem:[#allocation2 + $0x1dc8] sm:$0xff]
    %v1108 = vld [vmem:[#allocation2 + $0x1dd0] sm:$0xff]
    %v1109 = vld [vmem:[#allocation2 + $0x1dd8] sm:$0xff]
    %v1110 = vld [vmem:[#allocation2 + $0x1de0] sm:$0xff]
    %v1111 = vld [vmem:[#allocation2 + $0x1de8] sm:$0xff]
    %v1112 = vld [vmem:[#allocation2 + $0x1df0] sm:$0xff]
    %v1113 = vld [vmem:[#allocation2 + $0x1df8] sm:$0xff]
    %v1114 = vld [vmem:[#allocation2 + $0x1e00] sm:$0xff]
    %v1115 = vld [vmem:[#allocation2 + $0x1e08] sm:$0xff]
    %v1116 = vld [vmem:[#allocation2 + $0x1e10] sm:$0xff]
    %v1117 = vld [vmem:[#allocation2 + $0x1e18] sm:$0xff]
    %v1118 = vld [vmem:[#allocation2 + $0x1e20] sm:$0xff]
    %v1119 = vld [vmem:[#allocation2 + $0x1e28] sm:$0xff]
    %v1120 = vld [vmem:[#allocation2 + $0x1e30] sm:$0xff]
    %v1121 = vld [vmem:[#allocation2 + $0x1e38] sm:$0xff]
    %v1122 = vld [vmem:[#allocation2 + $0x1e40] sm:$0xff]
    %v1123 = vld [vmem:[#allocation2 + $0x1e48] sm:$0xff]
    %v1124 = vld [vmem:[#allocation2 + $0x1e50] sm:$0xff]
    %v1125 = vld [vmem:[#allocation2 + $0x1e58] sm:$0xff]
    %v1126 = vld [vmem:[#allocation2 + $0x1e60] sm:$0xff]
    %v1127 = vld [vmem:[#allocation2 + $0x1e68] sm:$0xff]
    %v1128 = vld [vmem:[#allocation2 + $0x1e70] sm:$0xff]
    %v1129 = vld [vmem:[#allocation2 + $0x1e78] sm:$0xff]
    %v1130 = vld [vmem:[#allocation2 + $0x1e80] sm:$0xff]
    %v1131 = vld [vmem:[#allocation2 + $0x1e88] sm:$0xff]
    %v1132 = vld [vmem:[#allocation2 + $0x1e90] sm:$0xff]
    %v1133 = vld [vmem:[#allocation2 + $0x1e98] sm:$0xff]
    %v1134 = vld [vmem:[#allocation2 + $0x1ea0] sm:$0xff]
    %v1135 = vld [vmem:[#allocation2 + $0x1ea8] sm:$0xff]
    %v1136 = vld [vmem:[#allocation2 + $0x1eb0] sm:$0xff]
    %v1137 = vld [vmem:[#allocation2 + $0x1eb8] sm:$0xff]
    %v1138 = vld [vmem:[#allocation2 + $0x1ec0] sm:$0xff]
    %v1139 = vld [vmem:[#allocation2 + $0x1ec8] sm:$0xff]
    %v1140 = vld [vmem:[#allocation2 + $0x1ed0] sm:$0xff]
    %v1141 = vld [vmem:[#allocation2 + $0x1ed8] sm:$0xff]
    %v1142 = vld [vmem:[#allocation2 + $0x1ee0] sm:$0xff]
    %v1143 = vld [vmem:[#allocation2 + $0x1ee8] sm:$0xff]
    %v1144 = vld [vmem:[#allocation2 + $0x1ef0] sm:$0xff]
    %v1145 = vld [vmem:[#allocation2 + $0x1ef8] sm:$0xff]
    %v1146 = vld [vmem:[#allocation2 + $0x1f00] sm:$0xff]
    %v1147 = vld [vmem:[#allocation2 + $0x1f08] sm:$0xff]
    %v1148 = vld [vmem:[#allocation2 + $0x1f10] sm:$0xff]
    %v1149 = vld [vmem:[#allocation2 + $0x1f18] sm:$0xff]
    %v1150 = vld [vmem:[#allocation2 + $0x1f20] sm:$0xff]
    %v1151 = vld [vmem:[#allocation2 + $0x1f28] sm:$0xff]
    %v1152 = vld [vmem:[#allocation2 + $0x1f30] sm:$0xff]
    %v1153 = vld [vmem:[#allocation2 + $0x1f38] sm:$0xff]
    %v1154 = vld [vmem:[#allocation2 + $0x1f40] sm:$0xff]
    %v1155 = vld [vmem:[#allocation2 + $0x1f48] sm:$0xff]
    %v1156 = vld [vmem:[#allocation2 + $0x1f50] sm:$0xff]
    %v1157 = vld [vmem:[#allocation2 + $0x1f58] sm:$0xff]
    %v1158 = vld [vmem:[#allocation2 + $0x1f60] sm:$0xff]
    %v1159 = vld [vmem:[#allocation2 + $0x1f68] sm:$0xff]
    %v1160 = vld [vmem:[#allocation2 + $0x1f70] sm:$0xff]
    %v1161 = vld [vmem:[#allocation2 + $0x1f78] sm:$0xff]
    %v1162 = vld [vmem:[#allocation2 + $0x1f80] sm:$0xff]
    %v1163 = vld [vmem:[#allocation2 + $0x1f88] sm:$0xff]
    %v1164 = vld [vmem:[#allocation2 + $0x1f90] sm:$0xff]
    %v1165 = vld [vmem:[#allocation2 + $0x1f98] sm:$0xff]
    %v1166 = vld [vmem:[#allocation2 + $0x1fa0] sm:$0xff]
    %v1167 = vld [vmem:[#allocation2 + $0x1fa8] sm:$0xff]
    %v1168 = vld [vmem:[#allocation2 + $0x1fb0] sm:$0xff]
    %v1169 = vld [vmem:[#allocation2 + $0x1fb8] sm:$0xff]
    %v1170 = vld [vmem:[#allocation2 + $0x1fc0] sm:$0xff]
    %v1171 = vld [vmem:[#allocation2 + $0x1fc8] sm:$0xff]
    %v1172 = vld [vmem:[#allocation2 + $0x1fd0] sm:$0xff]
    %v1173 = vld [vmem:[#allocation2 + $0x1fd8] sm:$0xff]
    %v1174 = vld [vmem:[#allocation2 + $0x1fe0] sm:$0xff]
    %v1175 = vld [vmem:[#allocation2 + $0x1fe8] sm:$0xff]
    %v1176 = vld [vmem:[#allocation2 + $0x1ff0] sm:$0xff]
    %v1177 = vld [vmem:[#allocation2 + $0x1ff8] sm:$0xff]
    %v1178 = vld [vmem:[#allocation10] sm:$0xff]
    %v1179 = vld [vmem:[#allocation10 + $0x8] sm:$0xff]
    %v1182 = vperm.slane %v1178, 0
    %v1183 = vperm.slane %v1178, 1
    %v1184 = vperm.slane %v1178, 2
    %v1185 = vperm.slane %v1178, 3
    %v1186 = vperm.slane %v1178, 4
    %v1187 = vperm.slane %v1178, 5
    %v1188 = vperm.slane %v1178, 6
    %v1189 = vperm.slane %v1178, 7
    %v1190 = vperm.slane %v1179, 0
    %v1191 = vperm.slane %v1179, 1
    %v1192 = vperm.slane %v1179, 2
    %v1193 = vperm.slane %v1179, 3
    %v1194 = vperm.slane %v1179, 4
    %v1195 = vperm.slane %v1179, 5
    %v1196 = vperm.slane %v1179, 6
    %v1197 = vperm.slane %v1179, 7
    %v2238 = vunpack.c.l.b16 %v154
    %v2239 = vunpack.c.h.b16 %v154
    %v2240 = vunpack.c.l.b16 %v155
    %v2241 = vunpack.c.h.b16 %v155
    %v2242 = vunpack.c.l.b16 %v156
    %v2243 = vunpack.c.h.b16 %v156
    %v2244 = vunpack.c.l.b16 %v157
    %v2245 = vunpack.c.h.b16 %v157
    %v2246 = vunpack.c.l.b16 %v158
    %v2247 = vunpack.c.h.b16 %v158
    %v2248 = vunpack.c.l.b16 %v159
    %v2249 = vunpack.c.h.b16 %v159
    %v2250 = vunpack.c.l.b16 %v160
    %v2251 = vunpack.c.h.b16 %v160
    %v2252 = vunpack.c.l.b16 %v161
    %v2253 = vunpack.c.h.b16 %v161
    %v2254 = vunpack.c.l.b16 %v162
    %v2255 = vunpack.c.h.b16 %v162
    %v2256 = vunpack.c.l.b16 %v163
    %v2257 = vunpack.c.h.b16 %v163
    %v2258 = vunpack.c.l.b16 %v164
    %v2259 = vunpack.c.h.b16 %v164
    %v2260 = vunpack.c.l.b16 %v165
    %v2261 = vunpack.c.h.b16 %v165
    %v2262 = vunpack.c.l.b16 %v166
    %v2263 = vunpack.c.h.b16 %v166
    %v2264 = vunpack.c.l.b16 %v167
    %v2265 = vunpack.c.h.b16 %v167
    %v2266 = vunpack.c.l.b16 %v168
    %v2267 = vunpack.c.h.b16 %v168
    %v2268 = vunpack.c.l.b16 %v169
    %v2269 = vunpack.c.h.b16 %v169
    %v2270 = vunpack.c.l.b16 %v170
    %v2271 = vunpack.c.h.b16 %v170
    %v2272 = vunpack.c.l.b16 %v171
    %v2273 = vunpack.c.h.b16 %v171
    %v2274 = vunpack.c.l.b16 %v172
    %v2275 = vunpack.c.h.b16 %v172
    %v2276 = vunpack.c.l.b16 %v173
    %v2277 = vunpack.c.h.b16 %v173
    %v2278 = vunpack.c.l.b16 %v174
    %v2279 = vunpack.c.h.b16 %v174
    %v2280 = vunpack.c.l.b16 %v175
    %v2281 = vunpack.c.h.b16 %v175
    %v2282 = vunpack.c.l.b16 %v176
    %v2283 = vunpack.c.h.b16 %v176
    %v2284 = vunpack.c.l.b16 %v177
    %v2285 = vunpack.c.h.b16 %v177
    %v2286 = vunpack.c.l.b16 %v178
    %v2287 = vunpack.c.h.b16 %v178
    %v2288 = vunpack.c.l.b16 %v179
    %v2289 = vunpack.c.h.b16 %v179
    %v2290 = vunpack.c.l.b16 %v180
    %v2291 = vunpack.c.h.b16 %v180
    %v2292 = vunpack.c.l.b16 %v181
    %v2293 = vunpack.c.h.b16 %v181
    %v2294 = vunpack.c.l.b16 %v182
    %v2295 = vunpack.c.h.b16 %v182
    %v2296 = vunpack.c.l.b16 %v183
    %v2297 = vunpack.c.h.b16 %v183
    %v2298 = vunpack.c.l.b16 %v184
    %v2299 = vunpack.c.h.b16 %v184
    %v2300 = vunpack.c.l.b16 %v185
    %v2301 = vunpack.c.h.b16 %v185
    %v2302 = vunpack.c.l.b16 %v186
    %v2303 = vunpack.c.h.b16 %v186
    %v2304 = vunpack.c.l.b16 %v187
    %v2305 = vunpack.c.h.b16 %v187
    %v2306 = vunpack.c.l.b16 %v188
    %v2307 = vunpack.c.h.b16 %v188
    %v2308 = vunpack.c.l.b16 %v189
    %v2309 = vunpack.c.h.b16 %v189
    %v2310 = vunpack.c.l.b16 %v190
    %v2311 = vunpack.c.h.b16 %v190
    %v2312 = vunpack.c.l.b16 %v191
    %v2313 = vunpack.c.h.b16 %v191
    %v2314 = vunpack.c.l.b16 %v192
    %v2315 = vunpack.c.h.b16 %v192
    %v2316 = vunpack.c.l.b16 %v193
    %v2317 = vunpack.c.h.b16 %v193
    %v2318 = vunpack.c.l.b16 %v194
    %v2319 = vunpack.c.h.b16 %v194
    %v2320 = vunpack.c.l.b16 %v195
    %v2321 = vunpack.c.h.b16 %v195
    %v2322 = vunpack.c.l.b16 %v196
    %v2323 = vunpack.c.h.b16 %v196
    %v2324 = vunpack.c.l.b16 %v197
    %v2325 = vunpack.c.h.b16 %v197
    %v2326 = vunpack.c.l.b16 %v198
    %v2327 = vunpack.c.h.b16 %v198
    %v2328 = vunpack.c.l.b16 %v199
    %v2329 = vunpack.c.h.b16 %v199
    %v2330 = vunpack.c.l.b16 %v200
    %v2331 = vunpack.c.h.b16 %v200
    %v2332 = vunpack.c.l.b16 %v201
    %v2333 = vunpack.c.h.b16 %v201
    %v2334 = vunpack.c.l.b16 %v202
    %v2335 = vunpack.c.h.b16 %v202
    %v2336 = vunpack.c.l.b16 %v203
    %v2337 = vunpack.c.h.b16 %v203
    %v2338 = vunpack.c.l.b16 %v204
    %v2339 = vunpack.c.h.b16 %v204
    %v2340 = vunpack.c.l.b16 %v205
    %v2341 = vunpack.c.h.b16 %v205
    %v2342 = vunpack.c.l.b16 %v206
    %v2343 = vunpack.c.h.b16 %v206
    %v2344 = vunpack.c.l.b16 %v207
    %v2345 = vunpack.c.h.b16 %v207
    %v2346 = vunpack.c.l.b16 %v208
    %v2347 = vunpack.c.h.b16 %v208
    %v2348 = vunpack.c.l.b16 %v209
    %v2349 = vunpack.c.h.b16 %v209
    %v2350 = vunpack.c.l.b16 %v210
    %v2351 = vunpack.c.h.b16 %v210
    %v2352 = vunpack.c.l.b16 %v211
    %v2353 = vunpack.c.h.b16 %v211
    %v2354 = vunpack.c.l.b16 %v212
    %v2355 = vunpack.c.h.b16 %v212
    %v2356 = vunpack.c.l.b16 %v213
    %v2357 = vunpack.c.h.b16 %v213
    %v2358 = vunpack.c.l.b16 %v214
    %v2359 = vunpack.c.h.b16 %v214
    %v2360 = vunpack.c.l.b16 %v215
    %v2361 = vunpack.c.h.b16 %v215
    %v2362 = vunpack.c.l.b16 %v216
    %v2363 = vunpack.c.h.b16 %v216
    %v2364 = vunpack.c.l.b16 %v217
    %v2365 = vunpack.c.h.b16 %v217
    %v2366 = vunpack.c.l.b16 %v218
    %v2367 = vunpack.c.h.b16 %v218
    %v2368 = vunpack.c.l.b16 %v219
    %v2369 = vunpack.c.h.b16 %v219
    %v2370 = vunpack.c.l.b16 %v220
    %v2371 = vunpack.c.h.b16 %v220
    %v2372 = vunpack.c.l.b16 %v221
    %v2373 = vunpack.c.h.b16 %v221
    %v2374 = vunpack.c.l.b16 %v222
    %v2375 = vunpack.c.h.b16 %v222
    %v2376 = vunpack.c.l.b16 %v223
    %v2377 = vunpack.c.h.b16 %v223
    %v2378 = vunpack.c.l.b16 %v224
    %v2379 = vunpack.c.h.b16 %v224
    %v2380 = vunpack.c.l.b16 %v225
    %v2381 = vunpack.c.h.b16 %v225
    %v2382 = vunpack.c.l.b16 %v226
    %v2383 = vunpack.c.h.b16 %v226
    %v2384 = vunpack.c.l.b16 %v227
    %v2385 = vunpack.c.h.b16 %v227
    %v2386 = vunpack.c.l.b16 %v228
    %v2387 = vunpack.c.h.b16 %v228
    %v2388 = vunpack.c.l.b16 %v229
    %v2389 = vunpack.c.h.b16 %v229
    %v2390 = vunpack.c.l.b16 %v230
    %v2391 = vunpack.c.h.b16 %v230
    %v2392 = vunpack.c.l.b16 %v231
    %v2393 = vunpack.c.h.b16 %v231
    %v2394 = vunpack.c.l.b16 %v232
    %v2395 = vunpack.c.h.b16 %v232
    %v2396 = vunpack.c.l.b16 %v233
    %v2397 = vunpack.c.h.b16 %v233
    %v2398 = vunpack.c.l.b16 %v234
    %v2399 = vunpack.c.h.b16 %v234
    %v2400 = vunpack.c.l.b16 %v235
    %v2401 = vunpack.c.h.b16 %v235
    %v2402 = vunpack.c.l.b16 %v236
    %v2403 = vunpack.c.h.b16 %v236
    %v2404 = vunpack.c.l.b16 %v237
    %v2405 = vunpack.c.h.b16 %v237
    %v2406 = vunpack.c.l.b16 %v238
    %v2407 = vunpack.c.h.b16 %v238
    %v2408 = vunpack.c.l.b16 %v239
    %v2409 = vunpack.c.h.b16 %v239
    %v2410 = vunpack.c.l.b16 %v240
    %v2411 = vunpack.c.h.b16 %v240
    %v2412 = vunpack.c.l.b16 %v241
    %v2413 = vunpack.c.h.b16 %v241
    %v2414 = vunpack.c.l.b16 %v242
    %v2415 = vunpack.c.h.b16 %v242
    %v2416 = vunpack.c.l.b16 %v243
    %v2417 = vunpack.c.h.b16 %v243
    %v2418 = vunpack.c.l.b16 %v244
    %v2419 = vunpack.c.h.b16 %v244
    %v2420 = vunpack.c.l.b16 %v245
    %v2421 = vunpack.c.h.b16 %v245
    %v2422 = vunpack.c.l.b16 %v246
    %v2423 = vunpack.c.h.b16 %v246
    %v2424 = vunpack.c.l.b16 %v247
    %v2425 = vunpack.c.h.b16 %v247
    %v2426 = vunpack.c.l.b16 %v248
    %v2427 = vunpack.c.h.b16 %v248
    %v2428 = vunpack.c.l.b16 %v249
    %v2429 = vunpack.c.h.b16 %v249
    %v2430 = vunpack.c.l.b16 %v250
    %v2431 = vunpack.c.h.b16 %v250
    %v2432 = vunpack.c.l.b16 %v251
    %v2433 = vunpack.c.h.b16 %v251
    %v2434 = vunpack.c.l.b16 %v252
    %v2435 = vunpack.c.h.b16 %v252
    %v2436 = vunpack.c.l.b16 %v253
    %v2437 = vunpack.c.h.b16 %v253
    %v2438 = vunpack.c.l.b16 %v254
    %v2439 = vunpack.c.h.b16 %v254
    %v2440 = vunpack.c.l.b16 %v255
    %v2441 = vunpack.c.h.b16 %v255
    %v2442 = vunpack.c.l.b16 %v256
    %v2443 = vunpack.c.h.b16 %v256
    %v2444 = vunpack.c.l.b16 %v257
    %v2445 = vunpack.c.h.b16 %v257
    %v2446 = vunpack.c.l.b16 %v258
    %v2447 = vunpack.c.h.b16 %v258
    %v2448 = vunpack.c.l.b16 %v259
    %v2449 = vunpack.c.h.b16 %v259
    %v2450 = vunpack.c.l.b16 %v260
    %v2451 = vunpack.c.h.b16 %v260
    %v2452 = vunpack.c.l.b16 %v261
    %v2453 = vunpack.c.h.b16 %v261
    %v2454 = vunpack.c.l.b16 %v262
    %v2455 = vunpack.c.h.b16 %v262
    %v2456 = vunpack.c.l.b16 %v263
    %v2457 = vunpack.c.h.b16 %v263
    %v2458 = vunpack.c.l.b16 %v264
    %v2459 = vunpack.c.h.b16 %v264
    %v2460 = vunpack.c.l.b16 %v265
    %v2461 = vunpack.c.h.b16 %v265
    %v2462 = vunpack.c.l.b16 %v266
    %v2463 = vunpack.c.h.b16 %v266
    %v2464 = vunpack.c.l.b16 %v267
    %v2465 = vunpack.c.h.b16 %v267
    %v2466 = vunpack.c.l.b16 %v268
    %v2467 = vunpack.c.h.b16 %v268
    %v2468 = vunpack.c.l.b16 %v269
    %v2469 = vunpack.c.h.b16 %v269
    %v2470 = vunpack.c.l.b16 %v270
    %v2471 = vunpack.c.h.b16 %v270
    %v2472 = vunpack.c.l.b16 %v271
    %v2473 = vunpack.c.h.b16 %v271
    %v2474 = vunpack.c.l.b16 %v272
    %v2475 = vunpack.c.h.b16 %v272
    %v2476 = vunpack.c.l.b16 %v273
    %v2477 = vunpack.c.h.b16 %v273
    %v2478 = vunpack.c.l.b16 %v274
    %v2479 = vunpack.c.h.b16 %v274
    %v2480 = vunpack.c.l.b16 %v275
    %v2481 = vunpack.c.h.b16 %v275
    %v2482 = vunpack.c.l.b16 %v276
    %v2483 = vunpack.c.h.b16 %v276
    %v2484 = vunpack.c.l.b16 %v277
    %v2485 = vunpack.c.h.b16 %v277
    %v2486 = vunpack.c.l.b16 %v278
    %v2487 = vunpack.c.h.b16 %v278
    %v2488 = vunpack.c.l.b16 %v279
    %v2489 = vunpack.c.h.b16 %v279
    %v2490 = vunpack.c.l.b16 %v280
    %v2491 = vunpack.c.h.b16 %v280
    %v2492 = vunpack.c.l.b16 %v281
    %v2493 = vunpack.c.h.b16 %v281
    %v2494 = vunpack.c.l.b16 %v282
    %v2495 = vunpack.c.h.b16 %v282
    %v2496 = vunpack.c.l.b16 %v283
    %v2497 = vunpack.c.h.b16 %v283
    %v2498 = vunpack.c.l.b16 %v284
    %v2499 = vunpack.c.h.b16 %v284
    %v2500 = vunpack.c.l.b16 %v285
    %v2501 = vunpack.c.h.b16 %v285
    %v2502 = vunpack.c.l.b16 %v286
    %v2503 = vunpack.c.h.b16 %v286
    %v2504 = vunpack.c.l.b16 %v287
    %v2505 = vunpack.c.h.b16 %v287
    %v2506 = vunpack.c.l.b16 %v288
    %v2507 = vunpack.c.h.b16 %v288
    %v2508 = vunpack.c.l.b16 %v289
    %v2509 = vunpack.c.h.b16 %v289
    %v2510 = vunpack.c.l.b16 %v290
    %v2511 = vunpack.c.h.b16 %v290
    %v2512 = vunpack.c.l.b16 %v291
    %v2513 = vunpack.c.h.b16 %v291
    %v2514 = vunpack.c.l.b16 %v292
    %v2515 = vunpack.c.h.b16 %v292
    %v2516 = vunpack.c.l.b16 %v293
    %v2517 = vunpack.c.h.b16 %v293
    %v2518 = vunpack.c.l.b16 %v294
    %v2519 = vunpack.c.h.b16 %v294
    %v2520 = vunpack.c.l.b16 %v295
    %v2521 = vunpack.c.h.b16 %v295
    %v2522 = vunpack.c.l.b16 %v296
    %v2523 = vunpack.c.h.b16 %v296
    %v2524 = vunpack.c.l.b16 %v297
    %v2525 = vunpack.c.h.b16 %v297
    %v2526 = vunpack.c.l.b16 %v298
    %v2527 = vunpack.c.h.b16 %v298
    %v2528 = vunpack.c.l.b16 %v299
    %v2529 = vunpack.c.h.b16 %v299
    %v2530 = vunpack.c.l.b16 %v300
    %v2531 = vunpack.c.h.b16 %v300
    %v2532 = vunpack.c.l.b16 %v301
    %v2533 = vunpack.c.h.b16 %v301
    %v2534 = vunpack.c.l.b16 %v302
    %v2535 = vunpack.c.h.b16 %v302
    %v2536 = vunpack.c.l.b16 %v303
    %v2537 = vunpack.c.h.b16 %v303
    %v2538 = vunpack.c.l.b16 %v304
    %v2539 = vunpack.c.h.b16 %v304
    %v2540 = vunpack.c.l.b16 %v305
    %v2541 = vunpack.c.h.b16 %v305
    %v2542 = vunpack.c.l.b16 %v306
    %v2543 = vunpack.c.h.b16 %v306
    %v2544 = vunpack.c.l.b16 %v307
    %v2545 = vunpack.c.h.b16 %v307
    %v2546 = vunpack.c.l.b16 %v308
    %v2547 = vunpack.c.h.b16 %v308
    %v2548 = vunpack.c.l.b16 %v309
    %v2549 = vunpack.c.h.b16 %v309
    %v2550 = vunpack.c.l.b16 %v310
    %v2551 = vunpack.c.h.b16 %v310
    %v2552 = vunpack.c.l.b16 %v311
    %v2553 = vunpack.c.h.b16 %v311
    %v2554 = vunpack.c.l.b16 %v312
    %v2555 = vunpack.c.h.b16 %v312
    %v2556 = vunpack.c.l.b16 %v313
    %v2557 = vunpack.c.h.b16 %v313
    %v2558 = vunpack.c.l.b16 %v314
    %v2559 = vunpack.c.h.b16 %v314
    %v2560 = vunpack.c.l.b16 %v315
    %v2561 = vunpack.c.h.b16 %v315
    %v2562 = vunpack.c.l.b16 %v316
    %v2563 = vunpack.c.h.b16 %v316
    %v2564 = vunpack.c.l.b16 %v317
    %v2565 = vunpack.c.h.b16 %v317
    %v2566 = vunpack.c.l.b16 %v318
    %v2567 = vunpack.c.h.b16 %v318
    %v2568 = vunpack.c.l.b16 %v319
    %v2569 = vunpack.c.h.b16 %v319
    %v2570 = vunpack.c.l.b16 %v320
    %v2571 = vunpack.c.h.b16 %v320
    %v2572 = vunpack.c.l.b16 %v321
    %v2573 = vunpack.c.h.b16 %v321
    %v2574 = vunpack.c.l.b16 %v322
    %v2575 = vunpack.c.h.b16 %v322
    %v2576 = vunpack.c.l.b16 %v323
    %v2577 = vunpack.c.h.b16 %v323
    %v2578 = vunpack.c.l.b16 %v324
    %v2579 = vunpack.c.h.b16 %v324
    %v2580 = vunpack.c.l.b16 %v325
    %v2581 = vunpack.c.h.b16 %v325
    %v2582 = vunpack.c.l.b16 %v326
    %v2583 = vunpack.c.h.b16 %v326
    %v2584 = vunpack.c.l.b16 %v327
    %v2585 = vunpack.c.h.b16 %v327
    %v2586 = vunpack.c.l.b16 %v328
    %v2587 = vunpack.c.h.b16 %v328
    %v2588 = vunpack.c.l.b16 %v329
    %v2589 = vunpack.c.h.b16 %v329
    %v2590 = vunpack.c.l.b16 %v330
    %v2591 = vunpack.c.h.b16 %v330
    %v2592 = vunpack.c.l.b16 %v331
    %v2593 = vunpack.c.h.b16 %v331
    %v2594 = vunpack.c.l.b16 %v332
    %v2595 = vunpack.c.h.b16 %v332
    %v2596 = vunpack.c.l.b16 %v333
    %v2597 = vunpack.c.h.b16 %v333
    %v2598 = vunpack.c.l.b16 %v334
    %v2599 = vunpack.c.h.b16 %v334
    %v2600 = vunpack.c.l.b16 %v335
    %v2601 = vunpack.c.h.b16 %v335
    %v2602 = vunpack.c.l.b16 %v336
    %v2603 = vunpack.c.h.b16 %v336
    %v2604 = vunpack.c.l.b16 %v337
    %v2605 = vunpack.c.h.b16 %v337
    %v2606 = vunpack.c.l.b16 %v338
    %v2607 = vunpack.c.h.b16 %v338
    %v2608 = vunpack.c.l.b16 %v339
    %v2609 = vunpack.c.h.b16 %v339
    %v2610 = vunpack.c.l.b16 %v340
    %v2611 = vunpack.c.h.b16 %v340
    %v2612 = vunpack.c.l.b16 %v341
    %v2613 = vunpack.c.h.b16 %v341
    %v2614 = vunpack.c.l.b16 %v342
    %v2615 = vunpack.c.h.b16 %v342
    %v2616 = vunpack.c.l.b16 %v343
    %v2617 = vunpack.c.h.b16 %v343
    %v2618 = vunpack.c.l.b16 %v344
    %v2619 = vunpack.c.h.b16 %v344
    %v2620 = vunpack.c.l.b16 %v345
    %v2621 = vunpack.c.h.b16 %v345
    %v2622 = vunpack.c.l.b16 %v346
    %v2623 = vunpack.c.h.b16 %v346
    %v2624 = vunpack.c.l.b16 %v347
    %v2625 = vunpack.c.h.b16 %v347
    %v2626 = vunpack.c.l.b16 %v348
    %v2627 = vunpack.c.h.b16 %v348
    %v2628 = vunpack.c.l.b16 %v349
    %v2629 = vunpack.c.h.b16 %v349
    %v2630 = vunpack.c.l.b16 %v350
    %v2631 = vunpack.c.h.b16 %v350
    %v2632 = vunpack.c.l.b16 %v351
    %v2633 = vunpack.c.h.b16 %v351
    %v2634 = vunpack.c.l.b16 %v352
    %v2635 = vunpack.c.h.b16 %v352
    %v2636 = vunpack.c.l.b16 %v353
    %v2637 = vunpack.c.h.b16 %v353
    %v2638 = vunpack.c.l.b16 %v354
    %v2639 = vunpack.c.h.b16 %v354
    %v2640 = vunpack.c.l.b16 %v355
    %v2641 = vunpack.c.h.b16 %v355
    %v2642 = vunpack.c.l.b16 %v356
    %v2643 = vunpack.c.h.b16 %v356
    %v2644 = vunpack.c.l.b16 %v357
    %v2645 = vunpack.c.h.b16 %v357
    %v2646 = vunpack.c.l.b16 %v358
    %v2647 = vunpack.c.h.b16 %v358
    %v2648 = vunpack.c.l.b16 %v359
    %v2649 = vunpack.c.h.b16 %v359
    %v2650 = vunpack.c.l.b16 %v360
    %v2651 = vunpack.c.h.b16 %v360
    %v2652 = vunpack.c.l.b16 %v361
    %v2653 = vunpack.c.h.b16 %v361
    %v2654 = vunpack.c.l.b16 %v362
    %v2655 = vunpack.c.h.b16 %v362
    %v2656 = vunpack.c.l.b16 %v363
    %v2657 = vunpack.c.h.b16 %v363
    %v2658 = vunpack.c.l.b16 %v364
    %v2659 = vunpack.c.h.b16 %v364
    %v2660 = vunpack.c.l.b16 %v365
    %v2661 = vunpack.c.h.b16 %v365
    %v2662 = vunpack.c.l.b16 %v366
    %v2663 = vunpack.c.h.b16 %v366
    %v2664 = vunpack.c.l.b16 %v367
    %v2665 = vunpack.c.h.b16 %v367
    %v2666 = vunpack.c.l.b16 %v368
    %v2667 = vunpack.c.h.b16 %v368
    %v2668 = vunpack.c.l.b16 %v369
    %v2669 = vunpack.c.h.b16 %v369
    %v2670 = vunpack.c.l.b16 %v370
    %v2671 = vunpack.c.h.b16 %v370
    %v2672 = vunpack.c.l.b16 %v371
    %v2673 = vunpack.c.h.b16 %v371
    %v2674 = vunpack.c.l.b16 %v372
    %v2675 = vunpack.c.h.b16 %v372
    %v2676 = vunpack.c.l.b16 %v373
    %v2677 = vunpack.c.h.b16 %v373
    %v2678 = vunpack.c.l.b16 %v374
    %v2679 = vunpack.c.h.b16 %v374
    %v2680 = vunpack.c.l.b16 %v375
    %v2681 = vunpack.c.h.b16 %v375
    %v2682 = vunpack.c.l.b16 %v376
    %v2683 = vunpack.c.h.b16 %v376
    %v2684 = vunpack.c.l.b16 %v377
    %v2685 = vunpack.c.h.b16 %v377
    %v2686 = vunpack.c.l.b16 %v378
    %v2687 = vunpack.c.h.b16 %v378
    %v2688 = vunpack.c.l.b16 %v379
    %v2689 = vunpack.c.h.b16 %v379
    %v2690 = vunpack.c.l.b16 %v380
    %v2691 = vunpack.c.h.b16 %v380
    %v2692 = vunpack.c.l.b16 %v381
    %v2693 = vunpack.c.h.b16 %v381
    %v2694 = vunpack.c.l.b16 %v382
    %v2695 = vunpack.c.h.b16 %v382
    %v2696 = vunpack.c.l.b16 %v383
    %v2697 = vunpack.c.h.b16 %v383
    %v2698 = vunpack.c.l.b16 %v384
    %v2699 = vunpack.c.h.b16 %v384
    %v2700 = vunpack.c.l.b16 %v385
    %v2701 = vunpack.c.h.b16 %v385
    %v2702 = vunpack.c.l.b16 %v386
    %v2703 = vunpack.c.h.b16 %v386
    %v2704 = vunpack.c.l.b16 %v387
    %v2705 = vunpack.c.h.b16 %v387
    %v2706 = vunpack.c.l.b16 %v388
    %v2707 = vunpack.c.h.b16 %v388
    %v2708 = vunpack.c.l.b16 %v389
    %v2709 = vunpack.c.h.b16 %v389
    %v2710 = vunpack.c.l.b16 %v390
    %v2711 = vunpack.c.h.b16 %v390
    %v2712 = vunpack.c.l.b16 %v391
    %v2713 = vunpack.c.h.b16 %v391
    %v2714 = vunpack.c.l.b16 %v392
    %v2715 = vunpack.c.h.b16 %v392
    %v2716 = vunpack.c.l.b16 %v393
    %v2717 = vunpack.c.h.b16 %v393
    %v2718 = vunpack.c.l.b16 %v394
    %v2719 = vunpack.c.h.b16 %v394
    %v2720 = vunpack.c.l.b16 %v395
    %v2721 = vunpack.c.h.b16 %v395
    %v2722 = vunpack.c.l.b16 %v396
    %v2723 = vunpack.c.h.b16 %v396
    %v2724 = vunpack.c.l.b16 %v397
    %v2725 = vunpack.c.h.b16 %v397
    %v2726 = vunpack.c.l.b16 %v398
    %v2727 = vunpack.c.h.b16 %v398
    %v2728 = vunpack.c.l.b16 %v399
    %v2729 = vunpack.c.h.b16 %v399
    %v2730 = vunpack.c.l.b16 %v400
    %v2731 = vunpack.c.h.b16 %v400
    %v2732 = vunpack.c.l.b16 %v401
    %v2733 = vunpack.c.h.b16 %v401
    %v2734 = vunpack.c.l.b16 %v402
    %v2735 = vunpack.c.h.b16 %v402
    %v2736 = vunpack.c.l.b16 %v403
    %v2737 = vunpack.c.h.b16 %v403
    %v2738 = vunpack.c.l.b16 %v404
    %v2739 = vunpack.c.h.b16 %v404
    %v2740 = vunpack.c.l.b16 %v405
    %v2741 = vunpack.c.h.b16 %v405
    %v2742 = vunpack.c.l.b16 %v406
    %v2743 = vunpack.c.h.b16 %v406
    %v2744 = vunpack.c.l.b16 %v407
    %v2745 = vunpack.c.h.b16 %v407
    %v2746 = vunpack.c.l.b16 %v408
    %v2747 = vunpack.c.h.b16 %v408
    %v2748 = vunpack.c.l.b16 %v409
    %v2749 = vunpack.c.h.b16 %v409
    %v2750 = vunpack.c.l.b16 %v410
    %v2751 = vunpack.c.h.b16 %v410
    %v2752 = vunpack.c.l.b16 %v411
    %v2753 = vunpack.c.h.b16 %v411
    %v2754 = vunpack.c.l.b16 %v412
    %v2755 = vunpack.c.h.b16 %v412
    %v2756 = vunpack.c.l.b16 %v413
    %v2757 = vunpack.c.h.b16 %v413
    %v2758 = vunpack.c.l.b16 %v414
    %v2759 = vunpack.c.h.b16 %v414
    %v2760 = vunpack.c.l.b16 %v415
    %v2761 = vunpack.c.h.b16 %v415
    %v2762 = vunpack.c.l.b16 %v416
    %v2763 = vunpack.c.h.b16 %v416
    %v2764 = vunpack.c.l.b16 %v417
    %v2765 = vunpack.c.h.b16 %v417
    %v2766 = vunpack.c.l.b16 %v418
    %v2767 = vunpack.c.h.b16 %v418
    %v2768 = vunpack.c.l.b16 %v419
    %v2769 = vunpack.c.h.b16 %v419
    %v2770 = vunpack.c.l.b16 %v420
    %v2771 = vunpack.c.h.b16 %v420
    %v2772 = vunpack.c.l.b16 %v421
    %v2773 = vunpack.c.h.b16 %v421
    %v2774 = vunpack.c.l.b16 %v422
    %v2775 = vunpack.c.h.b16 %v422
    %v2776 = vunpack.c.l.b16 %v423
    %v2777 = vunpack.c.h.b16 %v423
    %v2778 = vunpack.c.l.b16 %v424
    %v2779 = vunpack.c.h.b16 %v424
    %v2780 = vunpack.c.l.b16 %v425
    %v2781 = vunpack.c.h.b16 %v425
    %v2782 = vunpack.c.l.b16 %v426
    %v2783 = vunpack.c.h.b16 %v426
    %v2784 = vunpack.c.l.b16 %v427
    %v2785 = vunpack.c.h.b16 %v427
    %v2786 = vunpack.c.l.b16 %v428
    %v2787 = vunpack.c.h.b16 %v428
    %v2788 = vunpack.c.l.b16 %v429
    %v2789 = vunpack.c.h.b16 %v429
    %v2790 = vunpack.c.l.b16 %v430
    %v2791 = vunpack.c.h.b16 %v430
    %v2792 = vunpack.c.l.b16 %v431
    %v2793 = vunpack.c.h.b16 %v431
    %v2794 = vunpack.c.l.b16 %v432
    %v2795 = vunpack.c.h.b16 %v432
    %v2796 = vunpack.c.l.b16 %v433
    %v2797 = vunpack.c.h.b16 %v433
    %v2798 = vunpack.c.l.b16 %v434
    %v2799 = vunpack.c.h.b16 %v434
    %v2800 = vunpack.c.l.b16 %v435
    %v2801 = vunpack.c.h.b16 %v435
    %v2802 = vunpack.c.l.b16 %v436
    %v2803 = vunpack.c.h.b16 %v436
    %v2804 = vunpack.c.l.b16 %v437
    %v2805 = vunpack.c.h.b16 %v437
    %v2806 = vunpack.c.l.b16 %v438
    %v2807 = vunpack.c.h.b16 %v438
    %v2808 = vunpack.c.l.b16 %v439
    %v2809 = vunpack.c.h.b16 %v439
    %v2810 = vunpack.c.l.b16 %v440
    %v2811 = vunpack.c.h.b16 %v440
    %v2812 = vunpack.c.l.b16 %v441
    %v2813 = vunpack.c.h.b16 %v441
    %v2814 = vunpack.c.l.b16 %v442
    %v2815 = vunpack.c.h.b16 %v442
    %v2816 = vunpack.c.l.b16 %v443
    %v2817 = vunpack.c.h.b16 %v443
    %v2818 = vunpack.c.l.b16 %v444
    %v2819 = vunpack.c.h.b16 %v444
    %v2820 = vunpack.c.l.b16 %v445
    %v2821 = vunpack.c.h.b16 %v445
    %v2822 = vunpack.c.l.b16 %v446
    %v2823 = vunpack.c.h.b16 %v446
    %v2824 = vunpack.c.l.b16 %v447
    %v2825 = vunpack.c.h.b16 %v447
    %v2826 = vunpack.c.l.b16 %v448
    %v2827 = vunpack.c.h.b16 %v448
    %v2828 = vunpack.c.l.b16 %v449
    %v2829 = vunpack.c.h.b16 %v449
    %v2830 = vunpack.c.l.b16 %v450
    %v2831 = vunpack.c.h.b16 %v450
    %v2832 = vunpack.c.l.b16 %v451
    %v2833 = vunpack.c.h.b16 %v451
    %v2834 = vunpack.c.l.b16 %v452
    %v2835 = vunpack.c.h.b16 %v452
    %v2836 = vunpack.c.l.b16 %v453
    %v2837 = vunpack.c.h.b16 %v453
    %v2838 = vunpack.c.l.b16 %v454
    %v2839 = vunpack.c.h.b16 %v454
    %v2840 = vunpack.c.l.b16 %v455
    %v2841 = vunpack.c.h.b16 %v455
    %v2842 = vunpack.c.l.b16 %v456
    %v2843 = vunpack.c.h.b16 %v456
    %v2844 = vunpack.c.l.b16 %v457
    %v2845 = vunpack.c.h.b16 %v457
    %v2846 = vunpack.c.l.b16 %v458
    %v2847 = vunpack.c.h.b16 %v458
    %v2848 = vunpack.c.l.b16 %v459
    %v2849 = vunpack.c.h.b16 %v459
    %v2850 = vunpack.c.l.b16 %v460
    %v2851 = vunpack.c.h.b16 %v460
    %v2852 = vunpack.c.l.b16 %v461
    %v2853 = vunpack.c.h.b16 %v461
    %v2854 = vunpack.c.l.b16 %v462
    %v2855 = vunpack.c.h.b16 %v462
    %v2856 = vunpack.c.l.b16 %v463
    %v2857 = vunpack.c.h.b16 %v463
    %v2858 = vunpack.c.l.b16 %v464
    %v2859 = vunpack.c.h.b16 %v464
    %v2860 = vunpack.c.l.b16 %v465
    %v2861 = vunpack.c.h.b16 %v465
    %v2862 = vunpack.c.l.b16 %v466
    %v2863 = vunpack.c.h.b16 %v466
    %v2864 = vunpack.c.l.b16 %v467
    %v2865 = vunpack.c.h.b16 %v467
    %v2866 = vunpack.c.l.b16 %v468
    %v2867 = vunpack.c.h.b16 %v468
    %v2868 = vunpack.c.l.b16 %v469
    %v2869 = vunpack.c.h.b16 %v469
    %v2870 = vunpack.c.l.b16 %v470
    %v2871 = vunpack.c.h.b16 %v470
    %v2872 = vunpack.c.l.b16 %v471
    %v2873 = vunpack.c.h.b16 %v471
    %v2874 = vunpack.c.l.b16 %v472
    %v2875 = vunpack.c.h.b16 %v472
    %v2876 = vunpack.c.l.b16 %v473
    %v2877 = vunpack.c.h.b16 %v473
    %v2878 = vunpack.c.l.b16 %v474
    %v2879 = vunpack.c.h.b16 %v474
    %v2880 = vunpack.c.l.b16 %v475
    %v2881 = vunpack.c.h.b16 %v475
    %v2882 = vunpack.c.l.b16 %v476
    %v2883 = vunpack.c.h.b16 %v476
    %v2884 = vunpack.c.l.b16 %v477
    %v2885 = vunpack.c.h.b16 %v477
    %v2886 = vunpack.c.l.b16 %v478
    %v2887 = vunpack.c.h.b16 %v478
    %v2888 = vunpack.c.l.b16 %v479
    %v2889 = vunpack.c.h.b16 %v479
    %v2890 = vunpack.c.l.b16 %v480
    %v2891 = vunpack.c.h.b16 %v480
    %v2892 = vunpack.c.l.b16 %v481
    %v2893 = vunpack.c.h.b16 %v481
    %v2894 = vunpack.c.l.b16 %v482
    %v2895 = vunpack.c.h.b16 %v482
    %v2896 = vunpack.c.l.b16 %v483
    %v2897 = vunpack.c.h.b16 %v483
    %v2898 = vunpack.c.l.b16 %v484
    %v2899 = vunpack.c.h.b16 %v484
    %v2900 = vunpack.c.l.b16 %v485
    %v2901 = vunpack.c.h.b16 %v485
    %v2902 = vunpack.c.l.b16 %v486
    %v2903 = vunpack.c.h.b16 %v486
    %v2904 = vunpack.c.l.b16 %v487
    %v2905 = vunpack.c.h.b16 %v487
    %v2906 = vunpack.c.l.b16 %v488
    %v2907 = vunpack.c.h.b16 %v488
    %v2908 = vunpack.c.l.b16 %v489
    %v2909 = vunpack.c.h.b16 %v489
    %v2910 = vunpack.c.l.b16 %v490
    %v2911 = vunpack.c.h.b16 %v490
    %v2912 = vunpack.c.l.b16 %v491
    %v2913 = vunpack.c.h.b16 %v491
    %v2914 = vunpack.c.l.b16 %v492
    %v2915 = vunpack.c.h.b16 %v492
    %v2916 = vunpack.c.l.b16 %v493
    %v2917 = vunpack.c.h.b16 %v493
    %v2918 = vunpack.c.l.b16 %v494
    %v2919 = vunpack.c.h.b16 %v494
    %v2920 = vunpack.c.l.b16 %v495
    %v2921 = vunpack.c.h.b16 %v495
    %v2922 = vunpack.c.l.b16 %v496
    %v2923 = vunpack.c.h.b16 %v496
    %v2924 = vunpack.c.l.b16 %v497
    %v2925 = vunpack.c.h.b16 %v497
    %v2926 = vunpack.c.l.b16 %v498
    %v2927 = vunpack.c.h.b16 %v498
    %v2928 = vunpack.c.l.b16 %v499
    %v2929 = vunpack.c.h.b16 %v499
    %v2930 = vunpack.c.l.b16 %v500
    %v2931 = vunpack.c.h.b16 %v500
    %v2932 = vunpack.c.l.b16 %v501
    %v2933 = vunpack.c.h.b16 %v501
    %v2934 = vunpack.c.l.b16 %v502
    %v2935 = vunpack.c.h.b16 %v502
    %v2936 = vunpack.c.l.b16 %v503
    %v2937 = vunpack.c.h.b16 %v503
    %v2938 = vunpack.c.l.b16 %v504
    %v2939 = vunpack.c.h.b16 %v504
    %v2940 = vunpack.c.l.b16 %v505
    %v2941 = vunpack.c.h.b16 %v505
    %v2942 = vunpack.c.l.b16 %v506
    %v2943 = vunpack.c.h.b16 %v506
    %v2944 = vunpack.c.l.b16 %v507
    %v2945 = vunpack.c.h.b16 %v507
    %v2946 = vunpack.c.l.b16 %v508
    %v2947 = vunpack.c.h.b16 %v508
    %v2948 = vunpack.c.l.b16 %v509
    %v2949 = vunpack.c.h.b16 %v509
    %v2950 = vunpack.c.l.b16 %v510
    %v2951 = vunpack.c.h.b16 %v510
    %v2952 = vunpack.c.l.b16 %v511
    %v2953 = vunpack.c.h.b16 %v511
    %v2954 = vunpack.c.l.b16 %v512
    %v2955 = vunpack.c.h.b16 %v512
    %v2956 = vunpack.c.l.b16 %v513
    %v2957 = vunpack.c.h.b16 %v513
    %v2958 = vunpack.c.l.b16 %v514
    %v2959 = vunpack.c.h.b16 %v514
    %v2960 = vunpack.c.l.b16 %v515
    %v2961 = vunpack.c.h.b16 %v515
    %v2962 = vunpack.c.l.b16 %v516
    %v2963 = vunpack.c.h.b16 %v516
    %v2964 = vunpack.c.l.b16 %v517
    %v2965 = vunpack.c.h.b16 %v517
    %v2966 = vunpack.c.l.b16 %v518
    %v2967 = vunpack.c.h.b16 %v518
    %v2968 = vunpack.c.l.b16 %v519
    %v2969 = vunpack.c.h.b16 %v519
    %v2970 = vunpack.c.l.b16 %v520
    %v2971 = vunpack.c.h.b16 %v520
    %v2972 = vunpack.c.l.b16 %v521
    %v2973 = vunpack.c.h.b16 %v521
    %v2974 = vunpack.c.l.b16 %v522
    %v2975 = vunpack.c.h.b16 %v522
    %v2976 = vunpack.c.l.b16 %v523
    %v2977 = vunpack.c.h.b16 %v523
    %v2978 = vunpack.c.l.b16 %v524
    %v2979 = vunpack.c.h.b16 %v524
    %v2980 = vunpack.c.l.b16 %v525
    %v2981 = vunpack.c.h.b16 %v525
    %v2982 = vunpack.c.l.b16 %v526
    %v2983 = vunpack.c.h.b16 %v526
    %v2984 = vunpack.c.l.b16 %v527
    %v2985 = vunpack.c.h.b16 %v527
    %v2986 = vunpack.c.l.b16 %v528
    %v2987 = vunpack.c.h.b16 %v528
    %v2988 = vunpack.c.l.b16 %v529
    %v2989 = vunpack.c.h.b16 %v529
    %v2990 = vunpack.c.l.b16 %v530
    %v2991 = vunpack.c.h.b16 %v530
    %v2992 = vunpack.c.l.b16 %v531
    %v2993 = vunpack.c.h.b16 %v531
    %v2994 = vunpack.c.l.b16 %v532
    %v2995 = vunpack.c.h.b16 %v532
    %v2996 = vunpack.c.l.b16 %v533
    %v2997 = vunpack.c.h.b16 %v533
    %v2998 = vunpack.c.l.b16 %v534
    %v2999 = vunpack.c.h.b16 %v534
    %v3000 = vunpack.c.l.b16 %v535
    %v3001 = vunpack.c.h.b16 %v535
    %v3002 = vunpack.c.l.b16 %v536
    %v3003 = vunpack.c.h.b16 %v536
    %v3004 = vunpack.c.l.b16 %v537
    %v3005 = vunpack.c.h.b16 %v537
    %v3006 = vunpack.c.l.b16 %v538
    %v3007 = vunpack.c.h.b16 %v538
    %v3008 = vunpack.c.l.b16 %v539
    %v3009 = vunpack.c.h.b16 %v539
    %v3010 = vunpack.c.l.b16 %v540
    %v3011 = vunpack.c.h.b16 %v540
    %v3012 = vunpack.c.l.b16 %v541
    %v3013 = vunpack.c.h.b16 %v541
    %v3014 = vunpack.c.l.b16 %v542
    %v3015 = vunpack.c.h.b16 %v542
    %v3016 = vunpack.c.l.b16 %v543
    %v3017 = vunpack.c.h.b16 %v543
    %v3018 = vunpack.c.l.b16 %v544
    %v3019 = vunpack.c.h.b16 %v544
    %v3020 = vunpack.c.l.b16 %v545
    %v3021 = vunpack.c.h.b16 %v545
    %v3022 = vunpack.c.l.b16 %v546
    %v3023 = vunpack.c.h.b16 %v546
    %v3024 = vunpack.c.l.b16 %v547
    %v3025 = vunpack.c.h.b16 %v547
    %v3026 = vunpack.c.l.b16 %v548
    %v3027 = vunpack.c.h.b16 %v548
    %v3028 = vunpack.c.l.b16 %v549
    %v3029 = vunpack.c.h.b16 %v549
    %v3030 = vunpack.c.l.b16 %v550
    %v3031 = vunpack.c.h.b16 %v550
    %v3032 = vunpack.c.l.b16 %v551
    %v3033 = vunpack.c.h.b16 %v551
    %v3034 = vunpack.c.l.b16 %v552
    %v3035 = vunpack.c.h.b16 %v552
    %v3036 = vunpack.c.l.b16 %v553
    %v3037 = vunpack.c.h.b16 %v553
    %v3038 = vunpack.c.l.b16 %v554
    %v3039 = vunpack.c.h.b16 %v554
    %v3040 = vunpack.c.l.b16 %v555
    %v3041 = vunpack.c.h.b16 %v555
    %v3042 = vunpack.c.l.b16 %v556
    %v3043 = vunpack.c.h.b16 %v556
    %v3044 = vunpack.c.l.b16 %v557
    %v3045 = vunpack.c.h.b16 %v557
    %v3046 = vunpack.c.l.b16 %v558
    %v3047 = vunpack.c.h.b16 %v558
    %v3048 = vunpack.c.l.b16 %v559
    %v3049 = vunpack.c.h.b16 %v559
    %v3050 = vunpack.c.l.b16 %v560
    %v3051 = vunpack.c.h.b16 %v560
    %v3052 = vunpack.c.l.b16 %v561
    %v3053 = vunpack.c.h.b16 %v561
    %v3054 = vunpack.c.l.b16 %v562
    %v3055 = vunpack.c.h.b16 %v562
    %v3056 = vunpack.c.l.b16 %v563
    %v3057 = vunpack.c.h.b16 %v563
    %v3058 = vunpack.c.l.b16 %v564
    %v3059 = vunpack.c.h.b16 %v564
    %v3060 = vunpack.c.l.b16 %v565
    %v3061 = vunpack.c.h.b16 %v565
    %v3062 = vunpack.c.l.b16 %v566
    %v3063 = vunpack.c.h.b16 %v566
    %v3064 = vunpack.c.l.b16 %v567
    %v3065 = vunpack.c.h.b16 %v567
    %v3066 = vunpack.c.l.b16 %v568
    %v3067 = vunpack.c.h.b16 %v568
    %v3068 = vunpack.c.l.b16 %v569
    %v3069 = vunpack.c.h.b16 %v569
    %v3070 = vunpack.c.l.b16 %v570
    %v3071 = vunpack.c.h.b16 %v570
    %v3072 = vunpack.c.l.b16 %v571
    %v3073 = vunpack.c.h.b16 %v571
    %v3074 = vunpack.c.l.b16 %v572
    %v3075 = vunpack.c.h.b16 %v572
    %v3076 = vunpack.c.l.b16 %v573
    %v3077 = vunpack.c.h.b16 %v573
    %v3078 = vunpack.c.l.b16 %v574
    %v3079 = vunpack.c.h.b16 %v574
    %v3080 = vunpack.c.l.b16 %v575
    %v3081 = vunpack.c.h.b16 %v575
    %v3082 = vunpack.c.l.b16 %v576
    %v3083 = vunpack.c.h.b16 %v576
    %v3084 = vunpack.c.l.b16 %v577
    %v3085 = vunpack.c.h.b16 %v577
    %v3086 = vunpack.c.l.b16 %v578
    %v3087 = vunpack.c.h.b16 %v578
    %v3088 = vunpack.c.l.b16 %v579
    %v3089 = vunpack.c.h.b16 %v579
    %v3090 = vunpack.c.l.b16 %v580
    %v3091 = vunpack.c.h.b16 %v580
    %v3092 = vunpack.c.l.b16 %v581
    %v3093 = vunpack.c.h.b16 %v581
    %v3094 = vunpack.c.l.b16 %v582
    %v3095 = vunpack.c.h.b16 %v582
    %v3096 = vunpack.c.l.b16 %v583
    %v3097 = vunpack.c.h.b16 %v583
    %v3098 = vunpack.c.l.b16 %v584
    %v3099 = vunpack.c.h.b16 %v584
    %v3100 = vunpack.c.l.b16 %v585
    %v3101 = vunpack.c.h.b16 %v585
    %v3102 = vunpack.c.l.b16 %v586
    %v3103 = vunpack.c.h.b16 %v586
    %v3104 = vunpack.c.l.b16 %v587
    %v3105 = vunpack.c.h.b16 %v587
    %v3106 = vunpack.c.l.b16 %v588
    %v3107 = vunpack.c.h.b16 %v588
    %v3108 = vunpack.c.l.b16 %v589
    %v3109 = vunpack.c.h.b16 %v589
    %v3110 = vunpack.c.l.b16 %v590
    %v3111 = vunpack.c.h.b16 %v590
    %v3112 = vunpack.c.l.b16 %v591
    %v3113 = vunpack.c.h.b16 %v591
    %v3114 = vunpack.c.l.b16 %v592
    %v3115 = vunpack.c.h.b16 %v592
    %v3116 = vunpack.c.l.b16 %v593
    %v3117 = vunpack.c.h.b16 %v593
    %v3118 = vunpack.c.l.b16 %v594
    %v3119 = vunpack.c.h.b16 %v594
    %v3120 = vunpack.c.l.b16 %v595
    %v3121 = vunpack.c.h.b16 %v595
    %v3122 = vunpack.c.l.b16 %v596
    %v3123 = vunpack.c.h.b16 %v596
    %v3124 = vunpack.c.l.b16 %v597
    %v3125 = vunpack.c.h.b16 %v597
    %v3126 = vunpack.c.l.b16 %v598
    %v3127 = vunpack.c.h.b16 %v598
    %v3128 = vunpack.c.l.b16 %v599
    %v3129 = vunpack.c.h.b16 %v599
    %v3130 = vunpack.c.l.b16 %v600
    %v3131 = vunpack.c.h.b16 %v600
    %v3132 = vunpack.c.l.b16 %v601
    %v3133 = vunpack.c.h.b16 %v601
    %v3134 = vunpack.c.l.b16 %v602
    %v3135 = vunpack.c.h.b16 %v602
    %v3136 = vunpack.c.l.b16 %v603
    %v3137 = vunpack.c.h.b16 %v603
    %v3138 = vunpack.c.l.b16 %v604
    %v3139 = vunpack.c.h.b16 %v604
    %v3140 = vunpack.c.l.b16 %v605
    %v3141 = vunpack.c.h.b16 %v605
    %v3142 = vunpack.c.l.b16 %v606
    %v3143 = vunpack.c.h.b16 %v606
    %v3144 = vunpack.c.l.b16 %v607
    %v3145 = vunpack.c.h.b16 %v607
    %v3146 = vunpack.c.l.b16 %v608
    %v3147 = vunpack.c.h.b16 %v608
    %v3148 = vunpack.c.l.b16 %v609
    %v3149 = vunpack.c.h.b16 %v609
    %v3150 = vunpack.c.l.b16 %v610
    %v3151 = vunpack.c.h.b16 %v610
    %v3152 = vunpack.c.l.b16 %v611
    %v3153 = vunpack.c.h.b16 %v611
    %v3154 = vunpack.c.l.b16 %v612
    %v3155 = vunpack.c.h.b16 %v612
    %v3156 = vunpack.c.l.b16 %v613
    %v3157 = vunpack.c.h.b16 %v613
    %v3158 = vunpack.c.l.b16 %v614
    %v3159 = vunpack.c.h.b16 %v614
    %v3160 = vunpack.c.l.b16 %v615
    %v3161 = vunpack.c.h.b16 %v615
    %v3162 = vunpack.c.l.b16 %v616
    %v3163 = vunpack.c.h.b16 %v616
    %v3164 = vunpack.c.l.b16 %v617
    %v3165 = vunpack.c.h.b16 %v617
    %v3166 = vunpack.c.l.b16 %v618
    %v3167 = vunpack.c.h.b16 %v618
    %v3168 = vunpack.c.l.b16 %v619
    %v3169 = vunpack.c.h.b16 %v619
    %v3170 = vunpack.c.l.b16 %v620
    %v3171 = vunpack.c.h.b16 %v620
    %v3172 = vunpack.c.l.b16 %v621
    %v3173 = vunpack.c.h.b16 %v621
    %v3174 = vunpack.c.l.b16 %v622
    %v3175 = vunpack.c.h.b16 %v622
    %v3176 = vunpack.c.l.b16 %v623
    %v3177 = vunpack.c.h.b16 %v623
    %v3178 = vunpack.c.l.b16 %v624
    %v3179 = vunpack.c.h.b16 %v624
    %v3180 = vunpack.c.l.b16 %v625
    %v3181 = vunpack.c.h.b16 %v625
    %v3182 = vunpack.c.l.b16 %v626
    %v3183 = vunpack.c.h.b16 %v626
    %v3184 = vunpack.c.l.b16 %v627
    %v3185 = vunpack.c.h.b16 %v627
    %v3186 = vunpack.c.l.b16 %v628
    %v3187 = vunpack.c.h.b16 %v628
    %v3188 = vunpack.c.l.b16 %v629
    %v3189 = vunpack.c.h.b16 %v629
    %v3190 = vunpack.c.l.b16 %v630
    %v3191 = vunpack.c.h.b16 %v630
    %v3192 = vunpack.c.l.b16 %v631
    %v3193 = vunpack.c.h.b16 %v631
    %v3194 = vunpack.c.l.b16 %v632
    %v3195 = vunpack.c.h.b16 %v632
    %v3196 = vunpack.c.l.b16 %v633
    %v3197 = vunpack.c.h.b16 %v633
    %v3198 = vunpack.c.l.b16 %v634
    %v3199 = vunpack.c.h.b16 %v634
    %v3200 = vunpack.c.l.b16 %v635
    %v3201 = vunpack.c.h.b16 %v635
    %v3202 = vunpack.c.l.b16 %v636
    %v3203 = vunpack.c.h.b16 %v636
    %v3204 = vunpack.c.l.b16 %v637
    %v3205 = vunpack.c.h.b16 %v637
    %v3206 = vunpack.c.l.b16 %v638
    %v3207 = vunpack.c.h.b16 %v638
    %v3208 = vunpack.c.l.b16 %v639
    %v3209 = vunpack.c.h.b16 %v639
    %v3210 = vunpack.c.l.b16 %v640
    %v3211 = vunpack.c.h.b16 %v640
    %v3212 = vunpack.c.l.b16 %v641
    %v3213 = vunpack.c.h.b16 %v641
    %v3214 = vunpack.c.l.b16 %v642
    %v3215 = vunpack.c.h.b16 %v642
    %v3216 = vunpack.c.l.b16 %v643
    %v3217 = vunpack.c.h.b16 %v643
    %v3218 = vunpack.c.l.b16 %v644
    %v3219 = vunpack.c.h.b16 %v644
    %v3220 = vunpack.c.l.b16 %v645
    %v3221 = vunpack.c.h.b16 %v645
    %v3222 = vunpack.c.l.b16 %v646
    %v3223 = vunpack.c.h.b16 %v646
    %v3224 = vunpack.c.l.b16 %v647
    %v3225 = vunpack.c.h.b16 %v647
    %v3226 = vunpack.c.l.b16 %v648
    %v3227 = vunpack.c.h.b16 %v648
    %v3228 = vunpack.c.l.b16 %v649
    %v3229 = vunpack.c.h.b16 %v649
    %v3230 = vunpack.c.l.b16 %v650
    %v3231 = vunpack.c.h.b16 %v650
    %v3232 = vunpack.c.l.b16 %v651
    %v3233 = vunpack.c.h.b16 %v651
    %v3234 = vunpack.c.l.b16 %v652
    %v3235 = vunpack.c.h.b16 %v652
    %v3236 = vunpack.c.l.b16 %v653
    %v3237 = vunpack.c.h.b16 %v653
    %v3238 = vunpack.c.l.b16 %v654
    %v3239 = vunpack.c.h.b16 %v654
    %v3240 = vunpack.c.l.b16 %v655
    %v3241 = vunpack.c.h.b16 %v655
    %v3242 = vunpack.c.l.b16 %v656
    %v3243 = vunpack.c.h.b16 %v656
    %v3244 = vunpack.c.l.b16 %v657
    %v3245 = vunpack.c.h.b16 %v657
    %v3246 = vunpack.c.l.b16 %v658
    %v3247 = vunpack.c.h.b16 %v658
    %v3248 = vunpack.c.l.b16 %v659
    %v3249 = vunpack.c.h.b16 %v659
    %v3250 = vunpack.c.l.b16 %v660
    %v3251 = vunpack.c.h.b16 %v660
    %v3252 = vunpack.c.l.b16 %v661
    %v3253 = vunpack.c.h.b16 %v661
    %v3254 = vunpack.c.l.b16 %v662
    %v3255 = vunpack.c.h.b16 %v662
    %v3256 = vunpack.c.l.b16 %v663
    %v3257 = vunpack.c.h.b16 %v663
    %v3258 = vunpack.c.l.b16 %v664
    %v3259 = vunpack.c.h.b16 %v664
    %v3260 = vunpack.c.l.b16 %v665
    %v3261 = vunpack.c.h.b16 %v665
    %v3262 = vunpack.c.l.b16 %v666
    %v3263 = vunpack.c.h.b16 %v666
    %v3264 = vunpack.c.l.b16 %v667
    %v3265 = vunpack.c.h.b16 %v667
    %v3266 = vunpack.c.l.b16 %v668
    %v3267 = vunpack.c.h.b16 %v668
    %v3268 = vunpack.c.l.b16 %v669
    %v3269 = vunpack.c.h.b16 %v669
    %v3270 = vunpack.c.l.b16 %v670
    %v3271 = vunpack.c.h.b16 %v670
    %v3272 = vunpack.c.l.b16 %v671
    %v3273 = vunpack.c.h.b16 %v671
    %v3274 = vunpack.c.l.b16 %v672
    %v3275 = vunpack.c.h.b16 %v672
    %v3276 = vunpack.c.l.b16 %v673
    %v3277 = vunpack.c.h.b16 %v673
    %v3278 = vunpack.c.l.b16 %v674
    %v3279 = vunpack.c.h.b16 %v674
    %v3280 = vunpack.c.l.b16 %v675
    %v3281 = vunpack.c.h.b16 %v675
    %v3282 = vunpack.c.l.b16 %v676
    %v3283 = vunpack.c.h.b16 %v676
    %v3284 = vunpack.c.l.b16 %v677
    %v3285 = vunpack.c.h.b16 %v677
    %v3286 = vunpack.c.l.b16 %v678
    %v3287 = vunpack.c.h.b16 %v678
    %v3288 = vunpack.c.l.b16 %v679
    %v3289 = vunpack.c.h.b16 %v679
    %v3290 = vunpack.c.l.b16 %v680
    %v3291 = vunpack.c.h.b16 %v680
    %v3292 = vunpack.c.l.b16 %v681
    %v3293 = vunpack.c.h.b16 %v681
    %v3294 = vunpack.c.l.b16 %v682
    %v3295 = vunpack.c.h.b16 %v682
    %v3296 = vunpack.c.l.b16 %v683
    %v3297 = vunpack.c.h.b16 %v683
    %v3298 = vunpack.c.l.b16 %v684
    %v3299 = vunpack.c.h.b16 %v684
    %v3300 = vunpack.c.l.b16 %v685
    %v3301 = vunpack.c.h.b16 %v685
    %v3302 = vunpack.c.l.b16 %v686
    %v3303 = vunpack.c.h.b16 %v686
    %v3304 = vunpack.c.l.b16 %v687
    %v3305 = vunpack.c.h.b16 %v687
    %v3306 = vunpack.c.l.b16 %v688
    %v3307 = vunpack.c.h.b16 %v688
    %v3308 = vunpack.c.l.b16 %v689
    %v3309 = vunpack.c.h.b16 %v689
    %v3310 = vunpack.c.l.b16 %v690
    %v3311 = vunpack.c.h.b16 %v690
    %v3312 = vunpack.c.l.b16 %v691
    %v3313 = vunpack.c.h.b16 %v691
    %v3314 = vunpack.c.l.b16 %v692
    %v3315 = vunpack.c.h.b16 %v692
    %v3316 = vunpack.c.l.b16 %v693
    %v3317 = vunpack.c.h.b16 %v693
    %v3318 = vunpack.c.l.b16 %v694
    %v3319 = vunpack.c.h.b16 %v694
    %v3320 = vunpack.c.l.b16 %v695
    %v3321 = vunpack.c.h.b16 %v695
    %v3322 = vunpack.c.l.b16 %v696
    %v3323 = vunpack.c.h.b16 %v696
    %v3324 = vunpack.c.l.b16 %v697
    %v3325 = vunpack.c.h.b16 %v697
    %v3326 = vunpack.c.l.b16 %v698
    %v3327 = vunpack.c.h.b16 %v698
    %v3328 = vunpack.c.l.b16 %v699
    %v3329 = vunpack.c.h.b16 %v699
    %v3330 = vunpack.c.l.b16 %v700
    %v3331 = vunpack.c.h.b16 %v700
    %v3332 = vunpack.c.l.b16 %v701
    %v3333 = vunpack.c.h.b16 %v701
    %v3334 = vunpack.c.l.b16 %v702
    %v3335 = vunpack.c.h.b16 %v702
    %v3336 = vunpack.c.l.b16 %v703
    %v3337 = vunpack.c.h.b16 %v703
    %v3338 = vunpack.c.l.b16 %v704
    %v3339 = vunpack.c.h.b16 %v704
    %v3340 = vunpack.c.l.b16 %v705
    %v3341 = vunpack.c.h.b16 %v705
    %v3342 = vunpack.c.l.b16 %v706
    %v3343 = vunpack.c.h.b16 %v706
    %v3344 = vunpack.c.l.b16 %v707
    %v3345 = vunpack.c.h.b16 %v707
    %v3346 = vunpack.c.l.b16 %v708
    %v3347 = vunpack.c.h.b16 %v708
    %v3348 = vunpack.c.l.b16 %v709
    %v3349 = vunpack.c.h.b16 %v709
    %v3350 = vunpack.c.l.b16 %v710
    %v3351 = vunpack.c.h.b16 %v710
    %v3352 = vunpack.c.l.b16 %v711
    %v3353 = vunpack.c.h.b16 %v711
    %v3354 = vunpack.c.l.b16 %v712
    %v3355 = vunpack.c.h.b16 %v712
    %v3356 = vunpack.c.l.b16 %v713
    %v3357 = vunpack.c.h.b16 %v713
    %v3358 = vunpack.c.l.b16 %v714
    %v3359 = vunpack.c.h.b16 %v714
    %v3360 = vunpack.c.l.b16 %v715
    %v3361 = vunpack.c.h.b16 %v715
    %v3362 = vunpack.c.l.b16 %v716
    %v3363 = vunpack.c.h.b16 %v716
    %v3364 = vunpack.c.l.b16 %v717
    %v3365 = vunpack.c.h.b16 %v717
    %v3366 = vunpack.c.l.b16 %v718
    %v3367 = vunpack.c.h.b16 %v718
    %v3368 = vunpack.c.l.b16 %v719
    %v3369 = vunpack.c.h.b16 %v719
    %v3370 = vunpack.c.l.b16 %v720
    %v3371 = vunpack.c.h.b16 %v720
    %v3372 = vunpack.c.l.b16 %v721
    %v3373 = vunpack.c.h.b16 %v721
    %v3374 = vunpack.c.l.b16 %v722
    %v3375 = vunpack.c.h.b16 %v722
    %v3376 = vunpack.c.l.b16 %v723
    %v3377 = vunpack.c.h.b16 %v723
    %v3378 = vunpack.c.l.b16 %v724
    %v3379 = vunpack.c.h.b16 %v724
    %v3380 = vunpack.c.l.b16 %v725
    %v3381 = vunpack.c.h.b16 %v725
    %v3382 = vunpack.c.l.b16 %v726
    %v3383 = vunpack.c.h.b16 %v726
    %v3384 = vunpack.c.l.b16 %v727
    %v3385 = vunpack.c.h.b16 %v727
    %v3386 = vunpack.c.l.b16 %v728
    %v3387 = vunpack.c.h.b16 %v728
    %v3388 = vunpack.c.l.b16 %v729
    %v3389 = vunpack.c.h.b16 %v729
    %v3390 = vunpack.c.l.b16 %v730
    %v3391 = vunpack.c.h.b16 %v730
    %v3392 = vunpack.c.l.b16 %v731
    %v3393 = vunpack.c.h.b16 %v731
    %v3394 = vunpack.c.l.b16 %v732
    %v3395 = vunpack.c.h.b16 %v732
    %v3396 = vunpack.c.l.b16 %v733
    %v3397 = vunpack.c.h.b16 %v733
    %v3398 = vunpack.c.l.b16 %v734
    %v3399 = vunpack.c.h.b16 %v734
    %v3400 = vunpack.c.l.b16 %v735
    %v3401 = vunpack.c.h.b16 %v735
    %v3402 = vunpack.c.l.b16 %v736
    %v3403 = vunpack.c.h.b16 %v736
    %v3404 = vunpack.c.l.b16 %v737
    %v3405 = vunpack.c.h.b16 %v737
    %v3406 = vunpack.c.l.b16 %v738
    %v3407 = vunpack.c.h.b16 %v738
    %v3408 = vunpack.c.l.b16 %v739
    %v3409 = vunpack.c.h.b16 %v739
    %v3410 = vunpack.c.l.b16 %v740
    %v3411 = vunpack.c.h.b16 %v740
    %v3412 = vunpack.c.l.b16 %v741
    %v3413 = vunpack.c.h.b16 %v741
    %v3414 = vunpack.c.l.b16 %v742
    %v3415 = vunpack.c.h.b16 %v742
    %v3416 = vunpack.c.l.b16 %v743
    %v3417 = vunpack.c.h.b16 %v743
    %v3418 = vunpack.c.l.b16 %v744
    %v3419 = vunpack.c.h.b16 %v744
    %v3420 = vunpack.c.l.b16 %v745
    %v3421 = vunpack.c.h.b16 %v745
    %v3422 = vunpack.c.l.b16 %v746
    %v3423 = vunpack.c.h.b16 %v746
    %v3424 = vunpack.c.l.b16 %v747
    %v3425 = vunpack.c.h.b16 %v747
    %v3426 = vunpack.c.l.b16 %v748
    %v3427 = vunpack.c.h.b16 %v748
    %v3428 = vunpack.c.l.b16 %v749
    %v3429 = vunpack.c.h.b16 %v749
    %v3430 = vunpack.c.l.b16 %v750
    %v3431 = vunpack.c.h.b16 %v750
    %v3432 = vunpack.c.l.b16 %v751
    %v3433 = vunpack.c.h.b16 %v751
    %v3434 = vunpack.c.l.b16 %v752
    %v3435 = vunpack.c.h.b16 %v752
    %v3436 = vunpack.c.l.b16 %v753
    %v3437 = vunpack.c.h.b16 %v753
    %v3438 = vunpack.c.l.b16 %v754
    %v3439 = vunpack.c.h.b16 %v754
    %v3440 = vunpack.c.l.b16 %v755
    %v3441 = vunpack.c.h.b16 %v755
    %v3442 = vunpack.c.l.b16 %v756
    %v3443 = vunpack.c.h.b16 %v756
    %v3444 = vunpack.c.l.b16 %v757
    %v3445 = vunpack.c.h.b16 %v757
    %v3446 = vunpack.c.l.b16 %v758
    %v3447 = vunpack.c.h.b16 %v758
    %v3448 = vunpack.c.l.b16 %v759
    %v3449 = vunpack.c.h.b16 %v759
    %v3450 = vunpack.c.l.b16 %v760
    %v3451 = vunpack.c.h.b16 %v760
    %v3452 = vunpack.c.l.b16 %v761
    %v3453 = vunpack.c.h.b16 %v761
    %v3454 = vunpack.c.l.b16 %v762
    %v3455 = vunpack.c.h.b16 %v762
    %v3456 = vunpack.c.l.b16 %v763
    %v3457 = vunpack.c.h.b16 %v763
    %v3458 = vunpack.c.l.b16 %v764
    %v3459 = vunpack.c.h.b16 %v764
    %v3460 = vunpack.c.l.b16 %v765
    %v3461 = vunpack.c.h.b16 %v765
    %v3462 = vunpack.c.l.b16 %v766
    %v3463 = vunpack.c.h.b16 %v766
    %v3464 = vunpack.c.l.b16 %v767
    %v3465 = vunpack.c.h.b16 %v767
    %v3466 = vunpack.c.l.b16 %v768
    %v3467 = vunpack.c.h.b16 %v768
    %v3468 = vunpack.c.l.b16 %v769
    %v3469 = vunpack.c.h.b16 %v769
    %v3470 = vunpack.c.l.b16 %v770
    %v3471 = vunpack.c.h.b16 %v770
    %v3472 = vunpack.c.l.b16 %v771
    %v3473 = vunpack.c.h.b16 %v771
    %v3474 = vunpack.c.l.b16 %v772
    %v3475 = vunpack.c.h.b16 %v772
    %v3476 = vunpack.c.l.b16 %v773
    %v3477 = vunpack.c.h.b16 %v773
    %v3478 = vunpack.c.l.b16 %v774
    %v3479 = vunpack.c.h.b16 %v774
    %v3480 = vunpack.c.l.b16 %v775
    %v3481 = vunpack.c.h.b16 %v775
    %v3482 = vunpack.c.l.b16 %v776
    %v3483 = vunpack.c.h.b16 %v776
    %v3484 = vunpack.c.l.b16 %v777
    %v3485 = vunpack.c.h.b16 %v777
    %v3486 = vunpack.c.l.b16 %v778
    %v3487 = vunpack.c.h.b16 %v778
    %v3488 = vunpack.c.l.b16 %v779
    %v3489 = vunpack.c.h.b16 %v779
    %v3490 = vunpack.c.l.b16 %v780
    %v3491 = vunpack.c.h.b16 %v780
    %v3492 = vunpack.c.l.b16 %v781
    %v3493 = vunpack.c.h.b16 %v781
    %v3494 = vunpack.c.l.b16 %v782
    %v3495 = vunpack.c.h.b16 %v782
    %v3496 = vunpack.c.l.b16 %v783
    %v3497 = vunpack.c.h.b16 %v783
    %v3498 = vunpack.c.l.b16 %v784
    %v3499 = vunpack.c.h.b16 %v784
    %v3500 = vunpack.c.l.b16 %v785
    %v3501 = vunpack.c.h.b16 %v785
    %v3502 = vunpack.c.l.b16 %v786
    %v3503 = vunpack.c.h.b16 %v786
    %v3504 = vunpack.c.l.b16 %v787
    %v3505 = vunpack.c.h.b16 %v787
    %v3506 = vunpack.c.l.b16 %v788
    %v3507 = vunpack.c.h.b16 %v788
    %v3508 = vunpack.c.l.b16 %v789
    %v3509 = vunpack.c.h.b16 %v789
    %v3510 = vunpack.c.l.b16 %v790
    %v3511 = vunpack.c.h.b16 %v790
    %v3512 = vunpack.c.l.b16 %v791
    %v3513 = vunpack.c.h.b16 %v791
    %v3514 = vunpack.c.l.b16 %v792
    %v3515 = vunpack.c.h.b16 %v792
    %v3516 = vunpack.c.l.b16 %v793
    %v3517 = vunpack.c.h.b16 %v793
    %v3518 = vunpack.c.l.b16 %v794
    %v3519 = vunpack.c.h.b16 %v794
    %v3520 = vunpack.c.l.b16 %v795
    %v3521 = vunpack.c.h.b16 %v795
    %v3522 = vunpack.c.l.b16 %v796
    %v3523 = vunpack.c.h.b16 %v796
    %v3524 = vunpack.c.l.b16 %v797
    %v3525 = vunpack.c.h.b16 %v797
    %v3526 = vunpack.c.l.b16 %v798
    %v3527 = vunpack.c.h.b16 %v798
    %v3528 = vunpack.c.l.b16 %v799
    %v3529 = vunpack.c.h.b16 %v799
    %v3530 = vunpack.c.l.b16 %v800
    %v3531 = vunpack.c.h.b16 %v800
    %v3532 = vunpack.c.l.b16 %v801
    %v3533 = vunpack.c.h.b16 %v801
    %v3534 = vunpack.c.l.b16 %v802
    %v3535 = vunpack.c.h.b16 %v802
    %v3536 = vunpack.c.l.b16 %v803
    %v3537 = vunpack.c.h.b16 %v803
    %v3538 = vunpack.c.l.b16 %v804
    %v3539 = vunpack.c.h.b16 %v804
    %v3540 = vunpack.c.l.b16 %v805
    %v3541 = vunpack.c.h.b16 %v805
    %v3542 = vunpack.c.l.b16 %v806
    %v3543 = vunpack.c.h.b16 %v806
    %v3544 = vunpack.c.l.b16 %v807
    %v3545 = vunpack.c.h.b16 %v807
    %v3546 = vunpack.c.l.b16 %v808
    %v3547 = vunpack.c.h.b16 %v808
    %v3548 = vunpack.c.l.b16 %v809
    %v3549 = vunpack.c.h.b16 %v809
    %v3550 = vunpack.c.l.b16 %v810
    %v3551 = vunpack.c.h.b16 %v810
    %v3552 = vunpack.c.l.b16 %v811
    %v3553 = vunpack.c.h.b16 %v811
    %v3554 = vunpack.c.l.b16 %v812
    %v3555 = vunpack.c.h.b16 %v812
    %v3556 = vunpack.c.l.b16 %v813
    %v3557 = vunpack.c.h.b16 %v813
    %v3558 = vunpack.c.l.b16 %v814
    %v3559 = vunpack.c.h.b16 %v814
    %v3560 = vunpack.c.l.b16 %v815
    %v3561 = vunpack.c.h.b16 %v815
    %v3562 = vunpack.c.l.b16 %v816
    %v3563 = vunpack.c.h.b16 %v816
    %v3564 = vunpack.c.l.b16 %v817
    %v3565 = vunpack.c.h.b16 %v817
    %v3566 = vunpack.c.l.b16 %v818
    %v3567 = vunpack.c.h.b16 %v818
    %v3568 = vunpack.c.l.b16 %v819
    %v3569 = vunpack.c.h.b16 %v819
    %v3570 = vunpack.c.l.b16 %v820
    %v3571 = vunpack.c.h.b16 %v820
    %v3572 = vunpack.c.l.b16 %v821
    %v3573 = vunpack.c.h.b16 %v821
    %v3574 = vunpack.c.l.b16 %v822
    %v3575 = vunpack.c.h.b16 %v822
    %v3576 = vunpack.c.l.b16 %v823
    %v3577 = vunpack.c.h.b16 %v823
    %v3578 = vunpack.c.l.b16 %v824
    %v3579 = vunpack.c.h.b16 %v824
    %v3580 = vunpack.c.l.b16 %v825
    %v3581 = vunpack.c.h.b16 %v825
    %v3582 = vunpack.c.l.b16 %v826
    %v3583 = vunpack.c.h.b16 %v826
    %v3584 = vunpack.c.l.b16 %v827
    %v3585 = vunpack.c.h.b16 %v827
    %v3586 = vunpack.c.l.b16 %v828
    %v3587 = vunpack.c.h.b16 %v828
    %v3588 = vunpack.c.l.b16 %v829
    %v3589 = vunpack.c.h.b16 %v829
    %v3590 = vunpack.c.l.b16 %v830
    %v3591 = vunpack.c.h.b16 %v830
    %v3592 = vunpack.c.l.b16 %v831
    %v3593 = vunpack.c.h.b16 %v831
    %v3594 = vunpack.c.l.b16 %v832
    %v3595 = vunpack.c.h.b16 %v832
    %v3596 = vunpack.c.l.b16 %v833
    %v3597 = vunpack.c.h.b16 %v833
    %v3598 = vunpack.c.l.b16 %v834
    %v3599 = vunpack.c.h.b16 %v834
    %v3600 = vunpack.c.l.b16 %v835
    %v3601 = vunpack.c.h.b16 %v835
    %v3602 = vunpack.c.l.b16 %v836
    %v3603 = vunpack.c.h.b16 %v836
    %v3604 = vunpack.c.l.b16 %v837
    %v3605 = vunpack.c.h.b16 %v837
    %v3606 = vunpack.c.l.b16 %v838
    %v3607 = vunpack.c.h.b16 %v838
    %v3608 = vunpack.c.l.b16 %v839
    %v3609 = vunpack.c.h.b16 %v839
    %v3610 = vunpack.c.l.b16 %v840
    %v3611 = vunpack.c.h.b16 %v840
    %v3612 = vunpack.c.l.b16 %v841
    %v3613 = vunpack.c.h.b16 %v841
    %v3614 = vunpack.c.l.b16 %v842
    %v3615 = vunpack.c.h.b16 %v842
    %v3616 = vunpack.c.l.b16 %v843
    %v3617 = vunpack.c.h.b16 %v843
    %v3618 = vunpack.c.l.b16 %v844
    %v3619 = vunpack.c.h.b16 %v844
    %v3620 = vunpack.c.l.b16 %v845
    %v3621 = vunpack.c.h.b16 %v845
    %v3622 = vunpack.c.l.b16 %v846
    %v3623 = vunpack.c.h.b16 %v846
    %v3624 = vunpack.c.l.b16 %v847
    %v3625 = vunpack.c.h.b16 %v847
    %v3626 = vunpack.c.l.b16 %v848
    %v3627 = vunpack.c.h.b16 %v848
    %v3628 = vunpack.c.l.b16 %v849
    %v3629 = vunpack.c.h.b16 %v849
    %v3630 = vunpack.c.l.b16 %v850
    %v3631 = vunpack.c.h.b16 %v850
    %v3632 = vunpack.c.l.b16 %v851
    %v3633 = vunpack.c.h.b16 %v851
    %v3634 = vunpack.c.l.b16 %v852
    %v3635 = vunpack.c.h.b16 %v852
    %v3636 = vunpack.c.l.b16 %v853
    %v3637 = vunpack.c.h.b16 %v853
    %v3638 = vunpack.c.l.b16 %v854
    %v3639 = vunpack.c.h.b16 %v854
    %v3640 = vunpack.c.l.b16 %v855
    %v3641 = vunpack.c.h.b16 %v855
    %v3642 = vunpack.c.l.b16 %v856
    %v3643 = vunpack.c.h.b16 %v856
    %v3644 = vunpack.c.l.b16 %v857
    %v3645 = vunpack.c.h.b16 %v857
    %v3646 = vunpack.c.l.b16 %v858
    %v3647 = vunpack.c.h.b16 %v858
    %v3648 = vunpack.c.l.b16 %v859
    %v3649 = vunpack.c.h.b16 %v859
    %v3650 = vunpack.c.l.b16 %v860
    %v3651 = vunpack.c.h.b16 %v860
    %v3652 = vunpack.c.l.b16 %v861
    %v3653 = vunpack.c.h.b16 %v861
    %v3654 = vunpack.c.l.b16 %v862
    %v3655 = vunpack.c.h.b16 %v862
    %v3656 = vunpack.c.l.b16 %v863
    %v3657 = vunpack.c.h.b16 %v863
    %v3658 = vunpack.c.l.b16 %v864
    %v3659 = vunpack.c.h.b16 %v864
    %v3660 = vunpack.c.l.b16 %v865
    %v3661 = vunpack.c.h.b16 %v865
    %v3662 = vunpack.c.l.b16 %v866
    %v3663 = vunpack.c.h.b16 %v866
    %v3664 = vunpack.c.l.b16 %v867
    %v3665 = vunpack.c.h.b16 %v867
    %v3666 = vunpack.c.l.b16 %v868
    %v3667 = vunpack.c.h.b16 %v868
    %v3668 = vunpack.c.l.b16 %v869
    %v3669 = vunpack.c.h.b16 %v869
    %v3670 = vunpack.c.l.b16 %v870
    %v3671 = vunpack.c.h.b16 %v870
    %v3672 = vunpack.c.l.b16 %v871
    %v3673 = vunpack.c.h.b16 %v871
    %v3674 = vunpack.c.l.b16 %v872
    %v3675 = vunpack.c.h.b16 %v872
    %v3676 = vunpack.c.l.b16 %v873
    %v3677 = vunpack.c.h.b16 %v873
    %v3678 = vunpack.c.l.b16 %v874
    %v3679 = vunpack.c.h.b16 %v874
    %v3680 = vunpack.c.l.b16 %v875
    %v3681 = vunpack.c.h.b16 %v875
    %v3682 = vunpack.c.l.b16 %v876
    %v3683 = vunpack.c.h.b16 %v876
    %v3684 = vunpack.c.l.b16 %v877
    %v3685 = vunpack.c.h.b16 %v877
    %v3686 = vunpack.c.l.b16 %v878
    %v3687 = vunpack.c.h.b16 %v878
    %v3688 = vunpack.c.l.b16 %v879
    %v3689 = vunpack.c.h.b16 %v879
    %v3690 = vunpack.c.l.b16 %v880
    %v3691 = vunpack.c.h.b16 %v880
    %v3692 = vunpack.c.l.b16 %v881
    %v3693 = vunpack.c.h.b16 %v881
    %v3694 = vunpack.c.l.b16 %v882
    %v3695 = vunpack.c.h.b16 %v882
    %v3696 = vunpack.c.l.b16 %v883
    %v3697 = vunpack.c.h.b16 %v883
    %v3698 = vunpack.c.l.b16 %v884
    %v3699 = vunpack.c.h.b16 %v884
    %v3700 = vunpack.c.l.b16 %v885
    %v3701 = vunpack.c.h.b16 %v885
    %v3702 = vunpack.c.l.b16 %v886
    %v3703 = vunpack.c.h.b16 %v886
    %v3704 = vunpack.c.l.b16 %v887
    %v3705 = vunpack.c.h.b16 %v887
    %v3706 = vunpack.c.l.b16 %v888
    %v3707 = vunpack.c.h.b16 %v888
    %v3708 = vunpack.c.l.b16 %v889
    %v3709 = vunpack.c.h.b16 %v889
    %v3710 = vunpack.c.l.b16 %v890
    %v3711 = vunpack.c.h.b16 %v890
    %v3712 = vunpack.c.l.b16 %v891
    %v3713 = vunpack.c.h.b16 %v891
    %v3714 = vunpack.c.l.b16 %v892
    %v3715 = vunpack.c.h.b16 %v892
    %v3716 = vunpack.c.l.b16 %v893
    %v3717 = vunpack.c.h.b16 %v893
    %v3718 = vunpack.c.l.b16 %v894
    %v3719 = vunpack.c.h.b16 %v894
    %v3720 = vunpack.c.l.b16 %v895
    %v3721 = vunpack.c.h.b16 %v895
    %v3722 = vunpack.c.l.b16 %v896
    %v3723 = vunpack.c.h.b16 %v896
    %v3724 = vunpack.c.l.b16 %v897
    %v3725 = vunpack.c.h.b16 %v897
    %v3726 = vunpack.c.l.b16 %v898
    %v3727 = vunpack.c.h.b16 %v898
    %v3728 = vunpack.c.l.b16 %v899
    %v3729 = vunpack.c.h.b16 %v899
    %v3730 = vunpack.c.l.b16 %v900
    %v3731 = vunpack.c.h.b16 %v900
    %v3732 = vunpack.c.l.b16 %v901
    %v3733 = vunpack.c.h.b16 %v901
    %v3734 = vunpack.c.l.b16 %v902
    %v3735 = vunpack.c.h.b16 %v902
    %v3736 = vunpack.c.l.b16 %v903
    %v3737 = vunpack.c.h.b16 %v903
    %v3738 = vunpack.c.l.b16 %v904
    %v3739 = vunpack.c.h.b16 %v904
    %v3740 = vunpack.c.l.b16 %v905
    %v3741 = vunpack.c.h.b16 %v905
    %v3742 = vunpack.c.l.b16 %v906
    %v3743 = vunpack.c.h.b16 %v906
    %v3744 = vunpack.c.l.b16 %v907
    %v3745 = vunpack.c.h.b16 %v907
    %v3746 = vunpack.c.l.b16 %v908
    %v3747 = vunpack.c.h.b16 %v908
    %v3748 = vunpack.c.l.b16 %v909
    %v3749 = vunpack.c.h.b16 %v909
    %v3750 = vunpack.c.l.b16 %v910
    %v3751 = vunpack.c.h.b16 %v910
    %v3752 = vunpack.c.l.b16 %v911
    %v3753 = vunpack.c.h.b16 %v911
    %v3754 = vunpack.c.l.b16 %v912
    %v3755 = vunpack.c.h.b16 %v912
    %v3756 = vunpack.c.l.b16 %v913
    %v3757 = vunpack.c.h.b16 %v913
    %v3758 = vunpack.c.l.b16 %v914
    %v3759 = vunpack.c.h.b16 %v914
    %v3760 = vunpack.c.l.b16 %v915
    %v3761 = vunpack.c.h.b16 %v915
    %v3762 = vunpack.c.l.b16 %v916
    %v3763 = vunpack.c.h.b16 %v916
    %v3764 = vunpack.c.l.b16 %v917
    %v3765 = vunpack.c.h.b16 %v917
    %v3766 = vunpack.c.l.b16 %v918
    %v3767 = vunpack.c.h.b16 %v918
    %v3768 = vunpack.c.l.b16 %v919
    %v3769 = vunpack.c.h.b16 %v919
    %v3770 = vunpack.c.l.b16 %v920
    %v3771 = vunpack.c.h.b16 %v920
    %v3772 = vunpack.c.l.b16 %v921
    %v3773 = vunpack.c.h.b16 %v921
    %v3774 = vunpack.c.l.b16 %v922
    %v3775 = vunpack.c.h.b16 %v922
    %v3776 = vunpack.c.l.b16 %v923
    %v3777 = vunpack.c.h.b16 %v923
    %v3778 = vunpack.c.l.b16 %v924
    %v3779 = vunpack.c.h.b16 %v924
    %v3780 = vunpack.c.l.b16 %v925
    %v3781 = vunpack.c.h.b16 %v925
    %v3782 = vunpack.c.l.b16 %v926
    %v3783 = vunpack.c.h.b16 %v926
    %v3784 = vunpack.c.l.b16 %v927
    %v3785 = vunpack.c.h.b16 %v927
    %v3786 = vunpack.c.l.b16 %v928
    %v3787 = vunpack.c.h.b16 %v928
    %v3788 = vunpack.c.l.b16 %v929
    %v3789 = vunpack.c.h.b16 %v929
    %v3790 = vunpack.c.l.b16 %v930
    %v3791 = vunpack.c.h.b16 %v930
    %v3792 = vunpack.c.l.b16 %v931
    %v3793 = vunpack.c.h.b16 %v931
    %v3794 = vunpack.c.l.b16 %v932
    %v3795 = vunpack.c.h.b16 %v932
    %v3796 = vunpack.c.l.b16 %v933
    %v3797 = vunpack.c.h.b16 %v933
    %v3798 = vunpack.c.l.b16 %v934
    %v3799 = vunpack.c.h.b16 %v934
    %v3800 = vunpack.c.l.b16 %v935
    %v3801 = vunpack.c.h.b16 %v935
    %v3802 = vunpack.c.l.b16 %v936
    %v3803 = vunpack.c.h.b16 %v936
    %v3804 = vunpack.c.l.b16 %v937
    %v3805 = vunpack.c.h.b16 %v937
    %v3806 = vunpack.c.l.b16 %v938
    %v3807 = vunpack.c.h.b16 %v938
    %v3808 = vunpack.c.l.b16 %v939
    %v3809 = vunpack.c.h.b16 %v939
    %v3810 = vunpack.c.l.b16 %v940
    %v3811 = vunpack.c.h.b16 %v940
    %v3812 = vunpack.c.l.b16 %v941
    %v3813 = vunpack.c.h.b16 %v941
    %v3814 = vunpack.c.l.b16 %v942
    %v3815 = vunpack.c.h.b16 %v942
    %v3816 = vunpack.c.l.b16 %v943
    %v3817 = vunpack.c.h.b16 %v943
    %v3818 = vunpack.c.l.b16 %v944
    %v3819 = vunpack.c.h.b16 %v944
    %v3820 = vunpack.c.l.b16 %v945
    %v3821 = vunpack.c.h.b16 %v945
    %v3822 = vunpack.c.l.b16 %v946
    %v3823 = vunpack.c.h.b16 %v946
    %v3824 = vunpack.c.l.b16 %v947
    %v3825 = vunpack.c.h.b16 %v947
    %v3826 = vunpack.c.l.b16 %v948
    %v3827 = vunpack.c.h.b16 %v948
    %v3828 = vunpack.c.l.b16 %v949
    %v3829 = vunpack.c.h.b16 %v949
    %v3830 = vunpack.c.l.b16 %v950
    %v3831 = vunpack.c.h.b16 %v950
    %v3832 = vunpack.c.l.b16 %v951
    %v3833 = vunpack.c.h.b16 %v951
    %v3834 = vunpack.c.l.b16 %v952
    %v3835 = vunpack.c.h.b16 %v952
    %v3836 = vunpack.c.l.b16 %v953
    %v3837 = vunpack.c.h.b16 %v953
    %v3838 = vunpack.c.l.b16 %v954
    %v3839 = vunpack.c.h.b16 %v954
    %v3840 = vunpack.c.l.b16 %v955
    %v3841 = vunpack.c.h.b16 %v955
    %v3842 = vunpack.c.l.b16 %v956
    %v3843 = vunpack.c.h.b16 %v956
    %v3844 = vunpack.c.l.b16 %v957
    %v3845 = vunpack.c.h.b16 %v957
    %v3846 = vunpack.c.l.b16 %v958
    %v3847 = vunpack.c.h.b16 %v958
    %v3848 = vunpack.c.l.b16 %v959
    %v3849 = vunpack.c.h.b16 %v959
    %v3850 = vunpack.c.l.b16 %v960
    %v3851 = vunpack.c.h.b16 %v960
    %v3852 = vunpack.c.l.b16 %v961
    %v3853 = vunpack.c.h.b16 %v961
    %v3854 = vunpack.c.l.b16 %v962
    %v3855 = vunpack.c.h.b16 %v962
    %v3856 = vunpack.c.l.b16 %v963
    %v3857 = vunpack.c.h.b16 %v963
    %v3858 = vunpack.c.l.b16 %v964
    %v3859 = vunpack.c.h.b16 %v964
    %v3860 = vunpack.c.l.b16 %v965
    %v3861 = vunpack.c.h.b16 %v965
    %v3862 = vunpack.c.l.b16 %v966
    %v3863 = vunpack.c.h.b16 %v966
    %v3864 = vunpack.c.l.b16 %v967
    %v3865 = vunpack.c.h.b16 %v967
    %v3866 = vunpack.c.l.b16 %v968
    %v3867 = vunpack.c.h.b16 %v968
    %v3868 = vunpack.c.l.b16 %v969
    %v3869 = vunpack.c.h.b16 %v969
    %v3870 = vunpack.c.l.b16 %v970
    %v3871 = vunpack.c.h.b16 %v970
    %v3872 = vunpack.c.l.b16 %v971
    %v3873 = vunpack.c.h.b16 %v971
    %v3874 = vunpack.c.l.b16 %v972
    %v3875 = vunpack.c.h.b16 %v972
    %v3876 = vunpack.c.l.b16 %v973
    %v3877 = vunpack.c.h.b16 %v973
    %v3878 = vunpack.c.l.b16 %v974
    %v3879 = vunpack.c.h.b16 %v974
    %v3880 = vunpack.c.l.b16 %v975
    %v3881 = vunpack.c.h.b16 %v975
    %v3882 = vunpack.c.l.b16 %v976
    %v3883 = vunpack.c.h.b16 %v976
    %v3884 = vunpack.c.l.b16 %v977
    %v3885 = vunpack.c.h.b16 %v977
    %v3886 = vunpack.c.l.b16 %v978
    %v3887 = vunpack.c.h.b16 %v978
    %v3888 = vunpack.c.l.b16 %v979
    %v3889 = vunpack.c.h.b16 %v979
    %v3890 = vunpack.c.l.b16 %v980
    %v3891 = vunpack.c.h.b16 %v980
    %v3892 = vunpack.c.l.b16 %v981
    %v3893 = vunpack.c.h.b16 %v981
    %v3894 = vunpack.c.l.b16 %v982
    %v3895 = vunpack.c.h.b16 %v982
    %v3896 = vunpack.c.l.b16 %v983
    %v3897 = vunpack.c.h.b16 %v983
    %v3898 = vunpack.c.l.b16 %v984
    %v3899 = vunpack.c.h.b16 %v984
    %v3900 = vunpack.c.l.b16 %v985
    %v3901 = vunpack.c.h.b16 %v985
    %v3902 = vunpack.c.l.b16 %v986
    %v3903 = vunpack.c.h.b16 %v986
    %v3904 = vunpack.c.l.b16 %v987
    %v3905 = vunpack.c.h.b16 %v987
    %v3906 = vunpack.c.l.b16 %v988
    %v3907 = vunpack.c.h.b16 %v988
    %v3908 = vunpack.c.l.b16 %v989
    %v3909 = vunpack.c.h.b16 %v989
    %v3910 = vunpack.c.l.b16 %v990
    %v3911 = vunpack.c.h.b16 %v990
    %v3912 = vunpack.c.l.b16 %v991
    %v3913 = vunpack.c.h.b16 %v991
    %v3914 = vunpack.c.l.b16 %v992
    %v3915 = vunpack.c.h.b16 %v992
    %v3916 = vunpack.c.l.b16 %v993
    %v3917 = vunpack.c.h.b16 %v993
    %v3918 = vunpack.c.l.b16 %v994
    %v3919 = vunpack.c.h.b16 %v994
    %v3920 = vunpack.c.l.b16 %v995
    %v3921 = vunpack.c.h.b16 %v995
    %v3922 = vunpack.c.l.b16 %v996
    %v3923 = vunpack.c.h.b16 %v996
    %v3924 = vunpack.c.l.b16 %v997
    %v3925 = vunpack.c.h.b16 %v997
    %v3926 = vunpack.c.l.b16 %v998
    %v3927 = vunpack.c.h.b16 %v998
    %v3928 = vunpack.c.l.b16 %v999
    %v3929 = vunpack.c.h.b16 %v999
    %v3930 = vunpack.c.l.b16 %v1000
    %v3931 = vunpack.c.h.b16 %v1000
    %v3932 = vunpack.c.l.b16 %v1001
    %v3933 = vunpack.c.h.b16 %v1001
    %v3934 = vunpack.c.l.b16 %v1002
    %v3935 = vunpack.c.h.b16 %v1002
    %v3936 = vunpack.c.l.b16 %v1003
    %v3937 = vunpack.c.h.b16 %v1003
    %v3938 = vunpack.c.l.b16 %v1004
    %v3939 = vunpack.c.h.b16 %v1004
    %v3940 = vunpack.c.l.b16 %v1005
    %v3941 = vunpack.c.h.b16 %v1005
    %v3942 = vunpack.c.l.b16 %v1006
    %v3943 = vunpack.c.h.b16 %v1006
    %v3944 = vunpack.c.l.b16 %v1007
    %v3945 = vunpack.c.h.b16 %v1007
    %v3946 = vunpack.c.l.b16 %v1008
    %v3947 = vunpack.c.h.b16 %v1008
    %v3948 = vunpack.c.l.b16 %v1009
    %v3949 = vunpack.c.h.b16 %v1009
    %v3950 = vunpack.c.l.b16 %v1010
    %v3951 = vunpack.c.h.b16 %v1010
    %v3952 = vunpack.c.l.b16 %v1011
    %v3953 = vunpack.c.h.b16 %v1011
    %v3954 = vunpack.c.l.b16 %v1012
    %v3955 = vunpack.c.h.b16 %v1012
    %v3956 = vunpack.c.l.b16 %v1013
    %v3957 = vunpack.c.h.b16 %v1013
    %v3958 = vunpack.c.l.b16 %v1014
    %v3959 = vunpack.c.h.b16 %v1014
    %v3960 = vunpack.c.l.b16 %v1015
    %v3961 = vunpack.c.h.b16 %v1015
    %v3962 = vunpack.c.l.b16 %v1016
    %v3963 = vunpack.c.h.b16 %v1016
    %v3964 = vunpack.c.l.b16 %v1017
    %v3965 = vunpack.c.h.b16 %v1017
    %v3966 = vunpack.c.l.b16 %v1018
    %v3967 = vunpack.c.h.b16 %v1018
    %v3968 = vunpack.c.l.b16 %v1019
    %v3969 = vunpack.c.h.b16 %v1019
    %v3970 = vunpack.c.l.b16 %v1020
    %v3971 = vunpack.c.h.b16 %v1020
    %v3972 = vunpack.c.l.b16 %v1021
    %v3973 = vunpack.c.h.b16 %v1021
    %v3974 = vunpack.c.l.b16 %v1022
    %v3975 = vunpack.c.h.b16 %v1022
    %v3976 = vunpack.c.l.b16 %v1023
    %v3977 = vunpack.c.h.b16 %v1023
    %v3978 = vunpack.c.l.b16 %v1024
    %v3979 = vunpack.c.h.b16 %v1024
    %v3980 = vunpack.c.l.b16 %v1025
    %v3981 = vunpack.c.h.b16 %v1025
    %v3982 = vunpack.c.l.b16 %v1026
    %v3983 = vunpack.c.h.b16 %v1026
    %v3984 = vunpack.c.l.b16 %v1027
    %v3985 = vunpack.c.h.b16 %v1027
    %v3986 = vunpack.c.l.b16 %v1028
    %v3987 = vunpack.c.h.b16 %v1028
    %v3988 = vunpack.c.l.b16 %v1029
    %v3989 = vunpack.c.h.b16 %v1029
    %v3990 = vunpack.c.l.b16 %v1030
    %v3991 = vunpack.c.h.b16 %v1030
    %v3992 = vunpack.c.l.b16 %v1031
    %v3993 = vunpack.c.h.b16 %v1031
    %v3994 = vunpack.c.l.b16 %v1032
    %v3995 = vunpack.c.h.b16 %v1032
    %v3996 = vunpack.c.l.b16 %v1033
    %v3997 = vunpack.c.h.b16 %v1033
    %v3998 = vunpack.c.l.b16 %v1034
    %v3999 = vunpack.c.h.b16 %v1034
    %v4000 = vunpack.c.l.b16 %v1035
    %v4001 = vunpack.c.h.b16 %v1035
    %v4002 = vunpack.c.l.b16 %v1036
    %v4003 = vunpack.c.h.b16 %v1036
    %v4004 = vunpack.c.l.b16 %v1037
    %v4005 = vunpack.c.h.b16 %v1037
    %v4006 = vunpack.c.l.b16 %v1038
    %v4007 = vunpack.c.h.b16 %v1038
    %v4008 = vunpack.c.l.b16 %v1039
    %v4009 = vunpack.c.h.b16 %v1039
    %v4010 = vunpack.c.l.b16 %v1040
    %v4011 = vunpack.c.h.b16 %v1040
    %v4012 = vunpack.c.l.b16 %v1041
    %v4013 = vunpack.c.h.b16 %v1041
    %v4014 = vunpack.c.l.b16 %v1042
    %v4015 = vunpack.c.h.b16 %v1042
    %v4016 = vunpack.c.l.b16 %v1043
    %v4017 = vunpack.c.h.b16 %v1043
    %v4018 = vunpack.c.l.b16 %v1044
    %v4019 = vunpack.c.h.b16 %v1044
    %v4020 = vunpack.c.l.b16 %v1045
    %v4021 = vunpack.c.h.b16 %v1045
    %v4022 = vunpack.c.l.b16 %v1046
    %v4023 = vunpack.c.h.b16 %v1046
    %v4024 = vunpack.c.l.b16 %v1047
    %v4025 = vunpack.c.h.b16 %v1047
    %v4026 = vunpack.c.l.b16 %v1048
    %v4027 = vunpack.c.h.b16 %v1048
    %v4028 = vunpack.c.l.b16 %v1049
    %v4029 = vunpack.c.h.b16 %v1049
    %v4030 = vunpack.c.l.b16 %v1050
    %v4031 = vunpack.c.h.b16 %v1050
    %v4032 = vunpack.c.l.b16 %v1051
    %v4033 = vunpack.c.h.b16 %v1051
    %v4034 = vunpack.c.l.b16 %v1052
    %v4035 = vunpack.c.h.b16 %v1052
    %v4036 = vunpack.c.l.b16 %v1053
    %v4037 = vunpack.c.h.b16 %v1053
    %v4038 = vunpack.c.l.b16 %v1054
    %v4039 = vunpack.c.h.b16 %v1054
    %v4040 = vunpack.c.l.b16 %v1055
    %v4041 = vunpack.c.h.b16 %v1055
    %v4042 = vunpack.c.l.b16 %v1056
    %v4043 = vunpack.c.h.b16 %v1056
    %v4044 = vunpack.c.l.b16 %v1057
    %v4045 = vunpack.c.h.b16 %v1057
    %v4046 = vunpack.c.l.b16 %v1058
    %v4047 = vunpack.c.h.b16 %v1058
    %v4048 = vunpack.c.l.b16 %v1059
    %v4049 = vunpack.c.h.b16 %v1059
    %v4050 = vunpack.c.l.b16 %v1060
    %v4051 = vunpack.c.h.b16 %v1060
    %v4052 = vunpack.c.l.b16 %v1061
    %v4053 = vunpack.c.h.b16 %v1061
    %v4054 = vunpack.c.l.b16 %v1062
    %v4055 = vunpack.c.h.b16 %v1062
    %v4056 = vunpack.c.l.b16 %v1063
    %v4057 = vunpack.c.h.b16 %v1063
    %v4058 = vunpack.c.l.b16 %v1064
    %v4059 = vunpack.c.h.b16 %v1064
    %v4060 = vunpack.c.l.b16 %v1065
    %v4061 = vunpack.c.h.b16 %v1065
    %v4062 = vunpack.c.l.b16 %v1066
    %v4063 = vunpack.c.h.b16 %v1066
    %v4064 = vunpack.c.l.b16 %v1067
    %v4065 = vunpack.c.h.b16 %v1067
    %v4066 = vunpack.c.l.b16 %v1068
    %v4067 = vunpack.c.h.b16 %v1068
    %v4068 = vunpack.c.l.b16 %v1069
    %v4069 = vunpack.c.h.b16 %v1069
    %v4070 = vunpack.c.l.b16 %v1070
    %v4071 = vunpack.c.h.b16 %v1070
    %v4072 = vunpack.c.l.b16 %v1071
    %v4073 = vunpack.c.h.b16 %v1071
    %v4074 = vunpack.c.l.b16 %v1072
    %v4075 = vunpack.c.h.b16 %v1072
    %v4076 = vunpack.c.l.b16 %v1073
    %v4077 = vunpack.c.h.b16 %v1073
    %v4078 = vunpack.c.l.b16 %v1074
    %v4079 = vunpack.c.h.b16 %v1074
    %v4080 = vunpack.c.l.b16 %v1075
    %v4081 = vunpack.c.h.b16 %v1075
    %v4082 = vunpack.c.l.b16 %v1076
    %v4083 = vunpack.c.h.b16 %v1076
    %v4084 = vunpack.c.l.b16 %v1077
    %v4085 = vunpack.c.h.b16 %v1077
    %v4086 = vunpack.c.l.b16 %v1078
    %v4087 = vunpack.c.h.b16 %v1078
    %v4088 = vunpack.c.l.b16 %v1079
    %v4089 = vunpack.c.h.b16 %v1079
    %v4090 = vunpack.c.l.b16 %v1080
    %v4091 = vunpack.c.h.b16 %v1080
    %v4092 = vunpack.c.l.b16 %v1081
    %v4093 = vunpack.c.h.b16 %v1081
    %v4094 = vunpack.c.l.b16 %v1082
    %v4095 = vunpack.c.h.b16 %v1082
    %v4096 = vunpack.c.l.b16 %v1083
    %v4097 = vunpack.c.h.b16 %v1083
    %v4098 = vunpack.c.l.b16 %v1084
    %v4099 = vunpack.c.h.b16 %v1084
    %v4100 = vunpack.c.l.b16 %v1085
    %v4101 = vunpack.c.h.b16 %v1085
    %v4102 = vunpack.c.l.b16 %v1086
    %v4103 = vunpack.c.h.b16 %v1086
    %v4104 = vunpack.c.l.b16 %v1087
    %v4105 = vunpack.c.h.b16 %v1087
    %v4106 = vunpack.c.l.b16 %v1088
    %v4107 = vunpack.c.h.b16 %v1088
    %v4108 = vunpack.c.l.b16 %v1089
    %v4109 = vunpack.c.h.b16 %v1089
    %v4110 = vunpack.c.l.b16 %v1090
    %v4111 = vunpack.c.h.b16 %v1090
    %v4112 = vunpack.c.l.b16 %v1091
    %v4113 = vunpack.c.h.b16 %v1091
    %v4114 = vunpack.c.l.b16 %v1092
    %v4115 = vunpack.c.h.b16 %v1092
    %v4116 = vunpack.c.l.b16 %v1093
    %v4117 = vunpack.c.h.b16 %v1093
    %v4118 = vunpack.c.l.b16 %v1094
    %v4119 = vunpack.c.h.b16 %v1094
    %v4120 = vunpack.c.l.b16 %v1095
    %v4121 = vunpack.c.h.b16 %v1095
    %v4122 = vunpack.c.l.b16 %v1096
    %v4123 = vunpack.c.h.b16 %v1096
    %v4124 = vunpack.c.l.b16 %v1097
    %v4125 = vunpack.c.h.b16 %v1097
    %v4126 = vunpack.c.l.b16 %v1098
    %v4127 = vunpack.c.h.b16 %v1098
    %v4128 = vunpack.c.l.b16 %v1099
    %v4129 = vunpack.c.h.b16 %v1099
    %v4130 = vunpack.c.l.b16 %v1100
    %v4131 = vunpack.c.h.b16 %v1100
    %v4132 = vunpack.c.l.b16 %v1101
    %v4133 = vunpack.c.h.b16 %v1101
    %v4134 = vunpack.c.l.b16 %v1102
    %v4135 = vunpack.c.h.b16 %v1102
    %v4136 = vunpack.c.l.b16 %v1103
    %v4137 = vunpack.c.h.b16 %v1103
    %v4138 = vunpack.c.l.b16 %v1104
    %v4139 = vunpack.c.h.b16 %v1104
    %v4140 = vunpack.c.l.b16 %v1105
    %v4141 = vunpack.c.h.b16 %v1105
    %v4142 = vunpack.c.l.b16 %v1106
    %v4143 = vunpack.c.h.b16 %v1106
    %v4144 = vunpack.c.l.b16 %v1107
    %v4145 = vunpack.c.h.b16 %v1107
    %v4146 = vunpack.c.l.b16 %v1108
    %v4147 = vunpack.c.h.b16 %v1108
    %v4148 = vunpack.c.l.b16 %v1109
    %v4149 = vunpack.c.h.b16 %v1109
    %v4150 = vunpack.c.l.b16 %v1110
    %v4151 = vunpack.c.h.b16 %v1110
    %v4152 = vunpack.c.l.b16 %v1111
    %v4153 = vunpack.c.h.b16 %v1111
    %v4154 = vunpack.c.l.b16 %v1112
    %v4155 = vunpack.c.h.b16 %v1112
    %v4156 = vunpack.c.l.b16 %v1113
    %v4157 = vunpack.c.h.b16 %v1113
    %v4158 = vunpack.c.l.b16 %v1114
    %v4159 = vunpack.c.h.b16 %v1114
    %v4160 = vunpack.c.l.b16 %v1115
    %v4161 = vunpack.c.h.b16 %v1115
    %v4162 = vunpack.c.l.b16 %v1116
    %v4163 = vunpack.c.h.b16 %v1116
    %v4164 = vunpack.c.l.b16 %v1117
    %v4165 = vunpack.c.h.b16 %v1117
    %v4166 = vunpack.c.l.b16 %v1118
    %v4167 = vunpack.c.h.b16 %v1118
    %v4168 = vunpack.c.l.b16 %v1119
    %v4169 = vunpack.c.h.b16 %v1119
    %v4170 = vunpack.c.l.b16 %v1120
    %v4171 = vunpack.c.h.b16 %v1120
    %v4172 = vunpack.c.l.b16 %v1121
    %v4173 = vunpack.c.h.b16 %v1121
    %v4174 = vunpack.c.l.b16 %v1122
    %v4175 = vunpack.c.h.b16 %v1122
    %v4176 = vunpack.c.l.b16 %v1123
    %v4177 = vunpack.c.h.b16 %v1123
    %v4178 = vunpack.c.l.b16 %v1124
    %v4179 = vunpack.c.h.b16 %v1124
    %v4180 = vunpack.c.l.b16 %v1125
    %v4181 = vunpack.c.h.b16 %v1125
    %v4182 = vunpack.c.l.b16 %v1126
    %v4183 = vunpack.c.h.b16 %v1126
    %v4184 = vunpack.c.l.b16 %v1127
    %v4185 = vunpack.c.h.b16 %v1127
    %v4186 = vunpack.c.l.b16 %v1128
    %v4187 = vunpack.c.h.b16 %v1128
    %v4188 = vunpack.c.l.b16 %v1129
    %v4189 = vunpack.c.h.b16 %v1129
    %v4190 = vunpack.c.l.b16 %v1130
    %v4191 = vunpack.c.h.b16 %v1130
    %v4192 = vunpack.c.l.b16 %v1131
    %v4193 = vunpack.c.h.b16 %v1131
    %v4194 = vunpack.c.l.b16 %v1132
    %v4195 = vunpack.c.h.b16 %v1132
    %v4196 = vunpack.c.l.b16 %v1133
    %v4197 = vunpack.c.h.b16 %v1133
    %v4198 = vunpack.c.l.b16 %v1134
    %v4199 = vunpack.c.h.b16 %v1134
    %v4200 = vunpack.c.l.b16 %v1135
    %v4201 = vunpack.c.h.b16 %v1135
    %v4202 = vunpack.c.l.b16 %v1136
    %v4203 = vunpack.c.h.b16 %v1136
    %v4204 = vunpack.c.l.b16 %v1137
    %v4205 = vunpack.c.h.b16 %v1137
    %v4206 = vunpack.c.l.b16 %v1138
    %v4207 = vunpack.c.h.b16 %v1138
    %v4208 = vunpack.c.l.b16 %v1139
    %v4209 = vunpack.c.h.b16 %v1139
    %v4210 = vunpack.c.l.b16 %v1140
    %v4211 = vunpack.c.h.b16 %v1140
    %v4212 = vunpack.c.l.b16 %v1141
    %v4213 = vunpack.c.h.b16 %v1141
    %v4214 = vunpack.c.l.b16 %v1142
    %v4215 = vunpack.c.h.b16 %v1142
    %v4216 = vunpack.c.l.b16 %v1143
    %v4217 = vunpack.c.h.b16 %v1143
    %v4218 = vunpack.c.l.b16 %v1144
    %v4219 = vunpack.c.h.b16 %v1144
    %v4220 = vunpack.c.l.b16 %v1145
    %v4221 = vunpack.c.h.b16 %v1145
    %v4222 = vunpack.c.l.b16 %v1146
    %v4223 = vunpack.c.h.b16 %v1146
    %v4224 = vunpack.c.l.b16 %v1147
    %v4225 = vunpack.c.h.b16 %v1147
    %v4226 = vunpack.c.l.b16 %v1148
    %v4227 = vunpack.c.h.b16 %v1148
    %v4228 = vunpack.c.l.b16 %v1149
    %v4229 = vunpack.c.h.b16 %v1149
    %v4230 = vunpack.c.l.b16 %v1150
    %v4231 = vunpack.c.h.b16 %v1150
    %v4232 = vunpack.c.l.b16 %v1151
    %v4233 = vunpack.c.h.b16 %v1151
    %v4234 = vunpack.c.l.b16 %v1152
    %v4235 = vunpack.c.h.b16 %v1152
    %v4236 = vunpack.c.l.b16 %v1153
    %v4237 = vunpack.c.h.b16 %v1153
    %v4238 = vunpack.c.l.b16 %v1154
    %v4239 = vunpack.c.h.b16 %v1154
    %v4240 = vunpack.c.l.b16 %v1155
    %v4241 = vunpack.c.h.b16 %v1155
    %v4242 = vunpack.c.l.b16 %v1156
    %v4243 = vunpack.c.h.b16 %v1156
    %v4244 = vunpack.c.l.b16 %v1157
    %v4245 = vunpack.c.h.b16 %v1157
    %v4246 = vunpack.c.l.b16 %v1158
    %v4247 = vunpack.c.h.b16 %v1158
    %v4248 = vunpack.c.l.b16 %v1159
    %v4249 = vunpack.c.h.b16 %v1159
    %v4250 = vunpack.c.l.b16 %v1160
    %v4251 = vunpack.c.h.b16 %v1160
    %v4252 = vunpack.c.l.b16 %v1161
    %v4253 = vunpack.c.h.b16 %v1161
    %v4254 = vunpack.c.l.b16 %v1162
    %v4255 = vunpack.c.h.b16 %v1162
    %v4256 = vunpack.c.l.b16 %v1163
    %v4257 = vunpack.c.h.b16 %v1163
    %v4258 = vunpack.c.l.b16 %v1164
    %v4259 = vunpack.c.h.b16 %v1164
    %v4260 = vunpack.c.l.b16 %v1165
    %v4261 = vunpack.c.h.b16 %v1165
    %v4262 = vunpack.c.l.b16 %v1166
    %v4263 = vunpack.c.h.b16 %v1166
    %v4264 = vunpack.c.l.b16 %v1167
    %v4265 = vunpack.c.h.b16 %v1167
    %v4266 = vunpack.c.l.b16 %v1168
    %v4267 = vunpack.c.h.b16 %v1168
    %v4268 = vunpack.c.l.b16 %v1169
    %v4269 = vunpack.c.h.b16 %v1169
    %v4270 = vunpack.c.l.b16 %v1170
    %v4271 = vunpack.c.h.b16 %v1170
    %v4272 = vunpack.c.l.b16 %v1171
    %v4273 = vunpack.c.h.b16 %v1171
    %v4274 = vunpack.c.l.b16 %v1172
    %v4275 = vunpack.c.h.b16 %v1172
    %v4276 = vunpack.c.l.b16 %v1173
    %v4277 = vunpack.c.h.b16 %v1173
    %v4278 = vunpack.c.l.b16 %v1174
    %v4279 = vunpack.c.h.b16 %v1174
    %v4280 = vunpack.c.l.b16 %v1175
    %v4281 = vunpack.c.h.b16 %v1175
    %v4282 = vunpack.c.l.b16 %v1176
    %v4283 = vunpack.c.h.b16 %v1176
    %v4284 = vunpack.c.l.b16 %v1177
    %v4285 = vunpack.c.h.b16 %v1177
    %v4286 = vpack.c.b16 %v2254, %v2238
    %v4287 = vpack.c.b16 %v2255, %v2239
    %v4288 = vpack.c.b16 %v2256, %v2240
    %v4289 = vpack.c.b16 %v2257, %v2241
    %v4290 = vpack.c.b16 %v2258, %v2242
    %v4291 = vpack.c.b16 %v2259, %v2243
    %v4292 = vpack.c.b16 %v2260, %v2244
    %v4293 = vpack.c.b16 %v2261, %v2245
    %v4294 = vpack.c.b16 %v2262, %v2246
    %v4295 = vpack.c.b16 %v2263, %v2247
    %v4296 = vpack.c.b16 %v2264, %v2248
    %v4297 = vpack.c.b16 %v2265, %v2249
    %v4298 = vpack.c.b16 %v2266, %v2250
    %v4299 = vpack.c.b16 %v2267, %v2251
    %v4300 = vpack.c.b16 %v2268, %v2252
    %v4301 = vpack.c.b16 %v2269, %v2253
    %v4302 = vpack.c.b16 %v2286, %v2270
    %v4303 = vpack.c.b16 %v2287, %v2271
    %v4304 = vpack.c.b16 %v2288, %v2272
    %v4305 = vpack.c.b16 %v2289, %v2273
    %v4306 = vpack.c.b16 %v2290, %v2274
    %v4307 = vpack.c.b16 %v2291, %v2275
    %v4308 = vpack.c.b16 %v2292, %v2276
    %v4309 = vpack.c.b16 %v2293, %v2277
    %v4310 = vpack.c.b16 %v2294, %v2278
    %v4311 = vpack.c.b16 %v2295, %v2279
    %v4312 = vpack.c.b16 %v2296, %v2280
    %v4313 = vpack.c.b16 %v2297, %v2281
    %v4314 = vpack.c.b16 %v2298, %v2282
    %v4315 = vpack.c.b16 %v2299, %v2283
    %v4316 = vpack.c.b16 %v2300, %v2284
    %v4317 = vpack.c.b16 %v2301, %v2285
    %v4318 = vpack.c.b16 %v2318, %v2302
    %v4319 = vpack.c.b16 %v2319, %v2303
    %v4320 = vpack.c.b16 %v2320, %v2304
    %v4321 = vpack.c.b16 %v2321, %v2305
    %v4322 = vpack.c.b16 %v2322, %v2306
    %v4323 = vpack.c.b16 %v2323, %v2307
    %v4324 = vpack.c.b16 %v2324, %v2308
    %v4325 = vpack.c.b16 %v2325, %v2309
    %v4326 = vpack.c.b16 %v2326, %v2310
    %v4327 = vpack.c.b16 %v2327, %v2311
    %v4328 = vpack.c.b16 %v2328, %v2312
    %v4329 = vpack.c.b16 %v2329, %v2313
    %v4330 = vpack.c.b16 %v2330, %v2314
    %v4331 = vpack.c.b16 %v2331, %v2315
    %v4332 = vpack.c.b16 %v2332, %v2316
    %v4333 = vpack.c.b16 %v2333, %v2317
    %v4334 = vpack.c.b16 %v2350, %v2334
    %v4335 = vpack.c.b16 %v2351, %v2335
    %v4336 = vpack.c.b16 %v2352, %v2336
    %v4337 = vpack.c.b16 %v2353, %v2337
    %v4338 = vpack.c.b16 %v2354, %v2338
    %v4339 = vpack.c.b16 %v2355, %v2339
    %v4340 = vpack.c.b16 %v2356, %v2340
    %v4341 = vpack.c.b16 %v2357, %v2341
    %v4342 = vpack.c.b16 %v2358, %v2342
    %v4343 = vpack.c.b16 %v2359, %v2343
    %v4344 = vpack.c.b16 %v2360, %v2344
    %v4345 = vpack.c.b16 %v2361, %v2345
    %v4346 = vpack.c.b16 %v2362, %v2346
    %v4347 = vpack.c.b16 %v2363, %v2347
    %v4348 = vpack.c.b16 %v2364, %v2348
    %v4349 = vpack.c.b16 %v2365, %v2349
    %v4350 = vpack.c.b16 %v2382, %v2366
    %v4351 = vpack.c.b16 %v2383, %v2367
    %v4352 = vpack.c.b16 %v2384, %v2368
    %v4353 = vpack.c.b16 %v2385, %v2369
    %v4354 = vpack.c.b16 %v2386, %v2370
    %v4355 = vpack.c.b16 %v2387, %v2371
    %v4356 = vpack.c.b16 %v2388, %v2372
    %v4357 = vpack.c.b16 %v2389, %v2373
    %v4358 = vpack.c.b16 %v2390, %v2374
    %v4359 = vpack.c.b16 %v2391, %v2375
    %v4360 = vpack.c.b16 %v2392, %v2376
    %v4361 = vpack.c.b16 %v2393, %v2377
    %v4362 = vpack.c.b16 %v2394, %v2378
    %v4363 = vpack.c.b16 %v2395, %v2379
    %v4364 = vpack.c.b16 %v2396, %v2380
    %v4365 = vpack.c.b16 %v2397, %v2381
    %v4366 = vpack.c.b16 %v2414, %v2398
    %v4367 = vpack.c.b16 %v2415, %v2399
    %v4368 = vpack.c.b16 %v2416, %v2400
    %v4369 = vpack.c.b16 %v2417, %v2401
    %v4370 = vpack.c.b16 %v2418, %v2402
    %v4371 = vpack.c.b16 %v2419, %v2403
    %v4372 = vpack.c.b16 %v2420, %v2404
    %v4373 = vpack.c.b16 %v2421, %v2405
    %v4374 = vpack.c.b16 %v2422, %v2406
    %v4375 = vpack.c.b16 %v2423, %v2407
    %v4376 = vpack.c.b16 %v2424, %v2408
    %v4377 = vpack.c.b16 %v2425, %v2409
    %v4378 = vpack.c.b16 %v2426, %v2410
    %v4379 = vpack.c.b16 %v2427, %v2411
    %v4380 = vpack.c.b16 %v2428, %v2412
    %v4381 = vpack.c.b16 %v2429, %v2413
    %v4382 = vpack.c.b16 %v2446, %v2430
    %v4383 = vpack.c.b16 %v2447, %v2431
    %v4384 = vpack.c.b16 %v2448, %v2432
    %v4385 = vpack.c.b16 %v2449, %v2433
    %v4386 = vpack.c.b16 %v2450, %v2434
    %v4387 = vpack.c.b16 %v2451, %v2435
    %v4388 = vpack.c.b16 %v2452, %v2436
    %v4389 = vpack.c.b16 %v2453, %v2437
    %v4390 = vpack.c.b16 %v2454, %v2438
    %v4391 = vpack.c.b16 %v2455, %v2439
    %v4392 = vpack.c.b16 %v2456, %v2440
    %v4393 = vpack.c.b16 %v2457, %v2441
    %v4394 = vpack.c.b16 %v2458, %v2442
    %v4395 = vpack.c.b16 %v2459, %v2443
    %v4396 = vpack.c.b16 %v2460, %v2444
    %v4397 = vpack.c.b16 %v2461, %v2445
    %v4398 = vpack.c.b16 %v2478, %v2462
    %v4399 = vpack.c.b16 %v2479, %v2463
    %v4400 = vpack.c.b16 %v2480, %v2464
    %v4401 = vpack.c.b16 %v2481, %v2465
    %v4402 = vpack.c.b16 %v2482, %v2466
    %v4403 = vpack.c.b16 %v2483, %v2467
    %v4404 = vpack.c.b16 %v2484, %v2468
    %v4405 = vpack.c.b16 %v2485, %v2469
    %v4406 = vpack.c.b16 %v2486, %v2470
    %v4407 = vpack.c.b16 %v2487, %v2471
    %v4408 = vpack.c.b16 %v2488, %v2472
    %v4409 = vpack.c.b16 %v2489, %v2473
    %v4410 = vpack.c.b16 %v2490, %v2474
    %v4411 = vpack.c.b16 %v2491, %v2475
    %v4412 = vpack.c.b16 %v2492, %v2476
    %v4413 = vpack.c.b16 %v2493, %v2477
    %v4414 = vpack.c.b16 %v2510, %v2494
    %v4415 = vpack.c.b16 %v2511, %v2495
    %v4416 = vpack.c.b16 %v2512, %v2496
    %v4417 = vpack.c.b16 %v2513, %v2497
    %v4418 = vpack.c.b16 %v2514, %v2498
    %v4419 = vpack.c.b16 %v2515, %v2499
    %v4420 = vpack.c.b16 %v2516, %v2500
    %v4421 = vpack.c.b16 %v2517, %v2501
    %v4422 = vpack.c.b16 %v2518, %v2502
    %v4423 = vpack.c.b16 %v2519, %v2503
    %v4424 = vpack.c.b16 %v2520, %v2504
    %v4425 = vpack.c.b16 %v2521, %v2505
    %v4426 = vpack.c.b16 %v2522, %v2506
    %v4427 = vpack.c.b16 %v2523, %v2507
    %v4428 = vpack.c.b16 %v2524, %v2508
    %v4429 = vpack.c.b16 %v2525, %v2509
    %v4430 = vpack.c.b16 %v2542, %v2526
    %v4431 = vpack.c.b16 %v2543, %v2527
    %v4432 = vpack.c.b16 %v2544, %v2528
    %v4433 = vpack.c.b16 %v2545, %v2529
    %v4434 = vpack.c.b16 %v2546, %v2530
    %v4435 = vpack.c.b16 %v2547, %v2531
    %v4436 = vpack.c.b16 %v2548, %v2532
    %v4437 = vpack.c.b16 %v2549, %v2533
    %v4438 = vpack.c.b16 %v2550, %v2534
    %v4439 = vpack.c.b16 %v2551, %v2535
    %v4440 = vpack.c.b16 %v2552, %v2536
    %v4441 = vpack.c.b16 %v2553, %v2537
    %v4442 = vpack.c.b16 %v2554, %v2538
    %v4443 = vpack.c.b16 %v2555, %v2539
    %v4444 = vpack.c.b16 %v2556, %v2540
    %v4445 = vpack.c.b16 %v2557, %v2541
    %v4446 = vpack.c.b16 %v2574, %v2558
    %v4447 = vpack.c.b16 %v2575, %v2559
    %v4448 = vpack.c.b16 %v2576, %v2560
    %v4449 = vpack.c.b16 %v2577, %v2561
    %v4450 = vpack.c.b16 %v2578, %v2562
    %v4451 = vpack.c.b16 %v2579, %v2563
    %v4452 = vpack.c.b16 %v2580, %v2564
    %v4453 = vpack.c.b16 %v2581, %v2565
    %v4454 = vpack.c.b16 %v2582, %v2566
    %v4455 = vpack.c.b16 %v2583, %v2567
    %v4456 = vpack.c.b16 %v2584, %v2568
    %v4457 = vpack.c.b16 %v2585, %v2569
    %v4458 = vpack.c.b16 %v2586, %v2570
    %v4459 = vpack.c.b16 %v2587, %v2571
    %v4460 = vpack.c.b16 %v2588, %v2572
    %v4461 = vpack.c.b16 %v2589, %v2573
    %v4462 = vpack.c.b16 %v2606, %v2590
    %v4463 = vpack.c.b16 %v2607, %v2591
    %v4464 = vpack.c.b16 %v2608, %v2592
    %v4465 = vpack.c.b16 %v2609, %v2593
    %v4466 = vpack.c.b16 %v2610, %v2594
    %v4467 = vpack.c.b16 %v2611, %v2595
    %v4468 = vpack.c.b16 %v2612, %v2596
    %v4469 = vpack.c.b16 %v2613, %v2597
    %v4470 = vpack.c.b16 %v2614, %v2598
    %v4471 = vpack.c.b16 %v2615, %v2599
    %v4472 = vpack.c.b16 %v2616, %v2600
    %v4473 = vpack.c.b16 %v2617, %v2601
    %v4474 = vpack.c.b16 %v2618, %v2602
    %v4475 = vpack.c.b16 %v2619, %v2603
    %v4476 = vpack.c.b16 %v2620, %v2604
    %v4477 = vpack.c.b16 %v2621, %v2605
    %v4478 = vpack.c.b16 %v2638, %v2622
    %v4479 = vpack.c.b16 %v2639, %v2623
    %v4480 = vpack.c.b16 %v2640, %v2624
    %v4481 = vpack.c.b16 %v2641, %v2625
    %v4482 = vpack.c.b16 %v2642, %v2626
    %v4483 = vpack.c.b16 %v2643, %v2627
    %v4484 = vpack.c.b16 %v2644, %v2628
    %v4485 = vpack.c.b16 %v2645, %v2629
    %v4486 = vpack.c.b16 %v2646, %v2630
    %v4487 = vpack.c.b16 %v2647, %v2631
    %v4488 = vpack.c.b16 %v2648, %v2632
    %v4489 = vpack.c.b16 %v2649, %v2633
    %v4490 = vpack.c.b16 %v2650, %v2634
    %v4491 = vpack.c.b16 %v2651, %v2635
    %v4492 = vpack.c.b16 %v2652, %v2636
    %v4493 = vpack.c.b16 %v2653, %v2637
    %v4494 = vpack.c.b16 %v2670, %v2654
    %v4495 = vpack.c.b16 %v2671, %v2655
    %v4496 = vpack.c.b16 %v2672, %v2656
    %v4497 = vpack.c.b16 %v2673, %v2657
    %v4498 = vpack.c.b16 %v2674, %v2658
    %v4499 = vpack.c.b16 %v2675, %v2659
    %v4500 = vpack.c.b16 %v2676, %v2660
    %v4501 = vpack.c.b16 %v2677, %v2661
    %v4502 = vpack.c.b16 %v2678, %v2662
    %v4503 = vpack.c.b16 %v2679, %v2663
    %v4504 = vpack.c.b16 %v2680, %v2664
    %v4505 = vpack.c.b16 %v2681, %v2665
    %v4506 = vpack.c.b16 %v2682, %v2666
    %v4507 = vpack.c.b16 %v2683, %v2667
    %v4508 = vpack.c.b16 %v2684, %v2668
    %v4509 = vpack.c.b16 %v2685, %v2669
    %v4510 = vpack.c.b16 %v2702, %v2686
    %v4511 = vpack.c.b16 %v2703, %v2687
    %v4512 = vpack.c.b16 %v2704, %v2688
    %v4513 = vpack.c.b16 %v2705, %v2689
    %v4514 = vpack.c.b16 %v2706, %v2690
    %v4515 = vpack.c.b16 %v2707, %v2691
    %v4516 = vpack.c.b16 %v2708, %v2692
    %v4517 = vpack.c.b16 %v2709, %v2693
    %v4518 = vpack.c.b16 %v2710, %v2694
    %v4519 = vpack.c.b16 %v2711, %v2695
    %v4520 = vpack.c.b16 %v2712, %v2696
    %v4521 = vpack.c.b16 %v2713, %v2697
    %v4522 = vpack.c.b16 %v2714, %v2698
    %v4523 = vpack.c.b16 %v2715, %v2699
    %v4524 = vpack.c.b16 %v2716, %v2700
    %v4525 = vpack.c.b16 %v2717, %v2701
    %v4526 = vpack.c.b16 %v2734, %v2718
    %v4527 = vpack.c.b16 %v2735, %v2719
    %v4528 = vpack.c.b16 %v2736, %v2720
    %v4529 = vpack.c.b16 %v2737, %v2721
    %v4530 = vpack.c.b16 %v2738, %v2722
    %v4531 = vpack.c.b16 %v2739, %v2723
    %v4532 = vpack.c.b16 %v2740, %v2724
    %v4533 = vpack.c.b16 %v2741, %v2725
    %v4534 = vpack.c.b16 %v2742, %v2726
    %v4535 = vpack.c.b16 %v2743, %v2727
    %v4536 = vpack.c.b16 %v2744, %v2728
    %v4537 = vpack.c.b16 %v2745, %v2729
    %v4538 = vpack.c.b16 %v2746, %v2730
    %v4539 = vpack.c.b16 %v2747, %v2731
    %v4540 = vpack.c.b16 %v2748, %v2732
    %v4541 = vpack.c.b16 %v2749, %v2733
    %v4542 = vpack.c.b16 %v2766, %v2750
    %v4543 = vpack.c.b16 %v2767, %v2751
    %v4544 = vpack.c.b16 %v2768, %v2752
    %v4545 = vpack.c.b16 %v2769, %v2753
    %v4546 = vpack.c.b16 %v2770, %v2754
    %v4547 = vpack.c.b16 %v2771, %v2755
    %v4548 = vpack.c.b16 %v2772, %v2756
    %v4549 = vpack.c.b16 %v2773, %v2757
    %v4550 = vpack.c.b16 %v2774, %v2758
    %v4551 = vpack.c.b16 %v2775, %v2759
    %v4552 = vpack.c.b16 %v2776, %v2760
    %v4553 = vpack.c.b16 %v2777, %v2761
    %v4554 = vpack.c.b16 %v2778, %v2762
    %v4555 = vpack.c.b16 %v2779, %v2763
    %v4556 = vpack.c.b16 %v2780, %v2764
    %v4557 = vpack.c.b16 %v2781, %v2765
    %v4558 = vpack.c.b16 %v2798, %v2782
    %v4559 = vpack.c.b16 %v2799, %v2783
    %v4560 = vpack.c.b16 %v2800, %v2784
    %v4561 = vpack.c.b16 %v2801, %v2785
    %v4562 = vpack.c.b16 %v2802, %v2786
    %v4563 = vpack.c.b16 %v2803, %v2787
    %v4564 = vpack.c.b16 %v2804, %v2788
    %v4565 = vpack.c.b16 %v2805, %v2789
    %v4566 = vpack.c.b16 %v2806, %v2790
    %v4567 = vpack.c.b16 %v2807, %v2791
    %v4568 = vpack.c.b16 %v2808, %v2792
    %v4569 = vpack.c.b16 %v2809, %v2793
    %v4570 = vpack.c.b16 %v2810, %v2794
    %v4571 = vpack.c.b16 %v2811, %v2795
    %v4572 = vpack.c.b16 %v2812, %v2796
    %v4573 = vpack.c.b16 %v2813, %v2797
    %v4574 = vpack.c.b16 %v2830, %v2814
    %v4575 = vpack.c.b16 %v2831, %v2815
    %v4576 = vpack.c.b16 %v2832, %v2816
    %v4577 = vpack.c.b16 %v2833, %v2817
    %v4578 = vpack.c.b16 %v2834, %v2818
    %v4579 = vpack.c.b16 %v2835, %v2819
    %v4580 = vpack.c.b16 %v2836, %v2820
    %v4581 = vpack.c.b16 %v2837, %v2821
    %v4582 = vpack.c.b16 %v2838, %v2822
    %v4583 = vpack.c.b16 %v2839, %v2823
    %v4584 = vpack.c.b16 %v2840, %v2824
    %v4585 = vpack.c.b16 %v2841, %v2825
    %v4586 = vpack.c.b16 %v2842, %v2826
    %v4587 = vpack.c.b16 %v2843, %v2827
    %v4588 = vpack.c.b16 %v2844, %v2828
    %v4589 = vpack.c.b16 %v2845, %v2829
    %v4590 = vpack.c.b16 %v2862, %v2846
    %v4591 = vpack.c.b16 %v2863, %v2847
    %v4592 = vpack.c.b16 %v2864, %v2848
    %v4593 = vpack.c.b16 %v2865, %v2849
    %v4594 = vpack.c.b16 %v2866, %v2850
    %v4595 = vpack.c.b16 %v2867, %v2851
    %v4596 = vpack.c.b16 %v2868, %v2852
    %v4597 = vpack.c.b16 %v2869, %v2853
    %v4598 = vpack.c.b16 %v2870, %v2854
    %v4599 = vpack.c.b16 %v2871, %v2855
    %v4600 = vpack.c.b16 %v2872, %v2856
    %v4601 = vpack.c.b16 %v2873, %v2857
    %v4602 = vpack.c.b16 %v2874, %v2858
    %v4603 = vpack.c.b16 %v2875, %v2859
    %v4604 = vpack.c.b16 %v2876, %v2860
    %v4605 = vpack.c.b16 %v2877, %v2861
    %v4606 = vpack.c.b16 %v2894, %v2878
    %v4607 = vpack.c.b16 %v2895, %v2879
    %v4608 = vpack.c.b16 %v2896, %v2880
    %v4609 = vpack.c.b16 %v2897, %v2881
    %v4610 = vpack.c.b16 %v2898, %v2882
    %v4611 = vpack.c.b16 %v2899, %v2883
    %v4612 = vpack.c.b16 %v2900, %v2884
    %v4613 = vpack.c.b16 %v2901, %v2885
    %v4614 = vpack.c.b16 %v2902, %v2886
    %v4615 = vpack.c.b16 %v2903, %v2887
    %v4616 = vpack.c.b16 %v2904, %v2888
    %v4617 = vpack.c.b16 %v2905, %v2889
    %v4618 = vpack.c.b16 %v2906, %v2890
    %v4619 = vpack.c.b16 %v2907, %v2891
    %v4620 = vpack.c.b16 %v2908, %v2892
    %v4621 = vpack.c.b16 %v2909, %v2893
    %v4622 = vpack.c.b16 %v2926, %v2910
    %v4623 = vpack.c.b16 %v2927, %v2911
    %v4624 = vpack.c.b16 %v2928, %v2912
    %v4625 = vpack.c.b16 %v2929, %v2913
    %v4626 = vpack.c.b16 %v2930, %v2914
    %v4627 = vpack.c.b16 %v2931, %v2915
    %v4628 = vpack.c.b16 %v2932, %v2916
    %v4629 = vpack.c.b16 %v2933, %v2917
    %v4630 = vpack.c.b16 %v2934, %v2918
    %v4631 = vpack.c.b16 %v2935, %v2919
    %v4632 = vpack.c.b16 %v2936, %v2920
    %v4633 = vpack.c.b16 %v2937, %v2921
    %v4634 = vpack.c.b16 %v2938, %v2922
    %v4635 = vpack.c.b16 %v2939, %v2923
    %v4636 = vpack.c.b16 %v2940, %v2924
    %v4637 = vpack.c.b16 %v2941, %v2925
    %v4638 = vpack.c.b16 %v2958, %v2942
    %v4639 = vpack.c.b16 %v2959, %v2943
    %v4640 = vpack.c.b16 %v2960, %v2944
    %v4641 = vpack.c.b16 %v2961, %v2945
    %v4642 = vpack.c.b16 %v2962, %v2946
    %v4643 = vpack.c.b16 %v2963, %v2947
    %v4644 = vpack.c.b16 %v2964, %v2948
    %v4645 = vpack.c.b16 %v2965, %v2949
    %v4646 = vpack.c.b16 %v2966, %v2950
    %v4647 = vpack.c.b16 %v2967, %v2951
    %v4648 = vpack.c.b16 %v2968, %v2952
    %v4649 = vpack.c.b16 %v2969, %v2953
    %v4650 = vpack.c.b16 %v2970, %v2954
    %v4651 = vpack.c.b16 %v2971, %v2955
    %v4652 = vpack.c.b16 %v2972, %v2956
    %v4653 = vpack.c.b16 %v2973, %v2957
    %v4654 = vpack.c.b16 %v2990, %v2974
    %v4655 = vpack.c.b16 %v2991, %v2975
    %v4656 = vpack.c.b16 %v2992, %v2976
    %v4657 = vpack.c.b16 %v2993, %v2977
    %v4658 = vpack.c.b16 %v2994, %v2978
    %v4659 = vpack.c.b16 %v2995, %v2979
    %v4660 = vpack.c.b16 %v2996, %v2980
    %v4661 = vpack.c.b16 %v2997, %v2981
    %v4662 = vpack.c.b16 %v2998, %v2982
    %v4663 = vpack.c.b16 %v2999, %v2983
    %v4664 = vpack.c.b16 %v3000, %v2984
    %v4665 = vpack.c.b16 %v3001, %v2985
    %v4666 = vpack.c.b16 %v3002, %v2986
    %v4667 = vpack.c.b16 %v3003, %v2987
    %v4668 = vpack.c.b16 %v3004, %v2988
    %v4669 = vpack.c.b16 %v3005, %v2989
    %v4670 = vpack.c.b16 %v3022, %v3006
    %v4671 = vpack.c.b16 %v3023, %v3007
    %v4672 = vpack.c.b16 %v3024, %v3008
    %v4673 = vpack.c.b16 %v3025, %v3009
    %v4674 = vpack.c.b16 %v3026, %v3010
    %v4675 = vpack.c.b16 %v3027, %v3011
    %v4676 = vpack.c.b16 %v3028, %v3012
    %v4677 = vpack.c.b16 %v3029, %v3013
    %v4678 = vpack.c.b16 %v3030, %v3014
    %v4679 = vpack.c.b16 %v3031, %v3015
    %v4680 = vpack.c.b16 %v3032, %v3016
    %v4681 = vpack.c.b16 %v3033, %v3017
    %v4682 = vpack.c.b16 %v3034, %v3018
    %v4683 = vpack.c.b16 %v3035, %v3019
    %v4684 = vpack.c.b16 %v3036, %v3020
    %v4685 = vpack.c.b16 %v3037, %v3021
    %v4686 = vpack.c.b16 %v3054, %v3038
    %v4687 = vpack.c.b16 %v3055, %v3039
    %v4688 = vpack.c.b16 %v3056, %v3040
    %v4689 = vpack.c.b16 %v3057, %v3041
    %v4690 = vpack.c.b16 %v3058, %v3042
    %v4691 = vpack.c.b16 %v3059, %v3043
    %v4692 = vpack.c.b16 %v3060, %v3044
    %v4693 = vpack.c.b16 %v3061, %v3045
    %v4694 = vpack.c.b16 %v3062, %v3046
    %v4695 = vpack.c.b16 %v3063, %v3047
    %v4696 = vpack.c.b16 %v3064, %v3048
    %v4697 = vpack.c.b16 %v3065, %v3049
    %v4698 = vpack.c.b16 %v3066, %v3050
    %v4699 = vpack.c.b16 %v3067, %v3051
    %v4700 = vpack.c.b16 %v3068, %v3052
    %v4701 = vpack.c.b16 %v3069, %v3053
    %v4702 = vpack.c.b16 %v3086, %v3070
    %v4703 = vpack.c.b16 %v3087, %v3071
    %v4704 = vpack.c.b16 %v3088, %v3072
    %v4705 = vpack.c.b16 %v3089, %v3073
    %v4706 = vpack.c.b16 %v3090, %v3074
    %v4707 = vpack.c.b16 %v3091, %v3075
    %v4708 = vpack.c.b16 %v3092, %v3076
    %v4709 = vpack.c.b16 %v3093, %v3077
    %v4710 = vpack.c.b16 %v3094, %v3078
    %v4711 = vpack.c.b16 %v3095, %v3079
    %v4712 = vpack.c.b16 %v3096, %v3080
    %v4713 = vpack.c.b16 %v3097, %v3081
    %v4714 = vpack.c.b16 %v3098, %v3082
    %v4715 = vpack.c.b16 %v3099, %v3083
    %v4716 = vpack.c.b16 %v3100, %v3084
    %v4717 = vpack.c.b16 %v3101, %v3085
    %v4718 = vpack.c.b16 %v3118, %v3102
    %v4719 = vpack.c.b16 %v3119, %v3103
    %v4720 = vpack.c.b16 %v3120, %v3104
    %v4721 = vpack.c.b16 %v3121, %v3105
    %v4722 = vpack.c.b16 %v3122, %v3106
    %v4723 = vpack.c.b16 %v3123, %v3107
    %v4724 = vpack.c.b16 %v3124, %v3108
    %v4725 = vpack.c.b16 %v3125, %v3109
    %v4726 = vpack.c.b16 %v3126, %v3110
    %v4727 = vpack.c.b16 %v3127, %v3111
    %v4728 = vpack.c.b16 %v3128, %v3112
    %v4729 = vpack.c.b16 %v3129, %v3113
    %v4730 = vpack.c.b16 %v3130, %v3114
    %v4731 = vpack.c.b16 %v3131, %v3115
    %v4732 = vpack.c.b16 %v3132, %v3116
    %v4733 = vpack.c.b16 %v3133, %v3117
    %v4734 = vpack.c.b16 %v3150, %v3134
    %v4735 = vpack.c.b16 %v3151, %v3135
    %v4736 = vpack.c.b16 %v3152, %v3136
    %v4737 = vpack.c.b16 %v3153, %v3137
    %v4738 = vpack.c.b16 %v3154, %v3138
    %v4739 = vpack.c.b16 %v3155, %v3139
    %v4740 = vpack.c.b16 %v3156, %v3140
    %v4741 = vpack.c.b16 %v3157, %v3141
    %v4742 = vpack.c.b16 %v3158, %v3142
    %v4743 = vpack.c.b16 %v3159, %v3143
    %v4744 = vpack.c.b16 %v3160, %v3144
    %v4745 = vpack.c.b16 %v3161, %v3145
    %v4746 = vpack.c.b16 %v3162, %v3146
    %v4747 = vpack.c.b16 %v3163, %v3147
    %v4748 = vpack.c.b16 %v3164, %v3148
    %v4749 = vpack.c.b16 %v3165, %v3149
    %v4750 = vpack.c.b16 %v3182, %v3166
    %v4751 = vpack.c.b16 %v3183, %v3167
    %v4752 = vpack.c.b16 %v3184, %v3168
    %v4753 = vpack.c.b16 %v3185, %v3169
    %v4754 = vpack.c.b16 %v3186, %v3170
    %v4755 = vpack.c.b16 %v3187, %v3171
    %v4756 = vpack.c.b16 %v3188, %v3172
    %v4757 = vpack.c.b16 %v3189, %v3173
    %v4758 = vpack.c.b16 %v3190, %v3174
    %v4759 = vpack.c.b16 %v3191, %v3175
    %v4760 = vpack.c.b16 %v3192, %v3176
    %v4761 = vpack.c.b16 %v3193, %v3177
    %v4762 = vpack.c.b16 %v3194, %v3178
    %v4763 = vpack.c.b16 %v3195, %v3179
    %v4764 = vpack.c.b16 %v3196, %v3180
    %v4765 = vpack.c.b16 %v3197, %v3181
    %v4766 = vpack.c.b16 %v3214, %v3198
    %v4767 = vpack.c.b16 %v3215, %v3199
    %v4768 = vpack.c.b16 %v3216, %v3200
    %v4769 = vpack.c.b16 %v3217, %v3201
    %v4770 = vpack.c.b16 %v3218, %v3202
    %v4771 = vpack.c.b16 %v3219, %v3203
    %v4772 = vpack.c.b16 %v3220, %v3204
    %v4773 = vpack.c.b16 %v3221, %v3205
    %v4774 = vpack.c.b16 %v3222, %v3206
    %v4775 = vpack.c.b16 %v3223, %v3207
    %v4776 = vpack.c.b16 %v3224, %v3208
    %v4777 = vpack.c.b16 %v3225, %v3209
    %v4778 = vpack.c.b16 %v3226, %v3210
    %v4779 = vpack.c.b16 %v3227, %v3211
    %v4780 = vpack.c.b16 %v3228, %v3212
    %v4781 = vpack.c.b16 %v3229, %v3213
    %v4782 = vpack.c.b16 %v3246, %v3230
    %v4783 = vpack.c.b16 %v3247, %v3231
    %v4784 = vpack.c.b16 %v3248, %v3232
    %v4785 = vpack.c.b16 %v3249, %v3233
    %v4786 = vpack.c.b16 %v3250, %v3234
    %v4787 = vpack.c.b16 %v3251, %v3235
    %v4788 = vpack.c.b16 %v3252, %v3236
    %v4789 = vpack.c.b16 %v3253, %v3237
    %v4790 = vpack.c.b16 %v3254, %v3238
    %v4791 = vpack.c.b16 %v3255, %v3239
    %v4792 = vpack.c.b16 %v3256, %v3240
    %v4793 = vpack.c.b16 %v3257, %v3241
    %v4794 = vpack.c.b16 %v3258, %v3242
    %v4795 = vpack.c.b16 %v3259, %v3243
    %v4796 = vpack.c.b16 %v3260, %v3244
    %v4797 = vpack.c.b16 %v3261, %v3245
    %v4798 = vpack.c.b16 %v3278, %v3262
    %v4799 = vpack.c.b16 %v3279, %v3263
    %v4800 = vpack.c.b16 %v3280, %v3264
    %v4801 = vpack.c.b16 %v3281, %v3265
    %v4802 = vpack.c.b16 %v3282, %v3266
    %v4803 = vpack.c.b16 %v3283, %v3267
    %v4804 = vpack.c.b16 %v3284, %v3268
    %v4805 = vpack.c.b16 %v3285, %v3269
    %v4806 = vpack.c.b16 %v3286, %v3270
    %v4807 = vpack.c.b16 %v3287, %v3271
    %v4808 = vpack.c.b16 %v3288, %v3272
    %v4809 = vpack.c.b16 %v3289, %v3273
    %v4810 = vpack.c.b16 %v3290, %v3274
    %v4811 = vpack.c.b16 %v3291, %v3275
    %v4812 = vpack.c.b16 %v3292, %v3276
    %v4813 = vpack.c.b16 %v3293, %v3277
    %v4814 = vpack.c.b16 %v3310, %v3294
    %v4815 = vpack.c.b16 %v3311, %v3295
    %v4816 = vpack.c.b16 %v3312, %v3296
    %v4817 = vpack.c.b16 %v3313, %v3297
    %v4818 = vpack.c.b16 %v3314, %v3298
    %v4819 = vpack.c.b16 %v3315, %v3299
    %v4820 = vpack.c.b16 %v3316, %v3300
    %v4821 = vpack.c.b16 %v3317, %v3301
    %v4822 = vpack.c.b16 %v3318, %v3302
    %v4823 = vpack.c.b16 %v3319, %v3303
    %v4824 = vpack.c.b16 %v3320, %v3304
    %v4825 = vpack.c.b16 %v3321, %v3305
    %v4826 = vpack.c.b16 %v3322, %v3306
    %v4827 = vpack.c.b16 %v3323, %v3307
    %v4828 = vpack.c.b16 %v3324, %v3308
    %v4829 = vpack.c.b16 %v3325, %v3309
    %v4830 = vpack.c.b16 %v3342, %v3326
    %v4831 = vpack.c.b16 %v3343, %v3327
    %v4832 = vpack.c.b16 %v3344, %v3328
    %v4833 = vpack.c.b16 %v3345, %v3329
    %v4834 = vpack.c.b16 %v3346, %v3330
    %v4835 = vpack.c.b16 %v3347, %v3331
    %v4836 = vpack.c.b16 %v3348, %v3332
    %v4837 = vpack.c.b16 %v3349, %v3333
    %v4838 = vpack.c.b16 %v3350, %v3334
    %v4839 = vpack.c.b16 %v3351, %v3335
    %v4840 = vpack.c.b16 %v3352, %v3336
    %v4841 = vpack.c.b16 %v3353, %v3337
    %v4842 = vpack.c.b16 %v3354, %v3338
    %v4843 = vpack.c.b16 %v3355, %v3339
    %v4844 = vpack.c.b16 %v3356, %v3340
    %v4845 = vpack.c.b16 %v3357, %v3341
    %v4846 = vpack.c.b16 %v3374, %v3358
    %v4847 = vpack.c.b16 %v3375, %v3359
    %v4848 = vpack.c.b16 %v3376, %v3360
    %v4849 = vpack.c.b16 %v3377, %v3361
    %v4850 = vpack.c.b16 %v3378, %v3362
    %v4851 = vpack.c.b16 %v3379, %v3363
    %v4852 = vpack.c.b16 %v3380, %v3364
    %v4853 = vpack.c.b16 %v3381, %v3365
    %v4854 = vpack.c.b16 %v3382, %v3366
    %v4855 = vpack.c.b16 %v3383, %v3367
    %v4856 = vpack.c.b16 %v3384, %v3368
    %v4857 = vpack.c.b16 %v3385, %v3369
    %v4858 = vpack.c.b16 %v3386, %v3370
    %v4859 = vpack.c.b16 %v3387, %v3371
    %v4860 = vpack.c.b16 %v3388, %v3372
    %v4861 = vpack.c.b16 %v3389, %v3373
    %v4862 = vpack.c.b16 %v3406, %v3390
    %v4863 = vpack.c.b16 %v3407, %v3391
    %v4864 = vpack.c.b16 %v3408, %v3392
    %v4865 = vpack.c.b16 %v3409, %v3393
    %v4866 = vpack.c.b16 %v3410, %v3394
    %v4867 = vpack.c.b16 %v3411, %v3395
    %v4868 = vpack.c.b16 %v3412, %v3396
    %v4869 = vpack.c.b16 %v3413, %v3397
    %v4870 = vpack.c.b16 %v3414, %v3398
    %v4871 = vpack.c.b16 %v3415, %v3399
    %v4872 = vpack.c.b16 %v3416, %v3400
    %v4873 = vpack.c.b16 %v3417, %v3401
    %v4874 = vpack.c.b16 %v3418, %v3402
    %v4875 = vpack.c.b16 %v3419, %v3403
    %v4876 = vpack.c.b16 %v3420, %v3404
    %v4877 = vpack.c.b16 %v3421, %v3405
    %v4878 = vpack.c.b16 %v3438, %v3422
    %v4879 = vpack.c.b16 %v3439, %v3423
    %v4880 = vpack.c.b16 %v3440, %v3424
    %v4881 = vpack.c.b16 %v3441, %v3425
    %v4882 = vpack.c.b16 %v3442, %v3426
    %v4883 = vpack.c.b16 %v3443, %v3427
    %v4884 = vpack.c.b16 %v3444, %v3428
    %v4885 = vpack.c.b16 %v3445, %v3429
    %v4886 = vpack.c.b16 %v3446, %v3430
    %v4887 = vpack.c.b16 %v3447, %v3431
    %v4888 = vpack.c.b16 %v3448, %v3432
    %v4889 = vpack.c.b16 %v3449, %v3433
    %v4890 = vpack.c.b16 %v3450, %v3434
    %v4891 = vpack.c.b16 %v3451, %v3435
    %v4892 = vpack.c.b16 %v3452, %v3436
    %v4893 = vpack.c.b16 %v3453, %v3437
    %v4894 = vpack.c.b16 %v3470, %v3454
    %v4895 = vpack.c.b16 %v3471, %v3455
    %v4896 = vpack.c.b16 %v3472, %v3456
    %v4897 = vpack.c.b16 %v3473, %v3457
    %v4898 = vpack.c.b16 %v3474, %v3458
    %v4899 = vpack.c.b16 %v3475, %v3459
    %v4900 = vpack.c.b16 %v3476, %v3460
    %v4901 = vpack.c.b16 %v3477, %v3461
    %v4902 = vpack.c.b16 %v3478, %v3462
    %v4903 = vpack.c.b16 %v3479, %v3463
    %v4904 = vpack.c.b16 %v3480, %v3464
    %v4905 = vpack.c.b16 %v3481, %v3465
    %v4906 = vpack.c.b16 %v3482, %v3466
    %v4907 = vpack.c.b16 %v3483, %v3467
    %v4908 = vpack.c.b16 %v3484, %v3468
    %v4909 = vpack.c.b16 %v3485, %v3469
    %v4910 = vpack.c.b16 %v3502, %v3486
    %v4911 = vpack.c.b16 %v3503, %v3487
    %v4912 = vpack.c.b16 %v3504, %v3488
    %v4913 = vpack.c.b16 %v3505, %v3489
    %v4914 = vpack.c.b16 %v3506, %v3490
    %v4915 = vpack.c.b16 %v3507, %v3491
    %v4916 = vpack.c.b16 %v3508, %v3492
    %v4917 = vpack.c.b16 %v3509, %v3493
    %v4918 = vpack.c.b16 %v3510, %v3494
    %v4919 = vpack.c.b16 %v3511, %v3495
    %v4920 = vpack.c.b16 %v3512, %v3496
    %v4921 = vpack.c.b16 %v3513, %v3497
    %v4922 = vpack.c.b16 %v3514, %v3498
    %v4923 = vpack.c.b16 %v3515, %v3499
    %v4924 = vpack.c.b16 %v3516, %v3500
    %v4925 = vpack.c.b16 %v3517, %v3501
    %v4926 = vpack.c.b16 %v3534, %v3518
    %v4927 = vpack.c.b16 %v3535, %v3519
    %v4928 = vpack.c.b16 %v3536, %v3520
    %v4929 = vpack.c.b16 %v3537, %v3521
    %v4930 = vpack.c.b16 %v3538, %v3522
    %v4931 = vpack.c.b16 %v3539, %v3523
    %v4932 = vpack.c.b16 %v3540, %v3524
    %v4933 = vpack.c.b16 %v3541, %v3525
    %v4934 = vpack.c.b16 %v3542, %v3526
    %v4935 = vpack.c.b16 %v3543, %v3527
    %v4936 = vpack.c.b16 %v3544, %v3528
    %v4937 = vpack.c.b16 %v3545, %v3529
    %v4938 = vpack.c.b16 %v3546, %v3530
    %v4939 = vpack.c.b16 %v3547, %v3531
    %v4940 = vpack.c.b16 %v3548, %v3532
    %v4941 = vpack.c.b16 %v3549, %v3533
    %v4942 = vpack.c.b16 %v3566, %v3550
    %v4943 = vpack.c.b16 %v3567, %v3551
    %v4944 = vpack.c.b16 %v3568, %v3552
    %v4945 = vpack.c.b16 %v3569, %v3553
    %v4946 = vpack.c.b16 %v3570, %v3554
    %v4947 = vpack.c.b16 %v3571, %v3555
    %v4948 = vpack.c.b16 %v3572, %v3556
    %v4949 = vpack.c.b16 %v3573, %v3557
    %v4950 = vpack.c.b16 %v3574, %v3558
    %v4951 = vpack.c.b16 %v3575, %v3559
    %v4952 = vpack.c.b16 %v3576, %v3560
    %v4953 = vpack.c.b16 %v3577, %v3561
    %v4954 = vpack.c.b16 %v3578, %v3562
    %v4955 = vpack.c.b16 %v3579, %v3563
    %v4956 = vpack.c.b16 %v3580, %v3564
    %v4957 = vpack.c.b16 %v3581, %v3565
    %v4958 = vpack.c.b16 %v3598, %v3582
    %v4959 = vpack.c.b16 %v3599, %v3583
    %v4960 = vpack.c.b16 %v3600, %v3584
    %v4961 = vpack.c.b16 %v3601, %v3585
    %v4962 = vpack.c.b16 %v3602, %v3586
    %v4963 = vpack.c.b16 %v3603, %v3587
    %v4964 = vpack.c.b16 %v3604, %v3588
    %v4965 = vpack.c.b16 %v3605, %v3589
    %v4966 = vpack.c.b16 %v3606, %v3590
    %v4967 = vpack.c.b16 %v3607, %v3591
    %v4968 = vpack.c.b16 %v3608, %v3592
    %v4969 = vpack.c.b16 %v3609, %v3593
    %v4970 = vpack.c.b16 %v3610, %v3594
    %v4971 = vpack.c.b16 %v3611, %v3595
    %v4972 = vpack.c.b16 %v3612, %v3596
    %v4973 = vpack.c.b16 %v3613, %v3597
    %v4974 = vpack.c.b16 %v3630, %v3614
    %v4975 = vpack.c.b16 %v3631, %v3615
    %v4976 = vpack.c.b16 %v3632, %v3616
    %v4977 = vpack.c.b16 %v3633, %v3617
    %v4978 = vpack.c.b16 %v3634, %v3618
    %v4979 = vpack.c.b16 %v3635, %v3619
    %v4980 = vpack.c.b16 %v3636, %v3620
    %v4981 = vpack.c.b16 %v3637, %v3621
    %v4982 = vpack.c.b16 %v3638, %v3622
    %v4983 = vpack.c.b16 %v3639, %v3623
    %v4984 = vpack.c.b16 %v3640, %v3624
    %v4985 = vpack.c.b16 %v3641, %v3625
    %v4986 = vpack.c.b16 %v3642, %v3626
    %v4987 = vpack.c.b16 %v3643, %v3627
    %v4988 = vpack.c.b16 %v3644, %v3628
    %v4989 = vpack.c.b16 %v3645, %v3629
    %v4990 = vpack.c.b16 %v3662, %v3646
    %v4991 = vpack.c.b16 %v3663, %v3647
    %v4992 = vpack.c.b16 %v3664, %v3648
    %v4993 = vpack.c.b16 %v3665, %v3649
    %v4994 = vpack.c.b16 %v3666, %v3650
    %v4995 = vpack.c.b16 %v3667, %v3651
    %v4996 = vpack.c.b16 %v3668, %v3652
    %v4997 = vpack.c.b16 %v3669, %v3653
    %v4998 = vpack.c.b16 %v3670, %v3654
    %v4999 = vpack.c.b16 %v3671, %v3655
    %v5000 = vpack.c.b16 %v3672, %v3656
    %v5001 = vpack.c.b16 %v3673, %v3657
    %v5002 = vpack.c.b16 %v3674, %v3658
    %v5003 = vpack.c.b16 %v3675, %v3659
    %v5004 = vpack.c.b16 %v3676, %v3660
    %v5005 = vpack.c.b16 %v3677, %v3661
    %v5006 = vpack.c.b16 %v3694, %v3678
    %v5007 = vpack.c.b16 %v3695, %v3679
    %v5008 = vpack.c.b16 %v3696, %v3680
    %v5009 = vpack.c.b16 %v3697, %v3681
    %v5010 = vpack.c.b16 %v3698, %v3682
    %v5011 = vpack.c.b16 %v3699, %v3683
    %v5012 = vpack.c.b16 %v3700, %v3684
    %v5013 = vpack.c.b16 %v3701, %v3685
    %v5014 = vpack.c.b16 %v3702, %v3686
    %v5015 = vpack.c.b16 %v3703, %v3687
    %v5016 = vpack.c.b16 %v3704, %v3688
    %v5017 = vpack.c.b16 %v3705, %v3689
    %v5018 = vpack.c.b16 %v3706, %v3690
    %v5019 = vpack.c.b16 %v3707, %v3691
    %v5020 = vpack.c.b16 %v3708, %v3692
    %v5021 = vpack.c.b16 %v3709, %v3693
    %v5022 = vpack.c.b16 %v3726, %v3710
    %v5023 = vpack.c.b16 %v3727, %v3711
    %v5024 = vpack.c.b16 %v3728, %v3712
    %v5025 = vpack.c.b16 %v3729, %v3713
    %v5026 = vpack.c.b16 %v3730, %v3714
    %v5027 = vpack.c.b16 %v3731, %v3715
    %v5028 = vpack.c.b16 %v3732, %v3716
    %v5029 = vpack.c.b16 %v3733, %v3717
    %v5030 = vpack.c.b16 %v3734, %v3718
    %v5031 = vpack.c.b16 %v3735, %v3719
    %v5032 = vpack.c.b16 %v3736, %v3720
    %v5033 = vpack.c.b16 %v3737, %v3721
    %v5034 = vpack.c.b16 %v3738, %v3722
    %v5035 = vpack.c.b16 %v3739, %v3723
    %v5036 = vpack.c.b16 %v3740, %v3724
    %v5037 = vpack.c.b16 %v3741, %v3725
    %v5038 = vpack.c.b16 %v3758, %v3742
    %v5039 = vpack.c.b16 %v3759, %v3743
    %v5040 = vpack.c.b16 %v3760, %v3744
    %v5041 = vpack.c.b16 %v3761, %v3745
    %v5042 = vpack.c.b16 %v3762, %v3746
    %v5043 = vpack.c.b16 %v3763, %v3747
    %v5044 = vpack.c.b16 %v3764, %v3748
    %v5045 = vpack.c.b16 %v3765, %v3749
    %v5046 = vpack.c.b16 %v3766, %v3750
    %v5047 = vpack.c.b16 %v3767, %v3751
    %v5048 = vpack.c.b16 %v3768, %v3752
    %v5049 = vpack.c.b16 %v3769, %v3753
    %v5050 = vpack.c.b16 %v3770, %v3754
    %v5051 = vpack.c.b16 %v3771, %v3755
    %v5052 = vpack.c.b16 %v3772, %v3756
    %v5053 = vpack.c.b16 %v3773, %v3757
    %v5054 = vpack.c.b16 %v3790, %v3774
    %v5055 = vpack.c.b16 %v3791, %v3775
    %v5056 = vpack.c.b16 %v3792, %v3776
    %v5057 = vpack.c.b16 %v3793, %v3777
    %v5058 = vpack.c.b16 %v3794, %v3778
    %v5059 = vpack.c.b16 %v3795, %v3779
    %v5060 = vpack.c.b16 %v3796, %v3780
    %v5061 = vpack.c.b16 %v3797, %v3781
    %v5062 = vpack.c.b16 %v3798, %v3782
    %v5063 = vpack.c.b16 %v3799, %v3783
    %v5064 = vpack.c.b16 %v3800, %v3784
    %v5065 = vpack.c.b16 %v3801, %v3785
    %v5066 = vpack.c.b16 %v3802, %v3786
    %v5067 = vpack.c.b16 %v3803, %v3787
    %v5068 = vpack.c.b16 %v3804, %v3788
    %v5069 = vpack.c.b16 %v3805, %v3789
    %v5070 = vpack.c.b16 %v3822, %v3806
    %v5071 = vpack.c.b16 %v3823, %v3807
    %v5072 = vpack.c.b16 %v3824, %v3808
    %v5073 = vpack.c.b16 %v3825, %v3809
    %v5074 = vpack.c.b16 %v3826, %v3810
    %v5075 = vpack.c.b16 %v3827, %v3811
    %v5076 = vpack.c.b16 %v3828, %v3812
    %v5077 = vpack.c.b16 %v3829, %v3813
    %v5078 = vpack.c.b16 %v3830, %v3814
    %v5079 = vpack.c.b16 %v3831, %v3815
    %v5080 = vpack.c.b16 %v3832, %v3816
    %v5081 = vpack.c.b16 %v3833, %v3817
    %v5082 = vpack.c.b16 %v3834, %v3818
    %v5083 = vpack.c.b16 %v3835, %v3819
    %v5084 = vpack.c.b16 %v3836, %v3820
    %v5085 = vpack.c.b16 %v3837, %v3821
    %v5086 = vpack.c.b16 %v3854, %v3838
    %v5087 = vpack.c.b16 %v3855, %v3839
    %v5088 = vpack.c.b16 %v3856, %v3840
    %v5089 = vpack.c.b16 %v3857, %v3841
    %v5090 = vpack.c.b16 %v3858, %v3842
    %v5091 = vpack.c.b16 %v3859, %v3843
    %v5092 = vpack.c.b16 %v3860, %v3844
    %v5093 = vpack.c.b16 %v3861, %v3845
    %v5094 = vpack.c.b16 %v3862, %v3846
    %v5095 = vpack.c.b16 %v3863, %v3847
    %v5096 = vpack.c.b16 %v3864, %v3848
    %v5097 = vpack.c.b16 %v3865, %v3849
    %v5098 = vpack.c.b16 %v3866, %v3850
    %v5099 = vpack.c.b16 %v3867, %v3851
    %v5100 = vpack.c.b16 %v3868, %v3852
    %v5101 = vpack.c.b16 %v3869, %v3853
    %v5102 = vpack.c.b16 %v3886, %v3870
    %v5103 = vpack.c.b16 %v3887, %v3871
    %v5104 = vpack.c.b16 %v3888, %v3872
    %v5105 = vpack.c.b16 %v3889, %v3873
    %v5106 = vpack.c.b16 %v3890, %v3874
    %v5107 = vpack.c.b16 %v3891, %v3875
    %v5108 = vpack.c.b16 %v3892, %v3876
    %v5109 = vpack.c.b16 %v3893, %v3877
    %v5110 = vpack.c.b16 %v3894, %v3878
    %v5111 = vpack.c.b16 %v3895, %v3879
    %v5112 = vpack.c.b16 %v3896, %v3880
    %v5113 = vpack.c.b16 %v3897, %v3881
    %v5114 = vpack.c.b16 %v3898, %v3882
    %v5115 = vpack.c.b16 %v3899, %v3883
    %v5116 = vpack.c.b16 %v3900, %v3884
    %v5117 = vpack.c.b16 %v3901, %v3885
    %v5118 = vpack.c.b16 %v3918, %v3902
    %v5119 = vpack.c.b16 %v3919, %v3903
    %v5120 = vpack.c.b16 %v3920, %v3904
    %v5121 = vpack.c.b16 %v3921, %v3905
    %v5122 = vpack.c.b16 %v3922, %v3906
    %v5123 = vpack.c.b16 %v3923, %v3907
    %v5124 = vpack.c.b16 %v3924, %v3908
    %v5125 = vpack.c.b16 %v3925, %v3909
    %v5126 = vpack.c.b16 %v3926, %v3910
    %v5127 = vpack.c.b16 %v3927, %v3911
    %v5128 = vpack.c.b16 %v3928, %v3912
    %v5129 = vpack.c.b16 %v3929, %v3913
    %v5130 = vpack.c.b16 %v3930, %v3914
    %v5131 = vpack.c.b16 %v3931, %v3915
    %v5132 = vpack.c.b16 %v3932, %v3916
    %v5133 = vpack.c.b16 %v3933, %v3917
    %v5134 = vpack.c.b16 %v3950, %v3934
    %v5135 = vpack.c.b16 %v3951, %v3935
    %v5136 = vpack.c.b16 %v3952, %v3936
    %v5137 = vpack.c.b16 %v3953, %v3937
    %v5138 = vpack.c.b16 %v3954, %v3938
    %v5139 = vpack.c.b16 %v3955, %v3939
    %v5140 = vpack.c.b16 %v3956, %v3940
    %v5141 = vpack.c.b16 %v3957, %v3941
    %v5142 = vpack.c.b16 %v3958, %v3942
    %v5143 = vpack.c.b16 %v3959, %v3943
    %v5144 = vpack.c.b16 %v3960, %v3944
    %v5145 = vpack.c.b16 %v3961, %v3945
    %v5146 = vpack.c.b16 %v3962, %v3946
    %v5147 = vpack.c.b16 %v3963, %v3947
    %v5148 = vpack.c.b16 %v3964, %v3948
    %v5149 = vpack.c.b16 %v3965, %v3949
    %v5150 = vpack.c.b16 %v3982, %v3966
    %v5151 = vpack.c.b16 %v3983, %v3967
    %v5152 = vpack.c.b16 %v3984, %v3968
    %v5153 = vpack.c.b16 %v3985, %v3969
    %v5154 = vpack.c.b16 %v3986, %v3970
    %v5155 = vpack.c.b16 %v3987, %v3971
    %v5156 = vpack.c.b16 %v3988, %v3972
    %v5157 = vpack.c.b16 %v3989, %v3973
    %v5158 = vpack.c.b16 %v3990, %v3974
    %v5159 = vpack.c.b16 %v3991, %v3975
    %v5160 = vpack.c.b16 %v3992, %v3976
    %v5161 = vpack.c.b16 %v3993, %v3977
    %v5162 = vpack.c.b16 %v3994, %v3978
    %v5163 = vpack.c.b16 %v3995, %v3979
    %v5164 = vpack.c.b16 %v3996, %v3980
    %v5165 = vpack.c.b16 %v3997, %v3981
    %v5166 = vpack.c.b16 %v4014, %v3998
    %v5167 = vpack.c.b16 %v4015, %v3999
    %v5168 = vpack.c.b16 %v4016, %v4000
    %v5169 = vpack.c.b16 %v4017, %v4001
    %v5170 = vpack.c.b16 %v4018, %v4002
    %v5171 = vpack.c.b16 %v4019, %v4003
    %v5172 = vpack.c.b16 %v4020, %v4004
    %v5173 = vpack.c.b16 %v4021, %v4005
    %v5174 = vpack.c.b16 %v4022, %v4006
    %v5175 = vpack.c.b16 %v4023, %v4007
    %v5176 = vpack.c.b16 %v4024, %v4008
    %v5177 = vpack.c.b16 %v4025, %v4009
    %v5178 = vpack.c.b16 %v4026, %v4010
    %v5179 = vpack.c.b16 %v4027, %v4011
    %v5180 = vpack.c.b16 %v4028, %v4012
    %v5181 = vpack.c.b16 %v4029, %v4013
    %v5182 = vpack.c.b16 %v4046, %v4030
    %v5183 = vpack.c.b16 %v4047, %v4031
    %v5184 = vpack.c.b16 %v4048, %v4032
    %v5185 = vpack.c.b16 %v4049, %v4033
    %v5186 = vpack.c.b16 %v4050, %v4034
    %v5187 = vpack.c.b16 %v4051, %v4035
    %v5188 = vpack.c.b16 %v4052, %v4036
    %v5189 = vpack.c.b16 %v4053, %v4037
    %v5190 = vpack.c.b16 %v4054, %v4038
    %v5191 = vpack.c.b16 %v4055, %v4039
    %v5192 = vpack.c.b16 %v4056, %v4040
    %v5193 = vpack.c.b16 %v4057, %v4041
    %v5194 = vpack.c.b16 %v4058, %v4042
    %v5195 = vpack.c.b16 %v4059, %v4043
    %v5196 = vpack.c.b16 %v4060, %v4044
    %v5197 = vpack.c.b16 %v4061, %v4045
    %v5198 = vpack.c.b16 %v4078, %v4062
    %v5199 = vpack.c.b16 %v4079, %v4063
    %v5200 = vpack.c.b16 %v4080, %v4064
    %v5201 = vpack.c.b16 %v4081, %v4065
    %v5202 = vpack.c.b16 %v4082, %v4066
    %v5203 = vpack.c.b16 %v4083, %v4067
    %v5204 = vpack.c.b16 %v4084, %v4068
    %v5205 = vpack.c.b16 %v4085, %v4069
    %v5206 = vpack.c.b16 %v4086, %v4070
    %v5207 = vpack.c.b16 %v4087, %v4071
    %v5208 = vpack.c.b16 %v4088, %v4072
    %v5209 = vpack.c.b16 %v4089, %v4073
    %v5210 = vpack.c.b16 %v4090, %v4074
    %v5211 = vpack.c.b16 %v4091, %v4075
    %v5212 = vpack.c.b16 %v4092, %v4076
    %v5213 = vpack.c.b16 %v4093, %v4077
    %v5214 = vpack.c.b16 %v4110, %v4094
    %v5215 = vpack.c.b16 %v4111, %v4095
    %v5216 = vpack.c.b16 %v4112, %v4096
    %v5217 = vpack.c.b16 %v4113, %v4097
    %v5218 = vpack.c.b16 %v4114, %v4098
    %v5219 = vpack.c.b16 %v4115, %v4099
    %v5220 = vpack.c.b16 %v4116, %v4100
    %v5221 = vpack.c.b16 %v4117, %v4101
    %v5222 = vpack.c.b16 %v4118, %v4102
    %v5223 = vpack.c.b16 %v4119, %v4103
    %v5224 = vpack.c.b16 %v4120, %v4104
    %v5225 = vpack.c.b16 %v4121, %v4105
    %v5226 = vpack.c.b16 %v4122, %v4106
    %v5227 = vpack.c.b16 %v4123, %v4107
    %v5228 = vpack.c.b16 %v4124, %v4108
    %v5229 = vpack.c.b16 %v4125, %v4109
    %v5230 = vpack.c.b16 %v4142, %v4126
    %v5231 = vpack.c.b16 %v4143, %v4127
    %v5232 = vpack.c.b16 %v4144, %v4128
    %v5233 = vpack.c.b16 %v4145, %v4129
    %v5234 = vpack.c.b16 %v4146, %v4130
    %v5235 = vpack.c.b16 %v4147, %v4131
    %v5236 = vpack.c.b16 %v4148, %v4132
    %v5237 = vpack.c.b16 %v4149, %v4133
    %v5238 = vpack.c.b16 %v4150, %v4134
    %v5239 = vpack.c.b16 %v4151, %v4135
    %v5240 = vpack.c.b16 %v4152, %v4136
    %v5241 = vpack.c.b16 %v4153, %v4137
    %v5242 = vpack.c.b16 %v4154, %v4138
    %v5243 = vpack.c.b16 %v4155, %v4139
    %v5244 = vpack.c.b16 %v4156, %v4140
    %v5245 = vpack.c.b16 %v4157, %v4141
    %v5246 = vpack.c.b16 %v4174, %v4158
    %v5247 = vpack.c.b16 %v4175, %v4159
    %v5248 = vpack.c.b16 %v4176, %v4160
    %v5249 = vpack.c.b16 %v4177, %v4161
    %v5250 = vpack.c.b16 %v4178, %v4162
    %v5251 = vpack.c.b16 %v4179, %v4163
    %v5252 = vpack.c.b16 %v4180, %v4164
    %v5253 = vpack.c.b16 %v4181, %v4165
    %v5254 = vpack.c.b16 %v4182, %v4166
    %v5255 = vpack.c.b16 %v4183, %v4167
    %v5256 = vpack.c.b16 %v4184, %v4168
    %v5257 = vpack.c.b16 %v4185, %v4169
    %v5258 = vpack.c.b16 %v4186, %v4170
    %v5259 = vpack.c.b16 %v4187, %v4171
    %v5260 = vpack.c.b16 %v4188, %v4172
    %v5261 = vpack.c.b16 %v4189, %v4173
    %v5262 = vpack.c.b16 %v4206, %v4190
    %v5263 = vpack.c.b16 %v4207, %v4191
    %v5264 = vpack.c.b16 %v4208, %v4192
    %v5265 = vpack.c.b16 %v4209, %v4193
    %v5266 = vpack.c.b16 %v4210, %v4194
    %v5267 = vpack.c.b16 %v4211, %v4195
    %v5268 = vpack.c.b16 %v4212, %v4196
    %v5269 = vpack.c.b16 %v4213, %v4197
    %v5270 = vpack.c.b16 %v4214, %v4198
    %v5271 = vpack.c.b16 %v4215, %v4199
    %v5272 = vpack.c.b16 %v4216, %v4200
    %v5273 = vpack.c.b16 %v4217, %v4201
    %v5274 = vpack.c.b16 %v4218, %v4202
    %v5275 = vpack.c.b16 %v4219, %v4203
    %v5276 = vpack.c.b16 %v4220, %v4204
    %v5277 = vpack.c.b16 %v4221, %v4205
    %v5278 = vpack.c.b16 %v4238, %v4222
    %v5279 = vpack.c.b16 %v4239, %v4223
    %v5280 = vpack.c.b16 %v4240, %v4224
    %v5281 = vpack.c.b16 %v4241, %v4225
    %v5282 = vpack.c.b16 %v4242, %v4226
    %v5283 = vpack.c.b16 %v4243, %v4227
    %v5284 = vpack.c.b16 %v4244, %v4228
    %v5285 = vpack.c.b16 %v4245, %v4229
    %v5286 = vpack.c.b16 %v4246, %v4230
    %v5287 = vpack.c.b16 %v4247, %v4231
    %v5288 = vpack.c.b16 %v4248, %v4232
    %v5289 = vpack.c.b16 %v4249, %v4233
    %v5290 = vpack.c.b16 %v4250, %v4234
    %v5291 = vpack.c.b16 %v4251, %v4235
    %v5292 = vpack.c.b16 %v4252, %v4236
    %v5293 = vpack.c.b16 %v4253, %v4237
    %v5294 = vpack.c.b16 %v4270, %v4254
    %v5295 = vpack.c.b16 %v4271, %v4255
    %v5296 = vpack.c.b16 %v4272, %v4256
    %v5297 = vpack.c.b16 %v4273, %v4257
    %v5298 = vpack.c.b16 %v4274, %v4258
    %v5299 = vpack.c.b16 %v4275, %v4259
    %v5300 = vpack.c.b16 %v4276, %v4260
    %v5301 = vpack.c.b16 %v4277, %v4261
    %v5302 = vpack.c.b16 %v4278, %v4262
    %v5303 = vpack.c.b16 %v4279, %v4263
    %v5304 = vpack.c.b16 %v4280, %v4264
    %v5305 = vpack.c.b16 %v4281, %v4265
    %v5306 = vpack.c.b16 %v4282, %v4266
    %v5307 = vpack.c.b16 %v4283, %v4267
    %v5308 = vpack.c.b16 %v4284, %v4268
    %v5309 = vpack.c.b16 %v4285, %v4269
    %6334 = vmatpush.bf16.msra.mxu0 %v4398
    %6335 = vmatpush.bf16.msra.mxu0 %v4382
    %6336 = vmatpush.bf16.msra.mxu0 %v4366
    %6337 = vmatpush.bf16.msra.mxu0 %v4350
    %6338 = vmatpush.bf16.msra.mxu0 %v4334
    %6339 = vmatpush.bf16.msra.mxu0 %v4318
    %6340 = vmatpush.bf16.msra.mxu0 %v4302
    %6341 = vmatpush.bf16.msra.mxu0 %v4286
    %6342 = vmatmul.bf16.gmra.mxu0 %v146
    %v6343 = vpop.f32.mrf.mxu0
    %v6344 = vadd.f32 %v1182, %v6343
    %v6345 = vpop.f32.mrf.mxu0
    %6346 = vdwg.mxu0
    %6347 = vmatpush.bf16.msra.mxu0 %v4526
    %6348 = vmatpush.bf16.msra.mxu0 %v4510
    %6349 = vmatpush.bf16.msra.mxu0 %v4494
    %6350 = vmatpush.bf16.msra.mxu0 %v4478
    %6351 = vmatpush.bf16.msra.mxu0 %v4462
    %6352 = vmatpush.bf16.msra.mxu0 %v4446
    %6353 = vmatpush.bf16.msra.mxu0 %v4430
    %6354 = vmatpush.bf16.msra.mxu0 %v4414
    %6355 = vmatmul.bf16.gmra.mxu0 %v147
    %v6356 = vpop.f32.mrf.mxu0
    %v6357 = vadd.f32 %v6344, %v6356
    %v6358 = vpop.f32.mrf.mxu0
    %6359 = vdwg.mxu0
    %6360 = vmatpush.bf16.msra.mxu0 %v4654
    %6361 = vmatpush.bf16.msra.mxu0 %v4638
    %6362 = vmatpush.bf16.msra.mxu0 %v4622
    %6363 = vmatpush.bf16.msra.mxu0 %v4606
    %6364 = vmatpush.bf16.msra.mxu0 %v4590
    %6365 = vmatpush.bf16.msra.mxu0 %v4574
    %6366 = vmatpush.bf16.msra.mxu0 %v4558
    %6367 = vmatpush.bf16.msra.mxu0 %v4542
    %6368 = vmatmul.bf16.gmra.mxu0 %v148
    %v6369 = vpop.f32.mrf.mxu0
    %v6370 = vadd.f32 %v6357, %v6369
    %v6371 = vpop.f32.mrf.mxu0
    %6372 = vdwg.mxu0
    %6373 = vmatpush.bf16.msra.mxu0 %v4782
    %6374 = vmatpush.bf16.msra.mxu0 %v4766
    %6375 = vmatpush.bf16.msra.mxu0 %v4750
    %6376 = vmatpush.bf16.msra.mxu0 %v4734
    %6377 = vmatpush.bf16.msra.mxu0 %v4718
    %6378 = vmatpush.bf16.msra.mxu0 %v4702
    %6379 = vmatpush.bf16.msra.mxu0 %v4686
    %6380 = vmatpush.bf16.msra.mxu0 %v4670
    %6381 = vmatmul.bf16.gmra.mxu0 %v149
    %v6382 = vpop.f32.mrf.mxu0
    %v6383 = vadd.f32 %v6370, %v6382
    %v6384 = vpop.f32.mrf.mxu0
    %6385 = vdwg.mxu0
    %6386 = vmatpush.bf16.msra.mxu0 %v4910
    %6387 = vmatpush.bf16.msra.mxu0 %v4894
    %6388 = vmatpush.bf16.msra.mxu0 %v4878
    %6389 = vmatpush.bf16.msra.mxu0 %v4862
    %6390 = vmatpush.bf16.msra.mxu0 %v4846
    %6391 = vmatpush.bf16.msra.mxu0 %v4830
    %6392 = vmatpush.bf16.msra.mxu0 %v4814
    %6393 = vmatpush.bf16.msra.mxu0 %v4798
    %6394 = vmatmul.bf16.gmra.mxu0 %v150
    %v6395 = vpop.f32.mrf.mxu0
    %v6396 = vadd.f32 %v6383, %v6395
    %v6397 = vpop.f32.mrf.mxu0
    %6398 = vdwg.mxu0
    %6399 = vmatpush.bf16.msra.mxu0 %v5038
    %6400 = vmatpush.bf16.msra.mxu0 %v5022
    %6401 = vmatpush.bf16.msra.mxu0 %v5006
    %6402 = vmatpush.bf16.msra.mxu0 %v4990
    %6403 = vmatpush.bf16.msra.mxu0 %v4974
    %6404 = vmatpush.bf16.msra.mxu0 %v4958
    %6405 = vmatpush.bf16.msra.mxu0 %v4942
    %6406 = vmatpush.bf16.msra.mxu0 %v4926
    %6407 = vmatmul.bf16.gmra.mxu0 %v151
    %v6408 = vpop.f32.mrf.mxu0
    %v6409 = vadd.f32 %v6396, %v6408
    %v6410 = vpop.f32.mrf.mxu0
    %6411 = vdwg.mxu0
    %6412 = vmatpush.bf16.msra.mxu0 %v5166
    %6413 = vmatpush.bf16.msra.mxu0 %v5150
    %6414 = vmatpush.bf16.msra.mxu0 %v5134
    %6415 = vmatpush.bf16.msra.mxu0 %v5118
    %6416 = vmatpush.bf16.msra.mxu0 %v5102
    %6417 = vmatpush.bf16.msra.mxu0 %v5086
    %6418 = vmatpush.bf16.msra.mxu0 %v5070
    %6419 = vmatpush.bf16.msra.mxu0 %v5054
    %6420 = vmatmul.bf16.gmra.mxu0 %v152
    %v6421 = vpop.f32.mrf.mxu0
    %v6422 = vadd.f32 %v6409, %v6421
    %v6423 = vpop.f32.mrf.mxu0
    %6424 = vdwg.mxu0
    %6425 = vmatpush.bf16.msra.mxu0 %v5294
    %6426 = vmatpush.bf16.msra.mxu0 %v5278
    %6427 = vmatpush.bf16.msra.mxu0 %v5262
    %6428 = vmatpush.bf16.msra.mxu0 %v5246
    %6429 = vmatpush.bf16.msra.mxu0 %v5230
    %6430 = vmatpush.bf16.msra.mxu0 %v5214
    %6431 = vmatpush.bf16.msra.mxu0 %v5198
    %6432 = vmatpush.bf16.msra.mxu0 %v5182
    %6433 = vmatmul.bf16.gmra.mxu0 %v153
    %v6434 = vpop.f32.mrf.mxu0
    %v6435 = vadd.f32 %v6422, %v6434
    %v6436 = vpop.f32.mrf.mxu0
    %6437 = vdwg.mxu0
    %6438 = vmatpush.bf16.msra.mxu0 %v4399
    %6439 = vmatpush.bf16.msra.mxu0 %v4383
    %6440 = vmatpush.bf16.msra.mxu0 %v4367
    %6441 = vmatpush.bf16.msra.mxu0 %v4351
    %6442 = vmatpush.bf16.msra.mxu0 %v4335
    %6443 = vmatpush.bf16.msra.mxu0 %v4319
    %6444 = vmatpush.bf16.msra.mxu0 %v4303
    %6445 = vmatpush.bf16.msra.mxu0 %v4287
    %6446 = vmatmul.bf16.gmra.mxu0 %v146
    %v6447 = vpop.f32.mrf.mxu0
    %v6448 = vadd.f32 %v1183, %v6447
    %v6449 = vpop.f32.mrf.mxu0
    %6450 = vdwg.mxu0
    %6451 = vmatpush.bf16.msra.mxu0 %v4527
    %6452 = vmatpush.bf16.msra.mxu0 %v4511
    %6453 = vmatpush.bf16.msra.mxu0 %v4495
    %6454 = vmatpush.bf16.msra.mxu0 %v4479
    %6455 = vmatpush.bf16.msra.mxu0 %v4463
    %6456 = vmatpush.bf16.msra.mxu0 %v4447
    %6457 = vmatpush.bf16.msra.mxu0 %v4431
    %6458 = vmatpush.bf16.msra.mxu0 %v4415
    %6459 = vmatmul.bf16.gmra.mxu0 %v147
    %v6460 = vpop.f32.mrf.mxu0
    %v6461 = vadd.f32 %v6448, %v6460
    %v6462 = vpop.f32.mrf.mxu0
    %6463 = vdwg.mxu0
    %6464 = vmatpush.bf16.msra.mxu0 %v4655
    %6465 = vmatpush.bf16.msra.mxu0 %v4639
    %6466 = vmatpush.bf16.msra.mxu0 %v4623
    %6467 = vmatpush.bf16.msra.mxu0 %v4607
    %6468 = vmatpush.bf16.msra.mxu0 %v4591
    %6469 = vmatpush.bf16.msra.mxu0 %v4575
    %6470 = vmatpush.bf16.msra.mxu0 %v4559
    %6471 = vmatpush.bf16.msra.mxu0 %v4543
    %6472 = vmatmul.bf16.gmra.mxu0 %v148
    %v6473 = vpop.f32.mrf.mxu0
    %v6474 = vadd.f32 %v6461, %v6473
    %v6475 = vpop.f32.mrf.mxu0
    %6476 = vdwg.mxu0
    %6477 = vmatpush.bf16.msra.mxu0 %v4783
    %6478 = vmatpush.bf16.msra.mxu0 %v4767
    %6479 = vmatpush.bf16.msra.mxu0 %v4751
    %6480 = vmatpush.bf16.msra.mxu0 %v4735
    %6481 = vmatpush.bf16.msra.mxu0 %v4719
    %6482 = vmatpush.bf16.msra.mxu0 %v4703
    %6483 = vmatpush.bf16.msra.mxu0 %v4687
    %6484 = vmatpush.bf16.msra.mxu0 %v4671
    %6485 = vmatmul.bf16.gmra.mxu0 %v149
    %v6486 = vpop.f32.mrf.mxu0
    %v6487 = vadd.f32 %v6474, %v6486
    %v6488 = vpop.f32.mrf.mxu0
    %6489 = vdwg.mxu0
    %6490 = vmatpush.bf16.msra.mxu0 %v4911
    %6491 = vmatpush.bf16.msra.mxu0 %v4895
    %6492 = vmatpush.bf16.msra.mxu0 %v4879
    %6493 = vmatpush.bf16.msra.mxu0 %v4863
    %6494 = vmatpush.bf16.msra.mxu0 %v4847
    %6495 = vmatpush.bf16.msra.mxu0 %v4831
    %6496 = vmatpush.bf16.msra.mxu0 %v4815
    %6497 = vmatpush.bf16.msra.mxu0 %v4799
    %6498 = vmatmul.bf16.gmra.mxu0 %v150
    %v6499 = vpop.f32.mrf.mxu0
    %v6500 = vadd.f32 %v6487, %v6499
    %v6501 = vpop.f32.mrf.mxu0
    %6502 = vdwg.mxu0
    %6503 = vmatpush.bf16.msra.mxu0 %v5039
    %6504 = vmatpush.bf16.msra.mxu0 %v5023
    %6505 = vmatpush.bf16.msra.mxu0 %v5007
    %6506 = vmatpush.bf16.msra.mxu0 %v4991
    %6507 = vmatpush.bf16.msra.mxu0 %v4975
    %6508 = vmatpush.bf16.msra.mxu0 %v4959
    %6509 = vmatpush.bf16.msra.mxu0 %v4943
    %6510 = vmatpush.bf16.msra.mxu0 %v4927
    %6511 = vmatmul.bf16.gmra.mxu0 %v151
    %v6512 = vpop.f32.mrf.mxu0
    %v6513 = vadd.f32 %v6500, %v6512
    %v6514 = vpop.f32.mrf.mxu0
    %6515 = vdwg.mxu0
    %6516 = vmatpush.bf16.msra.mxu0 %v5167
    %6517 = vmatpush.bf16.msra.mxu0 %v5151
    %6518 = vmatpush.bf16.msra.mxu0 %v5135
    %6519 = vmatpush.bf16.msra.mxu0 %v5119
    %6520 = vmatpush.bf16.msra.mxu0 %v5103
    %6521 = vmatpush.bf16.msra.mxu0 %v5087
    %6522 = vmatpush.bf16.msra.mxu0 %v5071
    %6523 = vmatpush.bf16.msra.mxu0 %v5055
    %6524 = vmatmul.bf16.gmra.mxu0 %v152
    %v6525 = vpop.f32.mrf.mxu0
    %v6526 = vadd.f32 %v6513, %v6525
    %v6527 = vpop.f32.mrf.mxu0
    %6528 = vdwg.mxu0
    %6529 = vmatpush.bf16.msra.mxu0 %v5295
    %6530 = vmatpush.bf16.msra.mxu0 %v5279
    %6531 = vmatpush.bf16.msra.mxu0 %v5263
    %6532 = vmatpush.bf16.msra.mxu0 %v5247
    %6533 = vmatpush.bf16.msra.mxu0 %v5231
    %6534 = vmatpush.bf16.msra.mxu0 %v5215
    %6535 = vmatpush.bf16.msra.mxu0 %v5199
    %6536 = vmatpush.bf16.msra.mxu0 %v5183
    %6537 = vmatmul.bf16.gmra.mxu0 %v153
    %v6538 = vpop.f32.mrf.mxu0
    %v6539 = vadd.f32 %v6526, %v6538
    %v6540 = vpop.f32.mrf.mxu0
    %6541 = vdwg.mxu0
    %6542 = vmatpush.bf16.msra.mxu0 %v4400
    %6543 = vmatpush.bf16.msra.mxu0 %v4384
    %6544 = vmatpush.bf16.msra.mxu0 %v4368
    %6545 = vmatpush.bf16.msra.mxu0 %v4352
    %6546 = vmatpush.bf16.msra.mxu0 %v4336
    %6547 = vmatpush.bf16.msra.mxu0 %v4320
    %6548 = vmatpush.bf16.msra.mxu0 %v4304
    %6549 = vmatpush.bf16.msra.mxu0 %v4288
    %6550 = vmatmul.bf16.gmra.mxu0 %v146
    %v6551 = vpop.f32.mrf.mxu0
    %v6552 = vadd.f32 %v1184, %v6551
    %v6553 = vpop.f32.mrf.mxu0
    %6554 = vdwg.mxu0
    %6555 = vmatpush.bf16.msra.mxu0 %v4528
    %6556 = vmatpush.bf16.msra.mxu0 %v4512
    %6557 = vmatpush.bf16.msra.mxu0 %v4496
    %6558 = vmatpush.bf16.msra.mxu0 %v4480
    %6559 = vmatpush.bf16.msra.mxu0 %v4464
    %6560 = vmatpush.bf16.msra.mxu0 %v4448
    %6561 = vmatpush.bf16.msra.mxu0 %v4432
    %6562 = vmatpush.bf16.msra.mxu0 %v4416
    %6563 = vmatmul.bf16.gmra.mxu0 %v147
    %v6564 = vpop.f32.mrf.mxu0
    %v6565 = vadd.f32 %v6552, %v6564
    %v6566 = vpop.f32.mrf.mxu0
    %6567 = vdwg.mxu0
    %6568 = vmatpush.bf16.msra.mxu0 %v4656
    %6569 = vmatpush.bf16.msra.mxu0 %v4640
    %6570 = vmatpush.bf16.msra.mxu0 %v4624
    %6571 = vmatpush.bf16.msra.mxu0 %v4608
    %6572 = vmatpush.bf16.msra.mxu0 %v4592
    %6573 = vmatpush.bf16.msra.mxu0 %v4576
    %6574 = vmatpush.bf16.msra.mxu0 %v4560
    %6575 = vmatpush.bf16.msra.mxu0 %v4544
    %6576 = vmatmul.bf16.gmra.mxu0 %v148
    %v6577 = vpop.f32.mrf.mxu0
    %v6578 = vadd.f32 %v6565, %v6577
    %v6579 = vpop.f32.mrf.mxu0
    %6580 = vdwg.mxu0
    %6581 = vmatpush.bf16.msra.mxu0 %v4784
    %6582 = vmatpush.bf16.msra.mxu0 %v4768
    %6583 = vmatpush.bf16.msra.mxu0 %v4752
    %6584 = vmatpush.bf16.msra.mxu0 %v4736
    %6585 = vmatpush.bf16.msra.mxu0 %v4720
    %6586 = vmatpush.bf16.msra.mxu0 %v4704
    %6587 = vmatpush.bf16.msra.mxu0 %v4688
    %6588 = vmatpush.bf16.msra.mxu0 %v4672
    %6589 = vmatmul.bf16.gmra.mxu0 %v149
    %v6590 = vpop.f32.mrf.mxu0
    %v6591 = vadd.f32 %v6578, %v6590
    %v6592 = vpop.f32.mrf.mxu0
    %6593 = vdwg.mxu0
    %6594 = vmatpush.bf16.msra.mxu0 %v4912
    %6595 = vmatpush.bf16.msra.mxu0 %v4896
    %6596 = vmatpush.bf16.msra.mxu0 %v4880
    %6597 = vmatpush.bf16.msra.mxu0 %v4864
    %6598 = vmatpush.bf16.msra.mxu0 %v4848
    %6599 = vmatpush.bf16.msra.mxu0 %v4832
    %6600 = vmatpush.bf16.msra.mxu0 %v4816
    %6601 = vmatpush.bf16.msra.mxu0 %v4800
    %6602 = vmatmul.bf16.gmra.mxu0 %v150
    %v6603 = vpop.f32.mrf.mxu0
    %v6604 = vadd.f32 %v6591, %v6603
    %v6605 = vpop.f32.mrf.mxu0
    %6606 = vdwg.mxu0
    %6607 = vmatpush.bf16.msra.mxu0 %v5040
    %6608 = vmatpush.bf16.msra.mxu0 %v5024
    %6609 = vmatpush.bf16.msra.mxu0 %v5008
    %6610 = vmatpush.bf16.msra.mxu0 %v4992
    %6611 = vmatpush.bf16.msra.mxu0 %v4976
    %6612 = vmatpush.bf16.msra.mxu0 %v4960
    %6613 = vmatpush.bf16.msra.mxu0 %v4944
    %6614 = vmatpush.bf16.msra.mxu0 %v4928
    %6615 = vmatmul.bf16.gmra.mxu0 %v151
    %v6616 = vpop.f32.mrf.mxu0
    %v6617 = vadd.f32 %v6604, %v6616
    %v6618 = vpop.f32.mrf.mxu0
    %6619 = vdwg.mxu0
    %6620 = vmatpush.bf16.msra.mxu0 %v5168
    %6621 = vmatpush.bf16.msra.mxu0 %v5152
    %6622 = vmatpush.bf16.msra.mxu0 %v5136
    %6623 = vmatpush.bf16.msra.mxu0 %v5120
    %6624 = vmatpush.bf16.msra.mxu0 %v5104
    %6625 = vmatpush.bf16.msra.mxu0 %v5088
    %6626 = vmatpush.bf16.msra.mxu0 %v5072
    %6627 = vmatpush.bf16.msra.mxu0 %v5056
    %6628 = vmatmul.bf16.gmra.mxu0 %v152
    %v6629 = vpop.f32.mrf.mxu0
    %v6630 = vadd.f32 %v6617, %v6629
    %v6631 = vpop.f32.mrf.mxu0
    %6632 = vdwg.mxu0
    %6633 = vmatpush.bf16.msra.mxu0 %v5296
    %6634 = vmatpush.bf16.msra.mxu0 %v5280
    %6635 = vmatpush.bf16.msra.mxu0 %v5264
    %6636 = vmatpush.bf16.msra.mxu0 %v5248
    %6637 = vmatpush.bf16.msra.mxu0 %v5232
    %6638 = vmatpush.bf16.msra.mxu0 %v5216
    %6639 = vmatpush.bf16.msra.mxu0 %v5200
    %6640 = vmatpush.bf16.msra.mxu0 %v5184
    %6641 = vmatmul.bf16.gmra.mxu0 %v153
    %v6642 = vpop.f32.mrf.mxu0
    %v6643 = vadd.f32 %v6630, %v6642
    %v6644 = vpop.f32.mrf.mxu0
    %6645 = vdwg.mxu0
    %6646 = vmatpush.bf16.msra.mxu0 %v4401
    %6647 = vmatpush.bf16.msra.mxu0 %v4385
    %6648 = vmatpush.bf16.msra.mxu0 %v4369
    %6649 = vmatpush.bf16.msra.mxu0 %v4353
    %6650 = vmatpush.bf16.msra.mxu0 %v4337
    %6651 = vmatpush.bf16.msra.mxu0 %v4321
    %6652 = vmatpush.bf16.msra.mxu0 %v4305
    %6653 = vmatpush.bf16.msra.mxu0 %v4289
    %6654 = vmatmul.bf16.gmra.mxu0 %v146
    %v6655 = vpop.f32.mrf.mxu0
    %v6656 = vadd.f32 %v1185, %v6655
    %v6657 = vpop.f32.mrf.mxu0
    %6658 = vdwg.mxu0
    %6659 = vmatpush.bf16.msra.mxu0 %v4529
    %6660 = vmatpush.bf16.msra.mxu0 %v4513
    %6661 = vmatpush.bf16.msra.mxu0 %v4497
    %6662 = vmatpush.bf16.msra.mxu0 %v4481
    %6663 = vmatpush.bf16.msra.mxu0 %v4465
    %6664 = vmatpush.bf16.msra.mxu0 %v4449
    %6665 = vmatpush.bf16.msra.mxu0 %v4433
    %6666 = vmatpush.bf16.msra.mxu0 %v4417
    %6667 = vmatmul.bf16.gmra.mxu0 %v147
    %v6668 = vpop.f32.mrf.mxu0
    %v6669 = vadd.f32 %v6656, %v6668
    %v6670 = vpop.f32.mrf.mxu0
    %6671 = vdwg.mxu0
    %6672 = vmatpush.bf16.msra.mxu0 %v4657
    %6673 = vmatpush.bf16.msra.mxu0 %v4641
    %6674 = vmatpush.bf16.msra.mxu0 %v4625
    %6675 = vmatpush.bf16.msra.mxu0 %v4609
    %6676 = vmatpush.bf16.msra.mxu0 %v4593
    %6677 = vmatpush.bf16.msra.mxu0 %v4577
    %6678 = vmatpush.bf16.msra.mxu0 %v4561
    %6679 = vmatpush.bf16.msra.mxu0 %v4545
    %6680 = vmatmul.bf16.gmra.mxu0 %v148
    %v6681 = vpop.f32.mrf.mxu0
    %v6682 = vadd.f32 %v6669, %v6681
    %v6683 = vpop.f32.mrf.mxu0
    %6684 = vdwg.mxu0
    %6685 = vmatpush.bf16.msra.mxu0 %v4785
    %6686 = vmatpush.bf16.msra.mxu0 %v4769
    %6687 = vmatpush.bf16.msra.mxu0 %v4753
    %6688 = vmatpush.bf16.msra.mxu0 %v4737
    %6689 = vmatpush.bf16.msra.mxu0 %v4721
    %6690 = vmatpush.bf16.msra.mxu0 %v4705
    %6691 = vmatpush.bf16.msra.mxu0 %v4689
    %6692 = vmatpush.bf16.msra.mxu0 %v4673
    %6693 = vmatmul.bf16.gmra.mxu0 %v149
    %v6694 = vpop.f32.mrf.mxu0
    %v6695 = vadd.f32 %v6682, %v6694
    %v6696 = vpop.f32.mrf.mxu0
    %6697 = vdwg.mxu0
    %6698 = vmatpush.bf16.msra.mxu0 %v4913
    %6699 = vmatpush.bf16.msra.mxu0 %v4897
    %6700 = vmatpush.bf16.msra.mxu0 %v4881
    %6701 = vmatpush.bf16.msra.mxu0 %v4865
    %6702 = vmatpush.bf16.msra.mxu0 %v4849
    %6703 = vmatpush.bf16.msra.mxu0 %v4833
    %6704 = vmatpush.bf16.msra.mxu0 %v4817
    %6705 = vmatpush.bf16.msra.mxu0 %v4801
    %6706 = vmatmul.bf16.gmra.mxu0 %v150
    %v6707 = vpop.f32.mrf.mxu0
    %v6708 = vadd.f32 %v6695, %v6707
    %v6709 = vpop.f32.mrf.mxu0
    %6710 = vdwg.mxu0
    %6711 = vmatpush.bf16.msra.mxu0 %v5041
    %6712 = vmatpush.bf16.msra.mxu0 %v5025
    %6713 = vmatpush.bf16.msra.mxu0 %v5009
    %6714 = vmatpush.bf16.msra.mxu0 %v4993
    %6715 = vmatpush.bf16.msra.mxu0 %v4977
    %6716 = vmatpush.bf16.msra.mxu0 %v4961
    %6717 = vmatpush.bf16.msra.mxu0 %v4945
    %6718 = vmatpush.bf16.msra.mxu0 %v4929
    %6719 = vmatmul.bf16.gmra.mxu0 %v151
    %v6720 = vpop.f32.mrf.mxu0
    %v6721 = vadd.f32 %v6708, %v6720
    %v6722 = vpop.f32.mrf.mxu0
    %6723 = vdwg.mxu0
    %6724 = vmatpush.bf16.msra.mxu0 %v5169
    %6725 = vmatpush.bf16.msra.mxu0 %v5153
    %6726 = vmatpush.bf16.msra.mxu0 %v5137
    %6727 = vmatpush.bf16.msra.mxu0 %v5121
    %6728 = vmatpush.bf16.msra.mxu0 %v5105
    %6729 = vmatpush.bf16.msra.mxu0 %v5089
    %6730 = vmatpush.bf16.msra.mxu0 %v5073
    %6731 = vmatpush.bf16.msra.mxu0 %v5057
    %6732 = vmatmul.bf16.gmra.mxu0 %v152
    %v6733 = vpop.f32.mrf.mxu0
    %v6734 = vadd.f32 %v6721, %v6733
    %v6735 = vpop.f32.mrf.mxu0
    %6736 = vdwg.mxu0
    %6737 = vmatpush.bf16.msra.mxu0 %v5297
    %6738 = vmatpush.bf16.msra.mxu0 %v5281
    %6739 = vmatpush.bf16.msra.mxu0 %v5265
    %6740 = vmatpush.bf16.msra.mxu0 %v5249
    %6741 = vmatpush.bf16.msra.mxu0 %v5233
    %6742 = vmatpush.bf16.msra.mxu0 %v5217
    %6743 = vmatpush.bf16.msra.mxu0 %v5201
    %6744 = vmatpush.bf16.msra.mxu0 %v5185
    %6745 = vmatmul.bf16.gmra.mxu0 %v153
    %v6746 = vpop.f32.mrf.mxu0
    %v6747 = vadd.f32 %v6734, %v6746
    %v6748 = vpop.f32.mrf.mxu0
    %6749 = vdwg.mxu0
    %6750 = vmatpush.bf16.msra.mxu0 %v4402
    %6751 = vmatpush.bf16.msra.mxu0 %v4386
    %6752 = vmatpush.bf16.msra.mxu0 %v4370
    %6753 = vmatpush.bf16.msra.mxu0 %v4354
    %6754 = vmatpush.bf16.msra.mxu0 %v4338
    %6755 = vmatpush.bf16.msra.mxu0 %v4322
    %6756 = vmatpush.bf16.msra.mxu0 %v4306
    %6757 = vmatpush.bf16.msra.mxu0 %v4290
    %6758 = vmatmul.bf16.gmra.mxu0 %v146
    %v6759 = vpop.f32.mrf.mxu0
    %v6760 = vadd.f32 %v1186, %v6759
    %v6761 = vpop.f32.mrf.mxu0
    %6762 = vdwg.mxu0
    %6763 = vmatpush.bf16.msra.mxu0 %v4530
    %6764 = vmatpush.bf16.msra.mxu0 %v4514
    %6765 = vmatpush.bf16.msra.mxu0 %v4498
    %6766 = vmatpush.bf16.msra.mxu0 %v4482
    %6767 = vmatpush.bf16.msra.mxu0 %v4466
    %6768 = vmatpush.bf16.msra.mxu0 %v4450
    %6769 = vmatpush.bf16.msra.mxu0 %v4434
    %6770 = vmatpush.bf16.msra.mxu0 %v4418
    %6771 = vmatmul.bf16.gmra.mxu0 %v147
    %v6772 = vpop.f32.mrf.mxu0
    %v6773 = vadd.f32 %v6760, %v6772
    %v6774 = vpop.f32.mrf.mxu0
    %6775 = vdwg.mxu0
    %6776 = vmatpush.bf16.msra.mxu0 %v4658
    %6777 = vmatpush.bf16.msra.mxu0 %v4642
    %6778 = vmatpush.bf16.msra.mxu0 %v4626
    %6779 = vmatpush.bf16.msra.mxu0 %v4610
    %6780 = vmatpush.bf16.msra.mxu0 %v4594
    %6781 = vmatpush.bf16.msra.mxu0 %v4578
    %6782 = vmatpush.bf16.msra.mxu0 %v4562
    %6783 = vmatpush.bf16.msra.mxu0 %v4546
    %6784 = vmatmul.bf16.gmra.mxu0 %v148
    %v6785 = vpop.f32.mrf.mxu0
    %v6786 = vadd.f32 %v6773, %v6785
    %v6787 = vpop.f32.mrf.mxu0
    %6788 = vdwg.mxu0
    %6789 = vmatpush.bf16.msra.mxu0 %v4786
    %6790 = vmatpush.bf16.msra.mxu0 %v4770
    %6791 = vmatpush.bf16.msra.mxu0 %v4754
    %6792 = vmatpush.bf16.msra.mxu0 %v4738
    %6793 = vmatpush.bf16.msra.mxu0 %v4722
    %6794 = vmatpush.bf16.msra.mxu0 %v4706
    %6795 = vmatpush.bf16.msra.mxu0 %v4690
    %6796 = vmatpush.bf16.msra.mxu0 %v4674
    %6797 = vmatmul.bf16.gmra.mxu0 %v149
    %v6798 = vpop.f32.mrf.mxu0
    %v6799 = vadd.f32 %v6786, %v6798
    %v6800 = vpop.f32.mrf.mxu0
    %6801 = vdwg.mxu0
    %6802 = vmatpush.bf16.msra.mxu0 %v4914
    %6803 = vmatpush.bf16.msra.mxu0 %v4898
    %6804 = vmatpush.bf16.msra.mxu0 %v4882
    %6805 = vmatpush.bf16.msra.mxu0 %v4866
    %6806 = vmatpush.bf16.msra.mxu0 %v4850
    %6807 = vmatpush.bf16.msra.mxu0 %v4834
    %6808 = vmatpush.bf16.msra.mxu0 %v4818
    %6809 = vmatpush.bf16.msra.mxu0 %v4802
    %6810 = vmatmul.bf16.gmra.mxu0 %v150
    %v6811 = vpop.f32.mrf.mxu0
    %v6812 = vadd.f32 %v6799, %v6811
    %v6813 = vpop.f32.mrf.mxu0
    %6814 = vdwg.mxu0
    %6815 = vmatpush.bf16.msra.mxu0 %v5042
    %6816 = vmatpush.bf16.msra.mxu0 %v5026
    %6817 = vmatpush.bf16.msra.mxu0 %v5010
    %6818 = vmatpush.bf16.msra.mxu0 %v4994
    %6819 = vmatpush.bf16.msra.mxu0 %v4978
    %6820 = vmatpush.bf16.msra.mxu0 %v4962
    %6821 = vmatpush.bf16.msra.mxu0 %v4946
    %6822 = vmatpush.bf16.msra.mxu0 %v4930
    %6823 = vmatmul.bf16.gmra.mxu0 %v151
    %v6824 = vpop.f32.mrf.mxu0
    %v6825 = vadd.f32 %v6812, %v6824
    %v6826 = vpop.f32.mrf.mxu0
    %6827 = vdwg.mxu0
    %6828 = vmatpush.bf16.msra.mxu0 %v5170
    %6829 = vmatpush.bf16.msra.mxu0 %v5154
    %6830 = vmatpush.bf16.msra.mxu0 %v5138
    %6831 = vmatpush.bf16.msra.mxu0 %v5122
    %6832 = vmatpush.bf16.msra.mxu0 %v5106
    %6833 = vmatpush.bf16.msra.mxu0 %v5090
    %6834 = vmatpush.bf16.msra.mxu0 %v5074
    %6835 = vmatpush.bf16.msra.mxu0 %v5058
    %6836 = vmatmul.bf16.gmra.mxu0 %v152
    %v6837 = vpop.f32.mrf.mxu0
    %v6838 = vadd.f32 %v6825, %v6837
    %v6839 = vpop.f32.mrf.mxu0
    %6840 = vdwg.mxu0
    %6841 = vmatpush.bf16.msra.mxu0 %v5298
    %6842 = vmatpush.bf16.msra.mxu0 %v5282
    %6843 = vmatpush.bf16.msra.mxu0 %v5266
    %6844 = vmatpush.bf16.msra.mxu0 %v5250
    %6845 = vmatpush.bf16.msra.mxu0 %v5234
    %6846 = vmatpush.bf16.msra.mxu0 %v5218
    %6847 = vmatpush.bf16.msra.mxu0 %v5202
    %6848 = vmatpush.bf16.msra.mxu0 %v5186
    %6849 = vmatmul.bf16.gmra.mxu0 %v153
    %v6850 = vpop.f32.mrf.mxu0
    %v6851 = vadd.f32 %v6838, %v6850
    %v6852 = vpop.f32.mrf.mxu0
    %6853 = vdwg.mxu0
    %6854 = vmatpush.bf16.msra.mxu0 %v4403
    %6855 = vmatpush.bf16.msra.mxu0 %v4387
    %6856 = vmatpush.bf16.msra.mxu0 %v4371
    %6857 = vmatpush.bf16.msra.mxu0 %v4355
    %6858 = vmatpush.bf16.msra.mxu0 %v4339
    %6859 = vmatpush.bf16.msra.mxu0 %v4323
    %6860 = vmatpush.bf16.msra.mxu0 %v4307
    %6861 = vmatpush.bf16.msra.mxu0 %v4291
    %6862 = vmatmul.bf16.gmra.mxu0 %v146
    %v6863 = vpop.f32.mrf.mxu0
    %v6864 = vadd.f32 %v1187, %v6863
    %v6865 = vpop.f32.mrf.mxu0
    %6866 = vdwg.mxu0
    %6867 = vmatpush.bf16.msra.mxu0 %v4531
    %6868 = vmatpush.bf16.msra.mxu0 %v4515
    %6869 = vmatpush.bf16.msra.mxu0 %v4499
    %6870 = vmatpush.bf16.msra.mxu0 %v4483
    %6871 = vmatpush.bf16.msra.mxu0 %v4467
    %6872 = vmatpush.bf16.msra.mxu0 %v4451
    %6873 = vmatpush.bf16.msra.mxu0 %v4435
    %6874 = vmatpush.bf16.msra.mxu0 %v4419
    %6875 = vmatmul.bf16.gmra.mxu0 %v147
    %v6876 = vpop.f32.mrf.mxu0
    %v6877 = vadd.f32 %v6864, %v6876
    %v6878 = vpop.f32.mrf.mxu0
    %6879 = vdwg.mxu0
    %6880 = vmatpush.bf16.msra.mxu0 %v4659
    %6881 = vmatpush.bf16.msra.mxu0 %v4643
    %6882 = vmatpush.bf16.msra.mxu0 %v4627
    %6883 = vmatpush.bf16.msra.mxu0 %v4611
    %6884 = vmatpush.bf16.msra.mxu0 %v4595
    %6885 = vmatpush.bf16.msra.mxu0 %v4579
    %6886 = vmatpush.bf16.msra.mxu0 %v4563
    %6887 = vmatpush.bf16.msra.mxu0 %v4547
    %6888 = vmatmul.bf16.gmra.mxu0 %v148
    %v6889 = vpop.f32.mrf.mxu0
    %v6890 = vadd.f32 %v6877, %v6889
    %v6891 = vpop.f32.mrf.mxu0
    %6892 = vdwg.mxu0
    %6893 = vmatpush.bf16.msra.mxu0 %v4787
    %6894 = vmatpush.bf16.msra.mxu0 %v4771
    %6895 = vmatpush.bf16.msra.mxu0 %v4755
    %6896 = vmatpush.bf16.msra.mxu0 %v4739
    %6897 = vmatpush.bf16.msra.mxu0 %v4723
    %6898 = vmatpush.bf16.msra.mxu0 %v4707
    %6899 = vmatpush.bf16.msra.mxu0 %v4691
    %6900 = vmatpush.bf16.msra.mxu0 %v4675
    %6901 = vmatmul.bf16.gmra.mxu0 %v149
    %v6902 = vpop.f32.mrf.mxu0
    %v6903 = vadd.f32 %v6890, %v6902
    %v6904 = vpop.f32.mrf.mxu0
    %6905 = vdwg.mxu0
    %6906 = vmatpush.bf16.msra.mxu0 %v4915
    %6907 = vmatpush.bf16.msra.mxu0 %v4899
    %6908 = vmatpush.bf16.msra.mxu0 %v4883
    %6909 = vmatpush.bf16.msra.mxu0 %v4867
    %6910 = vmatpush.bf16.msra.mxu0 %v4851
    %6911 = vmatpush.bf16.msra.mxu0 %v4835
    %6912 = vmatpush.bf16.msra.mxu0 %v4819
    %6913 = vmatpush.bf16.msra.mxu0 %v4803
    %6914 = vmatmul.bf16.gmra.mxu0 %v150
    %v6915 = vpop.f32.mrf.mxu0
    %v6916 = vadd.f32 %v6903, %v6915
    %v6917 = vpop.f32.mrf.mxu0
    %6918 = vdwg.mxu0
    %6919 = vmatpush.bf16.msra.mxu0 %v5043
    %6920 = vmatpush.bf16.msra.mxu0 %v5027
    %6921 = vmatpush.bf16.msra.mxu0 %v5011
    %6922 = vmatpush.bf16.msra.mxu0 %v4995
    %6923 = vmatpush.bf16.msra.mxu0 %v4979
    %6924 = vmatpush.bf16.msra.mxu0 %v4963
    %6925 = vmatpush.bf16.msra.mxu0 %v4947
    %6926 = vmatpush.bf16.msra.mxu0 %v4931
    %6927 = vmatmul.bf16.gmra.mxu0 %v151
    %v6928 = vpop.f32.mrf.mxu0
    %v6929 = vadd.f32 %v6916, %v6928
    %v6930 = vpop.f32.mrf.mxu0
    %6931 = vdwg.mxu0
    %6932 = vmatpush.bf16.msra.mxu0 %v5171
    %6933 = vmatpush.bf16.msra.mxu0 %v5155
    %6934 = vmatpush.bf16.msra.mxu0 %v5139
    %6935 = vmatpush.bf16.msra.mxu0 %v5123
    %6936 = vmatpush.bf16.msra.mxu0 %v5107
    %6937 = vmatpush.bf16.msra.mxu0 %v5091
    %6938 = vmatpush.bf16.msra.mxu0 %v5075
    %6939 = vmatpush.bf16.msra.mxu0 %v5059
    %6940 = vmatmul.bf16.gmra.mxu0 %v152
    %v6941 = vpop.f32.mrf.mxu0
    %v6942 = vadd.f32 %v6929, %v6941
    %v6943 = vpop.f32.mrf.mxu0
    %6944 = vdwg.mxu0
    %6945 = vmatpush.bf16.msra.mxu0 %v5299
    %6946 = vmatpush.bf16.msra.mxu0 %v5283
    %6947 = vmatpush.bf16.msra.mxu0 %v5267
    %6948 = vmatpush.bf16.msra.mxu0 %v5251
    %6949 = vmatpush.bf16.msra.mxu0 %v5235
    %6950 = vmatpush.bf16.msra.mxu0 %v5219
    %6951 = vmatpush.bf16.msra.mxu0 %v5203
    %6952 = vmatpush.bf16.msra.mxu0 %v5187
    %6953 = vmatmul.bf16.gmra.mxu0 %v153
    %v6954 = vpop.f32.mrf.mxu0
    %v6955 = vadd.f32 %v6942, %v6954
    %v6956 = vpop.f32.mrf.mxu0
    %6957 = vdwg.mxu0
    %6958 = vmatpush.bf16.msra.mxu0 %v4404
    %6959 = vmatpush.bf16.msra.mxu0 %v4388
    %6960 = vmatpush.bf16.msra.mxu0 %v4372
    %6961 = vmatpush.bf16.msra.mxu0 %v4356
    %6962 = vmatpush.bf16.msra.mxu0 %v4340
    %6963 = vmatpush.bf16.msra.mxu0 %v4324
    %6964 = vmatpush.bf16.msra.mxu0 %v4308
    %6965 = vmatpush.bf16.msra.mxu0 %v4292
    %6966 = vmatmul.bf16.gmra.mxu0 %v146
    %v6967 = vpop.f32.mrf.mxu0
    %v6968 = vadd.f32 %v1188, %v6967
    %v6969 = vpop.f32.mrf.mxu0
    %6970 = vdwg.mxu0
    %6971 = vmatpush.bf16.msra.mxu0 %v4532
    %6972 = vmatpush.bf16.msra.mxu0 %v4516
    %6973 = vmatpush.bf16.msra.mxu0 %v4500
    %6974 = vmatpush.bf16.msra.mxu0 %v4484
    %6975 = vmatpush.bf16.msra.mxu0 %v4468
    %6976 = vmatpush.bf16.msra.mxu0 %v4452
    %6977 = vmatpush.bf16.msra.mxu0 %v4436
    %6978 = vmatpush.bf16.msra.mxu0 %v4420
    %6979 = vmatmul.bf16.gmra.mxu0 %v147
    %v6980 = vpop.f32.mrf.mxu0
    %v6981 = vadd.f32 %v6968, %v6980
    %v6982 = vpop.f32.mrf.mxu0
    %6983 = vdwg.mxu0
    %6984 = vmatpush.bf16.msra.mxu0 %v4660
    %6985 = vmatpush.bf16.msra.mxu0 %v4644
    %6986 = vmatpush.bf16.msra.mxu0 %v4628
    %6987 = vmatpush.bf16.msra.mxu0 %v4612
    %6988 = vmatpush.bf16.msra.mxu0 %v4596
    %6989 = vmatpush.bf16.msra.mxu0 %v4580
    %6990 = vmatpush.bf16.msra.mxu0 %v4564
    %6991 = vmatpush.bf16.msra.mxu0 %v4548
    %6992 = vmatmul.bf16.gmra.mxu0 %v148
    %v6993 = vpop.f32.mrf.mxu0
    %v6994 = vadd.f32 %v6981, %v6993
    %v6995 = vpop.f32.mrf.mxu0
    %6996 = vdwg.mxu0
    %6997 = vmatpush.bf16.msra.mxu0 %v4788
    %6998 = vmatpush.bf16.msra.mxu0 %v4772
    %6999 = vmatpush.bf16.msra.mxu0 %v4756
    %7000 = vmatpush.bf16.msra.mxu0 %v4740
    %7001 = vmatpush.bf16.msra.mxu0 %v4724
    %7002 = vmatpush.bf16.msra.mxu0 %v4708
    %7003 = vmatpush.bf16.msra.mxu0 %v4692
    %7004 = vmatpush.bf16.msra.mxu0 %v4676
    %7005 = vmatmul.bf16.gmra.mxu0 %v149
    %v7006 = vpop.f32.mrf.mxu0
    %v7007 = vadd.f32 %v6994, %v7006
    %v7008 = vpop.f32.mrf.mxu0
    %7009 = vdwg.mxu0
    %7010 = vmatpush.bf16.msra.mxu0 %v4916
    %7011 = vmatpush.bf16.msra.mxu0 %v4900
    %7012 = vmatpush.bf16.msra.mxu0 %v4884
    %7013 = vmatpush.bf16.msra.mxu0 %v4868
    %7014 = vmatpush.bf16.msra.mxu0 %v4852
    %7015 = vmatpush.bf16.msra.mxu0 %v4836
    %7016 = vmatpush.bf16.msra.mxu0 %v4820
    %7017 = vmatpush.bf16.msra.mxu0 %v4804
    %7018 = vmatmul.bf16.gmra.mxu0 %v150
    %v7019 = vpop.f32.mrf.mxu0
    %v7020 = vadd.f32 %v7007, %v7019
    %v7021 = vpop.f32.mrf.mxu0
    %7022 = vdwg.mxu0
    %7023 = vmatpush.bf16.msra.mxu0 %v5044
    %7024 = vmatpush.bf16.msra.mxu0 %v5028
    %7025 = vmatpush.bf16.msra.mxu0 %v5012
    %7026 = vmatpush.bf16.msra.mxu0 %v4996
    %7027 = vmatpush.bf16.msra.mxu0 %v4980
    %7028 = vmatpush.bf16.msra.mxu0 %v4964
    %7029 = vmatpush.bf16.msra.mxu0 %v4948
    %7030 = vmatpush.bf16.msra.mxu0 %v4932
    %7031 = vmatmul.bf16.gmra.mxu0 %v151
    %v7032 = vpop.f32.mrf.mxu0
    %v7033 = vadd.f32 %v7020, %v7032
    %v7034 = vpop.f32.mrf.mxu0
    %7035 = vdwg.mxu0
    %7036 = vmatpush.bf16.msra.mxu0 %v5172
    %7037 = vmatpush.bf16.msra.mxu0 %v5156
    %7038 = vmatpush.bf16.msra.mxu0 %v5140
    %7039 = vmatpush.bf16.msra.mxu0 %v5124
    %7040 = vmatpush.bf16.msra.mxu0 %v5108
    %7041 = vmatpush.bf16.msra.mxu0 %v5092
    %7042 = vmatpush.bf16.msra.mxu0 %v5076
    %7043 = vmatpush.bf16.msra.mxu0 %v5060
    %7044 = vmatmul.bf16.gmra.mxu0 %v152
    %v7045 = vpop.f32.mrf.mxu0
    %v7046 = vadd.f32 %v7033, %v7045
    %v7047 = vpop.f32.mrf.mxu0
    %7048 = vdwg.mxu0
    %7049 = vmatpush.bf16.msra.mxu0 %v5300
    %7050 = vmatpush.bf16.msra.mxu0 %v5284
    %7051 = vmatpush.bf16.msra.mxu0 %v5268
    %7052 = vmatpush.bf16.msra.mxu0 %v5252
    %7053 = vmatpush.bf16.msra.mxu0 %v5236
    %7054 = vmatpush.bf16.msra.mxu0 %v5220
    %7055 = vmatpush.bf16.msra.mxu0 %v5204
    %7056 = vmatpush.bf16.msra.mxu0 %v5188
    %7057 = vmatmul.bf16.gmra.mxu0 %v153
    %v7058 = vpop.f32.mrf.mxu0
    %v7059 = vadd.f32 %v7046, %v7058
    %v7060 = vpop.f32.mrf.mxu0
    %7061 = vdwg.mxu0
    %7062 = vmatpush.bf16.msra.mxu0 %v4405
    %7063 = vmatpush.bf16.msra.mxu0 %v4389
    %7064 = vmatpush.bf16.msra.mxu0 %v4373
    %7065 = vmatpush.bf16.msra.mxu0 %v4357
    %7066 = vmatpush.bf16.msra.mxu0 %v4341
    %7067 = vmatpush.bf16.msra.mxu0 %v4325
    %7068 = vmatpush.bf16.msra.mxu0 %v4309
    %7069 = vmatpush.bf16.msra.mxu0 %v4293
    %7070 = vmatmul.bf16.gmra.mxu0 %v146
    %v7071 = vpop.f32.mrf.mxu0
    %v7072 = vadd.f32 %v1189, %v7071
    %v7073 = vpop.f32.mrf.mxu0
    %7074 = vdwg.mxu0
    %7075 = vmatpush.bf16.msra.mxu0 %v4533
    %7076 = vmatpush.bf16.msra.mxu0 %v4517
    %7077 = vmatpush.bf16.msra.mxu0 %v4501
    %7078 = vmatpush.bf16.msra.mxu0 %v4485
    %7079 = vmatpush.bf16.msra.mxu0 %v4469
    %7080 = vmatpush.bf16.msra.mxu0 %v4453
    %7081 = vmatpush.bf16.msra.mxu0 %v4437
    %7082 = vmatpush.bf16.msra.mxu0 %v4421
    %7083 = vmatmul.bf16.gmra.mxu0 %v147
    %v7084 = vpop.f32.mrf.mxu0
    %v7085 = vadd.f32 %v7072, %v7084
    %v7086 = vpop.f32.mrf.mxu0
    %7087 = vdwg.mxu0
    %7088 = vmatpush.bf16.msra.mxu0 %v4661
    %7089 = vmatpush.bf16.msra.mxu0 %v4645
    %7090 = vmatpush.bf16.msra.mxu0 %v4629
    %7091 = vmatpush.bf16.msra.mxu0 %v4613
    %7092 = vmatpush.bf16.msra.mxu0 %v4597
    %7093 = vmatpush.bf16.msra.mxu0 %v4581
    %7094 = vmatpush.bf16.msra.mxu0 %v4565
    %7095 = vmatpush.bf16.msra.mxu0 %v4549
    %7096 = vmatmul.bf16.gmra.mxu0 %v148
    %v7097 = vpop.f32.mrf.mxu0
    %v7098 = vadd.f32 %v7085, %v7097
    %v7099 = vpop.f32.mrf.mxu0
    %7100 = vdwg.mxu0
    %7101 = vmatpush.bf16.msra.mxu0 %v4789
    %7102 = vmatpush.bf16.msra.mxu0 %v4773
    %7103 = vmatpush.bf16.msra.mxu0 %v4757
    %7104 = vmatpush.bf16.msra.mxu0 %v4741
    %7105 = vmatpush.bf16.msra.mxu0 %v4725
    %7106 = vmatpush.bf16.msra.mxu0 %v4709
    %7107 = vmatpush.bf16.msra.mxu0 %v4693
    %7108 = vmatpush.bf16.msra.mxu0 %v4677
    %7109 = vmatmul.bf16.gmra.mxu0 %v149
    %v7110 = vpop.f32.mrf.mxu0
    %v7111 = vadd.f32 %v7098, %v7110
    %v7112 = vpop.f32.mrf.mxu0
    %7113 = vdwg.mxu0
    %7114 = vmatpush.bf16.msra.mxu0 %v4917
    %7115 = vmatpush.bf16.msra.mxu0 %v4901
    %7116 = vmatpush.bf16.msra.mxu0 %v4885
    %7117 = vmatpush.bf16.msra.mxu0 %v4869
    %7118 = vmatpush.bf16.msra.mxu0 %v4853
    %7119 = vmatpush.bf16.msra.mxu0 %v4837
    %7120 = vmatpush.bf16.msra.mxu0 %v4821
    %7121 = vmatpush.bf16.msra.mxu0 %v4805
    %7122 = vmatmul.bf16.gmra.mxu0 %v150
    %v7123 = vpop.f32.mrf.mxu0
    %v7124 = vadd.f32 %v7111, %v7123
    %v7125 = vpop.f32.mrf.mxu0
    %7126 = vdwg.mxu0
    %7127 = vmatpush.bf16.msra.mxu0 %v5045
    %7128 = vmatpush.bf16.msra.mxu0 %v5029
    %7129 = vmatpush.bf16.msra.mxu0 %v5013
    %7130 = vmatpush.bf16.msra.mxu0 %v4997
    %7131 = vmatpush.bf16.msra.mxu0 %v4981
    %7132 = vmatpush.bf16.msra.mxu0 %v4965
    %7133 = vmatpush.bf16.msra.mxu0 %v4949
    %7134 = vmatpush.bf16.msra.mxu0 %v4933
    %7135 = vmatmul.bf16.gmra.mxu0 %v151
    %v7136 = vpop.f32.mrf.mxu0
    %v7137 = vadd.f32 %v7124, %v7136
    %v7138 = vpop.f32.mrf.mxu0
    %7139 = vdwg.mxu0
    %7140 = vmatpush.bf16.msra.mxu0 %v5173
    %7141 = vmatpush.bf16.msra.mxu0 %v5157
    %7142 = vmatpush.bf16.msra.mxu0 %v5141
    %7143 = vmatpush.bf16.msra.mxu0 %v5125
    %7144 = vmatpush.bf16.msra.mxu0 %v5109
    %7145 = vmatpush.bf16.msra.mxu0 %v5093
    %7146 = vmatpush.bf16.msra.mxu0 %v5077
    %7147 = vmatpush.bf16.msra.mxu0 %v5061
    %7148 = vmatmul.bf16.gmra.mxu0 %v152
    %v7149 = vpop.f32.mrf.mxu0
    %v7150 = vadd.f32 %v7137, %v7149
    %v7151 = vpop.f32.mrf.mxu0
    %7152 = vdwg.mxu0
    %7153 = vmatpush.bf16.msra.mxu0 %v5301
    %7154 = vmatpush.bf16.msra.mxu0 %v5285
    %7155 = vmatpush.bf16.msra.mxu0 %v5269
    %7156 = vmatpush.bf16.msra.mxu0 %v5253
    %7157 = vmatpush.bf16.msra.mxu0 %v5237
    %7158 = vmatpush.bf16.msra.mxu0 %v5221
    %7159 = vmatpush.bf16.msra.mxu0 %v5205
    %7160 = vmatpush.bf16.msra.mxu0 %v5189
    %7161 = vmatmul.bf16.gmra.mxu0 %v153
    %v7162 = vpop.f32.mrf.mxu0
    %v7163 = vadd.f32 %v7150, %v7162
    %v7164 = vpop.f32.mrf.mxu0
    %7165 = vdwg.mxu0
    %7166 = vmatpush.bf16.msra.mxu0 %v4406
    %7167 = vmatpush.bf16.msra.mxu0 %v4390
    %7168 = vmatpush.bf16.msra.mxu0 %v4374
    %7169 = vmatpush.bf16.msra.mxu0 %v4358
    %7170 = vmatpush.bf16.msra.mxu0 %v4342
    %7171 = vmatpush.bf16.msra.mxu0 %v4326
    %7172 = vmatpush.bf16.msra.mxu0 %v4310
    %7173 = vmatpush.bf16.msra.mxu0 %v4294
    %7174 = vmatmul.bf16.gmra.mxu0 %v146
    %v7175 = vpop.f32.mrf.mxu0
    %v7176 = vadd.f32 %v1190, %v7175
    %v7177 = vpop.f32.mrf.mxu0
    %7178 = vdwg.mxu0
    %7179 = vmatpush.bf16.msra.mxu0 %v4534
    %7180 = vmatpush.bf16.msra.mxu0 %v4518
    %7181 = vmatpush.bf16.msra.mxu0 %v4502
    %7182 = vmatpush.bf16.msra.mxu0 %v4486
    %7183 = vmatpush.bf16.msra.mxu0 %v4470
    %7184 = vmatpush.bf16.msra.mxu0 %v4454
    %7185 = vmatpush.bf16.msra.mxu0 %v4438
    %7186 = vmatpush.bf16.msra.mxu0 %v4422
    %7187 = vmatmul.bf16.gmra.mxu0 %v147
    %v7188 = vpop.f32.mrf.mxu0
    %v7189 = vadd.f32 %v7176, %v7188
    %v7190 = vpop.f32.mrf.mxu0
    %7191 = vdwg.mxu0
    %7192 = vmatpush.bf16.msra.mxu0 %v4662
    %7193 = vmatpush.bf16.msra.mxu0 %v4646
    %7194 = vmatpush.bf16.msra.mxu0 %v4630
    %7195 = vmatpush.bf16.msra.mxu0 %v4614
    %7196 = vmatpush.bf16.msra.mxu0 %v4598
    %7197 = vmatpush.bf16.msra.mxu0 %v4582
    %7198 = vmatpush.bf16.msra.mxu0 %v4566
    %7199 = vmatpush.bf16.msra.mxu0 %v4550
    %7200 = vmatmul.bf16.gmra.mxu0 %v148
    %v7201 = vpop.f32.mrf.mxu0
    %v7202 = vadd.f32 %v7189, %v7201
    %v7203 = vpop.f32.mrf.mxu0
    %7204 = vdwg.mxu0
    %7205 = vmatpush.bf16.msra.mxu0 %v4790
    %7206 = vmatpush.bf16.msra.mxu0 %v4774
    %7207 = vmatpush.bf16.msra.mxu0 %v4758
    %7208 = vmatpush.bf16.msra.mxu0 %v4742
    %7209 = vmatpush.bf16.msra.mxu0 %v4726
    %7210 = vmatpush.bf16.msra.mxu0 %v4710
    %7211 = vmatpush.bf16.msra.mxu0 %v4694
    %7212 = vmatpush.bf16.msra.mxu0 %v4678
    %7213 = vmatmul.bf16.gmra.mxu0 %v149
    %v7214 = vpop.f32.mrf.mxu0
    %v7215 = vadd.f32 %v7202, %v7214
    %v7216 = vpop.f32.mrf.mxu0
    %7217 = vdwg.mxu0
    %7218 = vmatpush.bf16.msra.mxu0 %v4918
    %7219 = vmatpush.bf16.msra.mxu0 %v4902
    %7220 = vmatpush.bf16.msra.mxu0 %v4886
    %7221 = vmatpush.bf16.msra.mxu0 %v4870
    %7222 = vmatpush.bf16.msra.mxu0 %v4854
    %7223 = vmatpush.bf16.msra.mxu0 %v4838
    %7224 = vmatpush.bf16.msra.mxu0 %v4822
    %7225 = vmatpush.bf16.msra.mxu0 %v4806
    %7226 = vmatmul.bf16.gmra.mxu0 %v150
    %v7227 = vpop.f32.mrf.mxu0
    %v7228 = vadd.f32 %v7215, %v7227
    %v7229 = vpop.f32.mrf.mxu0
    %7230 = vdwg.mxu0
    %7231 = vmatpush.bf16.msra.mxu0 %v5046
    %7232 = vmatpush.bf16.msra.mxu0 %v5030
    %7233 = vmatpush.bf16.msra.mxu0 %v5014
    %7234 = vmatpush.bf16.msra.mxu0 %v4998
    %7235 = vmatpush.bf16.msra.mxu0 %v4982
    %7236 = vmatpush.bf16.msra.mxu0 %v4966
    %7237 = vmatpush.bf16.msra.mxu0 %v4950
    %7238 = vmatpush.bf16.msra.mxu0 %v4934
    %7239 = vmatmul.bf16.gmra.mxu0 %v151
    %v7240 = vpop.f32.mrf.mxu0
    %v7241 = vadd.f32 %v7228, %v7240
    %v7242 = vpop.f32.mrf.mxu0
    %7243 = vdwg.mxu0
    %7244 = vmatpush.bf16.msra.mxu0 %v5174
    %7245 = vmatpush.bf16.msra.mxu0 %v5158
    %7246 = vmatpush.bf16.msra.mxu0 %v5142
    %7247 = vmatpush.bf16.msra.mxu0 %v5126
    %7248 = vmatpush.bf16.msra.mxu0 %v5110
    %7249 = vmatpush.bf16.msra.mxu0 %v5094
    %7250 = vmatpush.bf16.msra.mxu0 %v5078
    %7251 = vmatpush.bf16.msra.mxu0 %v5062
    %7252 = vmatmul.bf16.gmra.mxu0 %v152
    %v7253 = vpop.f32.mrf.mxu0
    %v7254 = vadd.f32 %v7241, %v7253
    %v7255 = vpop.f32.mrf.mxu0
    %7256 = vdwg.mxu0
    %7257 = vmatpush.bf16.msra.mxu0 %v5302
    %7258 = vmatpush.bf16.msra.mxu0 %v5286
    %7259 = vmatpush.bf16.msra.mxu0 %v5270
    %7260 = vmatpush.bf16.msra.mxu0 %v5254
    %7261 = vmatpush.bf16.msra.mxu0 %v5238
    %7262 = vmatpush.bf16.msra.mxu0 %v5222
    %7263 = vmatpush.bf16.msra.mxu0 %v5206
    %7264 = vmatpush.bf16.msra.mxu0 %v5190
    %7265 = vmatmul.bf16.gmra.mxu0 %v153
    %v7266 = vpop.f32.mrf.mxu0
    %v7267 = vadd.f32 %v7254, %v7266
    %v7268 = vpop.f32.mrf.mxu0
    %7269 = vdwg.mxu0
    %7270 = vmatpush.bf16.msra.mxu0 %v4407
    %7271 = vmatpush.bf16.msra.mxu0 %v4391
    %7272 = vmatpush.bf16.msra.mxu0 %v4375
    %7273 = vmatpush.bf16.msra.mxu0 %v4359
    %7274 = vmatpush.bf16.msra.mxu0 %v4343
    %7275 = vmatpush.bf16.msra.mxu0 %v4327
    %7276 = vmatpush.bf16.msra.mxu0 %v4311
    %7277 = vmatpush.bf16.msra.mxu0 %v4295
    %7278 = vmatmul.bf16.gmra.mxu0 %v146
    %v7279 = vpop.f32.mrf.mxu0
    %v7280 = vadd.f32 %v1191, %v7279
    %v7281 = vpop.f32.mrf.mxu0
    %7282 = vdwg.mxu0
    %7283 = vmatpush.bf16.msra.mxu0 %v4535
    %7284 = vmatpush.bf16.msra.mxu0 %v4519
    %7285 = vmatpush.bf16.msra.mxu0 %v4503
    %7286 = vmatpush.bf16.msra.mxu0 %v4487
    %7287 = vmatpush.bf16.msra.mxu0 %v4471
    %7288 = vmatpush.bf16.msra.mxu0 %v4455
    %7289 = vmatpush.bf16.msra.mxu0 %v4439
    %7290 = vmatpush.bf16.msra.mxu0 %v4423
    %7291 = vmatmul.bf16.gmra.mxu0 %v147
    %v7292 = vpop.f32.mrf.mxu0
    %v7293 = vadd.f32 %v7280, %v7292
    %v7294 = vpop.f32.mrf.mxu0
    %7295 = vdwg.mxu0
    %7296 = vmatpush.bf16.msra.mxu0 %v4663
    %7297 = vmatpush.bf16.msra.mxu0 %v4647
    %7298 = vmatpush.bf16.msra.mxu0 %v4631
    %7299 = vmatpush.bf16.msra.mxu0 %v4615
    %7300 = vmatpush.bf16.msra.mxu0 %v4599
    %7301 = vmatpush.bf16.msra.mxu0 %v4583
    %7302 = vmatpush.bf16.msra.mxu0 %v4567
    %7303 = vmatpush.bf16.msra.mxu0 %v4551
    %7304 = vmatmul.bf16.gmra.mxu0 %v148
    %v7305 = vpop.f32.mrf.mxu0
    %v7306 = vadd.f32 %v7293, %v7305
    %v7307 = vpop.f32.mrf.mxu0
    %7308 = vdwg.mxu0
    %7309 = vmatpush.bf16.msra.mxu0 %v4791
    %7310 = vmatpush.bf16.msra.mxu0 %v4775
    %7311 = vmatpush.bf16.msra.mxu0 %v4759
    %7312 = vmatpush.bf16.msra.mxu0 %v4743
    %7313 = vmatpush.bf16.msra.mxu0 %v4727
    %7314 = vmatpush.bf16.msra.mxu0 %v4711
    %7315 = vmatpush.bf16.msra.mxu0 %v4695
    %7316 = vmatpush.bf16.msra.mxu0 %v4679
    %7317 = vmatmul.bf16.gmra.mxu0 %v149
    %v7318 = vpop.f32.mrf.mxu0
    %v7319 = vadd.f32 %v7306, %v7318
    %v7320 = vpop.f32.mrf.mxu0
    %7321 = vdwg.mxu0
    %7322 = vmatpush.bf16.msra.mxu0 %v4919
    %7323 = vmatpush.bf16.msra.mxu0 %v4903
    %7324 = vmatpush.bf16.msra.mxu0 %v4887
    %7325 = vmatpush.bf16.msra.mxu0 %v4871
    %7326 = vmatpush.bf16.msra.mxu0 %v4855
    %7327 = vmatpush.bf16.msra.mxu0 %v4839
    %7328 = vmatpush.bf16.msra.mxu0 %v4823
    %7329 = vmatpush.bf16.msra.mxu0 %v4807
    %7330 = vmatmul.bf16.gmra.mxu0 %v150
    %v7331 = vpop.f32.mrf.mxu0
    %v7332 = vadd.f32 %v7319, %v7331
    %v7333 = vpop.f32.mrf.mxu0
    %7334 = vdwg.mxu0
    %7335 = vmatpush.bf16.msra.mxu0 %v5047
    %7336 = vmatpush.bf16.msra.mxu0 %v5031
    %7337 = vmatpush.bf16.msra.mxu0 %v5015
    %7338 = vmatpush.bf16.msra.mxu0 %v4999
    %7339 = vmatpush.bf16.msra.mxu0 %v4983
    %7340 = vmatpush.bf16.msra.mxu0 %v4967
    %7341 = vmatpush.bf16.msra.mxu0 %v4951
    %7342 = vmatpush.bf16.msra.mxu0 %v4935
    %7343 = vmatmul.bf16.gmra.mxu0 %v151
    %v7344 = vpop.f32.mrf.mxu0
    %v7345 = vadd.f32 %v7332, %v7344
    %v7346 = vpop.f32.mrf.mxu0
    %7347 = vdwg.mxu0
    %7348 = vmatpush.bf16.msra.mxu0 %v5175
    %7349 = vmatpush.bf16.msra.mxu0 %v5159
    %7350 = vmatpush.bf16.msra.mxu0 %v5143
    %7351 = vmatpush.bf16.msra.mxu0 %v5127
    %7352 = vmatpush.bf16.msra.mxu0 %v5111
    %7353 = vmatpush.bf16.msra.mxu0 %v5095
    %7354 = vmatpush.bf16.msra.mxu0 %v5079
    %7355 = vmatpush.bf16.msra.mxu0 %v5063
    %7356 = vmatmul.bf16.gmra.mxu0 %v152
    %v7357 = vpop.f32.mrf.mxu0
    %v7358 = vadd.f32 %v7345, %v7357
    %v7359 = vpop.f32.mrf.mxu0
    %7360 = vdwg.mxu0
    %7361 = vmatpush.bf16.msra.mxu0 %v5303
    %7362 = vmatpush.bf16.msra.mxu0 %v5287
    %7363 = vmatpush.bf16.msra.mxu0 %v5271
    %7364 = vmatpush.bf16.msra.mxu0 %v5255
    %7365 = vmatpush.bf16.msra.mxu0 %v5239
    %7366 = vmatpush.bf16.msra.mxu0 %v5223
    %7367 = vmatpush.bf16.msra.mxu0 %v5207
    %7368 = vmatpush.bf16.msra.mxu0 %v5191
    %7369 = vmatmul.bf16.gmra.mxu0 %v153
    %v7370 = vpop.f32.mrf.mxu0
    %v7371 = vadd.f32 %v7358, %v7370
    %v7372 = vpop.f32.mrf.mxu0
    %7373 = vdwg.mxu0
    %7374 = vmatpush.bf16.msra.mxu0 %v4408
    %7375 = vmatpush.bf16.msra.mxu0 %v4392
    %7376 = vmatpush.bf16.msra.mxu0 %v4376
    %7377 = vmatpush.bf16.msra.mxu0 %v4360
    %7378 = vmatpush.bf16.msra.mxu0 %v4344
    %7379 = vmatpush.bf16.msra.mxu0 %v4328
    %7380 = vmatpush.bf16.msra.mxu0 %v4312
    %7381 = vmatpush.bf16.msra.mxu0 %v4296
    %7382 = vmatmul.bf16.gmra.mxu0 %v146
    %v7383 = vpop.f32.mrf.mxu0
    %v7384 = vadd.f32 %v1192, %v7383
    %v7385 = vpop.f32.mrf.mxu0
    %7386 = vdwg.mxu0
    %7387 = vmatpush.bf16.msra.mxu0 %v4536
    %7388 = vmatpush.bf16.msra.mxu0 %v4520
    %7389 = vmatpush.bf16.msra.mxu0 %v4504
    %7390 = vmatpush.bf16.msra.mxu0 %v4488
    %7391 = vmatpush.bf16.msra.mxu0 %v4472
    %7392 = vmatpush.bf16.msra.mxu0 %v4456
    %7393 = vmatpush.bf16.msra.mxu0 %v4440
    %7394 = vmatpush.bf16.msra.mxu0 %v4424
    %7395 = vmatmul.bf16.gmra.mxu0 %v147
    %v7396 = vpop.f32.mrf.mxu0
    %v7397 = vadd.f32 %v7384, %v7396
    %v7398 = vpop.f32.mrf.mxu0
    %7399 = vdwg.mxu0
    %7400 = vmatpush.bf16.msra.mxu0 %v4664
    %7401 = vmatpush.bf16.msra.mxu0 %v4648
    %7402 = vmatpush.bf16.msra.mxu0 %v4632
    %7403 = vmatpush.bf16.msra.mxu0 %v4616
    %7404 = vmatpush.bf16.msra.mxu0 %v4600
    %7405 = vmatpush.bf16.msra.mxu0 %v4584
    %7406 = vmatpush.bf16.msra.mxu0 %v4568
    %7407 = vmatpush.bf16.msra.mxu0 %v4552
    %7408 = vmatmul.bf16.gmra.mxu0 %v148
    %v7409 = vpop.f32.mrf.mxu0
    %v7410 = vadd.f32 %v7397, %v7409
    %v7411 = vpop.f32.mrf.mxu0
    %7412 = vdwg.mxu0
    %7413 = vmatpush.bf16.msra.mxu0 %v4792
    %7414 = vmatpush.bf16.msra.mxu0 %v4776
    %7415 = vmatpush.bf16.msra.mxu0 %v4760
    %7416 = vmatpush.bf16.msra.mxu0 %v4744
    %7417 = vmatpush.bf16.msra.mxu0 %v4728
    %7418 = vmatpush.bf16.msra.mxu0 %v4712
    %7419 = vmatpush.bf16.msra.mxu0 %v4696
    %7420 = vmatpush.bf16.msra.mxu0 %v4680
    %7421 = vmatmul.bf16.gmra.mxu0 %v149
    %v7422 = vpop.f32.mrf.mxu0
    %v7423 = vadd.f32 %v7410, %v7422
    %v7424 = vpop.f32.mrf.mxu0
    %7425 = vdwg.mxu0
    %7426 = vmatpush.bf16.msra.mxu0 %v4920
    %7427 = vmatpush.bf16.msra.mxu0 %v4904
    %7428 = vmatpush.bf16.msra.mxu0 %v4888
    %7429 = vmatpush.bf16.msra.mxu0 %v4872
    %7430 = vmatpush.bf16.msra.mxu0 %v4856
    %7431 = vmatpush.bf16.msra.mxu0 %v4840
    %7432 = vmatpush.bf16.msra.mxu0 %v4824
    %7433 = vmatpush.bf16.msra.mxu0 %v4808
    %7434 = vmatmul.bf16.gmra.mxu0 %v150
    %v7435 = vpop.f32.mrf.mxu0
    %v7436 = vadd.f32 %v7423, %v7435
    %v7437 = vpop.f32.mrf.mxu0
    %7438 = vdwg.mxu0
    %7439 = vmatpush.bf16.msra.mxu0 %v5048
    %7440 = vmatpush.bf16.msra.mxu0 %v5032
    %7441 = vmatpush.bf16.msra.mxu0 %v5016
    %7442 = vmatpush.bf16.msra.mxu0 %v5000
    %7443 = vmatpush.bf16.msra.mxu0 %v4984
    %7444 = vmatpush.bf16.msra.mxu0 %v4968
    %7445 = vmatpush.bf16.msra.mxu0 %v4952
    %7446 = vmatpush.bf16.msra.mxu0 %v4936
    %7447 = vmatmul.bf16.gmra.mxu0 %v151
    %v7448 = vpop.f32.mrf.mxu0
    %v7449 = vadd.f32 %v7436, %v7448
    %v7450 = vpop.f32.mrf.mxu0
    %7451 = vdwg.mxu0
    %7452 = vmatpush.bf16.msra.mxu0 %v5176
    %7453 = vmatpush.bf16.msra.mxu0 %v5160
    %7454 = vmatpush.bf16.msra.mxu0 %v5144
    %7455 = vmatpush.bf16.msra.mxu0 %v5128
    %7456 = vmatpush.bf16.msra.mxu0 %v5112
    %7457 = vmatpush.bf16.msra.mxu0 %v5096
    %7458 = vmatpush.bf16.msra.mxu0 %v5080
    %7459 = vmatpush.bf16.msra.mxu0 %v5064
    %7460 = vmatmul.bf16.gmra.mxu0 %v152
    %v7461 = vpop.f32.mrf.mxu0
    %v7462 = vadd.f32 %v7449, %v7461
    %v7463 = vpop.f32.mrf.mxu0
    %7464 = vdwg.mxu0
    %7465 = vmatpush.bf16.msra.mxu0 %v5304
    %7466 = vmatpush.bf16.msra.mxu0 %v5288
    %7467 = vmatpush.bf16.msra.mxu0 %v5272
    %7468 = vmatpush.bf16.msra.mxu0 %v5256
    %7469 = vmatpush.bf16.msra.mxu0 %v5240
    %7470 = vmatpush.bf16.msra.mxu0 %v5224
    %7471 = vmatpush.bf16.msra.mxu0 %v5208
    %7472 = vmatpush.bf16.msra.mxu0 %v5192
    %7473 = vmatmul.bf16.gmra.mxu0 %v153
    %v7474 = vpop.f32.mrf.mxu0
    %v7475 = vadd.f32 %v7462, %v7474
    %v7476 = vpop.f32.mrf.mxu0
    %7477 = vdwg.mxu0
    %7478 = vmatpush.bf16.msra.mxu0 %v4409
    %7479 = vmatpush.bf16.msra.mxu0 %v4393
    %7480 = vmatpush.bf16.msra.mxu0 %v4377
    %7481 = vmatpush.bf16.msra.mxu0 %v4361
    %7482 = vmatpush.bf16.msra.mxu0 %v4345
    %7483 = vmatpush.bf16.msra.mxu0 %v4329
    %7484 = vmatpush.bf16.msra.mxu0 %v4313
    %7485 = vmatpush.bf16.msra.mxu0 %v4297
    %7486 = vmatmul.bf16.gmra.mxu0 %v146
    %v7487 = vpop.f32.mrf.mxu0
    %v7488 = vadd.f32 %v1193, %v7487
    %v7489 = vpop.f32.mrf.mxu0
    %7490 = vdwg.mxu0
    %7491 = vmatpush.bf16.msra.mxu0 %v4537
    %7492 = vmatpush.bf16.msra.mxu0 %v4521
    %7493 = vmatpush.bf16.msra.mxu0 %v4505
    %7494 = vmatpush.bf16.msra.mxu0 %v4489
    %7495 = vmatpush.bf16.msra.mxu0 %v4473
    %7496 = vmatpush.bf16.msra.mxu0 %v4457
    %7497 = vmatpush.bf16.msra.mxu0 %v4441
    %7498 = vmatpush.bf16.msra.mxu0 %v4425
    %7499 = vmatmul.bf16.gmra.mxu0 %v147
    %v7500 = vpop.f32.mrf.mxu0
    %v7501 = vadd.f32 %v7488, %v7500
    %v7502 = vpop.f32.mrf.mxu0
    %7503 = vdwg.mxu0
    %7504 = vmatpush.bf16.msra.mxu0 %v4665
    %7505 = vmatpush.bf16.msra.mxu0 %v4649
    %7506 = vmatpush.bf16.msra.mxu0 %v4633
    %7507 = vmatpush.bf16.msra.mxu0 %v4617
    %7508 = vmatpush.bf16.msra.mxu0 %v4601
    %7509 = vmatpush.bf16.msra.mxu0 %v4585
    %7510 = vmatpush.bf16.msra.mxu0 %v4569
    %7511 = vmatpush.bf16.msra.mxu0 %v4553
    %7512 = vmatmul.bf16.gmra.mxu0 %v148
    %v7513 = vpop.f32.mrf.mxu0
    %v7514 = vadd.f32 %v7501, %v7513
    %v7515 = vpop.f32.mrf.mxu0
    %7516 = vdwg.mxu0
    %7517 = vmatpush.bf16.msra.mxu0 %v4793
    %7518 = vmatpush.bf16.msra.mxu0 %v4777
    %7519 = vmatpush.bf16.msra.mxu0 %v4761
    %7520 = vmatpush.bf16.msra.mxu0 %v4745
    %7521 = vmatpush.bf16.msra.mxu0 %v4729
    %7522 = vmatpush.bf16.msra.mxu0 %v4713
    %7523 = vmatpush.bf16.msra.mxu0 %v4697
    %7524 = vmatpush.bf16.msra.mxu0 %v4681
    %7525 = vmatmul.bf16.gmra.mxu0 %v149
    %v7526 = vpop.f32.mrf.mxu0
    %v7527 = vadd.f32 %v7514, %v7526
    %v7528 = vpop.f32.mrf.mxu0
    %7529 = vdwg.mxu0
    %7530 = vmatpush.bf16.msra.mxu0 %v4921
    %7531 = vmatpush.bf16.msra.mxu0 %v4905
    %7532 = vmatpush.bf16.msra.mxu0 %v4889
    %7533 = vmatpush.bf16.msra.mxu0 %v4873
    %7534 = vmatpush.bf16.msra.mxu0 %v4857
    %7535 = vmatpush.bf16.msra.mxu0 %v4841
    %7536 = vmatpush.bf16.msra.mxu0 %v4825
    %7537 = vmatpush.bf16.msra.mxu0 %v4809
    %7538 = vmatmul.bf16.gmra.mxu0 %v150
    %v7539 = vpop.f32.mrf.mxu0
    %v7540 = vadd.f32 %v7527, %v7539
    %v7541 = vpop.f32.mrf.mxu0
    %7542 = vdwg.mxu0
    %7543 = vmatpush.bf16.msra.mxu0 %v5049
    %7544 = vmatpush.bf16.msra.mxu0 %v5033
    %7545 = vmatpush.bf16.msra.mxu0 %v5017
    %7546 = vmatpush.bf16.msra.mxu0 %v5001
    %7547 = vmatpush.bf16.msra.mxu0 %v4985
    %7548 = vmatpush.bf16.msra.mxu0 %v4969
    %7549 = vmatpush.bf16.msra.mxu0 %v4953
    %7550 = vmatpush.bf16.msra.mxu0 %v4937
    %7551 = vmatmul.bf16.gmra.mxu0 %v151
    %v7552 = vpop.f32.mrf.mxu0
    %v7553 = vadd.f32 %v7540, %v7552
    %v7554 = vpop.f32.mrf.mxu0
    %7555 = vdwg.mxu0
    %7556 = vmatpush.bf16.msra.mxu0 %v5177
    %7557 = vmatpush.bf16.msra.mxu0 %v5161
    %7558 = vmatpush.bf16.msra.mxu0 %v5145
    %7559 = vmatpush.bf16.msra.mxu0 %v5129
    %7560 = vmatpush.bf16.msra.mxu0 %v5113
    %7561 = vmatpush.bf16.msra.mxu0 %v5097
    %7562 = vmatpush.bf16.msra.mxu0 %v5081
    %7563 = vmatpush.bf16.msra.mxu0 %v5065
    %7564 = vmatmul.bf16.gmra.mxu0 %v152
    %v7565 = vpop.f32.mrf.mxu0
    %v7566 = vadd.f32 %v7553, %v7565
    %v7567 = vpop.f32.mrf.mxu0
    %7568 = vdwg.mxu0
    %7569 = vmatpush.bf16.msra.mxu0 %v5305
    %7570 = vmatpush.bf16.msra.mxu0 %v5289
    %7571 = vmatpush.bf16.msra.mxu0 %v5273
    %7572 = vmatpush.bf16.msra.mxu0 %v5257
    %7573 = vmatpush.bf16.msra.mxu0 %v5241
    %7574 = vmatpush.bf16.msra.mxu0 %v5225
    %7575 = vmatpush.bf16.msra.mxu0 %v5209
    %7576 = vmatpush.bf16.msra.mxu0 %v5193
    %7577 = vmatmul.bf16.gmra.mxu0 %v153
    %v7578 = vpop.f32.mrf.mxu0
    %v7579 = vadd.f32 %v7566, %v7578
    %v7580 = vpop.f32.mrf.mxu0
    %7581 = vdwg.mxu0
    %7582 = vmatpush.bf16.msra.mxu0 %v4410
    %7583 = vmatpush.bf16.msra.mxu0 %v4394
    %7584 = vmatpush.bf16.msra.mxu0 %v4378
    %7585 = vmatpush.bf16.msra.mxu0 %v4362
    %7586 = vmatpush.bf16.msra.mxu0 %v4346
    %7587 = vmatpush.bf16.msra.mxu0 %v4330
    %7588 = vmatpush.bf16.msra.mxu0 %v4314
    %7589 = vmatpush.bf16.msra.mxu0 %v4298
    %7590 = vmatmul.bf16.gmra.mxu0 %v146
    %v7591 = vpop.f32.mrf.mxu0
    %v7592 = vadd.f32 %v1194, %v7591
    %v7593 = vpop.f32.mrf.mxu0
    %7594 = vdwg.mxu0
    %7595 = vmatpush.bf16.msra.mxu0 %v4538
    %7596 = vmatpush.bf16.msra.mxu0 %v4522
    %7597 = vmatpush.bf16.msra.mxu0 %v4506
    %7598 = vmatpush.bf16.msra.mxu0 %v4490
    %7599 = vmatpush.bf16.msra.mxu0 %v4474
    %7600 = vmatpush.bf16.msra.mxu0 %v4458
    %7601 = vmatpush.bf16.msra.mxu0 %v4442
    %7602 = vmatpush.bf16.msra.mxu0 %v4426
    %7603 = vmatmul.bf16.gmra.mxu0 %v147
    %v7604 = vpop.f32.mrf.mxu0
    %v7605 = vadd.f32 %v7592, %v7604
    %v7606 = vpop.f32.mrf.mxu0
    %7607 = vdwg.mxu0
    %7608 = vmatpush.bf16.msra.mxu0 %v4666
    %7609 = vmatpush.bf16.msra.mxu0 %v4650
    %7610 = vmatpush.bf16.msra.mxu0 %v4634
    %7611 = vmatpush.bf16.msra.mxu0 %v4618
    %7612 = vmatpush.bf16.msra.mxu0 %v4602
    %7613 = vmatpush.bf16.msra.mxu0 %v4586
    %7614 = vmatpush.bf16.msra.mxu0 %v4570
    %7615 = vmatpush.bf16.msra.mxu0 %v4554
    %7616 = vmatmul.bf16.gmra.mxu0 %v148
    %v7617 = vpop.f32.mrf.mxu0
    %v7618 = vadd.f32 %v7605, %v7617
    %v7619 = vpop.f32.mrf.mxu0
    %7620 = vdwg.mxu0
    %7621 = vmatpush.bf16.msra.mxu0 %v4794
    %7622 = vmatpush.bf16.msra.mxu0 %v4778
    %7623 = vmatpush.bf16.msra.mxu0 %v4762
    %7624 = vmatpush.bf16.msra.mxu0 %v4746
    %7625 = vmatpush.bf16.msra.mxu0 %v4730
    %7626 = vmatpush.bf16.msra.mxu0 %v4714
    %7627 = vmatpush.bf16.msra.mxu0 %v4698
    %7628 = vmatpush.bf16.msra.mxu0 %v4682
    %7629 = vmatmul.bf16.gmra.mxu0 %v149
    %v7630 = vpop.f32.mrf.mxu0
    %v7631 = vadd.f32 %v7618, %v7630
    %v7632 = vpop.f32.mrf.mxu0
    %7633 = vdwg.mxu0
    %7634 = vmatpush.bf16.msra.mxu0 %v4922
    %7635 = vmatpush.bf16.msra.mxu0 %v4906
    %7636 = vmatpush.bf16.msra.mxu0 %v4890
    %7637 = vmatpush.bf16.msra.mxu0 %v4874
    %7638 = vmatpush.bf16.msra.mxu0 %v4858
    %7639 = vmatpush.bf16.msra.mxu0 %v4842
    %7640 = vmatpush.bf16.msra.mxu0 %v4826
    %7641 = vmatpush.bf16.msra.mxu0 %v4810
    %7642 = vmatmul.bf16.gmra.mxu0 %v150
    %v7643 = vpop.f32.mrf.mxu0
    %v7644 = vadd.f32 %v7631, %v7643
    %v7645 = vpop.f32.mrf.mxu0
    %7646 = vdwg.mxu0
    %7647 = vmatpush.bf16.msra.mxu0 %v5050
    %7648 = vmatpush.bf16.msra.mxu0 %v5034
    %7649 = vmatpush.bf16.msra.mxu0 %v5018
    %7650 = vmatpush.bf16.msra.mxu0 %v5002
    %7651 = vmatpush.bf16.msra.mxu0 %v4986
    %7652 = vmatpush.bf16.msra.mxu0 %v4970
    %7653 = vmatpush.bf16.msra.mxu0 %v4954
    %7654 = vmatpush.bf16.msra.mxu0 %v4938
    %7655 = vmatmul.bf16.gmra.mxu0 %v151
    %v7656 = vpop.f32.mrf.mxu0
    %v7657 = vadd.f32 %v7644, %v7656
    %v7658 = vpop.f32.mrf.mxu0
    %7659 = vdwg.mxu0
    %7660 = vmatpush.bf16.msra.mxu0 %v5178
    %7661 = vmatpush.bf16.msra.mxu0 %v5162
    %7662 = vmatpush.bf16.msra.mxu0 %v5146
    %7663 = vmatpush.bf16.msra.mxu0 %v5130
    %7664 = vmatpush.bf16.msra.mxu0 %v5114
    %7665 = vmatpush.bf16.msra.mxu0 %v5098
    %7666 = vmatpush.bf16.msra.mxu0 %v5082
    %7667 = vmatpush.bf16.msra.mxu0 %v5066
    %7668 = vmatmul.bf16.gmra.mxu0 %v152
    %v7669 = vpop.f32.mrf.mxu0
    %v7670 = vadd.f32 %v7657, %v7669
    %v7671 = vpop.f32.mrf.mxu0
    %7672 = vdwg.mxu0
    %7673 = vmatpush.bf16.msra.mxu0 %v5306
    %7674 = vmatpush.bf16.msra.mxu0 %v5290
    %7675 = vmatpush.bf16.msra.mxu0 %v5274
    %7676 = vmatpush.bf16.msra.mxu0 %v5258
    %7677 = vmatpush.bf16.msra.mxu0 %v5242
    %7678 = vmatpush.bf16.msra.mxu0 %v5226
    %7679 = vmatpush.bf16.msra.mxu0 %v5210
    %7680 = vmatpush.bf16.msra.mxu0 %v5194
    %7681 = vmatmul.bf16.gmra.mxu0 %v153
    %v7682 = vpop.f32.mrf.mxu0
    %v7683 = vadd.f32 %v7670, %v7682
    %v7684 = vpop.f32.mrf.mxu0
    %7685 = vdwg.mxu0
    %7686 = vmatpush.bf16.msra.mxu0 %v4411
    %7687 = vmatpush.bf16.msra.mxu0 %v4395
    %7688 = vmatpush.bf16.msra.mxu0 %v4379
    %7689 = vmatpush.bf16.msra.mxu0 %v4363
    %7690 = vmatpush.bf16.msra.mxu0 %v4347
    %7691 = vmatpush.bf16.msra.mxu0 %v4331
    %7692 = vmatpush.bf16.msra.mxu0 %v4315
    %7693 = vmatpush.bf16.msra.mxu0 %v4299
    %7694 = vmatmul.bf16.gmra.mxu0 %v146
    %v7695 = vpop.f32.mrf.mxu0
    %v7696 = vadd.f32 %v1195, %v7695
    %v7697 = vpop.f32.mrf.mxu0
    %7698 = vdwg.mxu0
    %7699 = vmatpush.bf16.msra.mxu0 %v4539
    %7700 = vmatpush.bf16.msra.mxu0 %v4523
    %7701 = vmatpush.bf16.msra.mxu0 %v4507
    %7702 = vmatpush.bf16.msra.mxu0 %v4491
    %7703 = vmatpush.bf16.msra.mxu0 %v4475
    %7704 = vmatpush.bf16.msra.mxu0 %v4459
    %7705 = vmatpush.bf16.msra.mxu0 %v4443
    %7706 = vmatpush.bf16.msra.mxu0 %v4427
    %7707 = vmatmul.bf16.gmra.mxu0 %v147
    %v7708 = vpop.f32.mrf.mxu0
    %v7709 = vadd.f32 %v7696, %v7708
    %v7710 = vpop.f32.mrf.mxu0
    %7711 = vdwg.mxu0
    %7712 = vmatpush.bf16.msra.mxu0 %v4667
    %7713 = vmatpush.bf16.msra.mxu0 %v4651
    %7714 = vmatpush.bf16.msra.mxu0 %v4635
    %7715 = vmatpush.bf16.msra.mxu0 %v4619
    %7716 = vmatpush.bf16.msra.mxu0 %v4603
    %7717 = vmatpush.bf16.msra.mxu0 %v4587
    %7718 = vmatpush.bf16.msra.mxu0 %v4571
    %7719 = vmatpush.bf16.msra.mxu0 %v4555
    %7720 = vmatmul.bf16.gmra.mxu0 %v148
    %v7721 = vpop.f32.mrf.mxu0
    %v7722 = vadd.f32 %v7709, %v7721
    %v7723 = vpop.f32.mrf.mxu0
    %7724 = vdwg.mxu0
    %7725 = vmatpush.bf16.msra.mxu0 %v4795
    %7726 = vmatpush.bf16.msra.mxu0 %v4779
    %7727 = vmatpush.bf16.msra.mxu0 %v4763
    %7728 = vmatpush.bf16.msra.mxu0 %v4747
    %7729 = vmatpush.bf16.msra.mxu0 %v4731
    %7730 = vmatpush.bf16.msra.mxu0 %v4715
    %7731 = vmatpush.bf16.msra.mxu0 %v4699
    %7732 = vmatpush.bf16.msra.mxu0 %v4683
    %7733 = vmatmul.bf16.gmra.mxu0 %v149
    %v7734 = vpop.f32.mrf.mxu0
    %v7735 = vadd.f32 %v7722, %v7734
    %v7736 = vpop.f32.mrf.mxu0
    %7737 = vdwg.mxu0
    %7738 = vmatpush.bf16.msra.mxu0 %v4923
    %7739 = vmatpush.bf16.msra.mxu0 %v4907
    %7740 = vmatpush.bf16.msra.mxu0 %v4891
    %7741 = vmatpush.bf16.msra.mxu0 %v4875
    %7742 = vmatpush.bf16.msra.mxu0 %v4859
    %7743 = vmatpush.bf16.msra.mxu0 %v4843
    %7744 = vmatpush.bf16.msra.mxu0 %v4827
    %7745 = vmatpush.bf16.msra.mxu0 %v4811
    %7746 = vmatmul.bf16.gmra.mxu0 %v150
    %v7747 = vpop.f32.mrf.mxu0
    %v7748 = vadd.f32 %v7735, %v7747
    %v7749 = vpop.f32.mrf.mxu0
    %7750 = vdwg.mxu0
    %7751 = vmatpush.bf16.msra.mxu0 %v5051
    %7752 = vmatpush.bf16.msra.mxu0 %v5035
    %7753 = vmatpush.bf16.msra.mxu0 %v5019
    %7754 = vmatpush.bf16.msra.mxu0 %v5003
    %7755 = vmatpush.bf16.msra.mxu0 %v4987
    %7756 = vmatpush.bf16.msra.mxu0 %v4971
    %7757 = vmatpush.bf16.msra.mxu0 %v4955
    %7758 = vmatpush.bf16.msra.mxu0 %v4939
    %7759 = vmatmul.bf16.gmra.mxu0 %v151
    %v7760 = vpop.f32.mrf.mxu0
    %v7761 = vadd.f32 %v7748, %v7760
    %v7762 = vpop.f32.mrf.mxu0
    %7763 = vdwg.mxu0
    %7764 = vmatpush.bf16.msra.mxu0 %v5179
    %7765 = vmatpush.bf16.msra.mxu0 %v5163
    %7766 = vmatpush.bf16.msra.mxu0 %v5147
    %7767 = vmatpush.bf16.msra.mxu0 %v5131
    %7768 = vmatpush.bf16.msra.mxu0 %v5115
    %7769 = vmatpush.bf16.msra.mxu0 %v5099
    %7770 = vmatpush.bf16.msra.mxu0 %v5083
    %7771 = vmatpush.bf16.msra.mxu0 %v5067
    %7772 = vmatmul.bf16.gmra.mxu0 %v152
    %v7773 = vpop.f32.mrf.mxu0
    %v7774 = vadd.f32 %v7761, %v7773
    %v7775 = vpop.f32.mrf.mxu0
    %7776 = vdwg.mxu0
    %7777 = vmatpush.bf16.msra.mxu0 %v5307
    %7778 = vmatpush.bf16.msra.mxu0 %v5291
    %7779 = vmatpush.bf16.msra.mxu0 %v5275
    %7780 = vmatpush.bf16.msra.mxu0 %v5259
    %7781 = vmatpush.bf16.msra.mxu0 %v5243
    %7782 = vmatpush.bf16.msra.mxu0 %v5227
    %7783 = vmatpush.bf16.msra.mxu0 %v5211
    %7784 = vmatpush.bf16.msra.mxu0 %v5195
    %7785 = vmatmul.bf16.gmra.mxu0 %v153
    %v7786 = vpop.f32.mrf.mxu0
    %v7787 = vadd.f32 %v7774, %v7786
    %v7788 = vpop.f32.mrf.mxu0
    %7789 = vdwg.mxu0
    %7790 = vmatpush.bf16.msra.mxu0 %v4412
    %7791 = vmatpush.bf16.msra.mxu0 %v4396
    %7792 = vmatpush.bf16.msra.mxu0 %v4380
    %7793 = vmatpush.bf16.msra.mxu0 %v4364
    %7794 = vmatpush.bf16.msra.mxu0 %v4348
    %7795 = vmatpush.bf16.msra.mxu0 %v4332
    %7796 = vmatpush.bf16.msra.mxu0 %v4316
    %7797 = vmatpush.bf16.msra.mxu0 %v4300
    %7798 = vmatmul.bf16.gmra.mxu0 %v146
    %v7799 = vpop.f32.mrf.mxu0
    %v7800 = vadd.f32 %v1196, %v7799
    %v7801 = vpop.f32.mrf.mxu0
    %7802 = vdwg.mxu0
    %7803 = vmatpush.bf16.msra.mxu0 %v4540
    %7804 = vmatpush.bf16.msra.mxu0 %v4524
    %7805 = vmatpush.bf16.msra.mxu0 %v4508
    %7806 = vmatpush.bf16.msra.mxu0 %v4492
    %7807 = vmatpush.bf16.msra.mxu0 %v4476
    %7808 = vmatpush.bf16.msra.mxu0 %v4460
    %7809 = vmatpush.bf16.msra.mxu0 %v4444
    %7810 = vmatpush.bf16.msra.mxu0 %v4428
    %7811 = vmatmul.bf16.gmra.mxu0 %v147
    %v7812 = vpop.f32.mrf.mxu0
    %v7813 = vadd.f32 %v7800, %v7812
    %v7814 = vpop.f32.mrf.mxu0
    %7815 = vdwg.mxu0
    %7816 = vmatpush.bf16.msra.mxu0 %v4668
    %7817 = vmatpush.bf16.msra.mxu0 %v4652
    %7818 = vmatpush.bf16.msra.mxu0 %v4636
    %7819 = vmatpush.bf16.msra.mxu0 %v4620
    %7820 = vmatpush.bf16.msra.mxu0 %v4604
    %7821 = vmatpush.bf16.msra.mxu0 %v4588
    %7822 = vmatpush.bf16.msra.mxu0 %v4572
    %7823 = vmatpush.bf16.msra.mxu0 %v4556
    %7824 = vmatmul.bf16.gmra.mxu0 %v148
    %v7825 = vpop.f32.mrf.mxu0
    %v7826 = vadd.f32 %v7813, %v7825
    %v7827 = vpop.f32.mrf.mxu0
    %7828 = vdwg.mxu0
    %7829 = vmatpush.bf16.msra.mxu0 %v4796
    %7830 = vmatpush.bf16.msra.mxu0 %v4780
    %7831 = vmatpush.bf16.msra.mxu0 %v4764
    %7832 = vmatpush.bf16.msra.mxu0 %v4748
    %7833 = vmatpush.bf16.msra.mxu0 %v4732
    %7834 = vmatpush.bf16.msra.mxu0 %v4716
    %7835 = vmatpush.bf16.msra.mxu0 %v4700
    %7836 = vmatpush.bf16.msra.mxu0 %v4684
    %7837 = vmatmul.bf16.gmra.mxu0 %v149
    %v7838 = vpop.f32.mrf.mxu0
    %v7839 = vadd.f32 %v7826, %v7838
    %v7840 = vpop.f32.mrf.mxu0
    %7841 = vdwg.mxu0
    %7842 = vmatpush.bf16.msra.mxu0 %v4924
    %7843 = vmatpush.bf16.msra.mxu0 %v4908
    %7844 = vmatpush.bf16.msra.mxu0 %v4892
    %7845 = vmatpush.bf16.msra.mxu0 %v4876
    %7846 = vmatpush.bf16.msra.mxu0 %v4860
    %7847 = vmatpush.bf16.msra.mxu0 %v4844
    %7848 = vmatpush.bf16.msra.mxu0 %v4828
    %7849 = vmatpush.bf16.msra.mxu0 %v4812
    %7850 = vmatmul.bf16.gmra.mxu0 %v150
    %v7851 = vpop.f32.mrf.mxu0
    %v7852 = vadd.f32 %v7839, %v7851
    %v7853 = vpop.f32.mrf.mxu0
    %7854 = vdwg.mxu0
    %7855 = vmatpush.bf16.msra.mxu0 %v5052
    %7856 = vmatpush.bf16.msra.mxu0 %v5036
    %7857 = vmatpush.bf16.msra.mxu0 %v5020
    %7858 = vmatpush.bf16.msra.mxu0 %v5004
    %7859 = vmatpush.bf16.msra.mxu0 %v4988
    %7860 = vmatpush.bf16.msra.mxu0 %v4972
    %7861 = vmatpush.bf16.msra.mxu0 %v4956
    %7862 = vmatpush.bf16.msra.mxu0 %v4940
    %7863 = vmatmul.bf16.gmra.mxu0 %v151
    %v7864 = vpop.f32.mrf.mxu0
    %v7865 = vadd.f32 %v7852, %v7864
    %v7866 = vpop.f32.mrf.mxu0
    %7867 = vdwg.mxu0
    %7868 = vmatpush.bf16.msra.mxu0 %v5180
    %7869 = vmatpush.bf16.msra.mxu0 %v5164
    %7870 = vmatpush.bf16.msra.mxu0 %v5148
    %7871 = vmatpush.bf16.msra.mxu0 %v5132
    %7872 = vmatpush.bf16.msra.mxu0 %v5116
    %7873 = vmatpush.bf16.msra.mxu0 %v5100
    %7874 = vmatpush.bf16.msra.mxu0 %v5084
    %7875 = vmatpush.bf16.msra.mxu0 %v5068
    %7876 = vmatmul.bf16.gmra.mxu0 %v152
    %v7877 = vpop.f32.mrf.mxu0
    %v7878 = vadd.f32 %v7865, %v7877
    %v7879 = vpop.f32.mrf.mxu0
    %7880 = vdwg.mxu0
    %7881 = vmatpush.bf16.msra.mxu0 %v5308
    %7882 = vmatpush.bf16.msra.mxu0 %v5292
    %7883 = vmatpush.bf16.msra.mxu0 %v5276
    %7884 = vmatpush.bf16.msra.mxu0 %v5260
    %7885 = vmatpush.bf16.msra.mxu0 %v5244
    %7886 = vmatpush.bf16.msra.mxu0 %v5228
    %7887 = vmatpush.bf16.msra.mxu0 %v5212
    %7888 = vmatpush.bf16.msra.mxu0 %v5196
    %7889 = vmatmul.bf16.gmra.mxu0 %v153
    %v7890 = vpop.f32.mrf.mxu0
    %v7891 = vadd.f32 %v7878, %v7890
    %v7892 = vpop.f32.mrf.mxu0
    %7893 = vdwg.mxu0
    %7894 = vmatpush.bf16.msra.mxu0 %v4413
    %7895 = vmatpush.bf16.msra.mxu0 %v4397
    %7896 = vmatpush.bf16.msra.mxu0 %v4381
    %7897 = vmatpush.bf16.msra.mxu0 %v4365
    %7898 = vmatpush.bf16.msra.mxu0 %v4349
    %7899 = vmatpush.bf16.msra.mxu0 %v4333
    %7900 = vmatpush.bf16.msra.mxu0 %v4317
    %7901 = vmatpush.bf16.msra.mxu0 %v4301
    %7902 = vmatmul.bf16.gmra.mxu0 %v146
    %v7903 = vpop.f32.mrf.mxu0
    %v7904 = vadd.f32 %v1197, %v7903
    %v7905 = vpop.f32.mrf.mxu0
    %7906 = vdwg.mxu0
    %7907 = vmatpush.bf16.msra.mxu0 %v4541
    %7908 = vmatpush.bf16.msra.mxu0 %v4525
    %7909 = vmatpush.bf16.msra.mxu0 %v4509
    %7910 = vmatpush.bf16.msra.mxu0 %v4493
    %7911 = vmatpush.bf16.msra.mxu0 %v4477
    %7912 = vmatpush.bf16.msra.mxu0 %v4461
    %7913 = vmatpush.bf16.msra.mxu0 %v4445
    %7914 = vmatpush.bf16.msra.mxu0 %v4429
    %7915 = vmatmul.bf16.gmra.mxu0 %v147
    %v7916 = vpop.f32.mrf.mxu0
    %v7917 = vadd.f32 %v7904, %v7916
    %v7918 = vpop.f32.mrf.mxu0
    %7919 = vdwg.mxu0
    %7920 = vmatpush.bf16.msra.mxu0 %v4669
    %7921 = vmatpush.bf16.msra.mxu0 %v4653
    %7922 = vmatpush.bf16.msra.mxu0 %v4637
    %7923 = vmatpush.bf16.msra.mxu0 %v4621
    %7924 = vmatpush.bf16.msra.mxu0 %v4605
    %7925 = vmatpush.bf16.msra.mxu0 %v4589
    %7926 = vmatpush.bf16.msra.mxu0 %v4573
    %7927 = vmatpush.bf16.msra.mxu0 %v4557
    %7928 = vmatmul.bf16.gmra.mxu0 %v148
    %v7929 = vpop.f32.mrf.mxu0
    %v7930 = vadd.f32 %v7917, %v7929
    %v7931 = vpop.f32.mrf.mxu0
    %7932 = vdwg.mxu0
    %7933 = vmatpush.bf16.msra.mxu0 %v4797
    %7934 = vmatpush.bf16.msra.mxu0 %v4781
    %7935 = vmatpush.bf16.msra.mxu0 %v4765
    %7936 = vmatpush.bf16.msra.mxu0 %v4749
    %7937 = vmatpush.bf16.msra.mxu0 %v4733
    %7938 = vmatpush.bf16.msra.mxu0 %v4717
    %7939 = vmatpush.bf16.msra.mxu0 %v4701
    %7940 = vmatpush.bf16.msra.mxu0 %v4685
    %7941 = vmatmul.bf16.gmra.mxu0 %v149
    %v7942 = vpop.f32.mrf.mxu0
    %v7943 = vadd.f32 %v7930, %v7942
    %v7944 = vpop.f32.mrf.mxu0
    %7945 = vdwg.mxu0
    %7946 = vmatpush.bf16.msra.mxu0 %v4925
    %7947 = vmatpush.bf16.msra.mxu0 %v4909
    %7948 = vmatpush.bf16.msra.mxu0 %v4893
    %7949 = vmatpush.bf16.msra.mxu0 %v4877
    %7950 = vmatpush.bf16.msra.mxu0 %v4861
    %7951 = vmatpush.bf16.msra.mxu0 %v4845
    %7952 = vmatpush.bf16.msra.mxu0 %v4829
    %7953 = vmatpush.bf16.msra.mxu0 %v4813
    %7954 = vmatmul.bf16.gmra.mxu0 %v150
    %v7955 = vpop.f32.mrf.mxu0
    %v7956 = vadd.f32 %v7943, %v7955
    %v7957 = vpop.f32.mrf.mxu0
    %7958 = vdwg.mxu0
    %7959 = vmatpush.bf16.msra.mxu0 %v5053
    %7960 = vmatpush.bf16.msra.mxu0 %v5037
    %7961 = vmatpush.bf16.msra.mxu0 %v5021
    %7962 = vmatpush.bf16.msra.mxu0 %v5005
    %7963 = vmatpush.bf16.msra.mxu0 %v4989
    %7964 = vmatpush.bf16.msra.mxu0 %v4973
    %7965 = vmatpush.bf16.msra.mxu0 %v4957
    %7966 = vmatpush.bf16.msra.mxu0 %v4941
    %7967 = vmatmul.bf16.gmra.mxu0 %v151
    %v7968 = vpop.f32.mrf.mxu0
    %v7969 = vadd.f32 %v7956, %v7968
    %v7970 = vpop.f32.mrf.mxu0
    %7971 = vdwg.mxu0
    %7972 = vmatpush.bf16.msra.mxu0 %v5181
    %7973 = vmatpush.bf16.msra.mxu0 %v5165
    %7974 = vmatpush.bf16.msra.mxu0 %v5149
    %7975 = vmatpush.bf16.msra.mxu0 %v5133
    %7976 = vmatpush.bf16.msra.mxu0 %v5117
    %7977 = vmatpush.bf16.msra.mxu0 %v5101
    %7978 = vmatpush.bf16.msra.mxu0 %v5085
    %7979 = vmatpush.bf16.msra.mxu0 %v5069
    %7980 = vmatmul.bf16.gmra.mxu0 %v152
    %v7981 = vpop.f32.mrf.mxu0
    %v7982 = vadd.f32 %v7969, %v7981
    %v7983 = vpop.f32.mrf.mxu0
    %7984 = vdwg.mxu0
    %7985 = vmatpush.bf16.msra.mxu0 %v5309
    %7986 = vmatpush.bf16.msra.mxu0 %v5293
    %7987 = vmatpush.bf16.msra.mxu0 %v5277
    %7988 = vmatpush.bf16.msra.mxu0 %v5261
    %7989 = vmatpush.bf16.msra.mxu0 %v5245
    %7990 = vmatpush.bf16.msra.mxu0 %v5229
    %7991 = vmatpush.bf16.msra.mxu0 %v5213
    %7992 = vmatpush.bf16.msra.mxu0 %v5197
    %7993 = vmatmul.bf16.gmra.mxu0 %v153
    %v7994 = vpop.f32.mrf.mxu0
    %v7995 = vadd.f32 %v7982, %v7994
    %v7996 = vpop.f32.mrf.mxu0
    %7997 = vdwg.mxu0
    %v7998 = vtanh.pop %v6435
    %v7999 = vtanh.pop %v6539
    %v8000 = vtanh.pop %v6643
    %v8001 = vtanh.pop %v6747
    %v8002 = vtanh.pop %v6851
    %v8003 = vtanh.pop %v6955
    %v8004 = vtanh.pop %v7059
    %v8005 = vtanh.pop %v7163
    %v8006 = vtanh.pop %v7267
    %v8007 = vtanh.pop %v7371
    %v8008 = vtanh.pop %v7475
    %v8009 = vtanh.pop %v7579
    %v8010 = vtanh.pop %v7683
    %v8011 = vtanh.pop %v7787
    %v8012 = vtanh.pop %v7891
    %v8013 = vtanh.pop %v7995
    %8014 = vst [vmem:[#allocation6] sm:$0xff] %v7998
    %8015 = vst [vmem:[#allocation6 + $0x8] sm:$0xff] %v7999
    %8016 = vst [vmem:[#allocation6 + $0x10] sm:$0xff] %v8000
    %8017 = vst [vmem:[#allocation6 + $0x18] sm:$0xff] %v8001
    %8018 = vst [vmem:[#allocation6 + $0x20] sm:$0xff] %v8002
    %8019 = vst [vmem:[#allocation6 + $0x28] sm:$0xff] %v8003
    %8020 = vst [vmem:[#allocation6 + $0x30] sm:$0xff] %v8004
    %8021 = vst [vmem:[#allocation6 + $0x38] sm:$0xff] %v8005
    %8022 = vst [vmem:[#allocation6 + $0x40] sm:$0xff] %v8006
    %8023 = vst [vmem:[#allocation6 + $0x48] sm:$0xff] %v8007
    %8024 = vst [vmem:[#allocation6 + $0x50] sm:$0xff] %v8008
    %8025 = vst [vmem:[#allocation6 + $0x58] sm:$0xff] %v8009
    %8026 = vst [vmem:[#allocation6 + $0x60] sm:$0xff] %v8010
    %8027 = vst [vmem:[#allocation6 + $0x68] sm:$0xff] %v8011
    %8028 = vst [vmem:[#allocation6 + $0x70] sm:$0xff] %v8012
    %8029 = vst [vmem:[#allocation6 + $0x78] sm:$0xff] %v8013
    %s8030 = smul.u32 4, 64
    %s8031 = smul.u32 %s8030, 8
    %s8032 = sshll.u32 %s8031, 4
    %8033 = dma.done %s92, %s8032
    %v8034 = vld [vmem:[#allocation6] sm:$0xff]
    %v8035 = vld [vmem:[#allocation6 + $0x8] sm:$0xff]
    %v8036 = vld [vmem:[#allocation6 + $0x10] sm:$0xff]
    %v8037 = vld [vmem:[#allocation6 + $0x18] sm:$0xff]
    %v8038 = vld [vmem:[#allocation6 + $0x20] sm:$0xff]
    %v8039 = vld [vmem:[#allocation6 + $0x28] sm:$0xff]
    %v8040 = vld [vmem:[#allocation6 + $0x30] sm:$0xff]
    %v8041 = vld [vmem:[#allocation6 + $0x38] sm:$0xff]
    %v8042 = vld [vmem:[#allocation6 + $0x40] sm:$0xff]
    %v8043 = vld [vmem:[#allocation6 + $0x48] sm:$0xff]
    %v8044 = vld [vmem:[#allocation6 + $0x50] sm:$0xff]
    %v8045 = vld [vmem:[#allocation6 + $0x58] sm:$0xff]
    %v8046 = vld [vmem:[#allocation6 + $0x60] sm:$0xff]
    %v8047 = vld [vmem:[#allocation6 + $0x68] sm:$0xff]
    %v8048 = vld [vmem:[#allocation6 + $0x70] sm:$0xff]
    %v8049 = vld [vmem:[#allocation6 + $0x78] sm:$0xff]
    %v8050 = vpack.c.bf16 %v8038, %v8034
    %v8051 = vpack.c.bf16 %v8039, %v8035
    %v8052 = vpack.c.bf16 %v8040, %v8036
    %v8053 = vpack.c.bf16 %v8041, %v8037
    %v8054 = vpack.c.bf16 %v8046, %v8042
    %v8055 = vpack.c.bf16 %v8047, %v8043
    %v8056 = vpack.c.bf16 %v8048, %v8044
    %v8057 = vpack.c.bf16 %v8049, %v8045
    %v8058 = vld [vmem:[#allocation3] sm:$0xff]
    %v8059 = vld [vmem:[#allocation3 + $0x8] sm:$0xff]
    %v8060 = vld [vmem:[#allocation3 + $0x10] sm:$0xff]
    %v8061 = vld [vmem:[#allocation3 + $0x18] sm:$0xff]
    %v8062 = vld [vmem:[#allocation3 + $0x20] sm:$0xff]
    %v8063 = vld [vmem:[#allocation3 + $0x28] sm:$0xff]
    %v8064 = vld [vmem:[#allocation3 + $0x30] sm:$0xff]
    %v8065 = vld [vmem:[#allocation3 + $0x38] sm:$0xff]
    %v8066 = vld [vmem:[#allocation3 + $0x40] sm:$0xff]
    %v8067 = vld [vmem:[#allocation3 + $0x48] sm:$0xff]
    %v8068 = vld [vmem:[#allocation3 + $0x50] sm:$0xff]
    %v8069 = vld [vmem:[#allocation3 + $0x58] sm:$0xff]
    %v8070 = vld [vmem:[#allocation3 + $0x60] sm:$0xff]
    %v8071 = vld [vmem:[#allocation3 + $0x68] sm:$0xff]
    %v8072 = vld [vmem:[#allocation3 + $0x70] sm:$0xff]
    %v8073 = vld [vmem:[#allocation3 + $0x78] sm:$0xff]
    %v8074 = vld [vmem:[#allocation3 + $0x80] sm:$0xff]
    %v8075 = vld [vmem:[#allocation3 + $0x88] sm:$0xff]
    %v8076 = vld [vmem:[#allocation3 + $0x90] sm:$0xff]
    %v8077 = vld [vmem:[#allocation3 + $0x98] sm:$0xff]
    %v8078 = vld [vmem:[#allocation3 + $0xa0] sm:$0xff]
    %v8079 = vld [vmem:[#allocation3 + $0xa8] sm:$0xff]
    %v8080 = vld [vmem:[#allocation3 + $0xb0] sm:$0xff]
    %v8081 = vld [vmem:[#allocation3 + $0xb8] sm:$0xff]
    %v8082 = vld [vmem:[#allocation3 + $0xc0] sm:$0xff]
    %v8083 = vld [vmem:[#allocation3 + $0xc8] sm:$0xff]
    %v8084 = vld [vmem:[#allocation3 + $0xd0] sm:$0xff]
    %v8085 = vld [vmem:[#allocation3 + $0xd8] sm:$0xff]
    %v8086 = vld [vmem:[#allocation3 + $0xe0] sm:$0xff]
    %v8087 = vld [vmem:[#allocation3 + $0xe8] sm:$0xff]
    %v8088 = vld [vmem:[#allocation3 + $0xf0] sm:$0xff]
    %v8089 = vld [vmem:[#allocation3 + $0xf8] sm:$0xff]
    %v8090 = vld [vmem:[#allocation3 + $0x100] sm:$0xff]
    %v8091 = vld [vmem:[#allocation3 + $0x108] sm:$0xff]
    %v8092 = vld [vmem:[#allocation3 + $0x110] sm:$0xff]
    %v8093 = vld [vmem:[#allocation3 + $0x118] sm:$0xff]
    %v8094 = vld [vmem:[#allocation3 + $0x120] sm:$0xff]
    %v8095 = vld [vmem:[#allocation3 + $0x128] sm:$0xff]
    %v8096 = vld [vmem:[#allocation3 + $0x130] sm:$0xff]
    %v8097 = vld [vmem:[#allocation3 + $0x138] sm:$0xff]
    %v8098 = vld [vmem:[#allocation3 + $0x140] sm:$0xff]
    %v8099 = vld [vmem:[#allocation3 + $0x148] sm:$0xff]
    %v8100 = vld [vmem:[#allocation3 + $0x150] sm:$0xff]
    %v8101 = vld [vmem:[#allocation3 + $0x158] sm:$0xff]
    %v8102 = vld [vmem:[#allocation3 + $0x160] sm:$0xff]
    %v8103 = vld [vmem:[#allocation3 + $0x168] sm:$0xff]
    %v8104 = vld [vmem:[#allocation3 + $0x170] sm:$0xff]
    %v8105 = vld [vmem:[#allocation3 + $0x178] sm:$0xff]
    %v8106 = vld [vmem:[#allocation3 + $0x180] sm:$0xff]
    %v8107 = vld [vmem:[#allocation3 + $0x188] sm:$0xff]
    %v8108 = vld [vmem:[#allocation3 + $0x190] sm:$0xff]
    %v8109 = vld [vmem:[#allocation3 + $0x198] sm:$0xff]
    %v8110 = vld [vmem:[#allocation3 + $0x1a0] sm:$0xff]
    %v8111 = vld [vmem:[#allocation3 + $0x1a8] sm:$0xff]
    %v8112 = vld [vmem:[#allocation3 + $0x1b0] sm:$0xff]
    %v8113 = vld [vmem:[#allocation3 + $0x1b8] sm:$0xff]
    %v8114 = vld [vmem:[#allocation3 + $0x1c0] sm:$0xff]
    %v8115 = vld [vmem:[#allocation3 + $0x1c8] sm:$0xff]
    %v8116 = vld [vmem:[#allocation3 + $0x1d0] sm:$0xff]
    %v8117 = vld [vmem:[#allocation3 + $0x1d8] sm:$0xff]
    %v8118 = vld [vmem:[#allocation3 + $0x1e0] sm:$0xff]
    %v8119 = vld [vmem:[#allocation3 + $0x1e8] sm:$0xff]
    %v8120 = vld [vmem:[#allocation3 + $0x1f0] sm:$0xff]
    %v8121 = vld [vmem:[#allocation3 + $0x1f8] sm:$0xff]
    %v8122 = vld [vmem:[#allocation3 + $0x200] sm:$0xff]
    %v8123 = vld [vmem:[#allocation3 + $0x208] sm:$0xff]
    %v8124 = vld [vmem:[#allocation3 + $0x210] sm:$0xff]
    %v8125 = vld [vmem:[#allocation3 + $0x218] sm:$0xff]
    %v8126 = vld [vmem:[#allocation3 + $0x220] sm:$0xff]
    %v8127 = vld [vmem:[#allocation3 + $0x228] sm:$0xff]
    %v8128 = vld [vmem:[#allocation3 + $0x230] sm:$0xff]
    %v8129 = vld [vmem:[#allocation3 + $0x238] sm:$0xff]
    %v8130 = vld [vmem:[#allocation3 + $0x240] sm:$0xff]
    %v8131 = vld [vmem:[#allocation3 + $0x248] sm:$0xff]
    %v8132 = vld [vmem:[#allocation3 + $0x250] sm:$0xff]
    %v8133 = vld [vmem:[#allocation3 + $0x258] sm:$0xff]
    %v8134 = vld [vmem:[#allocation3 + $0x260] sm:$0xff]
    %v8135 = vld [vmem:[#allocation3 + $0x268] sm:$0xff]
    %v8136 = vld [vmem:[#allocation3 + $0x270] sm:$0xff]
    %v8137 = vld [vmem:[#allocation3 + $0x278] sm:$0xff]
    %v8138 = vld [vmem:[#allocation3 + $0x280] sm:$0xff]
    %v8139 = vld [vmem:[#allocation3 + $0x288] sm:$0xff]
    %v8140 = vld [vmem:[#allocation3 + $0x290] sm:$0xff]
    %v8141 = vld [vmem:[#allocation3 + $0x298] sm:$0xff]
    %v8142 = vld [vmem:[#allocation3 + $0x2a0] sm:$0xff]
    %v8143 = vld [vmem:[#allocation3 + $0x2a8] sm:$0xff]
    %v8144 = vld [vmem:[#allocation3 + $0x2b0] sm:$0xff]
    %v8145 = vld [vmem:[#allocation3 + $0x2b8] sm:$0xff]
    %v8146 = vld [vmem:[#allocation3 + $0x2c0] sm:$0xff]
    %v8147 = vld [vmem:[#allocation3 + $0x2c8] sm:$0xff]
    %v8148 = vld [vmem:[#allocation3 + $0x2d0] sm:$0xff]
    %v8149 = vld [vmem:[#allocation3 + $0x2d8] sm:$0xff]
    %v8150 = vld [vmem:[#allocation3 + $0x2e0] sm:$0xff]
    %v8151 = vld [vmem:[#allocation3 + $0x2e8] sm:$0xff]
    %v8152 = vld [vmem:[#allocation3 + $0x2f0] sm:$0xff]
    %v8153 = vld [vmem:[#allocation3 + $0x2f8] sm:$0xff]
    %v8154 = vld [vmem:[#allocation3 + $0x300] sm:$0xff]
    %v8155 = vld [vmem:[#allocation3 + $0x308] sm:$0xff]
    %v8156 = vld [vmem:[#allocation3 + $0x310] sm:$0xff]
    %v8157 = vld [vmem:[#allocation3 + $0x318] sm:$0xff]
    %v8158 = vld [vmem:[#allocation3 + $0x320] sm:$0xff]
    %v8159 = vld [vmem:[#allocation3 + $0x328] sm:$0xff]
    %v8160 = vld [vmem:[#allocation3 + $0x330] sm:$0xff]
    %v8161 = vld [vmem:[#allocation3 + $0x338] sm:$0xff]
    %v8162 = vld [vmem:[#allocation3 + $0x340] sm:$0xff]
    %v8163 = vld [vmem:[#allocation3 + $0x348] sm:$0xff]
    %v8164 = vld [vmem:[#allocation3 + $0x350] sm:$0xff]
    %v8165 = vld [vmem:[#allocation3 + $0x358] sm:$0xff]
    %v8166 = vld [vmem:[#allocation3 + $0x360] sm:$0xff]
    %v8167 = vld [vmem:[#allocation3 + $0x368] sm:$0xff]
    %v8168 = vld [vmem:[#allocation3 + $0x370] sm:$0xff]
    %v8169 = vld [vmem:[#allocation3 + $0x378] sm:$0xff]
    %v8170 = vld [vmem:[#allocation3 + $0x380] sm:$0xff]
    %v8171 = vld [vmem:[#allocation3 + $0x388] sm:$0xff]
    %v8172 = vld [vmem:[#allocation3 + $0x390] sm:$0xff]
    %v8173 = vld [vmem:[#allocation3 + $0x398] sm:$0xff]
    %v8174 = vld [vmem:[#allocation3 + $0x3a0] sm:$0xff]
    %v8175 = vld [vmem:[#allocation3 + $0x3a8] sm:$0xff]
    %v8176 = vld [vmem:[#allocation3 + $0x3b0] sm:$0xff]
    %v8177 = vld [vmem:[#allocation3 + $0x3b8] sm:$0xff]
    %v8178 = vld [vmem:[#allocation3 + $0x3c0] sm:$0xff]
    %v8179 = vld [vmem:[#allocation3 + $0x3c8] sm:$0xff]
    %v8180 = vld [vmem:[#allocation3 + $0x3d0] sm:$0xff]
    %v8181 = vld [vmem:[#allocation3 + $0x3d8] sm:$0xff]
    %v8182 = vld [vmem:[#allocation3 + $0x3e0] sm:$0xff]
    %v8183 = vld [vmem:[#allocation3 + $0x3e8] sm:$0xff]
    %v8184 = vld [vmem:[#allocation3 + $0x3f0] sm:$0xff]
    %v8185 = vld [vmem:[#allocation3 + $0x3f8] sm:$0xff]
    %v8186 = vld [vmem:[#allocation3 + $0x400] sm:$0xff]
    %v8187 = vld [vmem:[#allocation3 + $0x408] sm:$0xff]
    %v8188 = vld [vmem:[#allocation3 + $0x410] sm:$0xff]
    %v8189 = vld [vmem:[#allocation3 + $0x418] sm:$0xff]
    %v8190 = vld [vmem:[#allocation3 + $0x420] sm:$0xff]
    %v8191 = vld [vmem:[#allocation3 + $0x428] sm:$0xff]
    %v8192 = vld [vmem:[#allocation3 + $0x430] sm:$0xff]
    %v8193 = vld [vmem:[#allocation3 + $0x438] sm:$0xff]
    %v8194 = vld [vmem:[#allocation3 + $0x440] sm:$0xff]
    %v8195 = vld [vmem:[#allocation3 + $0x448] sm:$0xff]
    %v8196 = vld [vmem:[#allocation3 + $0x450] sm:$0xff]
    %v8197 = vld [vmem:[#allocation3 + $0x458] sm:$0xff]
    %v8198 = vld [vmem:[#allocation3 + $0x460] sm:$0xff]
    %v8199 = vld [vmem:[#allocation3 + $0x468] sm:$0xff]
    %v8200 = vld [vmem:[#allocation3 + $0x470] sm:$0xff]
    %v8201 = vld [vmem:[#allocation3 + $0x478] sm:$0xff]
    %v8202 = vld [vmem:[#allocation3 + $0x480] sm:$0xff]
    %v8203 = vld [vmem:[#allocation3 + $0x488] sm:$0xff]
    %v8204 = vld [vmem:[#allocation3 + $0x490] sm:$0xff]
    %v8205 = vld [vmem:[#allocation3 + $0x498] sm:$0xff]
    %v8206 = vld [vmem:[#allocation3 + $0x4a0] sm:$0xff]
    %v8207 = vld [vmem:[#allocation3 + $0x4a8] sm:$0xff]
    %v8208 = vld [vmem:[#allocation3 + $0x4b0] sm:$0xff]
    %v8209 = vld [vmem:[#allocation3 + $0x4b8] sm:$0xff]
    %v8210 = vld [vmem:[#allocation3 + $0x4c0] sm:$0xff]
    %v8211 = vld [vmem:[#allocation3 + $0x4c8] sm:$0xff]
    %v8212 = vld [vmem:[#allocation3 + $0x4d0] sm:$0xff]
    %v8213 = vld [vmem:[#allocation3 + $0x4d8] sm:$0xff]
    %v8214 = vld [vmem:[#allocation3 + $0x4e0] sm:$0xff]
    %v8215 = vld [vmem:[#allocation3 + $0x4e8] sm:$0xff]
    %v8216 = vld [vmem:[#allocation3 + $0x4f0] sm:$0xff]
    %v8217 = vld [vmem:[#allocation3 + $0x4f8] sm:$0xff]
    %v8218 = vld [vmem:[#allocation3 + $0x500] sm:$0xff]
    %v8219 = vld [vmem:[#allocation3 + $0x508] sm:$0xff]
    %v8220 = vld [vmem:[#allocation3 + $0x510] sm:$0xff]
    %v8221 = vld [vmem:[#allocation3 + $0x518] sm:$0xff]
    %v8222 = vld [vmem:[#allocation3 + $0x520] sm:$0xff]
    %v8223 = vld [vmem:[#allocation3 + $0x528] sm:$0xff]
    %v8224 = vld [vmem:[#allocation3 + $0x530] sm:$0xff]
    %v8225 = vld [vmem:[#allocation3 + $0x538] sm:$0xff]
    %v8226 = vld [vmem:[#allocation3 + $0x540] sm:$0xff]
    %v8227 = vld [vmem:[#allocation3 + $0x548] sm:$0xff]
    %v8228 = vld [vmem:[#allocation3 + $0x550] sm:$0xff]
    %v8229 = vld [vmem:[#allocation3 + $0x558] sm:$0xff]
    %v8230 = vld [vmem:[#allocation3 + $0x560] sm:$0xff]
    %v8231 = vld [vmem:[#allocation3 + $0x568] sm:$0xff]
    %v8232 = vld [vmem:[#allocation3 + $0x570] sm:$0xff]
    %v8233 = vld [vmem:[#allocation3 + $0x578] sm:$0xff]
    %v8234 = vld [vmem:[#allocation3 + $0x580] sm:$0xff]
    %v8235 = vld [vmem:[#allocation3 + $0x588] sm:$0xff]
    %v8236 = vld [vmem:[#allocation3 + $0x590] sm:$0xff]
    %v8237 = vld [vmem:[#allocation3 + $0x598] sm:$0xff]
    %v8238 = vld [vmem:[#allocation3 + $0x5a0] sm:$0xff]
    %v8239 = vld [vmem:[#allocation3 + $0x5a8] sm:$0xff]
    %v8240 = vld [vmem:[#allocation3 + $0x5b0] sm:$0xff]
    %v8241 = vld [vmem:[#allocation3 + $0x5b8] sm:$0xff]
    %v8242 = vld [vmem:[#allocation3 + $0x5c0] sm:$0xff]
    %v8243 = vld [vmem:[#allocation3 + $0x5c8] sm:$0xff]
    %v8244 = vld [vmem:[#allocation3 + $0x5d0] sm:$0xff]
    %v8245 = vld [vmem:[#allocation3 + $0x5d8] sm:$0xff]
    %v8246 = vld [vmem:[#allocation3 + $0x5e0] sm:$0xff]
    %v8247 = vld [vmem:[#allocation3 + $0x5e8] sm:$0xff]
    %v8248 = vld [vmem:[#allocation3 + $0x5f0] sm:$0xff]
    %v8249 = vld [vmem:[#allocation3 + $0x5f8] sm:$0xff]
    %v8250 = vld [vmem:[#allocation3 + $0x600] sm:$0xff]
    %v8251 = vld [vmem:[#allocation3 + $0x608] sm:$0xff]
    %v8252 = vld [vmem:[#allocation3 + $0x610] sm:$0xff]
    %v8253 = vld [vmem:[#allocation3 + $0x618] sm:$0xff]
    %v8254 = vld [vmem:[#allocation3 + $0x620] sm:$0xff]
    %v8255 = vld [vmem:[#allocation3 + $0x628] sm:$0xff]
    %v8256 = vld [vmem:[#allocation3 + $0x630] sm:$0xff]
    %v8257 = vld [vmem:[#allocation3 + $0x638] sm:$0xff]
    %v8258 = vld [vmem:[#allocation3 + $0x640] sm:$0xff]
    %v8259 = vld [vmem:[#allocation3 + $0x648] sm:$0xff]
    %v8260 = vld [vmem:[#allocation3 + $0x650] sm:$0xff]
    %v8261 = vld [vmem:[#allocation3 + $0x658] sm:$0xff]
    %v8262 = vld [vmem:[#allocation3 + $0x660] sm:$0xff]
    %v8263 = vld [vmem:[#allocation3 + $0x668] sm:$0xff]
    %v8264 = vld [vmem:[#allocation3 + $0x670] sm:$0xff]
    %v8265 = vld [vmem:[#allocation3 + $0x678] sm:$0xff]
    %v8266 = vld [vmem:[#allocation3 + $0x680] sm:$0xff]
    %v8267 = vld [vmem:[#allocation3 + $0x688] sm:$0xff]
    %v8268 = vld [vmem:[#allocation3 + $0x690] sm:$0xff]
    %v8269 = vld [vmem:[#allocation3 + $0x698] sm:$0xff]
    %v8270 = vld [vmem:[#allocation3 + $0x6a0] sm:$0xff]
    %v8271 = vld [vmem:[#allocation3 + $0x6a8] sm:$0xff]
    %v8272 = vld [vmem:[#allocation3 + $0x6b0] sm:$0xff]
    %v8273 = vld [vmem:[#allocation3 + $0x6b8] sm:$0xff]
    %v8274 = vld [vmem:[#allocation3 + $0x6c0] sm:$0xff]
    %v8275 = vld [vmem:[#allocation3 + $0x6c8] sm:$0xff]
    %v8276 = vld [vmem:[#allocation3 + $0x6d0] sm:$0xff]
    %v8277 = vld [vmem:[#allocation3 + $0x6d8] sm:$0xff]
    %v8278 = vld [vmem:[#allocation3 + $0x6e0] sm:$0xff]
    %v8279 = vld [vmem:[#allocation3 + $0x6e8] sm:$0xff]
    %v8280 = vld [vmem:[#allocation3 + $0x6f0] sm:$0xff]
    %v8281 = vld [vmem:[#allocation3 + $0x6f8] sm:$0xff]
    %v8282 = vld [vmem:[#allocation3 + $0x700] sm:$0xff]
    %v8283 = vld [vmem:[#allocation3 + $0x708] sm:$0xff]
    %v8284 = vld [vmem:[#allocation3 + $0x710] sm:$0xff]
    %v8285 = vld [vmem:[#allocation3 + $0x718] sm:$0xff]
    %v8286 = vld [vmem:[#allocation3 + $0x720] sm:$0xff]
    %v8287 = vld [vmem:[#allocation3 + $0x728] sm:$0xff]
    %v8288 = vld [vmem:[#allocation3 + $0x730] sm:$0xff]
    %v8289 = vld [vmem:[#allocation3 + $0x738] sm:$0xff]
    %v8290 = vld [vmem:[#allocation3 + $0x740] sm:$0xff]
    %v8291 = vld [vmem:[#allocation3 + $0x748] sm:$0xff]
    %v8292 = vld [vmem:[#allocation3 + $0x750] sm:$0xff]
    %v8293 = vld [vmem:[#allocation3 + $0x758] sm:$0xff]
    %v8294 = vld [vmem:[#allocation3 + $0x760] sm:$0xff]
    %v8295 = vld [vmem:[#allocation3 + $0x768] sm:$0xff]
    %v8296 = vld [vmem:[#allocation3 + $0x770] sm:$0xff]
    %v8297 = vld [vmem:[#allocation3 + $0x778] sm:$0xff]
    %v8298 = vld [vmem:[#allocation3 + $0x780] sm:$0xff]
    %v8299 = vld [vmem:[#allocation3 + $0x788] sm:$0xff]
    %v8300 = vld [vmem:[#allocation3 + $0x790] sm:$0xff]
    %v8301 = vld [vmem:[#allocation3 + $0x798] sm:$0xff]
    %v8302 = vld [vmem:[#allocation3 + $0x7a0] sm:$0xff]
    %v8303 = vld [vmem:[#allocation3 + $0x7a8] sm:$0xff]
    %v8304 = vld [vmem:[#allocation3 + $0x7b0] sm:$0xff]
    %v8305 = vld [vmem:[#allocation3 + $0x7b8] sm:$0xff]
    %v8306 = vld [vmem:[#allocation3 + $0x7c0] sm:$0xff]
    %v8307 = vld [vmem:[#allocation3 + $0x7c8] sm:$0xff]
    %v8308 = vld [vmem:[#allocation3 + $0x7d0] sm:$0xff]
    %v8309 = vld [vmem:[#allocation3 + $0x7d8] sm:$0xff]
    %v8310 = vld [vmem:[#allocation3 + $0x7e0] sm:$0xff]
    %v8311 = vld [vmem:[#allocation3 + $0x7e8] sm:$0xff]
    %v8312 = vld [vmem:[#allocation3 + $0x7f0] sm:$0xff]
    %v8313 = vld [vmem:[#allocation3 + $0x7f8] sm:$0xff]
    %v8314 = vld [vmem:[#allocation12] sm:$0xff]
    %v8316 = vperm.slane %v8314, 0
    %v8317 = vperm.slane %v8314, 1
    %v8318 = vperm.slane %v8314, 2
    %v8319 = vperm.slane %v8314, 3
    %v8320 = vperm.slane %v8314, 4
    %v8321 = vperm.slane %v8314, 5
    %v8322 = vperm.slane %v8314, 6
    %v8323 = vperm.slane %v8314, 7
    %v8588 = vunpack.c.l.b16 %v8058
    %v8589 = vunpack.c.h.b16 %v8058
    %v8590 = vunpack.c.l.b16 %v8059
    %v8591 = vunpack.c.h.b16 %v8059
    %v8592 = vunpack.c.l.b16 %v8060
    %v8593 = vunpack.c.h.b16 %v8060
    %v8594 = vunpack.c.l.b16 %v8061
    %v8595 = vunpack.c.h.b16 %v8061
    %v8596 = vunpack.c.l.b16 %v8062
    %v8597 = vunpack.c.h.b16 %v8062
    %v8598 = vunpack.c.l.b16 %v8063
    %v8599 = vunpack.c.h.b16 %v8063
    %v8600 = vunpack.c.l.b16 %v8064
    %v8601 = vunpack.c.h.b16 %v8064
    %v8602 = vunpack.c.l.b16 %v8065
    %v8603 = vunpack.c.h.b16 %v8065
    %v8604 = vunpack.c.l.b16 %v8066
    %v8605 = vunpack.c.h.b16 %v8066
    %v8606 = vunpack.c.l.b16 %v8067
    %v8607 = vunpack.c.h.b16 %v8067
    %v8608 = vunpack.c.l.b16 %v8068
    %v8609 = vunpack.c.h.b16 %v8068
    %v8610 = vunpack.c.l.b16 %v8069
    %v8611 = vunpack.c.h.b16 %v8069
    %v8612 = vunpack.c.l.b16 %v8070
    %v8613 = vunpack.c.h.b16 %v8070
    %v8614 = vunpack.c.l.b16 %v8071
    %v8615 = vunpack.c.h.b16 %v8071
    %v8616 = vunpack.c.l.b16 %v8072
    %v8617 = vunpack.c.h.b16 %v8072
    %v8618 = vunpack.c.l.b16 %v8073
    %v8619 = vunpack.c.h.b16 %v8073
    %v8620 = vunpack.c.l.b16 %v8074
    %v8621 = vunpack.c.h.b16 %v8074
    %v8622 = vunpack.c.l.b16 %v8075
    %v8623 = vunpack.c.h.b16 %v8075
    %v8624 = vunpack.c.l.b16 %v8076
    %v8625 = vunpack.c.h.b16 %v8076
    %v8626 = vunpack.c.l.b16 %v8077
    %v8627 = vunpack.c.h.b16 %v8077
    %v8628 = vunpack.c.l.b16 %v8078
    %v8629 = vunpack.c.h.b16 %v8078
    %v8630 = vunpack.c.l.b16 %v8079
    %v8631 = vunpack.c.h.b16 %v8079
    %v8632 = vunpack.c.l.b16 %v8080
    %v8633 = vunpack.c.h.b16 %v8080
    %v8634 = vunpack.c.l.b16 %v8081
    %v8635 = vunpack.c.h.b16 %v8081
    %v8636 = vunpack.c.l.b16 %v8082
    %v8637 = vunpack.c.h.b16 %v8082
    %v8638 = vunpack.c.l.b16 %v8083
    %v8639 = vunpack.c.h.b16 %v8083
    %v8640 = vunpack.c.l.b16 %v8084
    %v8641 = vunpack.c.h.b16 %v8084
    %v8642 = vunpack.c.l.b16 %v8085
    %v8643 = vunpack.c.h.b16 %v8085
    %v8644 = vunpack.c.l.b16 %v8086
    %v8645 = vunpack.c.h.b16 %v8086
    %v8646 = vunpack.c.l.b16 %v8087
    %v8647 = vunpack.c.h.b16 %v8087
    %v8648 = vunpack.c.l.b16 %v8088
    %v8649 = vunpack.c.h.b16 %v8088
    %v8650 = vunpack.c.l.b16 %v8089
    %v8651 = vunpack.c.h.b16 %v8089
    %v8652 = vunpack.c.l.b16 %v8090
    %v8653 = vunpack.c.h.b16 %v8090
    %v8654 = vunpack.c.l.b16 %v8091
    %v8655 = vunpack.c.h.b16 %v8091
    %v8656 = vunpack.c.l.b16 %v8092
    %v8657 = vunpack.c.h.b16 %v8092
    %v8658 = vunpack.c.l.b16 %v8093
    %v8659 = vunpack.c.h.b16 %v8093
    %v8660 = vunpack.c.l.b16 %v8094
    %v8661 = vunpack.c.h.b16 %v8094
    %v8662 = vunpack.c.l.b16 %v8095
    %v8663 = vunpack.c.h.b16 %v8095
    %v8664 = vunpack.c.l.b16 %v8096
    %v8665 = vunpack.c.h.b16 %v8096
    %v8666 = vunpack.c.l.b16 %v8097
    %v8667 = vunpack.c.h.b16 %v8097
    %v8668 = vunpack.c.l.b16 %v8098
    %v8669 = vunpack.c.h.b16 %v8098
    %v8670 = vunpack.c.l.b16 %v8099
    %v8671 = vunpack.c.h.b16 %v8099
    %v8672 = vunpack.c.l.b16 %v8100
    %v8673 = vunpack.c.h.b16 %v8100
    %v8674 = vunpack.c.l.b16 %v8101
    %v8675 = vunpack.c.h.b16 %v8101
    %v8676 = vunpack.c.l.b16 %v8102
    %v8677 = vunpack.c.h.b16 %v8102
    %v8678 = vunpack.c.l.b16 %v8103
    %v8679 = vunpack.c.h.b16 %v8103
    %v8680 = vunpack.c.l.b16 %v8104
    %v8681 = vunpack.c.h.b16 %v8104
    %v8682 = vunpack.c.l.b16 %v8105
    %v8683 = vunpack.c.h.b16 %v8105
    %v8684 = vunpack.c.l.b16 %v8106
    %v8685 = vunpack.c.h.b16 %v8106
    %v8686 = vunpack.c.l.b16 %v8107
    %v8687 = vunpack.c.h.b16 %v8107
    %v8688 = vunpack.c.l.b16 %v8108
    %v8689 = vunpack.c.h.b16 %v8108
    %v8690 = vunpack.c.l.b16 %v8109
    %v8691 = vunpack.c.h.b16 %v8109
    %v8692 = vunpack.c.l.b16 %v8110
    %v8693 = vunpack.c.h.b16 %v8110
    %v8694 = vunpack.c.l.b16 %v8111
    %v8695 = vunpack.c.h.b16 %v8111
    %v8696 = vunpack.c.l.b16 %v8112
    %v8697 = vunpack.c.h.b16 %v8112
    %v8698 = vunpack.c.l.b16 %v8113
    %v8699 = vunpack.c.h.b16 %v8113
    %v8700 = vunpack.c.l.b16 %v8114
    %v8701 = vunpack.c.h.b16 %v8114
    %v8702 = vunpack.c.l.b16 %v8115
    %v8703 = vunpack.c.h.b16 %v8115
    %v8704 = vunpack.c.l.b16 %v8116
    %v8705 = vunpack.c.h.b16 %v8116
    %v8706 = vunpack.c.l.b16 %v8117
    %v8707 = vunpack.c.h.b16 %v8117
    %v8708 = vunpack.c.l.b16 %v8118
    %v8709 = vunpack.c.h.b16 %v8118
    %v8710 = vunpack.c.l.b16 %v8119
    %v8711 = vunpack.c.h.b16 %v8119
    %v8712 = vunpack.c.l.b16 %v8120
    %v8713 = vunpack.c.h.b16 %v8120
    %v8714 = vunpack.c.l.b16 %v8121
    %v8715 = vunpack.c.h.b16 %v8121
    %v8716 = vunpack.c.l.b16 %v8122
    %v8717 = vunpack.c.h.b16 %v8122
    %v8718 = vunpack.c.l.b16 %v8123
    %v8719 = vunpack.c.h.b16 %v8123
    %v8720 = vunpack.c.l.b16 %v8124
    %v8721 = vunpack.c.h.b16 %v8124
    %v8722 = vunpack.c.l.b16 %v8125
    %v8723 = vunpack.c.h.b16 %v8125
    %v8724 = vunpack.c.l.b16 %v8126
    %v8725 = vunpack.c.h.b16 %v8126
    %v8726 = vunpack.c.l.b16 %v8127
    %v8727 = vunpack.c.h.b16 %v8127
    %v8728 = vunpack.c.l.b16 %v8128
    %v8729 = vunpack.c.h.b16 %v8128
    %v8730 = vunpack.c.l.b16 %v8129
    %v8731 = vunpack.c.h.b16 %v8129
    %v8732 = vunpack.c.l.b16 %v8130
    %v8733 = vunpack.c.h.b16 %v8130
    %v8734 = vunpack.c.l.b16 %v8131
    %v8735 = vunpack.c.h.b16 %v8131
    %v8736 = vunpack.c.l.b16 %v8132
    %v8737 = vunpack.c.h.b16 %v8132
    %v8738 = vunpack.c.l.b16 %v8133
    %v8739 = vunpack.c.h.b16 %v8133
    %v8740 = vunpack.c.l.b16 %v8134
    %v8741 = vunpack.c.h.b16 %v8134
    %v8742 = vunpack.c.l.b16 %v8135
    %v8743 = vunpack.c.h.b16 %v8135
    %v8744 = vunpack.c.l.b16 %v8136
    %v8745 = vunpack.c.h.b16 %v8136
    %v8746 = vunpack.c.l.b16 %v8137
    %v8747 = vunpack.c.h.b16 %v8137
    %v8748 = vunpack.c.l.b16 %v8138
    %v8749 = vunpack.c.h.b16 %v8138
    %v8750 = vunpack.c.l.b16 %v8139
    %v8751 = vunpack.c.h.b16 %v8139
    %v8752 = vunpack.c.l.b16 %v8140
    %v8753 = vunpack.c.h.b16 %v8140
    %v8754 = vunpack.c.l.b16 %v8141
    %v8755 = vunpack.c.h.b16 %v8141
    %v8756 = vunpack.c.l.b16 %v8142
    %v8757 = vunpack.c.h.b16 %v8142
    %v8758 = vunpack.c.l.b16 %v8143
    %v8759 = vunpack.c.h.b16 %v8143
    %v8760 = vunpack.c.l.b16 %v8144
    %v8761 = vunpack.c.h.b16 %v8144
    %v8762 = vunpack.c.l.b16 %v8145
    %v8763 = vunpack.c.h.b16 %v8145
    %v8764 = vunpack.c.l.b16 %v8146
    %v8765 = vunpack.c.h.b16 %v8146
    %v8766 = vunpack.c.l.b16 %v8147
    %v8767 = vunpack.c.h.b16 %v8147
    %v8768 = vunpack.c.l.b16 %v8148
    %v8769 = vunpack.c.h.b16 %v8148
    %v8770 = vunpack.c.l.b16 %v8149
    %v8771 = vunpack.c.h.b16 %v8149
    %v8772 = vunpack.c.l.b16 %v8150
    %v8773 = vunpack.c.h.b16 %v8150
    %v8774 = vunpack.c.l.b16 %v8151
    %v8775 = vunpack.c.h.b16 %v8151
    %v8776 = vunpack.c.l.b16 %v8152
    %v8777 = vunpack.c.h.b16 %v8152
    %v8778 = vunpack.c.l.b16 %v8153
    %v8779 = vunpack.c.h.b16 %v8153
    %v8780 = vunpack.c.l.b16 %v8154
    %v8781 = vunpack.c.h.b16 %v8154
    %v8782 = vunpack.c.l.b16 %v8155
    %v8783 = vunpack.c.h.b16 %v8155
    %v8784 = vunpack.c.l.b16 %v8156
    %v8785 = vunpack.c.h.b16 %v8156
    %v8786 = vunpack.c.l.b16 %v8157
    %v8787 = vunpack.c.h.b16 %v8157
    %v8788 = vunpack.c.l.b16 %v8158
    %v8789 = vunpack.c.h.b16 %v8158
    %v8790 = vunpack.c.l.b16 %v8159
    %v8791 = vunpack.c.h.b16 %v8159
    %v8792 = vunpack.c.l.b16 %v8160
    %v8793 = vunpack.c.h.b16 %v8160
    %v8794 = vunpack.c.l.b16 %v8161
    %v8795 = vunpack.c.h.b16 %v8161
    %v8796 = vunpack.c.l.b16 %v8162
    %v8797 = vunpack.c.h.b16 %v8162
    %v8798 = vunpack.c.l.b16 %v8163
    %v8799 = vunpack.c.h.b16 %v8163
    %v8800 = vunpack.c.l.b16 %v8164
    %v8801 = vunpack.c.h.b16 %v8164
    %v8802 = vunpack.c.l.b16 %v8165
    %v8803 = vunpack.c.h.b16 %v8165
    %v8804 = vunpack.c.l.b16 %v8166
    %v8805 = vunpack.c.h.b16 %v8166
    %v8806 = vunpack.c.l.b16 %v8167
    %v8807 = vunpack.c.h.b16 %v8167
    %v8808 = vunpack.c.l.b16 %v8168
    %v8809 = vunpack.c.h.b16 %v8168
    %v8810 = vunpack.c.l.b16 %v8169
    %v8811 = vunpack.c.h.b16 %v8169
    %v8812 = vunpack.c.l.b16 %v8170
    %v8813 = vunpack.c.h.b16 %v8170
    %v8814 = vunpack.c.l.b16 %v8171
    %v8815 = vunpack.c.h.b16 %v8171
    %v8816 = vunpack.c.l.b16 %v8172
    %v8817 = vunpack.c.h.b16 %v8172
    %v8818 = vunpack.c.l.b16 %v8173
    %v8819 = vunpack.c.h.b16 %v8173
    %v8820 = vunpack.c.l.b16 %v8174
    %v8821 = vunpack.c.h.b16 %v8174
    %v8822 = vunpack.c.l.b16 %v8175
    %v8823 = vunpack.c.h.b16 %v8175
    %v8824 = vunpack.c.l.b16 %v8176
    %v8825 = vunpack.c.h.b16 %v8176
    %v8826 = vunpack.c.l.b16 %v8177
    %v8827 = vunpack.c.h.b16 %v8177
    %v8828 = vunpack.c.l.b16 %v8178
    %v8829 = vunpack.c.h.b16 %v8178
    %v8830 = vunpack.c.l.b16 %v8179
    %v8831 = vunpack.c.h.b16 %v8179
    %v8832 = vunpack.c.l.b16 %v8180
    %v8833 = vunpack.c.h.b16 %v8180
    %v8834 = vunpack.c.l.b16 %v8181
    %v8835 = vunpack.c.h.b16 %v8181
    %v8836 = vunpack.c.l.b16 %v8182
    %v8837 = vunpack.c.h.b16 %v8182
    %v8838 = vunpack.c.l.b16 %v8183
    %v8839 = vunpack.c.h.b16 %v8183
    %v8840 = vunpack.c.l.b16 %v8184
    %v8841 = vunpack.c.h.b16 %v8184
    %v8842 = vunpack.c.l.b16 %v8185
    %v8843 = vunpack.c.h.b16 %v8185
    %v8844 = vunpack.c.l.b16 %v8186
    %v8845 = vunpack.c.h.b16 %v8186
    %v8846 = vunpack.c.l.b16 %v8187
    %v8847 = vunpack.c.h.b16 %v8187
    %v8848 = vunpack.c.l.b16 %v8188
    %v8849 = vunpack.c.h.b16 %v8188
    %v8850 = vunpack.c.l.b16 %v8189
    %v8851 = vunpack.c.h.b16 %v8189
    %v8852 = vunpack.c.l.b16 %v8190
    %v8853 = vunpack.c.h.b16 %v8190
    %v8854 = vunpack.c.l.b16 %v8191
    %v8855 = vunpack.c.h.b16 %v8191
    %v8856 = vunpack.c.l.b16 %v8192
    %v8857 = vunpack.c.h.b16 %v8192
    %v8858 = vunpack.c.l.b16 %v8193
    %v8859 = vunpack.c.h.b16 %v8193
    %v8860 = vunpack.c.l.b16 %v8194
    %v8861 = vunpack.c.h.b16 %v8194
    %v8862 = vunpack.c.l.b16 %v8195
    %v8863 = vunpack.c.h.b16 %v8195
    %v8864 = vunpack.c.l.b16 %v8196
    %v8865 = vunpack.c.h.b16 %v8196
    %v8866 = vunpack.c.l.b16 %v8197
    %v8867 = vunpack.c.h.b16 %v8197
    %v8868 = vunpack.c.l.b16 %v8198
    %v8869 = vunpack.c.h.b16 %v8198
    %v8870 = vunpack.c.l.b16 %v8199
    %v8871 = vunpack.c.h.b16 %v8199
    %v8872 = vunpack.c.l.b16 %v8200
    %v8873 = vunpack.c.h.b16 %v8200
    %v8874 = vunpack.c.l.b16 %v8201
    %v8875 = vunpack.c.h.b16 %v8201
    %v8876 = vunpack.c.l.b16 %v8202
    %v8877 = vunpack.c.h.b16 %v8202
    %v8878 = vunpack.c.l.b16 %v8203
    %v8879 = vunpack.c.h.b16 %v8203
    %v8880 = vunpack.c.l.b16 %v8204
    %v8881 = vunpack.c.h.b16 %v8204
    %v8882 = vunpack.c.l.b16 %v8205
    %v8883 = vunpack.c.h.b16 %v8205
    %v8884 = vunpack.c.l.b16 %v8206
    %v8885 = vunpack.c.h.b16 %v8206
    %v8886 = vunpack.c.l.b16 %v8207
    %v8887 = vunpack.c.h.b16 %v8207
    %v8888 = vunpack.c.l.b16 %v8208
    %v8889 = vunpack.c.h.b16 %v8208
    %v8890 = vunpack.c.l.b16 %v8209
    %v8891 = vunpack.c.h.b16 %v8209
    %v8892 = vunpack.c.l.b16 %v8210
    %v8893 = vunpack.c.h.b16 %v8210
    %v8894 = vunpack.c.l.b16 %v8211
    %v8895 = vunpack.c.h.b16 %v8211
    %v8896 = vunpack.c.l.b16 %v8212
    %v8897 = vunpack.c.h.b16 %v8212
    %v8898 = vunpack.c.l.b16 %v8213
    %v8899 = vunpack.c.h.b16 %v8213
    %v8900 = vunpack.c.l.b16 %v8214
    %v8901 = vunpack.c.h.b16 %v8214
    %v8902 = vunpack.c.l.b16 %v8215
    %v8903 = vunpack.c.h.b16 %v8215
    %v8904 = vunpack.c.l.b16 %v8216
    %v8905 = vunpack.c.h.b16 %v8216
    %v8906 = vunpack.c.l.b16 %v8217
    %v8907 = vunpack.c.h.b16 %v8217
    %v8908 = vunpack.c.l.b16 %v8218
    %v8909 = vunpack.c.h.b16 %v8218
    %v8910 = vunpack.c.l.b16 %v8219
    %v8911 = vunpack.c.h.b16 %v8219
    %v8912 = vunpack.c.l.b16 %v8220
    %v8913 = vunpack.c.h.b16 %v8220
    %v8914 = vunpack.c.l.b16 %v8221
    %v8915 = vunpack.c.h.b16 %v8221
    %v8916 = vunpack.c.l.b16 %v8222
    %v8917 = vunpack.c.h.b16 %v8222
    %v8918 = vunpack.c.l.b16 %v8223
    %v8919 = vunpack.c.h.b16 %v8223
    %v8920 = vunpack.c.l.b16 %v8224
    %v8921 = vunpack.c.h.b16 %v8224
    %v8922 = vunpack.c.l.b16 %v8225
    %v8923 = vunpack.c.h.b16 %v8225
    %v8924 = vunpack.c.l.b16 %v8226
    %v8925 = vunpack.c.h.b16 %v8226
    %v8926 = vunpack.c.l.b16 %v8227
    %v8927 = vunpack.c.h.b16 %v8227
    %v8928 = vunpack.c.l.b16 %v8228
    %v8929 = vunpack.c.h.b16 %v8228
    %v8930 = vunpack.c.l.b16 %v8229
    %v8931 = vunpack.c.h.b16 %v8229
    %v8932 = vunpack.c.l.b16 %v8230
    %v8933 = vunpack.c.h.b16 %v8230
    %v8934 = vunpack.c.l.b16 %v8231
    %v8935 = vunpack.c.h.b16 %v8231
    %v8936 = vunpack.c.l.b16 %v8232
    %v8937 = vunpack.c.h.b16 %v8232
    %v8938 = vunpack.c.l.b16 %v8233
    %v8939 = vunpack.c.h.b16 %v8233
    %v8940 = vunpack.c.l.b16 %v8234
    %v8941 = vunpack.c.h.b16 %v8234
    %v8942 = vunpack.c.l.b16 %v8235
    %v8943 = vunpack.c.h.b16 %v8235
    %v8944 = vunpack.c.l.b16 %v8236
    %v8945 = vunpack.c.h.b16 %v8236
    %v8946 = vunpack.c.l.b16 %v8237
    %v8947 = vunpack.c.h.b16 %v8237
    %v8948 = vunpack.c.l.b16 %v8238
    %v8949 = vunpack.c.h.b16 %v8238
    %v8950 = vunpack.c.l.b16 %v8239
    %v8951 = vunpack.c.h.b16 %v8239
    %v8952 = vunpack.c.l.b16 %v8240
    %v8953 = vunpack.c.h.b16 %v8240
    %v8954 = vunpack.c.l.b16 %v8241
    %v8955 = vunpack.c.h.b16 %v8241
    %v8956 = vunpack.c.l.b16 %v8242
    %v8957 = vunpack.c.h.b16 %v8242
    %v8958 = vunpack.c.l.b16 %v8243
    %v8959 = vunpack.c.h.b16 %v8243
    %v8960 = vunpack.c.l.b16 %v8244
    %v8961 = vunpack.c.h.b16 %v8244
    %v8962 = vunpack.c.l.b16 %v8245
    %v8963 = vunpack.c.h.b16 %v8245
    %v8964 = vunpack.c.l.b16 %v8246
    %v8965 = vunpack.c.h.b16 %v8246
    %v8966 = vunpack.c.l.b16 %v8247
    %v8967 = vunpack.c.h.b16 %v8247
    %v8968 = vunpack.c.l.b16 %v8248
    %v8969 = vunpack.c.h.b16 %v8248
    %v8970 = vunpack.c.l.b16 %v8249
    %v8971 = vunpack.c.h.b16 %v8249
    %v8972 = vunpack.c.l.b16 %v8250
    %v8973 = vunpack.c.h.b16 %v8250
    %v8974 = vunpack.c.l.b16 %v8251
    %v8975 = vunpack.c.h.b16 %v8251
    %v8976 = vunpack.c.l.b16 %v8252
    %v8977 = vunpack.c.h.b16 %v8252
    %v8978 = vunpack.c.l.b16 %v8253
    %v8979 = vunpack.c.h.b16 %v8253
    %v8980 = vunpack.c.l.b16 %v8254
    %v8981 = vunpack.c.h.b16 %v8254
    %v8982 = vunpack.c.l.b16 %v8255
    %v8983 = vunpack.c.h.b16 %v8255
    %v8984 = vunpack.c.l.b16 %v8256
    %v8985 = vunpack.c.h.b16 %v8256
    %v8986 = vunpack.c.l.b16 %v8257
    %v8987 = vunpack.c.h.b16 %v8257
    %v8988 = vunpack.c.l.b16 %v8258
    %v8989 = vunpack.c.h.b16 %v8258
    %v8990 = vunpack.c.l.b16 %v8259
    %v8991 = vunpack.c.h.b16 %v8259
    %v8992 = vunpack.c.l.b16 %v8260
    %v8993 = vunpack.c.h.b16 %v8260
    %v8994 = vunpack.c.l.b16 %v8261
    %v8995 = vunpack.c.h.b16 %v8261
    %v8996 = vunpack.c.l.b16 %v8262
    %v8997 = vunpack.c.h.b16 %v8262
    %v8998 = vunpack.c.l.b16 %v8263
    %v8999 = vunpack.c.h.b16 %v8263
    %v9000 = vunpack.c.l.b16 %v8264
    %v9001 = vunpack.c.h.b16 %v8264
    %v9002 = vunpack.c.l.b16 %v8265
    %v9003 = vunpack.c.h.b16 %v8265
    %v9004 = vunpack.c.l.b16 %v8266
    %v9005 = vunpack.c.h.b16 %v8266
    %v9006 = vunpack.c.l.b16 %v8267
    %v9007 = vunpack.c.h.b16 %v8267
    %v9008 = vunpack.c.l.b16 %v8268
    %v9009 = vunpack.c.h.b16 %v8268
    %v9010 = vunpack.c.l.b16 %v8269
    %v9011 = vunpack.c.h.b16 %v8269
    %v9012 = vunpack.c.l.b16 %v8270
    %v9013 = vunpack.c.h.b16 %v8270
    %v9014 = vunpack.c.l.b16 %v8271
    %v9015 = vunpack.c.h.b16 %v8271
    %v9016 = vunpack.c.l.b16 %v8272
    %v9017 = vunpack.c.h.b16 %v8272
    %v9018 = vunpack.c.l.b16 %v8273
    %v9019 = vunpack.c.h.b16 %v8273
    %v9020 = vunpack.c.l.b16 %v8274
    %v9021 = vunpack.c.h.b16 %v8274
    %v9022 = vunpack.c.l.b16 %v8275
    %v9023 = vunpack.c.h.b16 %v8275
    %v9024 = vunpack.c.l.b16 %v8276
    %v9025 = vunpack.c.h.b16 %v8276
    %v9026 = vunpack.c.l.b16 %v8277
    %v9027 = vunpack.c.h.b16 %v8277
    %v9028 = vunpack.c.l.b16 %v8278
    %v9029 = vunpack.c.h.b16 %v8278
    %v9030 = vunpack.c.l.b16 %v8279
    %v9031 = vunpack.c.h.b16 %v8279
    %v9032 = vunpack.c.l.b16 %v8280
    %v9033 = vunpack.c.h.b16 %v8280
    %v9034 = vunpack.c.l.b16 %v8281
    %v9035 = vunpack.c.h.b16 %v8281
    %v9036 = vunpack.c.l.b16 %v8282
    %v9037 = vunpack.c.h.b16 %v8282
    %v9038 = vunpack.c.l.b16 %v8283
    %v9039 = vunpack.c.h.b16 %v8283
    %v9040 = vunpack.c.l.b16 %v8284
    %v9041 = vunpack.c.h.b16 %v8284
    %v9042 = vunpack.c.l.b16 %v8285
    %v9043 = vunpack.c.h.b16 %v8285
    %v9044 = vunpack.c.l.b16 %v8286
    %v9045 = vunpack.c.h.b16 %v8286
    %v9046 = vunpack.c.l.b16 %v8287
    %v9047 = vunpack.c.h.b16 %v8287
    %v9048 = vunpack.c.l.b16 %v8288
    %v9049 = vunpack.c.h.b16 %v8288
    %v9050 = vunpack.c.l.b16 %v8289
    %v9051 = vunpack.c.h.b16 %v8289
    %v9052 = vunpack.c.l.b16 %v8290
    %v9053 = vunpack.c.h.b16 %v8290
    %v9054 = vunpack.c.l.b16 %v8291
    %v9055 = vunpack.c.h.b16 %v8291
    %v9056 = vunpack.c.l.b16 %v8292
    %v9057 = vunpack.c.h.b16 %v8292
    %v9058 = vunpack.c.l.b16 %v8293
    %v9059 = vunpack.c.h.b16 %v8293
    %v9060 = vunpack.c.l.b16 %v8294
    %v9061 = vunpack.c.h.b16 %v8294
    %v9062 = vunpack.c.l.b16 %v8295
    %v9063 = vunpack.c.h.b16 %v8295
    %v9064 = vunpack.c.l.b16 %v8296
    %v9065 = vunpack.c.h.b16 %v8296
    %v9066 = vunpack.c.l.b16 %v8297
    %v9067 = vunpack.c.h.b16 %v8297
    %v9068 = vunpack.c.l.b16 %v8298
    %v9069 = vunpack.c.h.b16 %v8298
    %v9070 = vunpack.c.l.b16 %v8299
    %v9071 = vunpack.c.h.b16 %v8299
    %v9072 = vunpack.c.l.b16 %v8300
    %v9073 = vunpack.c.h.b16 %v8300
    %v9074 = vunpack.c.l.b16 %v8301
    %v9075 = vunpack.c.h.b16 %v8301
    %v9076 = vunpack.c.l.b16 %v8302
    %v9077 = vunpack.c.h.b16 %v8302
    %v9078 = vunpack.c.l.b16 %v8303
    %v9079 = vunpack.c.h.b16 %v8303
    %v9080 = vunpack.c.l.b16 %v8304
    %v9081 = vunpack.c.h.b16 %v8304
    %v9082 = vunpack.c.l.b16 %v8305
    %v9083 = vunpack.c.h.b16 %v8305
    %v9084 = vunpack.c.l.b16 %v8306
    %v9085 = vunpack.c.h.b16 %v8306
    %v9086 = vunpack.c.l.b16 %v8307
    %v9087 = vunpack.c.h.b16 %v8307
    %v9088 = vunpack.c.l.b16 %v8308
    %v9089 = vunpack.c.h.b16 %v8308
    %v9090 = vunpack.c.l.b16 %v8309
    %v9091 = vunpack.c.h.b16 %v8309
    %v9092 = vunpack.c.l.b16 %v8310
    %v9093 = vunpack.c.h.b16 %v8310
    %v9094 = vunpack.c.l.b16 %v8311
    %v9095 = vunpack.c.h.b16 %v8311
    %v9096 = vunpack.c.l.b16 %v8312
    %v9097 = vunpack.c.h.b16 %v8312
    %v9098 = vunpack.c.l.b16 %v8313
    %v9099 = vunpack.c.h.b16 %v8313
    %v9100 = vpack.c.b16 %v8596, %v8588
    %v9101 = vpack.c.b16 %v8597, %v8589
    %v9102 = vpack.c.b16 %v8598, %v8590
    %v9103 = vpack.c.b16 %v8599, %v8591
    %v9104 = vpack.c.b16 %v8600, %v8592
    %v9105 = vpack.c.b16 %v8601, %v8593
    %v9106 = vpack.c.b16 %v8602, %v8594
    %v9107 = vpack.c.b16 %v8603, %v8595
    %v9108 = vpack.c.b16 %v8612, %v8604
    %v9109 = vpack.c.b16 %v8613, %v8605
    %v9110 = vpack.c.b16 %v8614, %v8606
    %v9111 = vpack.c.b16 %v8615, %v8607
    %v9112 = vpack.c.b16 %v8616, %v8608
    %v9113 = vpack.c.b16 %v8617, %v8609
    %v9114 = vpack.c.b16 %v8618, %v8610
    %v9115 = vpack.c.b16 %v8619, %v8611
    %v9116 = vpack.c.b16 %v8628, %v8620
    %v9117 = vpack.c.b16 %v8629, %v8621
    %v9118 = vpack.c.b16 %v8630, %v8622
    %v9119 = vpack.c.b16 %v8631, %v8623
    %v9120 = vpack.c.b16 %v8632, %v8624
    %v9121 = vpack.c.b16 %v8633, %v8625
    %v9122 = vpack.c.b16 %v8634, %v8626
    %v9123 = vpack.c.b16 %v8635, %v8627
    %v9124 = vpack.c.b16 %v8644, %v8636
    %v9125 = vpack.c.b16 %v8645, %v8637
    %v9126 = vpack.c.b16 %v8646, %v8638
    %v9127 = vpack.c.b16 %v8647, %v8639
    %v9128 = vpack.c.b16 %v8648, %v8640
    %v9129 = vpack.c.b16 %v8649, %v8641
    %v9130 = vpack.c.b16 %v8650, %v8642
    %v9131 = vpack.c.b16 %v8651, %v8643
    %v9132 = vpack.c.b16 %v8660, %v8652
    %v9133 = vpack.c.b16 %v8661, %v8653
    %v9134 = vpack.c.b16 %v8662, %v8654
    %v9135 = vpack.c.b16 %v8663, %v8655
    %v9136 = vpack.c.b16 %v8664, %v8656
    %v9137 = vpack.c.b16 %v8665, %v8657
    %v9138 = vpack.c.b16 %v8666, %v8658
    %v9139 = vpack.c.b16 %v8667, %v8659
    %v9140 = vpack.c.b16 %v8676, %v8668
    %v9141 = vpack.c.b16 %v8677, %v8669
    %v9142 = vpack.c.b16 %v8678, %v8670
    %v9143 = vpack.c.b16 %v8679, %v8671
    %v9144 = vpack.c.b16 %v8680, %v8672
    %v9145 = vpack.c.b16 %v8681, %v8673
    %v9146 = vpack.c.b16 %v8682, %v8674
    %v9147 = vpack.c.b16 %v8683, %v8675
    %v9148 = vpack.c.b16 %v8692, %v8684
    %v9149 = vpack.c.b16 %v8693, %v8685
    %v9150 = vpack.c.b16 %v8694, %v8686
    %v9151 = vpack.c.b16 %v8695, %v8687
    %v9152 = vpack.c.b16 %v8696, %v8688
    %v9153 = vpack.c.b16 %v8697, %v8689
    %v9154 = vpack.c.b16 %v8698, %v8690
    %v9155 = vpack.c.b16 %v8699, %v8691
    %v9156 = vpack.c.b16 %v8708, %v8700
    %v9157 = vpack.c.b16 %v8709, %v8701
    %v9158 = vpack.c.b16 %v8710, %v8702
    %v9159 = vpack.c.b16 %v8711, %v8703
    %v9160 = vpack.c.b16 %v8712, %v8704
    %v9161 = vpack.c.b16 %v8713, %v8705
    %v9162 = vpack.c.b16 %v8714, %v8706
    %v9163 = vpack.c.b16 %v8715, %v8707
    %v9164 = vpack.c.b16 %v8724, %v8716
    %v9165 = vpack.c.b16 %v8725, %v8717
    %v9166 = vpack.c.b16 %v8726, %v8718
    %v9167 = vpack.c.b16 %v8727, %v8719
    %v9168 = vpack.c.b16 %v8728, %v8720
    %v9169 = vpack.c.b16 %v8729, %v8721
    %v9170 = vpack.c.b16 %v8730, %v8722
    %v9171 = vpack.c.b16 %v8731, %v8723
    %v9172 = vpack.c.b16 %v8740, %v8732
    %v9173 = vpack.c.b16 %v8741, %v8733
    %v9174 = vpack.c.b16 %v8742, %v8734
    %v9175 = vpack.c.b16 %v8743, %v8735
    %v9176 = vpack.c.b16 %v8744, %v8736
    %v9177 = vpack.c.b16 %v8745, %v8737
    %v9178 = vpack.c.b16 %v8746, %v8738
    %v9179 = vpack.c.b16 %v8747, %v8739
    %v9180 = vpack.c.b16 %v8756, %v8748
    %v9181 = vpack.c.b16 %v8757, %v8749
    %v9182 = vpack.c.b16 %v8758, %v8750
    %v9183 = vpack.c.b16 %v8759, %v8751
    %v9184 = vpack.c.b16 %v8760, %v8752
    %v9185 = vpack.c.b16 %v8761, %v8753
    %v9186 = vpack.c.b16 %v8762, %v8754
    %v9187 = vpack.c.b16 %v8763, %v8755
    %v9188 = vpack.c.b16 %v8772, %v8764
    %v9189 = vpack.c.b16 %v8773, %v8765
    %v9190 = vpack.c.b16 %v8774, %v8766
    %v9191 = vpack.c.b16 %v8775, %v8767
    %v9192 = vpack.c.b16 %v8776, %v8768
    %v9193 = vpack.c.b16 %v8777, %v8769
    %v9194 = vpack.c.b16 %v8778, %v8770
    %v9195 = vpack.c.b16 %v8779, %v8771
    %v9196 = vpack.c.b16 %v8788, %v8780
    %v9197 = vpack.c.b16 %v8789, %v8781
    %v9198 = vpack.c.b16 %v8790, %v8782
    %v9199 = vpack.c.b16 %v8791, %v8783
    %v9200 = vpack.c.b16 %v8792, %v8784
    %v9201 = vpack.c.b16 %v8793, %v8785
    %v9202 = vpack.c.b16 %v8794, %v8786
    %v9203 = vpack.c.b16 %v8795, %v8787
    %v9204 = vpack.c.b16 %v8804, %v8796
    %v9205 = vpack.c.b16 %v8805, %v8797
    %v9206 = vpack.c.b16 %v8806, %v8798
    %v9207 = vpack.c.b16 %v8807, %v8799
    %v9208 = vpack.c.b16 %v8808, %v8800
    %v9209 = vpack.c.b16 %v8809, %v8801
    %v9210 = vpack.c.b16 %v8810, %v8802
    %v9211 = vpack.c.b16 %v8811, %v8803
    %v9212 = vpack.c.b16 %v8820, %v8812
    %v9213 = vpack.c.b16 %v8821, %v8813
    %v9214 = vpack.c.b16 %v8822, %v8814
    %v9215 = vpack.c.b16 %v8823, %v8815
    %v9216 = vpack.c.b16 %v8824, %v8816
    %v9217 = vpack.c.b16 %v8825, %v8817
    %v9218 = vpack.c.b16 %v8826, %v8818
    %v9219 = vpack.c.b16 %v8827, %v8819
    %v9220 = vpack.c.b16 %v8836, %v8828
    %v9221 = vpack.c.b16 %v8837, %v8829
    %v9222 = vpack.c.b16 %v8838, %v8830
    %v9223 = vpack.c.b16 %v8839, %v8831
    %v9224 = vpack.c.b16 %v8840, %v8832
    %v9225 = vpack.c.b16 %v8841, %v8833
    %v9226 = vpack.c.b16 %v8842, %v8834
    %v9227 = vpack.c.b16 %v8843, %v8835
    %v9228 = vpack.c.b16 %v8852, %v8844
    %v9229 = vpack.c.b16 %v8853, %v8845
    %v9230 = vpack.c.b16 %v8854, %v8846
    %v9231 = vpack.c.b16 %v8855, %v8847
    %v9232 = vpack.c.b16 %v8856, %v8848
    %v9233 = vpack.c.b16 %v8857, %v8849
    %v9234 = vpack.c.b16 %v8858, %v8850
    %v9235 = vpack.c.b16 %v8859, %v8851
    %v9236 = vpack.c.b16 %v8868, %v8860
    %v9237 = vpack.c.b16 %v8869, %v8861
    %v9238 = vpack.c.b16 %v8870, %v8862
    %v9239 = vpack.c.b16 %v8871, %v8863
    %v9240 = vpack.c.b16 %v8872, %v8864
    %v9241 = vpack.c.b16 %v8873, %v8865
    %v9242 = vpack.c.b16 %v8874, %v8866
    %v9243 = vpack.c.b16 %v8875, %v8867
    %v9244 = vpack.c.b16 %v8884, %v8876
    %v9245 = vpack.c.b16 %v8885, %v8877
    %v9246 = vpack.c.b16 %v8886, %v8878
    %v9247 = vpack.c.b16 %v8887, %v8879
    %v9248 = vpack.c.b16 %v8888, %v8880
    %v9249 = vpack.c.b16 %v8889, %v8881
    %v9250 = vpack.c.b16 %v8890, %v8882
    %v9251 = vpack.c.b16 %v8891, %v8883
    %v9252 = vpack.c.b16 %v8900, %v8892
    %v9253 = vpack.c.b16 %v8901, %v8893
    %v9254 = vpack.c.b16 %v8902, %v8894
    %v9255 = vpack.c.b16 %v8903, %v8895
    %v9256 = vpack.c.b16 %v8904, %v8896
    %v9257 = vpack.c.b16 %v8905, %v8897
    %v9258 = vpack.c.b16 %v8906, %v8898
    %v9259 = vpack.c.b16 %v8907, %v8899
    %v9260 = vpack.c.b16 %v8916, %v8908
    %v9261 = vpack.c.b16 %v8917, %v8909
    %v9262 = vpack.c.b16 %v8918, %v8910
    %v9263 = vpack.c.b16 %v8919, %v8911
    %v9264 = vpack.c.b16 %v8920, %v8912
    %v9265 = vpack.c.b16 %v8921, %v8913
    %v9266 = vpack.c.b16 %v8922, %v8914
    %v9267 = vpack.c.b16 %v8923, %v8915
    %v9268 = vpack.c.b16 %v8932, %v8924
    %v9269 = vpack.c.b16 %v8933, %v8925
    %v9270 = vpack.c.b16 %v8934, %v8926
    %v9271 = vpack.c.b16 %v8935, %v8927
    %v9272 = vpack.c.b16 %v8936, %v8928
    %v9273 = vpack.c.b16 %v8937, %v8929
    %v9274 = vpack.c.b16 %v8938, %v8930
    %v9275 = vpack.c.b16 %v8939, %v8931
    %v9276 = vpack.c.b16 %v8948, %v8940
    %v9277 = vpack.c.b16 %v8949, %v8941
    %v9278 = vpack.c.b16 %v8950, %v8942
    %v9279 = vpack.c.b16 %v8951, %v8943
    %v9280 = vpack.c.b16 %v8952, %v8944
    %v9281 = vpack.c.b16 %v8953, %v8945
    %v9282 = vpack.c.b16 %v8954, %v8946
    %v9283 = vpack.c.b16 %v8955, %v8947
    %v9284 = vpack.c.b16 %v8964, %v8956
    %v9285 = vpack.c.b16 %v8965, %v8957
    %v9286 = vpack.c.b16 %v8966, %v8958
    %v9287 = vpack.c.b16 %v8967, %v8959
    %v9288 = vpack.c.b16 %v8968, %v8960
    %v9289 = vpack.c.b16 %v8969, %v8961
    %v9290 = vpack.c.b16 %v8970, %v8962
    %v9291 = vpack.c.b16 %v8971, %v8963
    %v9292 = vpack.c.b16 %v8980, %v8972
    %v9293 = vpack.c.b16 %v8981, %v8973
    %v9294 = vpack.c.b16 %v8982, %v8974
    %v9295 = vpack.c.b16 %v8983, %v8975
    %v9296 = vpack.c.b16 %v8984, %v8976
    %v9297 = vpack.c.b16 %v8985, %v8977
    %v9298 = vpack.c.b16 %v8986, %v8978
    %v9299 = vpack.c.b16 %v8987, %v8979
    %v9300 = vpack.c.b16 %v8996, %v8988
    %v9301 = vpack.c.b16 %v8997, %v8989
    %v9302 = vpack.c.b16 %v8998, %v8990
    %v9303 = vpack.c.b16 %v8999, %v8991
    %v9304 = vpack.c.b16 %v9000, %v8992
    %v9305 = vpack.c.b16 %v9001, %v8993
    %v9306 = vpack.c.b16 %v9002, %v8994
    %v9307 = vpack.c.b16 %v9003, %v8995
    %v9308 = vpack.c.b16 %v9012, %v9004
    %v9309 = vpack.c.b16 %v9013, %v9005
    %v9310 = vpack.c.b16 %v9014, %v9006
    %v9311 = vpack.c.b16 %v9015, %v9007
    %v9312 = vpack.c.b16 %v9016, %v9008
    %v9313 = vpack.c.b16 %v9017, %v9009
    %v9314 = vpack.c.b16 %v9018, %v9010
    %v9315 = vpack.c.b16 %v9019, %v9011
    %v9316 = vpack.c.b16 %v9028, %v9020
    %v9317 = vpack.c.b16 %v9029, %v9021
    %v9318 = vpack.c.b16 %v9030, %v9022
    %v9319 = vpack.c.b16 %v9031, %v9023
    %v9320 = vpack.c.b16 %v9032, %v9024
    %v9321 = vpack.c.b16 %v9033, %v9025
    %v9322 = vpack.c.b16 %v9034, %v9026
    %v9323 = vpack.c.b16 %v9035, %v9027
    %v9324 = vpack.c.b16 %v9044, %v9036
    %v9325 = vpack.c.b16 %v9045, %v9037
    %v9326 = vpack.c.b16 %v9046, %v9038
    %v9327 = vpack.c.b16 %v9047, %v9039
    %v9328 = vpack.c.b16 %v9048, %v9040
    %v9329 = vpack.c.b16 %v9049, %v9041
    %v9330 = vpack.c.b16 %v9050, %v9042
    %v9331 = vpack.c.b16 %v9051, %v9043
    %v9332 = vpack.c.b16 %v9060, %v9052
    %v9333 = vpack.c.b16 %v9061, %v9053
    %v9334 = vpack.c.b16 %v9062, %v9054
    %v9335 = vpack.c.b16 %v9063, %v9055
    %v9336 = vpack.c.b16 %v9064, %v9056
    %v9337 = vpack.c.b16 %v9065, %v9057
    %v9338 = vpack.c.b16 %v9066, %v9058
    %v9339 = vpack.c.b16 %v9067, %v9059
    %v9340 = vpack.c.b16 %v9076, %v9068
    %v9341 = vpack.c.b16 %v9077, %v9069
    %v9342 = vpack.c.b16 %v9078, %v9070
    %v9343 = vpack.c.b16 %v9079, %v9071
    %v9344 = vpack.c.b16 %v9080, %v9072
    %v9345 = vpack.c.b16 %v9081, %v9073
    %v9346 = vpack.c.b16 %v9082, %v9074
    %v9347 = vpack.c.b16 %v9083, %v9075
    %v9348 = vpack.c.b16 %v9092, %v9084
    %v9349 = vpack.c.b16 %v9093, %v9085
    %v9350 = vpack.c.b16 %v9094, %v9086
    %v9351 = vpack.c.b16 %v9095, %v9087
    %v9352 = vpack.c.b16 %v9096, %v9088
    %v9353 = vpack.c.b16 %v9097, %v9089
    %v9354 = vpack.c.b16 %v9098, %v9090
    %v9355 = vpack.c.b16 %v9099, %v9091
    %9612 = vmatpush.bf16.msra.mxu0 %v9156
    %9613 = vmatpush.bf16.msra.mxu0 %v9148
    %9614 = vmatpush.bf16.msra.mxu0 %v9140
    %9615 = vmatpush.bf16.msra.mxu0 %v9132
    %9616 = vmatpush.bf16.msra.mxu0 %v9124
    %9617 = vmatpush.bf16.msra.mxu0 %v9116
    %9618 = vmatpush.bf16.msra.mxu0 %v9108
    %9619 = vmatpush.bf16.msra.mxu0 %v9100
    %9620 = vmatmul.bf16.gmra.mxu0 %v8050
    %v9621 = vpop.f32.mrf.mxu0
    %v9622 = vadd.f32 %v8316, %v9621
    %v9623 = vpop.f32.mrf.mxu0
    %v9624 = vadd.f32 %v8316, %v9623
    %9625 = vmatmul.bf16.gmra.mxu0 %v8054
    %v9626 = vpop.f32.mrf.mxu0
    %v9627 = vadd.f32 %v8316, %v9626
    %v9628 = vpop.f32.mrf.mxu0
    %v9629 = vadd.f32 %v8316, %v9628
    %9630 = vdwg.mxu0
    %9631 = vmatpush.bf16.msra.mxu0 %v9220
    %9632 = vmatpush.bf16.msra.mxu0 %v9212
    %9633 = vmatpush.bf16.msra.mxu0 %v9204
    %9634 = vmatpush.bf16.msra.mxu0 %v9196
    %9635 = vmatpush.bf16.msra.mxu0 %v9188
    %9636 = vmatpush.bf16.msra.mxu0 %v9180
    %9637 = vmatpush.bf16.msra.mxu0 %v9172
    %9638 = vmatpush.bf16.msra.mxu0 %v9164
    %9639 = vmatmul.bf16.gmra.mxu0 %v8051
    %v9640 = vpop.f32.mrf.mxu0
    %v9641 = vadd.f32 %v9622, %v9640
    %v9642 = vpop.f32.mrf.mxu0
    %v9643 = vadd.f32 %v9624, %v9642
    %9644 = vmatmul.bf16.gmra.mxu0 %v8055
    %v9645 = vpop.f32.mrf.mxu0
    %v9646 = vadd.f32 %v9627, %v9645
    %v9647 = vpop.f32.mrf.mxu0
    %v9648 = vadd.f32 %v9629, %v9647
    %9649 = vdwg.mxu0
    %9650 = vmatpush.bf16.msra.mxu0 %v9284
    %9651 = vmatpush.bf16.msra.mxu0 %v9276
    %9652 = vmatpush.bf16.msra.mxu0 %v9268
    %9653 = vmatpush.bf16.msra.mxu0 %v9260
    %9654 = vmatpush.bf16.msra.mxu0 %v9252
    %9655 = vmatpush.bf16.msra.mxu0 %v9244
    %9656 = vmatpush.bf16.msra.mxu0 %v9236
    %9657 = vmatpush.bf16.msra.mxu0 %v9228
    %9658 = vmatmul.bf16.gmra.mxu0 %v8052
    %v9659 = vpop.f32.mrf.mxu0
    %v9660 = vadd.f32 %v9641, %v9659
    %v9661 = vpop.f32.mrf.mxu0
    %v9662 = vadd.f32 %v9643, %v9661
    %9663 = vmatmul.bf16.gmra.mxu0 %v8056
    %v9664 = vpop.f32.mrf.mxu0
    %v9665 = vadd.f32 %v9646, %v9664
    %v9666 = vpop.f32.mrf.mxu0
    %v9667 = vadd.f32 %v9648, %v9666
    %9668 = vdwg.mxu0
    %9669 = vmatpush.bf16.msra.mxu0 %v9348
    %9670 = vmatpush.bf16.msra.mxu0 %v9340
    %9671 = vmatpush.bf16.msra.mxu0 %v9332
    %9672 = vmatpush.bf16.msra.mxu0 %v9324
    %9673 = vmatpush.bf16.msra.mxu0 %v9316
    %9674 = vmatpush.bf16.msra.mxu0 %v9308
    %9675 = vmatpush.bf16.msra.mxu0 %v9300
    %9676 = vmatpush.bf16.msra.mxu0 %v9292
    %9677 = vmatmul.bf16.gmra.mxu0 %v8053
    %v9678 = vpop.f32.mrf.mxu0
    %v9679 = vadd.f32 %v9660, %v9678
    %v9680 = vpop.f32.mrf.mxu0
    %v9681 = vadd.f32 %v9662, %v9680
    %9682 = vmatmul.bf16.gmra.mxu0 %v8057
    %v9683 = vpop.f32.mrf.mxu0
    %v9684 = vadd.f32 %v9665, %v9683
    %v9685 = vpop.f32.mrf.mxu0
    %v9686 = vadd.f32 %v9667, %v9685
    %9687 = vdwg.mxu0
    %9688 = vmatpush.bf16.msra.mxu0 %v9157
    %9689 = vmatpush.bf16.msra.mxu0 %v9149
    %9690 = vmatpush.bf16.msra.mxu0 %v9141
    %9691 = vmatpush.bf16.msra.mxu0 %v9133
    %9692 = vmatpush.bf16.msra.mxu0 %v9125
    %9693 = vmatpush.bf16.msra.mxu0 %v9117
    %9694 = vmatpush.bf16.msra.mxu0 %v9109
    %9695 = vmatpush.bf16.msra.mxu0 %v9101
    %9696 = vmatmul.bf16.gmra.mxu0 %v8050
    %v9697 = vpop.f32.mrf.mxu0
    %v9698 = vadd.f32 %v8317, %v9697
    %v9699 = vpop.f32.mrf.mxu0
    %v9700 = vadd.f32 %v8317, %v9699
    %9701 = vmatmul.bf16.gmra.mxu0 %v8054
    %v9702 = vpop.f32.mrf.mxu0
    %v9703 = vadd.f32 %v8317, %v9702
    %v9704 = vpop.f32.mrf.mxu0
    %v9705 = vadd.f32 %v8317, %v9704
    %9706 = vdwg.mxu0
    %9707 = vmatpush.bf16.msra.mxu0 %v9221
    %9708 = vmatpush.bf16.msra.mxu0 %v9213
    %9709 = vmatpush.bf16.msra.mxu0 %v9205
    %9710 = vmatpush.bf16.msra.mxu0 %v9197
    %9711 = vmatpush.bf16.msra.mxu0 %v9189
    %9712 = vmatpush.bf16.msra.mxu0 %v9181
    %9713 = vmatpush.bf16.msra.mxu0 %v9173
    %9714 = vmatpush.bf16.msra.mxu0 %v9165
    %9715 = vmatmul.bf16.gmra.mxu0 %v8051
    %v9716 = vpop.f32.mrf.mxu0
    %v9717 = vadd.f32 %v9698, %v9716
    %v9718 = vpop.f32.mrf.mxu0
    %v9719 = vadd.f32 %v9700, %v9718
    %9720 = vmatmul.bf16.gmra.mxu0 %v8055
    %v9721 = vpop.f32.mrf.mxu0
    %v9722 = vadd.f32 %v9703, %v9721
    %v9723 = vpop.f32.mrf.mxu0
    %v9724 = vadd.f32 %v9705, %v9723
    %9725 = vdwg.mxu0
    %9726 = vmatpush.bf16.msra.mxu0 %v9285
    %9727 = vmatpush.bf16.msra.mxu0 %v9277
    %9728 = vmatpush.bf16.msra.mxu0 %v9269
    %9729 = vmatpush.bf16.msra.mxu0 %v9261
    %9730 = vmatpush.bf16.msra.mxu0 %v9253
    %9731 = vmatpush.bf16.msra.mxu0 %v9245
    %9732 = vmatpush.bf16.msra.mxu0 %v9237
    %9733 = vmatpush.bf16.msra.mxu0 %v9229
    %9734 = vmatmul.bf16.gmra.mxu0 %v8052
    %v9735 = vpop.f32.mrf.mxu0
    %v9736 = vadd.f32 %v9717, %v9735
    %v9737 = vpop.f32.mrf.mxu0
    %v9738 = vadd.f32 %v9719, %v9737
    %9739 = vmatmul.bf16.gmra.mxu0 %v8056
    %v9740 = vpop.f32.mrf.mxu0
    %v9741 = vadd.f32 %v9722, %v9740
    %v9742 = vpop.f32.mrf.mxu0
    %v9743 = vadd.f32 %v9724, %v9742
    %9744 = vdwg.mxu0
    %9745 = vmatpush.bf16.msra.mxu0 %v9349
    %9746 = vmatpush.bf16.msra.mxu0 %v9341
    %9747 = vmatpush.bf16.msra.mxu0 %v9333
    %9748 = vmatpush.bf16.msra.mxu0 %v9325
    %9749 = vmatpush.bf16.msra.mxu0 %v9317
    %9750 = vmatpush.bf16.msra.mxu0 %v9309
    %9751 = vmatpush.bf16.msra.mxu0 %v9301
    %9752 = vmatpush.bf16.msra.mxu0 %v9293
    %9753 = vmatmul.bf16.gmra.mxu0 %v8053
    %v9754 = vpop.f32.mrf.mxu0
    %v9755 = vadd.f32 %v9736, %v9754
    %v9756 = vpop.f32.mrf.mxu0
    %v9757 = vadd.f32 %v9738, %v9756
    %9758 = vmatmul.bf16.gmra.mxu0 %v8057
    %v9759 = vpop.f32.mrf.mxu0
    %v9760 = vadd.f32 %v9741, %v9759
    %v9761 = vpop.f32.mrf.mxu0
    %v9762 = vadd.f32 %v9743, %v9761
    %9763 = vdwg.mxu0
    %9764 = vmatpush.bf16.msra.mxu0 %v9158
    %9765 = vmatpush.bf16.msra.mxu0 %v9150
    %9766 = vmatpush.bf16.msra.mxu0 %v9142
    %9767 = vmatpush.bf16.msra.mxu0 %v9134
    %9768 = vmatpush.bf16.msra.mxu0 %v9126
    %9769 = vmatpush.bf16.msra.mxu0 %v9118
    %9770 = vmatpush.bf16.msra.mxu0 %v9110
    %9771 = vmatpush.bf16.msra.mxu0 %v9102
    %9772 = vmatmul.bf16.gmra.mxu0 %v8050
    %v9773 = vpop.f32.mrf.mxu0
    %v9774 = vadd.f32 %v8318, %v9773
    %v9775 = vpop.f32.mrf.mxu0
    %v9776 = vadd.f32 %v8318, %v9775
    %9777 = vmatmul.bf16.gmra.mxu0 %v8054
    %v9778 = vpop.f32.mrf.mxu0
    %v9779 = vadd.f32 %v8318, %v9778
    %v9780 = vpop.f32.mrf.mxu0
    %v9781 = vadd.f32 %v8318, %v9780
    %9782 = vdwg.mxu0
    %9783 = vmatpush.bf16.msra.mxu0 %v9222
    %9784 = vmatpush.bf16.msra.mxu0 %v9214
    %9785 = vmatpush.bf16.msra.mxu0 %v9206
    %9786 = vmatpush.bf16.msra.mxu0 %v9198
    %9787 = vmatpush.bf16.msra.mxu0 %v9190
    %9788 = vmatpush.bf16.msra.mxu0 %v9182
    %9789 = vmatpush.bf16.msra.mxu0 %v9174
    %9790 = vmatpush.bf16.msra.mxu0 %v9166
    %9791 = vmatmul.bf16.gmra.mxu0 %v8051
    %v9792 = vpop.f32.mrf.mxu0
    %v9793 = vadd.f32 %v9774, %v9792
    %v9794 = vpop.f32.mrf.mxu0
    %v9795 = vadd.f32 %v9776, %v9794
    %9796 = vmatmul.bf16.gmra.mxu0 %v8055
    %v9797 = vpop.f32.mrf.mxu0
    %v9798 = vadd.f32 %v9779, %v9797
    %v9799 = vpop.f32.mrf.mxu0
    %v9800 = vadd.f32 %v9781, %v9799
    %9801 = vdwg.mxu0
    %9802 = vmatpush.bf16.msra.mxu0 %v9286
    %9803 = vmatpush.bf16.msra.mxu0 %v9278
    %9804 = vmatpush.bf16.msra.mxu0 %v9270
    %9805 = vmatpush.bf16.msra.mxu0 %v9262
    %9806 = vmatpush.bf16.msra.mxu0 %v9254
    %9807 = vmatpush.bf16.msra.mxu0 %v9246
    %9808 = vmatpush.bf16.msra.mxu0 %v9238
    %9809 = vmatpush.bf16.msra.mxu0 %v9230
    %9810 = vmatmul.bf16.gmra.mxu0 %v8052
    %v9811 = vpop.f32.mrf.mxu0
    %v9812 = vadd.f32 %v9793, %v9811
    %v9813 = vpop.f32.mrf.mxu0
    %v9814 = vadd.f32 %v9795, %v9813
    %9815 = vmatmul.bf16.gmra.mxu0 %v8056
    %v9816 = vpop.f32.mrf.mxu0
    %v9817 = vadd.f32 %v9798, %v9816
    %v9818 = vpop.f32.mrf.mxu0
    %v9819 = vadd.f32 %v9800, %v9818
    %9820 = vdwg.mxu0
    %9821 = vmatpush.bf16.msra.mxu0 %v9350
    %9822 = vmatpush.bf16.msra.mxu0 %v9342
    %9823 = vmatpush.bf16.msra.mxu0 %v9334
    %9824 = vmatpush.bf16.msra.mxu0 %v9326
    %9825 = vmatpush.bf16.msra.mxu0 %v9318
    %9826 = vmatpush.bf16.msra.mxu0 %v9310
    %9827 = vmatpush.bf16.msra.mxu0 %v9302
    %9828 = vmatpush.bf16.msra.mxu0 %v9294
    %9829 = vmatmul.bf16.gmra.mxu0 %v8053
    %v9830 = vpop.f32.mrf.mxu0
    %v9831 = vadd.f32 %v9812, %v9830
    %v9832 = vpop.f32.mrf.mxu0
    %v9833 = vadd.f32 %v9814, %v9832
    %9834 = vmatmul.bf16.gmra.mxu0 %v8057
    %v9835 = vpop.f32.mrf.mxu0
    %v9836 = vadd.f32 %v9817, %v9835
    %v9837 = vpop.f32.mrf.mxu0
    %v9838 = vadd.f32 %v9819, %v9837
    %9839 = vdwg.mxu0
    %9840 = vmatpush.bf16.msra.mxu0 %v9159
    %9841 = vmatpush.bf16.msra.mxu0 %v9151
    %9842 = vmatpush.bf16.msra.mxu0 %v9143
    %9843 = vmatpush.bf16.msra.mxu0 %v9135
    %9844 = vmatpush.bf16.msra.mxu0 %v9127
    %9845 = vmatpush.bf16.msra.mxu0 %v9119
    %9846 = vmatpush.bf16.msra.mxu0 %v9111
    %9847 = vmatpush.bf16.msra.mxu0 %v9103
    %9848 = vmatmul.bf16.gmra.mxu0 %v8050
    %v9849 = vpop.f32.mrf.mxu0
    %v9850 = vadd.f32 %v8319, %v9849
    %v9851 = vpop.f32.mrf.mxu0
    %v9852 = vadd.f32 %v8319, %v9851
    %9853 = vmatmul.bf16.gmra.mxu0 %v8054
    %v9854 = vpop.f32.mrf.mxu0
    %v9855 = vadd.f32 %v8319, %v9854
    %v9856 = vpop.f32.mrf.mxu0
    %v9857 = vadd.f32 %v8319, %v9856
    %9858 = vdwg.mxu0
    %9859 = vmatpush.bf16.msra.mxu0 %v9223
    %9860 = vmatpush.bf16.msra.mxu0 %v9215
    %9861 = vmatpush.bf16.msra.mxu0 %v9207
    %9862 = vmatpush.bf16.msra.mxu0 %v9199
    %9863 = vmatpush.bf16.msra.mxu0 %v9191
    %9864 = vmatpush.bf16.msra.mxu0 %v9183
    %9865 = vmatpush.bf16.msra.mxu0 %v9175
    %9866 = vmatpush.bf16.msra.mxu0 %v9167
    %9867 = vmatmul.bf16.gmra.mxu0 %v8051
    %v9868 = vpop.f32.mrf.mxu0
    %v9869 = vadd.f32 %v9850, %v9868
    %v9870 = vpop.f32.mrf.mxu0
    %v9871 = vadd.f32 %v9852, %v9870
    %9872 = vmatmul.bf16.gmra.mxu0 %v8055
    %v9873 = vpop.f32.mrf.mxu0
    %v9874 = vadd.f32 %v9855, %v9873
    %v9875 = vpop.f32.mrf.mxu0
    %v9876 = vadd.f32 %v9857, %v9875
    %9877 = vdwg.mxu0
    %9878 = vmatpush.bf16.msra.mxu0 %v9287
    %9879 = vmatpush.bf16.msra.mxu0 %v9279
    %9880 = vmatpush.bf16.msra.mxu0 %v9271
    %9881 = vmatpush.bf16.msra.mxu0 %v9263
    %9882 = vmatpush.bf16.msra.mxu0 %v9255
    %9883 = vmatpush.bf16.msra.mxu0 %v9247
    %9884 = vmatpush.bf16.msra.mxu0 %v9239
    %9885 = vmatpush.bf16.msra.mxu0 %v9231
    %9886 = vmatmul.bf16.gmra.mxu0 %v8052
    %v9887 = vpop.f32.mrf.mxu0
    %v9888 = vadd.f32 %v9869, %v9887
    %v9889 = vpop.f32.mrf.mxu0
    %v9890 = vadd.f32 %v9871, %v9889
    %9891 = vmatmul.bf16.gmra.mxu0 %v8056
    %v9892 = vpop.f32.mrf.mxu0
    %v9893 = vadd.f32 %v9874, %v9892
    %v9894 = vpop.f32.mrf.mxu0
    %v9895 = vadd.f32 %v9876, %v9894
    %9896 = vdwg.mxu0
    %9897 = vmatpush.bf16.msra.mxu0 %v9351
    %9898 = vmatpush.bf16.msra.mxu0 %v9343
    %9899 = vmatpush.bf16.msra.mxu0 %v9335
    %9900 = vmatpush.bf16.msra.mxu0 %v9327
    %9901 = vmatpush.bf16.msra.mxu0 %v9319
    %9902 = vmatpush.bf16.msra.mxu0 %v9311
    %9903 = vmatpush.bf16.msra.mxu0 %v9303
    %9904 = vmatpush.bf16.msra.mxu0 %v9295
    %9905 = vmatmul.bf16.gmra.mxu0 %v8053
    %v9906 = vpop.f32.mrf.mxu0
    %v9907 = vadd.f32 %v9888, %v9906
    %v9908 = vpop.f32.mrf.mxu0
    %v9909 = vadd.f32 %v9890, %v9908
    %9910 = vmatmul.bf16.gmra.mxu0 %v8057
    %v9911 = vpop.f32.mrf.mxu0
    %v9912 = vadd.f32 %v9893, %v9911
    %v9913 = vpop.f32.mrf.mxu0
    %v9914 = vadd.f32 %v9895, %v9913
    %9915 = vdwg.mxu0
    %9916 = vmatpush.bf16.msra.mxu0 %v9160
    %9917 = vmatpush.bf16.msra.mxu0 %v9152
    %9918 = vmatpush.bf16.msra.mxu0 %v9144
    %9919 = vmatpush.bf16.msra.mxu0 %v9136
    %9920 = vmatpush.bf16.msra.mxu0 %v9128
    %9921 = vmatpush.bf16.msra.mxu0 %v9120
    %9922 = vmatpush.bf16.msra.mxu0 %v9112
    %9923 = vmatpush.bf16.msra.mxu0 %v9104
    %9924 = vmatmul.bf16.gmra.mxu0 %v8050
    %v9925 = vpop.f32.mrf.mxu0
    %v9926 = vadd.f32 %v8320, %v9925
    %v9927 = vpop.f32.mrf.mxu0
    %v9928 = vadd.f32 %v8320, %v9927
    %9929 = vmatmul.bf16.gmra.mxu0 %v8054
    %v9930 = vpop.f32.mrf.mxu0
    %v9931 = vadd.f32 %v8320, %v9930
    %v9932 = vpop.f32.mrf.mxu0
    %v9933 = vadd.f32 %v8320, %v9932
    %9934 = vdwg.mxu0
    %9935 = vmatpush.bf16.msra.mxu0 %v9224
    %9936 = vmatpush.bf16.msra.mxu0 %v9216
    %9937 = vmatpush.bf16.msra.mxu0 %v9208
    %9938 = vmatpush.bf16.msra.mxu0 %v9200
    %9939 = vmatpush.bf16.msra.mxu0 %v9192
    %9940 = vmatpush.bf16.msra.mxu0 %v9184
    %9941 = vmatpush.bf16.msra.mxu0 %v9176
    %9942 = vmatpush.bf16.msra.mxu0 %v9168
    %9943 = vmatmul.bf16.gmra.mxu0 %v8051
    %v9944 = vpop.f32.mrf.mxu0
    %v9945 = vadd.f32 %v9926, %v9944
    %v9946 = vpop.f32.mrf.mxu0
    %v9947 = vadd.f32 %v9928, %v9946
    %9948 = vmatmul.bf16.gmra.mxu0 %v8055
    %v9949 = vpop.f32.mrf.mxu0
    %v9950 = vadd.f32 %v9931, %v9949
    %v9951 = vpop.f32.mrf.mxu0
    %v9952 = vadd.f32 %v9933, %v9951
    %9953 = vdwg.mxu0
    %9954 = vmatpush.bf16.msra.mxu0 %v9288
    %9955 = vmatpush.bf16.msra.mxu0 %v9280
    %9956 = vmatpush.bf16.msra.mxu0 %v9272
    %9957 = vmatpush.bf16.msra.mxu0 %v9264
    %9958 = vmatpush.bf16.msra.mxu0 %v9256
    %9959 = vmatpush.bf16.msra.mxu0 %v9248
    %9960 = vmatpush.bf16.msra.mxu0 %v9240
    %9961 = vmatpush.bf16.msra.mxu0 %v9232
    %9962 = vmatmul.bf16.gmra.mxu0 %v8052
    %v9963 = vpop.f32.mrf.mxu0
    %v9964 = vadd.f32 %v9945, %v9963
    %v9965 = vpop.f32.mrf.mxu0
    %v9966 = vadd.f32 %v9947, %v9965
    %9967 = vmatmul.bf16.gmra.mxu0 %v8056
    %v9968 = vpop.f32.mrf.mxu0
    %v9969 = vadd.f32 %v9950, %v9968
    %v9970 = vpop.f32.mrf.mxu0
    %v9971 = vadd.f32 %v9952, %v9970
    %9972 = vdwg.mxu0
    %9973 = vmatpush.bf16.msra.mxu0 %v9352
    %9974 = vmatpush.bf16.msra.mxu0 %v9344
    %9975 = vmatpush.bf16.msra.mxu0 %v9336
    %9976 = vmatpush.bf16.msra.mxu0 %v9328
    %9977 = vmatpush.bf16.msra.mxu0 %v9320
    %9978 = vmatpush.bf16.msra.mxu0 %v9312
    %9979 = vmatpush.bf16.msra.mxu0 %v9304
    %9980 = vmatpush.bf16.msra.mxu0 %v9296
    %9981 = vmatmul.bf16.gmra.mxu0 %v8053
    %v9982 = vpop.f32.mrf.mxu0
    %v9983 = vadd.f32 %v9964, %v9982
    %v9984 = vpop.f32.mrf.mxu0
    %v9985 = vadd.f32 %v9966, %v9984
    %9986 = vmatmul.bf16.gmra.mxu0 %v8057
    %v9987 = vpop.f32.mrf.mxu0
    %v9988 = vadd.f32 %v9969, %v9987
    %v9989 = vpop.f32.mrf.mxu0
    %v9990 = vadd.f32 %v9971, %v9989
    %9991 = vdwg.mxu0
    %9992 = vmatpush.bf16.msra.mxu0 %v9161
    %9993 = vmatpush.bf16.msra.mxu0 %v9153
    %9994 = vmatpush.bf16.msra.mxu0 %v9145
    %9995 = vmatpush.bf16.msra.mxu0 %v9137
    %9996 = vmatpush.bf16.msra.mxu0 %v9129
    %9997 = vmatpush.bf16.msra.mxu0 %v9121
    %9998 = vmatpush.bf16.msra.mxu0 %v9113
    %9999 = vmatpush.bf16.msra.mxu0 %v9105
    %10000 = vmatmul.bf16.gmra.mxu0 %v8050
    %v10001 = vpop.f32.mrf.mxu0
    %v10002 = vadd.f32 %v8321, %v10001
    %v10003 = vpop.f32.mrf.mxu0
    %v10004 = vadd.f32 %v8321, %v10003
    %10005 = vmatmul.bf16.gmra.mxu0 %v8054
    %v10006 = vpop.f32.mrf.mxu0
    %v10007 = vadd.f32 %v8321, %v10006
    %v10008 = vpop.f32.mrf.mxu0
    %v10009 = vadd.f32 %v8321, %v10008
    %10010 = vdwg.mxu0
    %10011 = vmatpush.bf16.msra.mxu0 %v9225
    %10012 = vmatpush.bf16.msra.mxu0 %v9217
    %10013 = vmatpush.bf16.msra.mxu0 %v9209
    %10014 = vmatpush.bf16.msra.mxu0 %v9201
    %10015 = vmatpush.bf16.msra.mxu0 %v9193
    %10016 = vmatpush.bf16.msra.mxu0 %v9185
    %10017 = vmatpush.bf16.msra.mxu0 %v9177
    %10018 = vmatpush.bf16.msra.mxu0 %v9169
    %10019 = vmatmul.bf16.gmra.mxu0 %v8051
    %v10020 = vpop.f32.mrf.mxu0
    %v10021 = vadd.f32 %v10002, %v10020
    %v10022 = vpop.f32.mrf.mxu0
    %v10023 = vadd.f32 %v10004, %v10022
    %10024 = vmatmul.bf16.gmra.mxu0 %v8055
    %v10025 = vpop.f32.mrf.mxu0
    %v10026 = vadd.f32 %v10007, %v10025
    %v10027 = vpop.f32.mrf.mxu0
    %v10028 = vadd.f32 %v10009, %v10027
    %10029 = vdwg.mxu0
    %10030 = vmatpush.bf16.msra.mxu0 %v9289
    %10031 = vmatpush.bf16.msra.mxu0 %v9281
    %10032 = vmatpush.bf16.msra.mxu0 %v9273
    %10033 = vmatpush.bf16.msra.mxu0 %v9265
    %10034 = vmatpush.bf16.msra.mxu0 %v9257
    %10035 = vmatpush.bf16.msra.mxu0 %v9249
    %10036 = vmatpush.bf16.msra.mxu0 %v9241
    %10037 = vmatpush.bf16.msra.mxu0 %v9233
    %10038 = vmatmul.bf16.gmra.mxu0 %v8052
    %v10039 = vpop.f32.mrf.mxu0
    %v10040 = vadd.f32 %v10021, %v10039
    %v10041 = vpop.f32.mrf.mxu0
    %v10042 = vadd.f32 %v10023, %v10041
    %10043 = vmatmul.bf16.gmra.mxu0 %v8056
    %v10044 = vpop.f32.mrf.mxu0
    %v10045 = vadd.f32 %v10026, %v10044
    %v10046 = vpop.f32.mrf.mxu0
    %v10047 = vadd.f32 %v10028, %v10046
    %10048 = vdwg.mxu0
    %10049 = vmatpush.bf16.msra.mxu0 %v9353
    %10050 = vmatpush.bf16.msra.mxu0 %v9345
    %10051 = vmatpush.bf16.msra.mxu0 %v9337
    %10052 = vmatpush.bf16.msra.mxu0 %v9329
    %10053 = vmatpush.bf16.msra.mxu0 %v9321
    %10054 = vmatpush.bf16.msra.mxu0 %v9313
    %10055 = vmatpush.bf16.msra.mxu0 %v9305
    %10056 = vmatpush.bf16.msra.mxu0 %v9297
    %10057 = vmatmul.bf16.gmra.mxu0 %v8053
    %v10058 = vpop.f32.mrf.mxu0
    %v10059 = vadd.f32 %v10040, %v10058
    %v10060 = vpop.f32.mrf.mxu0
    %v10061 = vadd.f32 %v10042, %v10060
    %10062 = vmatmul.bf16.gmra.mxu0 %v8057
    %v10063 = vpop.f32.mrf.mxu0
    %v10064 = vadd.f32 %v10045, %v10063
    %v10065 = vpop.f32.mrf.mxu0
    %v10066 = vadd.f32 %v10047, %v10065
    %10067 = vdwg.mxu0
    %10068 = vmatpush.bf16.msra.mxu0 %v9162
    %10069 = vmatpush.bf16.msra.mxu0 %v9154
    %10070 = vmatpush.bf16.msra.mxu0 %v9146
    %10071 = vmatpush.bf16.msra.mxu0 %v9138
    %10072 = vmatpush.bf16.msra.mxu0 %v9130
    %10073 = vmatpush.bf16.msra.mxu0 %v9122
    %10074 = vmatpush.bf16.msra.mxu0 %v9114
    %10075 = vmatpush.bf16.msra.mxu0 %v9106
    %10076 = vmatmul.bf16.gmra.mxu0 %v8050
    %v10077 = vpop.f32.mrf.mxu0
    %v10078 = vadd.f32 %v8322, %v10077
    %v10079 = vpop.f32.mrf.mxu0
    %v10080 = vadd.f32 %v8322, %v10079
    %10081 = vmatmul.bf16.gmra.mxu0 %v8054
    %v10082 = vpop.f32.mrf.mxu0
    %v10083 = vadd.f32 %v8322, %v10082
    %v10084 = vpop.f32.mrf.mxu0
    %v10085 = vadd.f32 %v8322, %v10084
    %10086 = vdwg.mxu0
    %10087 = vmatpush.bf16.msra.mxu0 %v9226
    %10088 = vmatpush.bf16.msra.mxu0 %v9218
    %10089 = vmatpush.bf16.msra.mxu0 %v9210
    %10090 = vmatpush.bf16.msra.mxu0 %v9202
    %10091 = vmatpush.bf16.msra.mxu0 %v9194
    %10092 = vmatpush.bf16.msra.mxu0 %v9186
    %10093 = vmatpush.bf16.msra.mxu0 %v9178
    %10094 = vmatpush.bf16.msra.mxu0 %v9170
    %10095 = vmatmul.bf16.gmra.mxu0 %v8051
    %v10096 = vpop.f32.mrf.mxu0
    %v10097 = vadd.f32 %v10078, %v10096
    %v10098 = vpop.f32.mrf.mxu0
    %v10099 = vadd.f32 %v10080, %v10098
    %10100 = vmatmul.bf16.gmra.mxu0 %v8055
    %v10101 = vpop.f32.mrf.mxu0
    %v10102 = vadd.f32 %v10083, %v10101
    %v10103 = vpop.f32.mrf.mxu0
    %v10104 = vadd.f32 %v10085, %v10103
    %10105 = vdwg.mxu0
    %10106 = vmatpush.bf16.msra.mxu0 %v9290
    %10107 = vmatpush.bf16.msra.mxu0 %v9282
    %10108 = vmatpush.bf16.msra.mxu0 %v9274
    %10109 = vmatpush.bf16.msra.mxu0 %v9266
    %10110 = vmatpush.bf16.msra.mxu0 %v9258
    %10111 = vmatpush.bf16.msra.mxu0 %v9250
    %10112 = vmatpush.bf16.msra.mxu0 %v9242
    %10113 = vmatpush.bf16.msra.mxu0 %v9234
    %10114 = vmatmul.bf16.gmra.mxu0 %v8052
    %v10115 = vpop.f32.mrf.mxu0
    %v10116 = vadd.f32 %v10097, %v10115
    %v10117 = vpop.f32.mrf.mxu0
    %v10118 = vadd.f32 %v10099, %v10117
    %10119 = vmatmul.bf16.gmra.mxu0 %v8056
    %v10120 = vpop.f32.mrf.mxu0
    %v10121 = vadd.f32 %v10102, %v10120
    %v10122 = vpop.f32.mrf.mxu0
    %v10123 = vadd.f32 %v10104, %v10122
    %10124 = vdwg.mxu0
    %10125 = vmatpush.bf16.msra.mxu0 %v9354
    %10126 = vmatpush.bf16.msra.mxu0 %v9346
    %10127 = vmatpush.bf16.msra.mxu0 %v9338
    %10128 = vmatpush.bf16.msra.mxu0 %v9330
    %10129 = vmatpush.bf16.msra.mxu0 %v9322
    %10130 = vmatpush.bf16.msra.mxu0 %v9314
    %10131 = vmatpush.bf16.msra.mxu0 %v9306
    %10132 = vmatpush.bf16.msra.mxu0 %v9298
    %10133 = vmatmul.bf16.gmra.mxu0 %v8053
    %v10134 = vpop.f32.mrf.mxu0
    %v10135 = vadd.f32 %v10116, %v10134
    %v10136 = vpop.f32.mrf.mxu0
    %v10137 = vadd.f32 %v10118, %v10136
    %10138 = vmatmul.bf16.gmra.mxu0 %v8057
    %v10139 = vpop.f32.mrf.mxu0
    %v10140 = vadd.f32 %v10121, %v10139
    %v10141 = vpop.f32.mrf.mxu0
    %v10142 = vadd.f32 %v10123, %v10141
    %10143 = vdwg.mxu0
    %10144 = vmatpush.bf16.msra.mxu0 %v9163
    %10145 = vmatpush.bf16.msra.mxu0 %v9155
    %10146 = vmatpush.bf16.msra.mxu0 %v9147
    %10147 = vmatpush.bf16.msra.mxu0 %v9139
    %10148 = vmatpush.bf16.msra.mxu0 %v9131
    %10149 = vmatpush.bf16.msra.mxu0 %v9123
    %10150 = vmatpush.bf16.msra.mxu0 %v9115
    %10151 = vmatpush.bf16.msra.mxu0 %v9107
    %10152 = vmatmul.bf16.gmra.mxu0 %v8050
    %v10153 = vpop.f32.mrf.mxu0
    %v10154 = vadd.f32 %v8323, %v10153
    %v10155 = vpop.f32.mrf.mxu0
    %v10156 = vadd.f32 %v8323, %v10155
    %10157 = vmatmul.bf16.gmra.mxu0 %v8054
    %v10158 = vpop.f32.mrf.mxu0
    %v10159 = vadd.f32 %v8323, %v10158
    %v10160 = vpop.f32.mrf.mxu0
    %v10161 = vadd.f32 %v8323, %v10160
    %10162 = vdwg.mxu0
    %10163 = vmatpush.bf16.msra.mxu0 %v9227
    %10164 = vmatpush.bf16.msra.mxu0 %v9219
    %10165 = vmatpush.bf16.msra.mxu0 %v9211
    %10166 = vmatpush.bf16.msra.mxu0 %v9203
    %10167 = vmatpush.bf16.msra.mxu0 %v9195
    %10168 = vmatpush.bf16.msra.mxu0 %v9187
    %10169 = vmatpush.bf16.msra.mxu0 %v9179
    %10170 = vmatpush.bf16.msra.mxu0 %v9171
    %10171 = vmatmul.bf16.gmra.mxu0 %v8051
    %v10172 = vpop.f32.mrf.mxu0
    %v10173 = vadd.f32 %v10154, %v10172
    %v10174 = vpop.f32.mrf.mxu0
    %v10175 = vadd.f32 %v10156, %v10174
    %10176 = vmatmul.bf16.gmra.mxu0 %v8055
    %v10177 = vpop.f32.mrf.mxu0
    %v10178 = vadd.f32 %v10159, %v10177
    %v10179 = vpop.f32.mrf.mxu0
    %v10180 = vadd.f32 %v10161, %v10179
    %10181 = vdwg.mxu0
    %10182 = vmatpush.bf16.msra.mxu0 %v9291
    %10183 = vmatpush.bf16.msra.mxu0 %v9283
    %10184 = vmatpush.bf16.msra.mxu0 %v9275
    %10185 = vmatpush.bf16.msra.mxu0 %v9267
    %10186 = vmatpush.bf16.msra.mxu0 %v9259
    %10187 = vmatpush.bf16.msra.mxu0 %v9251
    %10188 = vmatpush.bf16.msra.mxu0 %v9243
    %10189 = vmatpush.bf16.msra.mxu0 %v9235
    %10190 = vmatmul.bf16.gmra.mxu0 %v8052
    %v10191 = vpop.f32.mrf.mxu0
    %v10192 = vadd.f32 %v10173, %v10191
    %v10193 = vpop.f32.mrf.mxu0
    %v10194 = vadd.f32 %v10175, %v10193
    %10195 = vmatmul.bf16.gmra.mxu0 %v8056
    %v10196 = vpop.f32.mrf.mxu0
    %v10197 = vadd.f32 %v10178, %v10196
    %v10198 = vpop.f32.mrf.mxu0
    %v10199 = vadd.f32 %v10180, %v10198
    %10200 = vdwg.mxu0
    %10201 = vmatpush.bf16.msra.mxu0 %v9355
    %10202 = vmatpush.bf16.msra.mxu0 %v9347
    %10203 = vmatpush.bf16.msra.mxu0 %v9339
    %10204 = vmatpush.bf16.msra.mxu0 %v9331
    %10205 = vmatpush.bf16.msra.mxu0 %v9323
    %10206 = vmatpush.bf16.msra.mxu0 %v9315
    %10207 = vmatpush.bf16.msra.mxu0 %v9307
    %10208 = vmatpush.bf16.msra.mxu0 %v9299
    %10209 = vmatmul.bf16.gmra.mxu0 %v8053
    %v10210 = vpop.f32.mrf.mxu0
    %v10211 = vadd.f32 %v10192, %v10210
    %v10212 = vpop.f32.mrf.mxu0
    %v10213 = vadd.f32 %v10194, %v10212
    %10214 = vmatmul.bf16.gmra.mxu0 %v8057
    %v10215 = vpop.f32.mrf.mxu0
    %v10216 = vadd.f32 %v10197, %v10215
    %v10217 = vpop.f32.mrf.mxu0
    %v10218 = vadd.f32 %v10199, %v10217
    %10219 = vdwg.mxu0
    %v10220 = vtanh.pop %v9679
    %v10221 = vtanh.pop %v9755
    %v10222 = vtanh.pop %v9831
    %v10223 = vtanh.pop %v9907
    %v10224 = vtanh.pop %v9983
    %v10225 = vtanh.pop %v10059
    %v10226 = vtanh.pop %v10135
    %v10227 = vtanh.pop %v10211
    %v10228 = vtanh.pop %v9681
    %v10229 = vtanh.pop %v9757
    %v10230 = vtanh.pop %v9833
    %v10231 = vtanh.pop %v9909
    %v10232 = vtanh.pop %v9985
    %v10233 = vtanh.pop %v10061
    %v10234 = vtanh.pop %v10137
    %v10235 = vtanh.pop %v10213
    %v10236 = vtanh.pop %v9684
    %v10237 = vtanh.pop %v9760
    %v10238 = vtanh.pop %v9836
    %v10239 = vtanh.pop %v9912
    %v10240 = vtanh.pop %v9988
    %v10241 = vtanh.pop %v10064
    %v10242 = vtanh.pop %v10140
    %v10243 = vtanh.pop %v10216
    %v10244 = vtanh.pop %v9686
    %v10245 = vtanh.pop %v9762
    %v10246 = vtanh.pop %v9838
    %v10247 = vtanh.pop %v9914
    %v10248 = vtanh.pop %v9990
    %v10249 = vtanh.pop %v10066
    %v10250 = vtanh.pop %v10142
    %v10251 = vtanh.pop %v10218
    %10252 = vst [vmem:[#allocation7] sm:$0xff] %v10220
    %10253 = vst [vmem:[#allocation7 + $0x8] sm:$0xff] %v10221
    %10254 = vst [vmem:[#allocation7 + $0x10] sm:$0xff] %v10228
    %10255 = vst [vmem:[#allocation7 + $0x18] sm:$0xff] %v10229
    %10256 = vst [vmem:[#allocation7 + $0x20] sm:$0xff] %v10236
    %10257 = vst [vmem:[#allocation7 + $0x28] sm:$0xff] %v10237
    %10258 = vst [vmem:[#allocation7 + $0x30] sm:$0xff] %v10244
    %10259 = vst [vmem:[#allocation7 + $0x38] sm:$0xff] %v10245
    %10260 = vst [vmem:[#allocation7 + $0x40] sm:$0xff] %v10222
    %10261 = vst [vmem:[#allocation7 + $0x48] sm:$0xff] %v10223
    %10262 = vst [vmem:[#allocation7 + $0x50] sm:$0xff] %v10230
    %10263 = vst [vmem:[#allocation7 + $0x58] sm:$0xff] %v10231
    %10264 = vst [vmem:[#allocation7 + $0x60] sm:$0xff] %v10238
    %10265 = vst [vmem:[#allocation7 + $0x68] sm:$0xff] %v10239
    %10266 = vst [vmem:[#allocation7 + $0x70] sm:$0xff] %v10246
    %10267 = vst [vmem:[#allocation7 + $0x78] sm:$0xff] %v10247
    %10268 = vst [vmem:[#allocation7 + $0x80] sm:$0xff] %v10224
    %10269 = vst [vmem:[#allocation7 + $0x88] sm:$0xff] %v10225
    %10270 = vst [vmem:[#allocation7 + $0x90] sm:$0xff] %v10232
    %10271 = vst [vmem:[#allocation7 + $0x98] sm:$0xff] %v10233
    %10272 = vst [vmem:[#allocation7 + $0xa0] sm:$0xff] %v10240
    %10273 = vst [vmem:[#allocation7 + $0xa8] sm:$0xff] %v10241
    %10274 = vst [vmem:[#allocation7 + $0xb0] sm:$0xff] %v10248
    %10275 = vst [vmem:[#allocation7 + $0xb8] sm:$0xff] %v10249
    %10276 = vst [vmem:[#allocation7 + $0xc0] sm:$0xff] %v10226
    %10277 = vst [vmem:[#allocation7 + $0xc8] sm:$0xff] %v10227
    %10278 = vst [vmem:[#allocation7 + $0xd0] sm:$0xff] %v10234
    %10279 = vst [vmem:[#allocation7 + $0xd8] sm:$0xff] %v10235
    %10280 = vst [vmem:[#allocation7 + $0xe0] sm:$0xff] %v10242
    %10281 = vst [vmem:[#allocation7 + $0xe8] sm:$0xff] %v10243
    %10282 = vst [vmem:[#allocation7 + $0xf0] sm:$0xff] %v10250
    %10283 = vst [vmem:[#allocation7 + $0xf8] sm:$0xff] %v10251
    %s10284 = smul.u32 4, 32
    %s10285 = smul.u32 %s10284, 4
    %s10286 = sshll.u32 %s10285, 4
    %10287 = dma.done %s106, %s10286
    %v10288 = vld [vmem:[#allocation7] sm:$0xff]
    %v10289 = vld [vmem:[#allocation7 + $0x8] sm:$0xff]
    %v10290 = vld [vmem:[#allocation7 + $0x10] sm:$0xff]
    %v10291 = vld [vmem:[#allocation7 + $0x18] sm:$0xff]
    %v10292 = vld [vmem:[#allocation7 + $0x20] sm:$0xff]
    %v10293 = vld [vmem:[#allocation7 + $0x28] sm:$0xff]
    %v10294 = vld [vmem:[#allocation7 + $0x30] sm:$0xff]
    %v10295 = vld [vmem:[#allocation7 + $0x38] sm:$0xff]
    %v10296 = vld [vmem:[#allocation7 + $0x40] sm:$0xff]
    %v10297 = vld [vmem:[#allocation7 + $0x48] sm:$0xff]
    %v10298 = vld [vmem:[#allocation7 + $0x50] sm:$0xff]
    %v10299 = vld [vmem:[#allocation7 + $0x58] sm:$0xff]
    %v10300 = vld [vmem:[#allocation7 + $0x60] sm:$0xff]
    %v10301 = vld [vmem:[#allocation7 + $0x68] sm:$0xff]
    %v10302 = vld [vmem:[#allocation7 + $0x70] sm:$0xff]
    %v10303 = vld [vmem:[#allocation7 + $0x78] sm:$0xff]
    %v10304 = vld [vmem:[#allocation7 + $0x80] sm:$0xff]
    %v10305 = vld [vmem:[#allocation7 + $0x88] sm:$0xff]
    %v10306 = vld [vmem:[#allocation7 + $0x90] sm:$0xff]
    %v10307 = vld [vmem:[#allocation7 + $0x98] sm:$0xff]
    %v10308 = vld [vmem:[#allocation7 + $0xa0] sm:$0xff]
    %v10309 = vld [vmem:[#allocation7 + $0xa8] sm:$0xff]
    %v10310 = vld [vmem:[#allocation7 + $0xb0] sm:$0xff]
    %v10311 = vld [vmem:[#allocation7 + $0xb8] sm:$0xff]
    %v10312 = vld [vmem:[#allocation7 + $0xc0] sm:$0xff]
    %v10313 = vld [vmem:[#allocation7 + $0xc8] sm:$0xff]
    %v10314 = vld [vmem:[#allocation7 + $0xd0] sm:$0xff]
    %v10315 = vld [vmem:[#allocation7 + $0xd8] sm:$0xff]
    %v10316 = vld [vmem:[#allocation7 + $0xe0] sm:$0xff]
    %v10317 = vld [vmem:[#allocation7 + $0xe8] sm:$0xff]
    %v10318 = vld [vmem:[#allocation7 + $0xf0] sm:$0xff]
    %v10319 = vld [vmem:[#allocation7 + $0xf8] sm:$0xff]
    %v10320 = vpack.c.bf16 %v10290, %v10288
    %v10321 = vpack.c.bf16 %v10291, %v10289
    %v10322 = vpack.c.bf16 %v10294, %v10292
    %v10323 = vpack.c.bf16 %v10295, %v10293
    %v10324 = vpack.c.bf16 %v10298, %v10296
    %v10325 = vpack.c.bf16 %v10299, %v10297
    %v10326 = vpack.c.bf16 %v10302, %v10300
    %v10327 = vpack.c.bf16 %v10303, %v10301
    %v10328 = vpack.c.bf16 %v10306, %v10304
    %v10329 = vpack.c.bf16 %v10307, %v10305
    %v10330 = vpack.c.bf16 %v10310, %v10308
    %v10331 = vpack.c.bf16 %v10311, %v10309
    %v10332 = vpack.c.bf16 %v10314, %v10312
    %v10333 = vpack.c.bf16 %v10315, %v10313
    %v10334 = vpack.c.bf16 %v10318, %v10316
    %v10335 = vpack.c.bf16 %v10319, %v10317
    %v10336 = vld [vmem:[#allocation4] sm:$0xff]
    %v10337 = vld [vmem:[#allocation4 + $0x8] sm:$0xff]
    %v10338 = vld [vmem:[#allocation4 + $0x10] sm:$0xff]
    %v10339 = vld [vmem:[#allocation4 + $0x18] sm:$0xff]
    %v10340 = vld [vmem:[#allocation4 + $0x20] sm:$0xff]
    %v10341 = vld [vmem:[#allocation4 + $0x28] sm:$0xff]
    %v10342 = vld [vmem:[#allocation4 + $0x30] sm:$0xff]
    %v10343 = vld [vmem:[#allocation4 + $0x38] sm:$0xff]
    %v10344 = vld [vmem:[#allocation4 + $0x40] sm:$0xff]
    %v10345 = vld [vmem:[#allocation4 + $0x48] sm:$0xff]
    %v10346 = vld [vmem:[#allocation4 + $0x50] sm:$0xff]
    %v10347 = vld [vmem:[#allocation4 + $0x58] sm:$0xff]
    %v10348 = vld [vmem:[#allocation4 + $0x60] sm:$0xff]
    %v10349 = vld [vmem:[#allocation4 + $0x68] sm:$0xff]
    %v10350 = vld [vmem:[#allocation4 + $0x70] sm:$0xff]
    %v10351 = vld [vmem:[#allocation4 + $0x78] sm:$0xff]
    %v10352 = vld [vmem:[#allocation4 + $0x80] sm:$0xff]
    %v10353 = vld [vmem:[#allocation4 + $0x88] sm:$0xff]
    %v10354 = vld [vmem:[#allocation4 + $0x90] sm:$0xff]
    %v10355 = vld [vmem:[#allocation4 + $0x98] sm:$0xff]
    %v10356 = vld [vmem:[#allocation4 + $0xa0] sm:$0xff]
    %v10357 = vld [vmem:[#allocation4 + $0xa8] sm:$0xff]
    %v10358 = vld [vmem:[#allocation4 + $0xb0] sm:$0xff]
    %v10359 = vld [vmem:[#allocation4 + $0xb8] sm:$0xff]
    %v10360 = vld [vmem:[#allocation4 + $0xc0] sm:$0xff]
    %v10361 = vld [vmem:[#allocation4 + $0xc8] sm:$0xff]
    %v10362 = vld [vmem:[#allocation4 + $0xd0] sm:$0xff]
    %v10363 = vld [vmem:[#allocation4 + $0xd8] sm:$0xff]
    %v10364 = vld [vmem:[#allocation4 + $0xe0] sm:$0xff]
    %v10365 = vld [vmem:[#allocation4 + $0xe8] sm:$0xff]
    %v10366 = vld [vmem:[#allocation4 + $0xf0] sm:$0xff]
    %v10367 = vld [vmem:[#allocation4 + $0xf8] sm:$0xff]
    %v10368 = vld [vmem:[#allocation4 + $0x100] sm:$0xff]
    %v10369 = vld [vmem:[#allocation4 + $0x108] sm:$0xff]
    %v10370 = vld [vmem:[#allocation4 + $0x110] sm:$0xff]
    %v10371 = vld [vmem:[#allocation4 + $0x118] sm:$0xff]
    %v10372 = vld [vmem:[#allocation4 + $0x120] sm:$0xff]
    %v10373 = vld [vmem:[#allocation4 + $0x128] sm:$0xff]
    %v10374 = vld [vmem:[#allocation4 + $0x130] sm:$0xff]
    %v10375 = vld [vmem:[#allocation4 + $0x138] sm:$0xff]
    %v10376 = vld [vmem:[#allocation4 + $0x140] sm:$0xff]
    %v10377 = vld [vmem:[#allocation4 + $0x148] sm:$0xff]
    %v10378 = vld [vmem:[#allocation4 + $0x150] sm:$0xff]
    %v10379 = vld [vmem:[#allocation4 + $0x158] sm:$0xff]
    %v10380 = vld [vmem:[#allocation4 + $0x160] sm:$0xff]
    %v10381 = vld [vmem:[#allocation4 + $0x168] sm:$0xff]
    %v10382 = vld [vmem:[#allocation4 + $0x170] sm:$0xff]
    %v10383 = vld [vmem:[#allocation4 + $0x178] sm:$0xff]
    %v10384 = vld [vmem:[#allocation4 + $0x180] sm:$0xff]
    %v10385 = vld [vmem:[#allocation4 + $0x188] sm:$0xff]
    %v10386 = vld [vmem:[#allocation4 + $0x190] sm:$0xff]
    %v10387 = vld [vmem:[#allocation4 + $0x198] sm:$0xff]
    %v10388 = vld [vmem:[#allocation4 + $0x1a0] sm:$0xff]
    %v10389 = vld [vmem:[#allocation4 + $0x1a8] sm:$0xff]
    %v10390 = vld [vmem:[#allocation4 + $0x1b0] sm:$0xff]
    %v10391 = vld [vmem:[#allocation4 + $0x1b8] sm:$0xff]
    %v10392 = vld [vmem:[#allocation4 + $0x1c0] sm:$0xff]
    %v10393 = vld [vmem:[#allocation4 + $0x1c8] sm:$0xff]
    %v10394 = vld [vmem:[#allocation4 + $0x1d0] sm:$0xff]
    %v10395 = vld [vmem:[#allocation4 + $0x1d8] sm:$0xff]
    %v10396 = vld [vmem:[#allocation4 + $0x1e0] sm:$0xff]
    %v10397 = vld [vmem:[#allocation4 + $0x1e8] sm:$0xff]
    %v10398 = vld [vmem:[#allocation4 + $0x1f0] sm:$0xff]
    %v10399 = vld [vmem:[#allocation4 + $0x1f8] sm:$0xff]
    %v10400 = vld [vmem:[#allocation14] sm:$0xf]
    %v10402 = vperm.slane %v10400, 0
    %v10403 = vperm.slane %v10400, 1
    %v10404 = vperm.slane %v10400, 2
    %v10405 = vperm.slane %v10400, 3
    %v10474 = vunpack.c.l.b16 %v10336
    %v10475 = vunpack.c.h.b16 %v10336
    %v10476 = vunpack.c.l.b16 %v10337
    %v10477 = vunpack.c.h.b16 %v10337
    %v10478 = vunpack.c.l.b16 %v10338
    %v10479 = vunpack.c.h.b16 %v10338
    %v10480 = vunpack.c.l.b16 %v10339
    %v10481 = vunpack.c.h.b16 %v10339
    %v10482 = vunpack.c.l.b16 %v10340
    %v10483 = vunpack.c.h.b16 %v10340
    %v10484 = vunpack.c.l.b16 %v10341
    %v10485 = vunpack.c.h.b16 %v10341
    %v10486 = vunpack.c.l.b16 %v10342
    %v10487 = vunpack.c.h.b16 %v10342
    %v10488 = vunpack.c.l.b16 %v10343
    %v10489 = vunpack.c.h.b16 %v10343
    %v10490 = vunpack.c.l.b16 %v10344
    %v10491 = vunpack.c.h.b16 %v10344
    %v10492 = vunpack.c.l.b16 %v10345
    %v10493 = vunpack.c.h.b16 %v10345
    %v10494 = vunpack.c.l.b16 %v10346
    %v10495 = vunpack.c.h.b16 %v10346
    %v10496 = vunpack.c.l.b16 %v10347
    %v10497 = vunpack.c.h.b16 %v10347
    %v10498 = vunpack.c.l.b16 %v10348
    %v10499 = vunpack.c.h.b16 %v10348
    %v10500 = vunpack.c.l.b16 %v10349
    %v10501 = vunpack.c.h.b16 %v10349
    %v10502 = vunpack.c.l.b16 %v10350
    %v10503 = vunpack.c.h.b16 %v10350
    %v10504 = vunpack.c.l.b16 %v10351
    %v10505 = vunpack.c.h.b16 %v10351
    %v10506 = vunpack.c.l.b16 %v10352
    %v10507 = vunpack.c.h.b16 %v10352
    %v10508 = vunpack.c.l.b16 %v10353
    %v10509 = vunpack.c.h.b16 %v10353
    %v10510 = vunpack.c.l.b16 %v10354
    %v10511 = vunpack.c.h.b16 %v10354
    %v10512 = vunpack.c.l.b16 %v10355
    %v10513 = vunpack.c.h.b16 %v10355
    %v10514 = vunpack.c.l.b16 %v10356
    %v10515 = vunpack.c.h.b16 %v10356
    %v10516 = vunpack.c.l.b16 %v10357
    %v10517 = vunpack.c.h.b16 %v10357
    %v10518 = vunpack.c.l.b16 %v10358
    %v10519 = vunpack.c.h.b16 %v10358
    %v10520 = vunpack.c.l.b16 %v10359
    %v10521 = vunpack.c.h.b16 %v10359
    %v10522 = vunpack.c.l.b16 %v10360
    %v10523 = vunpack.c.h.b16 %v10360
    %v10524 = vunpack.c.l.b16 %v10361
    %v10525 = vunpack.c.h.b16 %v10361
    %v10526 = vunpack.c.l.b16 %v10362
    %v10527 = vunpack.c.h.b16 %v10362
    %v10528 = vunpack.c.l.b16 %v10363
    %v10529 = vunpack.c.h.b16 %v10363
    %v10530 = vunpack.c.l.b16 %v10364
    %v10531 = vunpack.c.h.b16 %v10364
    %v10532 = vunpack.c.l.b16 %v10365
    %v10533 = vunpack.c.h.b16 %v10365
    %v10534 = vunpack.c.l.b16 %v10366
    %v10535 = vunpack.c.h.b16 %v10366
    %v10536 = vunpack.c.l.b16 %v10367
    %v10537 = vunpack.c.h.b16 %v10367
    %v10538 = vunpack.c.l.b16 %v10368
    %v10539 = vunpack.c.h.b16 %v10368
    %v10540 = vunpack.c.l.b16 %v10369
    %v10541 = vunpack.c.h.b16 %v10369
    %v10542 = vunpack.c.l.b16 %v10370
    %v10543 = vunpack.c.h.b16 %v10370
    %v10544 = vunpack.c.l.b16 %v10371
    %v10545 = vunpack.c.h.b16 %v10371
    %v10546 = vunpack.c.l.b16 %v10372
    %v10547 = vunpack.c.h.b16 %v10372
    %v10548 = vunpack.c.l.b16 %v10373
    %v10549 = vunpack.c.h.b16 %v10373
    %v10550 = vunpack.c.l.b16 %v10374
    %v10551 = vunpack.c.h.b16 %v10374
    %v10552 = vunpack.c.l.b16 %v10375
    %v10553 = vunpack.c.h.b16 %v10375
    %v10554 = vunpack.c.l.b16 %v10376
    %v10555 = vunpack.c.h.b16 %v10376
    %v10556 = vunpack.c.l.b16 %v10377
    %v10557 = vunpack.c.h.b16 %v10377
    %v10558 = vunpack.c.l.b16 %v10378
    %v10559 = vunpack.c.h.b16 %v10378
    %v10560 = vunpack.c.l.b16 %v10379
    %v10561 = vunpack.c.h.b16 %v10379
    %v10562 = vunpack.c.l.b16 %v10380
    %v10563 = vunpack.c.h.b16 %v10380
    %v10564 = vunpack.c.l.b16 %v10381
    %v10565 = vunpack.c.h.b16 %v10381
    %v10566 = vunpack.c.l.b16 %v10382
    %v10567 = vunpack.c.h.b16 %v10382
    %v10568 = vunpack.c.l.b16 %v10383
    %v10569 = vunpack.c.h.b16 %v10383
    %v10570 = vunpack.c.l.b16 %v10384
    %v10571 = vunpack.c.h.b16 %v10384
    %v10572 = vunpack.c.l.b16 %v10385
    %v10573 = vunpack.c.h.b16 %v10385
    %v10574 = vunpack.c.l.b16 %v10386
    %v10575 = vunpack.c.h.b16 %v10386
    %v10576 = vunpack.c.l.b16 %v10387
    %v10577 = vunpack.c.h.b16 %v10387
    %v10578 = vunpack.c.l.b16 %v10388
    %v10579 = vunpack.c.h.b16 %v10388
    %v10580 = vunpack.c.l.b16 %v10389
    %v10581 = vunpack.c.h.b16 %v10389
    %v10582 = vunpack.c.l.b16 %v10390
    %v10583 = vunpack.c.h.b16 %v10390
    %v10584 = vunpack.c.l.b16 %v10391
    %v10585 = vunpack.c.h.b16 %v10391
    %v10586 = vunpack.c.l.b16 %v10392
    %v10587 = vunpack.c.h.b16 %v10392
    %v10588 = vunpack.c.l.b16 %v10393
    %v10589 = vunpack.c.h.b16 %v10393
    %v10590 = vunpack.c.l.b16 %v10394
    %v10591 = vunpack.c.h.b16 %v10394
    %v10592 = vunpack.c.l.b16 %v10395
    %v10593 = vunpack.c.h.b16 %v10395
    %v10594 = vunpack.c.l.b16 %v10396
    %v10595 = vunpack.c.h.b16 %v10396
    %v10596 = vunpack.c.l.b16 %v10397
    %v10597 = vunpack.c.h.b16 %v10397
    %v10598 = vunpack.c.l.b16 %v10398
    %v10599 = vunpack.c.h.b16 %v10398
    %v10600 = vunpack.c.l.b16 %v10399
    %v10601 = vunpack.c.h.b16 %v10399
    %v10602 = vpack.c.b16 %v10478, %v10474
    %v10603 = vpack.c.b16 %v10479, %v10475
    %v10604 = vpack.c.b16 %v10480, %v10476
    %v10605 = vpack.c.b16 %v10481, %v10477
    %v10606 = vpack.c.b16 %v10486, %v10482
    %v10607 = vpack.c.b16 %v10487, %v10483
    %v10608 = vpack.c.b16 %v10488, %v10484
    %v10609 = vpack.c.b16 %v10489, %v10485
    %v10610 = vpack.c.b16 %v10494, %v10490
    %v10611 = vpack.c.b16 %v10495, %v10491
    %v10612 = vpack.c.b16 %v10496, %v10492
    %v10613 = vpack.c.b16 %v10497, %v10493
    %v10614 = vpack.c.b16 %v10502, %v10498
    %v10615 = vpack.c.b16 %v10503, %v10499
    %v10616 = vpack.c.b16 %v10504, %v10500
    %v10617 = vpack.c.b16 %v10505, %v10501
    %v10618 = vpack.c.b16 %v10510, %v10506
    %v10619 = vpack.c.b16 %v10511, %v10507
    %v10620 = vpack.c.b16 %v10512, %v10508
    %v10621 = vpack.c.b16 %v10513, %v10509
    %v10622 = vpack.c.b16 %v10518, %v10514
    %v10623 = vpack.c.b16 %v10519, %v10515
    %v10624 = vpack.c.b16 %v10520, %v10516
    %v10625 = vpack.c.b16 %v10521, %v10517
    %v10626 = vpack.c.b16 %v10526, %v10522
    %v10627 = vpack.c.b16 %v10527, %v10523
    %v10628 = vpack.c.b16 %v10528, %v10524
    %v10629 = vpack.c.b16 %v10529, %v10525
    %v10630 = vpack.c.b16 %v10534, %v10530
    %v10631 = vpack.c.b16 %v10535, %v10531
    %v10632 = vpack.c.b16 %v10536, %v10532
    %v10633 = vpack.c.b16 %v10537, %v10533
    %v10634 = vpack.c.b16 %v10542, %v10538
    %v10635 = vpack.c.b16 %v10543, %v10539
    %v10636 = vpack.c.b16 %v10544, %v10540
    %v10637 = vpack.c.b16 %v10545, %v10541
    %v10638 = vpack.c.b16 %v10550, %v10546
    %v10639 = vpack.c.b16 %v10551, %v10547
    %v10640 = vpack.c.b16 %v10552, %v10548
    %v10641 = vpack.c.b16 %v10553, %v10549
    %v10642 = vpack.c.b16 %v10558, %v10554
    %v10643 = vpack.c.b16 %v10559, %v10555
    %v10644 = vpack.c.b16 %v10560, %v10556
    %v10645 = vpack.c.b16 %v10561, %v10557
    %v10646 = vpack.c.b16 %v10566, %v10562
    %v10647 = vpack.c.b16 %v10567, %v10563
    %v10648 = vpack.c.b16 %v10568, %v10564
    %v10649 = vpack.c.b16 %v10569, %v10565
    %v10650 = vpack.c.b16 %v10574, %v10570
    %v10651 = vpack.c.b16 %v10575, %v10571
    %v10652 = vpack.c.b16 %v10576, %v10572
    %v10653 = vpack.c.b16 %v10577, %v10573
    %v10654 = vpack.c.b16 %v10582, %v10578
    %v10655 = vpack.c.b16 %v10583, %v10579
    %v10656 = vpack.c.b16 %v10584, %v10580
    %v10657 = vpack.c.b16 %v10585, %v10581
    %v10658 = vpack.c.b16 %v10590, %v10586
    %v10659 = vpack.c.b16 %v10591, %v10587
    %v10660 = vpack.c.b16 %v10592, %v10588
    %v10661 = vpack.c.b16 %v10593, %v10589
    %v10662 = vpack.c.b16 %v10598, %v10594
    %v10663 = vpack.c.b16 %v10599, %v10595
    %v10664 = vpack.c.b16 %v10600, %v10596
    %v10665 = vpack.c.b16 %v10601, %v10597
    %10730 = vmatpush.bf16.msra.mxu0 %v10630
    %10731 = vmatpush.bf16.msra.mxu0 %v10626
    %10732 = vmatpush.bf16.msra.mxu0 %v10622
    %10733 = vmatpush.bf16.msra.mxu0 %v10618
    %10734 = vmatpush.bf16.msra.mxu0 %v10614
    %10735 = vmatpush.bf16.msra.mxu0 %v10610
    %10736 = vmatpush.bf16.msra.mxu0 %v10606
    %10737 = vmatpush.bf16.msra.mxu0 %v10602
    %10738 = vmatmul.bf16.gmra.mxu0 %v10320
    %v10739 = vpop.f32.mrf.mxu0
    %v10740 = vadd.f32 %v10402, %v10739
    %v10741 = vpop.f32.mrf.mxu0
    %v10742 = vadd.f32 %v10402, %v10741
    %10743 = vmatmul.bf16.gmra.mxu0 %v10322
    %v10744 = vpop.f32.mrf.mxu0
    %v10745 = vadd.f32 %v10402, %v10744
    %v10746 = vpop.f32.mrf.mxu0
    %v10747 = vadd.f32 %v10402, %v10746
    %10748 = vmatmul.bf16.gmra.mxu0 %v10324
    %v10749 = vpop.f32.mrf.mxu0
    %v10750 = vadd.f32 %v10402, %v10749
    %v10751 = vpop.f32.mrf.mxu0
    %v10752 = vadd.f32 %v10402, %v10751
    %10753 = vmatmul.bf16.gmra.mxu0 %v10326
    %v10754 = vpop.f32.mrf.mxu0
    %v10755 = vadd.f32 %v10402, %v10754
    %v10756 = vpop.f32.mrf.mxu0
    %v10757 = vadd.f32 %v10402, %v10756
    %10758 = vmatmul.bf16.gmra.mxu0 %v10328
    %v10759 = vpop.f32.mrf.mxu0
    %v10760 = vadd.f32 %v10402, %v10759
    %v10761 = vpop.f32.mrf.mxu0
    %v10762 = vadd.f32 %v10402, %v10761
    %10763 = vmatmul.bf16.gmra.mxu0 %v10330
    %v10764 = vpop.f32.mrf.mxu0
    %v10765 = vadd.f32 %v10402, %v10764
    %v10766 = vpop.f32.mrf.mxu0
    %v10767 = vadd.f32 %v10402, %v10766
    %10768 = vmatmul.bf16.gmra.mxu0 %v10332
    %v10769 = vpop.f32.mrf.mxu0
    %v10770 = vadd.f32 %v10402, %v10769
    %v10771 = vpop.f32.mrf.mxu0
    %v10772 = vadd.f32 %v10402, %v10771
    %10773 = vmatmul.bf16.gmra.mxu0 %v10334
    %v10774 = vpop.f32.mrf.mxu0
    %v10775 = vadd.f32 %v10402, %v10774
    %v10776 = vpop.f32.mrf.mxu0
    %v10777 = vadd.f32 %v10402, %v10776
    %10778 = vdwg.mxu0
    %10779 = vmatpush.bf16.msra.mxu0 %v10662
    %10780 = vmatpush.bf16.msra.mxu0 %v10658
    %10781 = vmatpush.bf16.msra.mxu0 %v10654
    %10782 = vmatpush.bf16.msra.mxu0 %v10650
    %10783 = vmatpush.bf16.msra.mxu0 %v10646
    %10784 = vmatpush.bf16.msra.mxu0 %v10642
    %10785 = vmatpush.bf16.msra.mxu0 %v10638
    %10786 = vmatpush.bf16.msra.mxu0 %v10634
    %10787 = vmatmul.bf16.gmra.mxu0 %v10321
    %v10788 = vpop.f32.mrf.mxu0
    %v10789 = vadd.f32 %v10740, %v10788
    %v10790 = vpop.f32.mrf.mxu0
    %v10791 = vadd.f32 %v10742, %v10790
    %10792 = vmatmul.bf16.gmra.mxu0 %v10323
    %v10793 = vpop.f32.mrf.mxu0
    %v10794 = vadd.f32 %v10745, %v10793
    %v10795 = vpop.f32.mrf.mxu0
    %v10796 = vadd.f32 %v10747, %v10795
    %10797 = vmatmul.bf16.gmra.mxu0 %v10325
    %v10798 = vpop.f32.mrf.mxu0
    %v10799 = vadd.f32 %v10750, %v10798
    %v10800 = vpop.f32.mrf.mxu0
    %v10801 = vadd.f32 %v10752, %v10800
    %10802 = vmatmul.bf16.gmra.mxu0 %v10327
    %v10803 = vpop.f32.mrf.mxu0
    %v10804 = vadd.f32 %v10755, %v10803
    %v10805 = vpop.f32.mrf.mxu0
    %v10806 = vadd.f32 %v10757, %v10805
    %10807 = vmatmul.bf16.gmra.mxu0 %v10329
    %v10808 = vpop.f32.mrf.mxu0
    %v10809 = vadd.f32 %v10760, %v10808
    %v10810 = vpop.f32.mrf.mxu0
    %v10811 = vadd.f32 %v10762, %v10810
    %10812 = vmatmul.bf16.gmra.mxu0 %v10331
    %v10813 = vpop.f32.mrf.mxu0
    %v10814 = vadd.f32 %v10765, %v10813
    %v10815 = vpop.f32.mrf.mxu0
    %v10816 = vadd.f32 %v10767, %v10815
    %10817 = vmatmul.bf16.gmra.mxu0 %v10333
    %v10818 = vpop.f32.mrf.mxu0
    %v10819 = vadd.f32 %v10770, %v10818
    %v10820 = vpop.f32.mrf.mxu0
    %v10821 = vadd.f32 %v10772, %v10820
    %10822 = vmatmul.bf16.gmra.mxu0 %v10335
    %v10823 = vpop.f32.mrf.mxu0
    %v10824 = vadd.f32 %v10775, %v10823
    %v10825 = vpop.f32.mrf.mxu0
    %v10826 = vadd.f32 %v10777, %v10825
    %10827 = vdwg.mxu0
    %10828 = vmatpush.bf16.msra.mxu0 %v10631
    %10829 = vmatpush.bf16.msra.mxu0 %v10627
    %10830 = vmatpush.bf16.msra.mxu0 %v10623
    %10831 = vmatpush.bf16.msra.mxu0 %v10619
    %10832 = vmatpush.bf16.msra.mxu0 %v10615
    %10833 = vmatpush.bf16.msra.mxu0 %v10611
    %10834 = vmatpush.bf16.msra.mxu0 %v10607
    %10835 = vmatpush.bf16.msra.mxu0 %v10603
    %10836 = vmatmul.bf16.gmra.mxu0 %v10320
    %v10837 = vpop.f32.mrf.mxu0
    %v10838 = vadd.f32 %v10403, %v10837
    %v10839 = vpop.f32.mrf.mxu0
    %v10840 = vadd.f32 %v10403, %v10839
    %10841 = vmatmul.bf16.gmra.mxu0 %v10322
    %v10842 = vpop.f32.mrf.mxu0
    %v10843 = vadd.f32 %v10403, %v10842
    %v10844 = vpop.f32.mrf.mxu0
    %v10845 = vadd.f32 %v10403, %v10844
    %10846 = vmatmul.bf16.gmra.mxu0 %v10324
    %v10847 = vpop.f32.mrf.mxu0
    %v10848 = vadd.f32 %v10403, %v10847
    %v10849 = vpop.f32.mrf.mxu0
    %v10850 = vadd.f32 %v10403, %v10849
    %10851 = vmatmul.bf16.gmra.mxu0 %v10326
    %v10852 = vpop.f32.mrf.mxu0
    %v10853 = vadd.f32 %v10403, %v10852
    %v10854 = vpop.f32.mrf.mxu0
    %v10855 = vadd.f32 %v10403, %v10854
    %10856 = vmatmul.bf16.gmra.mxu0 %v10328
    %v10857 = vpop.f32.mrf.mxu0
    %v10858 = vadd.f32 %v10403, %v10857
    %v10859 = vpop.f32.mrf.mxu0
    %v10860 = vadd.f32 %v10403, %v10859
    %10861 = vmatmul.bf16.gmra.mxu0 %v10330
    %v10862 = vpop.f32.mrf.mxu0
    %v10863 = vadd.f32 %v10403, %v10862
    %v10864 = vpop.f32.mrf.mxu0
    %v10865 = vadd.f32 %v10403, %v10864
    %10866 = vmatmul.bf16.gmra.mxu0 %v10332
    %v10867 = vpop.f32.mrf.mxu0
    %v10868 = vadd.f32 %v10403, %v10867
    %v10869 = vpop.f32.mrf.mxu0
    %v10870 = vadd.f32 %v10403, %v10869
    %10871 = vmatmul.bf16.gmra.mxu0 %v10334
    %v10872 = vpop.f32.mrf.mxu0
    %v10873 = vadd.f32 %v10403, %v10872
    %v10874 = vpop.f32.mrf.mxu0
    %v10875 = vadd.f32 %v10403, %v10874
    %10876 = vdwg.mxu0
    %10877 = vmatpush.bf16.msra.mxu0 %v10663
    %10878 = vmatpush.bf16.msra.mxu0 %v10659
    %10879 = vmatpush.bf16.msra.mxu0 %v10655
    %10880 = vmatpush.bf16.msra.mxu0 %v10651
    %10881 = vmatpush.bf16.msra.mxu0 %v10647
    %10882 = vmatpush.bf16.msra.mxu0 %v10643
    %10883 = vmatpush.bf16.msra.mxu0 %v10639
    %10884 = vmatpush.bf16.msra.mxu0 %v10635
    %10885 = vmatmul.bf16.gmra.mxu0 %v10321
    %v10886 = vpop.f32.mrf.mxu0
    %v10887 = vadd.f32 %v10838, %v10886
    %v10888 = vpop.f32.mrf.mxu0
    %v10889 = vadd.f32 %v10840, %v10888
    %10890 = vmatmul.bf16.gmra.mxu0 %v10323
    %v10891 = vpop.f32.mrf.mxu0
    %v10892 = vadd.f32 %v10843, %v10891
    %v10893 = vpop.f32.mrf.mxu0
    %v10894 = vadd.f32 %v10845, %v10893
    %10895 = vmatmul.bf16.gmra.mxu0 %v10325
    %v10896 = vpop.f32.mrf.mxu0
    %v10897 = vadd.f32 %v10848, %v10896
    %v10898 = vpop.f32.mrf.mxu0
    %v10899 = vadd.f32 %v10850, %v10898
    %10900 = vmatmul.bf16.gmra.mxu0 %v10327
    %v10901 = vpop.f32.mrf.mxu0
    %v10902 = vadd.f32 %v10853, %v10901
    %v10903 = vpop.f32.mrf.mxu0
    %v10904 = vadd.f32 %v10855, %v10903
    %10905 = vmatmul.bf16.gmra.mxu0 %v10329
    %v10906 = vpop.f32.mrf.mxu0
    %v10907 = vadd.f32 %v10858, %v10906
    %v10908 = vpop.f32.mrf.mxu0
    %v10909 = vadd.f32 %v10860, %v10908
    %10910 = vmatmul.bf16.gmra.mxu0 %v10331
    %v10911 = vpop.f32.mrf.mxu0
    %v10912 = vadd.f32 %v10863, %v10911
    %v10913 = vpop.f32.mrf.mxu0
    %v10914 = vadd.f32 %v10865, %v10913
    %10915 = vmatmul.bf16.gmra.mxu0 %v10333
    %v10916 = vpop.f32.mrf.mxu0
    %v10917 = vadd.f32 %v10868, %v10916
    %v10918 = vpop.f32.mrf.mxu0
    %v10919 = vadd.f32 %v10870, %v10918
    %10920 = vmatmul.bf16.gmra.mxu0 %v10335
    %v10921 = vpop.f32.mrf.mxu0
    %v10922 = vadd.f32 %v10873, %v10921
    %v10923 = vpop.f32.mrf.mxu0
    %v10924 = vadd.f32 %v10875, %v10923
    %10925 = vdwg.mxu0
    %10926 = vmatpush.bf16.msra.mxu0 %v10632
    %10927 = vmatpush.bf16.msra.mxu0 %v10628
    %10928 = vmatpush.bf16.msra.mxu0 %v10624
    %10929 = vmatpush.bf16.msra.mxu0 %v10620
    %10930 = vmatpush.bf16.msra.mxu0 %v10616
    %10931 = vmatpush.bf16.msra.mxu0 %v10612
    %10932 = vmatpush.bf16.msra.mxu0 %v10608
    %10933 = vmatpush.bf16.msra.mxu0 %v10604
    %10934 = vmatmul.bf16.gmra.mxu0 %v10320
    %v10935 = vpop.f32.mrf.mxu0
    %v10936 = vadd.f32 %v10404, %v10935
    %v10937 = vpop.f32.mrf.mxu0
    %v10938 = vadd.f32 %v10404, %v10937
    %10939 = vmatmul.bf16.gmra.mxu0 %v10322
    %v10940 = vpop.f32.mrf.mxu0
    %v10941 = vadd.f32 %v10404, %v10940
    %v10942 = vpop.f32.mrf.mxu0
    %v10943 = vadd.f32 %v10404, %v10942
    %10944 = vmatmul.bf16.gmra.mxu0 %v10324
    %v10945 = vpop.f32.mrf.mxu0
    %v10946 = vadd.f32 %v10404, %v10945
    %v10947 = vpop.f32.mrf.mxu0
    %v10948 = vadd.f32 %v10404, %v10947
    %10949 = vmatmul.bf16.gmra.mxu0 %v10326
    %v10950 = vpop.f32.mrf.mxu0
    %v10951 = vadd.f32 %v10404, %v10950
    %v10952 = vpop.f32.mrf.mxu0
    %v10953 = vadd.f32 %v10404, %v10952
    %10954 = vmatmul.bf16.gmra.mxu0 %v10328
    %v10955 = vpop.f32.mrf.mxu0
    %v10956 = vadd.f32 %v10404, %v10955
    %v10957 = vpop.f32.mrf.mxu0
    %v10958 = vadd.f32 %v10404, %v10957
    %10959 = vmatmul.bf16.gmra.mxu0 %v10330
    %v10960 = vpop.f32.mrf.mxu0
    %v10961 = vadd.f32 %v10404, %v10960
    %v10962 = vpop.f32.mrf.mxu0
    %v10963 = vadd.f32 %v10404, %v10962
    %10964 = vmatmul.bf16.gmra.mxu0 %v10332
    %v10965 = vpop.f32.mrf.mxu0
    %v10966 = vadd.f32 %v10404, %v10965
    %v10967 = vpop.f32.mrf.mxu0
    %v10968 = vadd.f32 %v10404, %v10967
    %10969 = vmatmul.bf16.gmra.mxu0 %v10334
    %v10970 = vpop.f32.mrf.mxu0
    %v10971 = vadd.f32 %v10404, %v10970
    %v10972 = vpop.f32.mrf.mxu0
    %v10973 = vadd.f32 %v10404, %v10972
    %10974 = vdwg.mxu0
    %10975 = vmatpush.bf16.msra.mxu0 %v10664
    %10976 = vmatpush.bf16.msra.mxu0 %v10660
    %10977 = vmatpush.bf16.msra.mxu0 %v10656
    %10978 = vmatpush.bf16.msra.mxu0 %v10652
    %10979 = vmatpush.bf16.msra.mxu0 %v10648
    %10980 = vmatpush.bf16.msra.mxu0 %v10644
    %10981 = vmatpush.bf16.msra.mxu0 %v10640
    %10982 = vmatpush.bf16.msra.mxu0 %v10636
    %10983 = vmatmul.bf16.gmra.mxu0 %v10321
    %v10984 = vpop.f32.mrf.mxu0
    %v10985 = vadd.f32 %v10936, %v10984
    %v10986 = vpop.f32.mrf.mxu0
    %v10987 = vadd.f32 %v10938, %v10986
    %10988 = vmatmul.bf16.gmra.mxu0 %v10323
    %v10989 = vpop.f32.mrf.mxu0
    %v10990 = vadd.f32 %v10941, %v10989
    %v10991 = vpop.f32.mrf.mxu0
    %v10992 = vadd.f32 %v10943, %v10991
    %10993 = vmatmul.bf16.gmra.mxu0 %v10325
    %v10994 = vpop.f32.mrf.mxu0
    %v10995 = vadd.f32 %v10946, %v10994
    %v10996 = vpop.f32.mrf.mxu0
    %v10997 = vadd.f32 %v10948, %v10996
    %10998 = vmatmul.bf16.gmra.mxu0 %v10327
    %v10999 = vpop.f32.mrf.mxu0
    %v11000 = vadd.f32 %v10951, %v10999
    %v11001 = vpop.f32.mrf.mxu0
    %v11002 = vadd.f32 %v10953, %v11001
    %11003 = vmatmul.bf16.gmra.mxu0 %v10329
    %v11004 = vpop.f32.mrf.mxu0
    %v11005 = vadd.f32 %v10956, %v11004
    %v11006 = vpop.f32.mrf.mxu0
    %v11007 = vadd.f32 %v10958, %v11006
    %11008 = vmatmul.bf16.gmra.mxu0 %v10331
    %v11009 = vpop.f32.mrf.mxu0
    %v11010 = vadd.f32 %v10961, %v11009
    %v11011 = vpop.f32.mrf.mxu0
    %v11012 = vadd.f32 %v10963, %v11011
    %11013 = vmatmul.bf16.gmra.mxu0 %v10333
    %v11014 = vpop.f32.mrf.mxu0
    %v11015 = vadd.f32 %v10966, %v11014
    %v11016 = vpop.f32.mrf.mxu0
    %v11017 = vadd.f32 %v10968, %v11016
    %11018 = vmatmul.bf16.gmra.mxu0 %v10335
    %v11019 = vpop.f32.mrf.mxu0
    %v11020 = vadd.f32 %v10971, %v11019
    %v11021 = vpop.f32.mrf.mxu0
    %v11022 = vadd.f32 %v10973, %v11021
    %11023 = vdwg.mxu0
    %11024 = vmatpush.bf16.msra.mxu0 %v10633
    %11025 = vmatpush.bf16.msra.mxu0 %v10629
    %11026 = vmatpush.bf16.msra.mxu0 %v10625
    %11027 = vmatpush.bf16.msra.mxu0 %v10621
    %11028 = vmatpush.bf16.msra.mxu0 %v10617
    %11029 = vmatpush.bf16.msra.mxu0 %v10613
    %11030 = vmatpush.bf16.msra.mxu0 %v10609
    %11031 = vmatpush.bf16.msra.mxu0 %v10605
    %11032 = vmatmul.bf16.gmra.mxu0 %v10320
    %v11033 = vpop.f32.mrf.mxu0
    %v11034 = vadd.f32 %v10405, %v11033
    %v11035 = vpop.f32.mrf.mxu0
    %v11036 = vadd.f32 %v10405, %v11035
    %11037 = vmatmul.bf16.gmra.mxu0 %v10322
    %v11038 = vpop.f32.mrf.mxu0
    %v11039 = vadd.f32 %v10405, %v11038
    %v11040 = vpop.f32.mrf.mxu0
    %v11041 = vadd.f32 %v10405, %v11040
    %11042 = vmatmul.bf16.gmra.mxu0 %v10324
    %v11043 = vpop.f32.mrf.mxu0
    %v11044 = vadd.f32 %v10405, %v11043
    %v11045 = vpop.f32.mrf.mxu0
    %v11046 = vadd.f32 %v10405, %v11045
    %11047 = vmatmul.bf16.gmra.mxu0 %v10326
    %v11048 = vpop.f32.mrf.mxu0
    %v11049 = vadd.f32 %v10405, %v11048
    %v11050 = vpop.f32.mrf.mxu0
    %v11051 = vadd.f32 %v10405, %v11050
    %11052 = vmatmul.bf16.gmra.mxu0 %v10328
    %v11053 = vpop.f32.mrf.mxu0
    %v11054 = vadd.f32 %v10405, %v11053
    %v11055 = vpop.f32.mrf.mxu0
    %v11056 = vadd.f32 %v10405, %v11055
    %11057 = vmatmul.bf16.gmra.mxu0 %v10330
    %v11058 = vpop.f32.mrf.mxu0
    %v11059 = vadd.f32 %v10405, %v11058
    %v11060 = vpop.f32.mrf.mxu0
    %v11061 = vadd.f32 %v10405, %v11060
    %11062 = vmatmul.bf16.gmra.mxu0 %v10332
    %v11063 = vpop.f32.mrf.mxu0
    %v11064 = vadd.f32 %v10405, %v11063
    %v11065 = vpop.f32.mrf.mxu0
    %v11066 = vadd.f32 %v10405, %v11065
    %11067 = vmatmul.bf16.gmra.mxu0 %v10334
    %v11068 = vpop.f32.mrf.mxu0
    %v11069 = vadd.f32 %v10405, %v11068
    %v11070 = vpop.f32.mrf.mxu0
    %v11071 = vadd.f32 %v10405, %v11070
    %11072 = vdwg.mxu0
    %11073 = vmatpush.bf16.msra.mxu0 %v10665
    %11074 = vmatpush.bf16.msra.mxu0 %v10661
    %11075 = vmatpush.bf16.msra.mxu0 %v10657
    %11076 = vmatpush.bf16.msra.mxu0 %v10653
    %11077 = vmatpush.bf16.msra.mxu0 %v10649
    %11078 = vmatpush.bf16.msra.mxu0 %v10645
    %11079 = vmatpush.bf16.msra.mxu0 %v10641
    %11080 = vmatpush.bf16.msra.mxu0 %v10637
    %11081 = vmatmul.bf16.gmra.mxu0 %v10321
    %v11082 = vpop.f32.mrf.mxu0
    %v11083 = vadd.f32 %v11034, %v11082
    %v11084 = vpop.f32.mrf.mxu0
    %v11085 = vadd.f32 %v11036, %v11084
    %11086 = vmatmul.bf16.gmra.mxu0 %v10323
    %v11087 = vpop.f32.mrf.mxu0
    %v11088 = vadd.f32 %v11039, %v11087
    %v11089 = vpop.f32.mrf.mxu0
    %v11090 = vadd.f32 %v11041, %v11089
    %11091 = vmatmul.bf16.gmra.mxu0 %v10325
    %v11092 = vpop.f32.mrf.mxu0
    %v11093 = vadd.f32 %v11044, %v11092
    %v11094 = vpop.f32.mrf.mxu0
    %v11095 = vadd.f32 %v11046, %v11094
    %11096 = vmatmul.bf16.gmra.mxu0 %v10327
    %v11097 = vpop.f32.mrf.mxu0
    %v11098 = vadd.f32 %v11049, %v11097
    %v11099 = vpop.f32.mrf.mxu0
    %v11100 = vadd.f32 %v11051, %v11099
    %11101 = vmatmul.bf16.gmra.mxu0 %v10329
    %v11102 = vpop.f32.mrf.mxu0
    %v11103 = vadd.f32 %v11054, %v11102
    %v11104 = vpop.f32.mrf.mxu0
    %v11105 = vadd.f32 %v11056, %v11104
    %11106 = vmatmul.bf16.gmra.mxu0 %v10331
    %v11107 = vpop.f32.mrf.mxu0
    %v11108 = vadd.f32 %v11059, %v11107
    %v11109 = vpop.f32.mrf.mxu0
    %v11110 = vadd.f32 %v11061, %v11109
    %11111 = vmatmul.bf16.gmra.mxu0 %v10333
    %v11112 = vpop.f32.mrf.mxu0
    %v11113 = vadd.f32 %v11064, %v11112
    %v11114 = vpop.f32.mrf.mxu0
    %v11115 = vadd.f32 %v11066, %v11114
    %11116 = vmatmul.bf16.gmra.mxu0 %v10335
    %v11117 = vpop.f32.mrf.mxu0
    %v11118 = vadd.f32 %v11069, %v11117
    %v11119 = vpop.f32.mrf.mxu0
    %v11120 = vadd.f32 %v11071, %v11119
    %11121 = vdwg.mxu0
    %v11122 = vtanh.pop %v10789
    %v11123 = vtanh.pop %v10887
    %v11124 = vtanh.pop %v10985
    %v11125 = vtanh.pop %v11083
    %v11126 = vtanh.pop %v10791
    %v11127 = vtanh.pop %v10889
    %v11128 = vtanh.pop %v10987
    %v11129 = vtanh.pop %v11085
    %v11130 = vtanh.pop %v10794
    %v11131 = vtanh.pop %v10892
    %v11132 = vtanh.pop %v10990
    %v11133 = vtanh.pop %v11088
    %v11134 = vtanh.pop %v10796
    %v11135 = vtanh.pop %v10894
    %v11136 = vtanh.pop %v10992
    %v11137 = vtanh.pop %v11090
    %v11138 = vtanh.pop %v10799
    %v11139 = vtanh.pop %v10897
    %v11140 = vtanh.pop %v10995
    %v11141 = vtanh.pop %v11093
    %v11142 = vtanh.pop %v10801
    %v11143 = vtanh.pop %v10899
    %v11144 = vtanh.pop %v10997
    %v11145 = vtanh.pop %v11095
    %v11146 = vtanh.pop %v10804
    %v11147 = vtanh.pop %v10902
    %v11148 = vtanh.pop %v11000
    %v11149 = vtanh.pop %v11098
    %v11150 = vtanh.pop %v10806
    %v11151 = vtanh.pop %v10904
    %v11152 = vtanh.pop %v11002
    %v11153 = vtanh.pop %v11100
    %v11154 = vtanh.pop %v10809
    %v11155 = vtanh.pop %v10907
    %v11156 = vtanh.pop %v11005
    %v11157 = vtanh.pop %v11103
    %v11158 = vtanh.pop %v10811
    %v11159 = vtanh.pop %v10909
    %v11160 = vtanh.pop %v11007
    %v11161 = vtanh.pop %v11105
    %v11162 = vtanh.pop %v10814
    %v11163 = vtanh.pop %v10912
    %v11164 = vtanh.pop %v11010
    %v11165 = vtanh.pop %v11108
    %v11166 = vtanh.pop %v10816
    %v11167 = vtanh.pop %v10914
    %v11168 = vtanh.pop %v11012
    %v11169 = vtanh.pop %v11110
    %v11170 = vtanh.pop %v10819
    %v11171 = vtanh.pop %v10917
    %v11172 = vtanh.pop %v11015
    %v11173 = vtanh.pop %v11113
    %v11174 = vtanh.pop %v10821
    %v11175 = vtanh.pop %v10919
    %v11176 = vtanh.pop %v11017
    %v11177 = vtanh.pop %v11115
    %v11178 = vtanh.pop %v10824
    %v11179 = vtanh.pop %v10922
    %v11180 = vtanh.pop %v11020
    %v11181 = vtanh.pop %v11118
    %v11182 = vtanh.pop %v10826
    %v11183 = vtanh.pop %v10924
    %v11184 = vtanh.pop %v11022
    %v11185 = vtanh.pop %v11120
    %11186 = vst [vmem:[#allocation8] sm:$0xff] %v11122
    %11187 = vst [vmem:[#allocation8 + $0x8] sm:$0xff] %v11126
    %11188 = vst [vmem:[#allocation8 + $0x10] sm:$0xff] %v11130
    %11189 = vst [vmem:[#allocation8 + $0x18] sm:$0xff] %v11134
    %11190 = vst [vmem:[#allocation8 + $0x20] sm:$0xff] %v11138
    %11191 = vst [vmem:[#allocation8 + $0x28] sm:$0xff] %v11142
    %11192 = vst [vmem:[#allocation8 + $0x30] sm:$0xff] %v11146
    %11193 = vst [vmem:[#allocation8 + $0x38] sm:$0xff] %v11150
    %11194 = vst [vmem:[#allocation8 + $0x40] sm:$0xff] %v11154
    %11195 = vst [vmem:[#allocation8 + $0x48] sm:$0xff] %v11158
    %11196 = vst [vmem:[#allocation8 + $0x50] sm:$0xff] %v11162
    %11197 = vst [vmem:[#allocation8 + $0x58] sm:$0xff] %v11166
    %11198 = vst [vmem:[#allocation8 + $0x60] sm:$0xff] %v11170
    %11199 = vst [vmem:[#allocation8 + $0x68] sm:$0xff] %v11174
    %11200 = vst [vmem:[#allocation8 + $0x70] sm:$0xff] %v11178
    %11201 = vst [vmem:[#allocation8 + $0x78] sm:$0xff] %v11182
    %11202 = vst [vmem:[#allocation8 + $0x80] sm:$0xff] %v11123
    %11203 = vst [vmem:[#allocation8 + $0x88] sm:$0xff] %v11127
    %11204 = vst [vmem:[#allocation8 + $0x90] sm:$0xff] %v11131
    %11205 = vst [vmem:[#allocation8 + $0x98] sm:$0xff] %v11135
    %11206 = vst [vmem:[#allocation8 + $0xa0] sm:$0xff] %v11139
    %11207 = vst [vmem:[#allocation8 + $0xa8] sm:$0xff] %v11143
    %11208 = vst [vmem:[#allocation8 + $0xb0] sm:$0xff] %v11147
    %11209 = vst [vmem:[#allocation8 + $0xb8] sm:$0xff] %v11151
    %11210 = vst [vmem:[#allocation8 + $0xc0] sm:$0xff] %v11155
    %11211 = vst [vmem:[#allocation8 + $0xc8] sm:$0xff] %v11159
    %11212 = vst [vmem:[#allocation8 + $0xd0] sm:$0xff] %v11163
    %11213 = vst [vmem:[#allocation8 + $0xd8] sm:$0xff] %v11167
    %11214 = vst [vmem:[#allocation8 + $0xe0] sm:$0xff] %v11171
    %11215 = vst [vmem:[#allocation8 + $0xe8] sm:$0xff] %v11175
    %11216 = vst [vmem:[#allocation8 + $0xf0] sm:$0xff] %v11179
    %11217 = vst [vmem:[#allocation8 + $0xf8] sm:$0xff] %v11183
    %11218 = vst [vmem:[#allocation8 + $0x100] sm:$0xff] %v11124
    %11219 = vst [vmem:[#allocation8 + $0x108] sm:$0xff] %v11128
    %11220 = vst [vmem:[#allocation8 + $0x110] sm:$0xff] %v11132
    %11221 = vst [vmem:[#allocation8 + $0x118] sm:$0xff] %v11136
    %11222 = vst [vmem:[#allocation8 + $0x120] sm:$0xff] %v11140
    %11223 = vst [vmem:[#allocation8 + $0x128] sm:$0xff] %v11144
    %11224 = vst [vmem:[#allocation8 + $0x130] sm:$0xff] %v11148
    %11225 = vst [vmem:[#allocation8 + $0x138] sm:$0xff] %v11152
    %11226 = vst [vmem:[#allocation8 + $0x140] sm:$0xff] %v11156
    %11227 = vst [vmem:[#allocation8 + $0x148] sm:$0xff] %v11160
    %11228 = vst [vmem:[#allocation8 + $0x150] sm:$0xff] %v11164
    %11229 = vst [vmem:[#allocation8 + $0x158] sm:$0xff] %v11168
    %11230 = vst [vmem:[#allocation8 + $0x160] sm:$0xff] %v11172
    %11231 = vst [vmem:[#allocation8 + $0x168] sm:$0xff] %v11176
    %11232 = vst [vmem:[#allocation8 + $0x170] sm:$0xff] %v11180
    %11233 = vst [vmem:[#allocation8 + $0x178] sm:$0xff] %v11184
    %11234 = vst [vmem:[#allocation8 + $0x180] sm:$0xff] %v11125
    %11235 = vst [vmem:[#allocation8 + $0x188] sm:$0xff] %v11129
    %11236 = vst [vmem:[#allocation8 + $0x190] sm:$0xff] %v11133
    %11237 = vst [vmem:[#allocation8 + $0x198] sm:$0xff] %v11137
    %11238 = vst [vmem:[#allocation8 + $0x1a0] sm:$0xff] %v11141
    %11239 = vst [vmem:[#allocation8 + $0x1a8] sm:$0xff] %v11145
    %11240 = vst [vmem:[#allocation8 + $0x1b0] sm:$0xff] %v11149
    %11241 = vst [vmem:[#allocation8 + $0x1b8] sm:$0xff] %v11153
    %11242 = vst [vmem:[#allocation8 + $0x1c0] sm:$0xff] %v11157
    %11243 = vst [vmem:[#allocation8 + $0x1c8] sm:$0xff] %v11161
    %11244 = vst [vmem:[#allocation8 + $0x1d0] sm:$0xff] %v11165
    %11245 = vst [vmem:[#allocation8 + $0x1d8] sm:$0xff] %v11169
    %11246 = vst [vmem:[#allocation8 + $0x1e0] sm:$0xff] %v11173
    %11247 = vst [vmem:[#allocation8 + $0x1e8] sm:$0xff] %v11177
    %11248 = vst [vmem:[#allocation8 + $0x1f0] sm:$0xff] %v11181
    %11249 = vst [vmem:[#allocation8 + $0x1f8] sm:$0xff] %v11185
    %s11250 = smul.u32 4, 16
    %s11251 = smul.u32 %s11250, 1
    %s11252 = sshll.u32 %s11251, 4
    %11253 = dma.done %s120, %s11252
    %v11254 = vld [vmem:[#allocation8] sm:$0xff]
    %v11255 = vld [vmem:[#allocation8 + $0x8] sm:$0xff]
    %v11256 = vld [vmem:[#allocation8 + $0x10] sm:$0xff]
    %v11257 = vld [vmem:[#allocation8 + $0x18] sm:$0xff]
    %v11258 = vld [vmem:[#allocation8 + $0x20] sm:$0xff]
    %v11259 = vld [vmem:[#allocation8 + $0x28] sm:$0xff]
    %v11260 = vld [vmem:[#allocation8 + $0x30] sm:$0xff]
    %v11261 = vld [vmem:[#allocation8 + $0x38] sm:$0xff]
    %v11262 = vld [vmem:[#allocation8 + $0x40] sm:$0xff]
    %v11263 = vld [vmem:[#allocation8 + $0x48] sm:$0xff]
    %v11264 = vld [vmem:[#allocation8 + $0x50] sm:$0xff]
    %v11265 = vld [vmem:[#allocation8 + $0x58] sm:$0xff]
    %v11266 = vld [vmem:[#allocation8 + $0x60] sm:$0xff]
    %v11267 = vld [vmem:[#allocation8 + $0x68] sm:$0xff]
    %v11268 = vld [vmem:[#allocation8 + $0x70] sm:$0xff]
    %v11269 = vld [vmem:[#allocation8 + $0x78] sm:$0xff]
    %v11270 = vld [vmem:[#allocation8 + $0x80] sm:$0xff]
    %v11271 = vld [vmem:[#allocation8 + $0x88] sm:$0xff]
    %v11272 = vld [vmem:[#allocation8 + $0x90] sm:$0xff]
    %v11273 = vld [vmem:[#allocation8 + $0x98] sm:$0xff]
    %v11274 = vld [vmem:[#allocation8 + $0xa0] sm:$0xff]
    %v11275 = vld [vmem:[#allocation8 + $0xa8] sm:$0xff]
    %v11276 = vld [vmem:[#allocation8 + $0xb0] sm:$0xff]
    %v11277 = vld [vmem:[#allocation8 + $0xb8] sm:$0xff]
    %v11278 = vld [vmem:[#allocation8 + $0xc0] sm:$0xff]
    %v11279 = vld [vmem:[#allocation8 + $0xc8] sm:$0xff]
    %v11280 = vld [vmem:[#allocation8 + $0xd0] sm:$0xff]
    %v11281 = vld [vmem:[#allocation8 + $0xd8] sm:$0xff]
    %v11282 = vld [vmem:[#allocation8 + $0xe0] sm:$0xff]
    %v11283 = vld [vmem:[#allocation8 + $0xe8] sm:$0xff]
    %v11284 = vld [vmem:[#allocation8 + $0xf0] sm:$0xff]
    %v11285 = vld [vmem:[#allocation8 + $0xf8] sm:$0xff]
    %v11286 = vld [vmem:[#allocation8 + $0x100] sm:$0xff]
    %v11287 = vld [vmem:[#allocation8 + $0x108] sm:$0xff]
    %v11288 = vld [vmem:[#allocation8 + $0x110] sm:$0xff]
    %v11289 = vld [vmem:[#allocation8 + $0x118] sm:$0xff]
    %v11290 = vld [vmem:[#allocation8 + $0x120] sm:$0xff]
    %v11291 = vld [vmem:[#allocation8 + $0x128] sm:$0xff]
    %v11292 = vld [vmem:[#allocation8 + $0x130] sm:$0xff]
    %v11293 = vld [vmem:[#allocation8 + $0x138] sm:$0xff]
    %v11294 = vld [vmem:[#allocation8 + $0x140] sm:$0xff]
    %v11295 = vld [vmem:[#allocation8 + $0x148] sm:$0xff]
    %v11296 = vld [vmem:[#allocation8 + $0x150] sm:$0xff]
    %v11297 = vld [vmem:[#allocation8 + $0x158] sm:$0xff]
    %v11298 = vld [vmem:[#allocation8 + $0x160] sm:$0xff]
    %v11299 = vld [vmem:[#allocation8 + $0x168] sm:$0xff]
    %v11300 = vld [vmem:[#allocation8 + $0x170] sm:$0xff]
    %v11301 = vld [vmem:[#allocation8 + $0x178] sm:$0xff]
    %v11302 = vld [vmem:[#allocation8 + $0x180] sm:$0xff]
    %v11303 = vld [vmem:[#allocation8 + $0x188] sm:$0xff]
    %v11304 = vld [vmem:[#allocation8 + $0x190] sm:$0xff]
    %v11305 = vld [vmem:[#allocation8 + $0x198] sm:$0xff]
    %v11306 = vld [vmem:[#allocation8 + $0x1a0] sm:$0xff]
    %v11307 = vld [vmem:[#allocation8 + $0x1a8] sm:$0xff]
    %v11308 = vld [vmem:[#allocation8 + $0x1b0] sm:$0xff]
    %v11309 = vld [vmem:[#allocation8 + $0x1b8] sm:$0xff]
    %v11310 = vld [vmem:[#allocation8 + $0x1c0] sm:$0xff]
    %v11311 = vld [vmem:[#allocation8 + $0x1c8] sm:$0xff]
    %v11312 = vld [vmem:[#allocation8 + $0x1d0] sm:$0xff]
    %v11313 = vld [vmem:[#allocation8 + $0x1d8] sm:$0xff]
    %v11314 = vld [vmem:[#allocation8 + $0x1e0] sm:$0xff]
    %v11315 = vld [vmem:[#allocation8 + $0x1e8] sm:$0xff]
    %v11316 = vld [vmem:[#allocation8 + $0x1f0] sm:$0xff]
    %v11317 = vld [vmem:[#allocation8 + $0x1f8] sm:$0xff]
    %v11318 = vpack.c.bf16 %v11255, %v11254
    %v11319 = vpack.c.bf16 %v11257, %v11256
    %v11320 = vpack.c.bf16 %v11259, %v11258
    %v11321 = vpack.c.bf16 %v11261, %v11260
    %v11322 = vpack.c.bf16 %v11263, %v11262
    %v11323 = vpack.c.bf16 %v11265, %v11264
    %v11324 = vpack.c.bf16 %v11267, %v11266
    %v11325 = vpack.c.bf16 %v11269, %v11268
    %v11326 = vpack.c.bf16 %v11271, %v11270
    %v11327 = vpack.c.bf16 %v11273, %v11272
    %v11328 = vpack.c.bf16 %v11275, %v11274
    %v11329 = vpack.c.bf16 %v11277, %v11276
    %v11330 = vpack.c.bf16 %v11279, %v11278
    %v11331 = vpack.c.bf16 %v11281, %v11280
    %v11332 = vpack.c.bf16 %v11283, %v11282
    %v11333 = vpack.c.bf16 %v11285, %v11284
    %v11334 = vpack.c.bf16 %v11287, %v11286
    %v11335 = vpack.c.bf16 %v11289, %v11288
    %v11336 = vpack.c.bf16 %v11291, %v11290
    %v11337 = vpack.c.bf16 %v11293, %v11292
    %v11338 = vpack.c.bf16 %v11295, %v11294
    %v11339 = vpack.c.bf16 %v11297, %v11296
    %v11340 = vpack.c.bf16 %v11299, %v11298
    %v11341 = vpack.c.bf16 %v11301, %v11300
    %v11342 = vpack.c.bf16 %v11303, %v11302
    %v11343 = vpack.c.bf16 %v11305, %v11304
    %v11344 = vpack.c.bf16 %v11307, %v11306
    %v11345 = vpack.c.bf16 %v11309, %v11308
    %v11346 = vpack.c.bf16 %v11311, %v11310
    %v11347 = vpack.c.bf16 %v11313, %v11312
    %v11348 = vpack.c.bf16 %v11315, %v11314
    %v11349 = vpack.c.bf16 %v11317, %v11316
    %v11350 = vld [vmem:[#allocation5] sm:$0xf]
    %v11351 = vld [vmem:[#allocation5 + $0x4] sm:$0xf]
    %v11352 = vld [vmem:[#allocation5 + $0x8] sm:$0xf]
    %v11353 = vld [vmem:[#allocation5 + $0xc] sm:$0xf]
    %v11354 = vld [vmem:[#allocation5 + $0x10] sm:$0xf]
    %v11355 = vld [vmem:[#allocation5 + $0x14] sm:$0xf]
    %v11356 = vld [vmem:[#allocation5 + $0x18] sm:$0xf]
    %v11357 = vld [vmem:[#allocation5 + $0x1c] sm:$0xf]
    %v11358 = vld [vmem:[#allocation5 + $0x20] sm:$0xf]
    %v11359 = vld [vmem:[#allocation5 + $0x24] sm:$0xf]
    %v11360 = vld [vmem:[#allocation5 + $0x28] sm:$0xf]
    %v11361 = vld [vmem:[#allocation5 + $0x2c] sm:$0xf]
    %v11362 = vld [vmem:[#allocation5 + $0x30] sm:$0xf]
    %v11363 = vld [vmem:[#allocation5 + $0x34] sm:$0xf]
    %v11364 = vld [vmem:[#allocation5 + $0x38] sm:$0xf]
    %v11365 = vld [vmem:[#allocation5 + $0x3c] sm:$0xf]
    %v11366 = vld [vmem:[#allocation15] sm:$0x1]
    %v11368 = vperm.slane %v11366, 0
    %v11386 = vunpack.c.l.b16 %v11350
    %v11387 = vunpack.c.l.b16 %v11351
    %v11388 = vunpack.c.l.b16 %v11352
    %v11389 = vunpack.c.l.b16 %v11353
    %v11390 = vunpack.c.l.b16 %v11354
    %v11391 = vunpack.c.l.b16 %v11355
    %v11392 = vunpack.c.l.b16 %v11356
    %v11393 = vunpack.c.l.b16 %v11357
    %v11394 = vunpack.c.l.b16 %v11358
    %v11395 = vunpack.c.l.b16 %v11359
    %v11396 = vunpack.c.l.b16 %v11360
    %v11397 = vunpack.c.l.b16 %v11361
    %v11398 = vunpack.c.l.b16 %v11362
    %v11399 = vunpack.c.l.b16 %v11363
    %v11400 = vunpack.c.l.b16 %v11364
    %v11401 = vunpack.c.l.b16 %v11365
    %v11402 = vpack.c.b16 %v11387, %v11386
    %v11403 = vpack.c.b16 %v11389, %v11388
    %v11404 = vpack.c.b16 %v11391, %v11390
    %v11405 = vpack.c.b16 %v11393, %v11392
    %v11406 = vpack.c.b16 %v11395, %v11394
    %v11407 = vpack.c.b16 %v11397, %v11396
    %v11408 = vpack.c.b16 %v11399, %v11398
    %v11409 = vpack.c.b16 %v11401, %v11400
    %11418 = vmatpush.bf16.msra.mxu0 %v11409
    %11419 = vmatpush.bf16.msra.mxu0 %v11408
    %11420 = vmatpush.bf16.msra.mxu0 %v11407
    %11421 = vmatpush.bf16.msra.mxu0 %v11406
    %11422 = vmatpush.bf16.msra.mxu0 %v11405
    %11423 = vmatpush.bf16.msra.mxu0 %v11404
    %11424 = vmatpush.bf16.msra.mxu0 %v11403
    %11425 = vmatpush.bf16.msra.mxu0 %v11402
    %11426 = vmatmul.bf16.gmra.mxu0 %v11318
    %v11427 = vpop.f32.mrf.mxu0
    %v11428 = vadd.f32 %v11368, %v11427
    %v11429 = vpop.f32.mrf.mxu0
    %v11430 = vadd.f32 %v11368, %v11429
    %11431 = vmatmul.bf16.gmra.mxu0 %v11319
    %v11432 = vpop.f32.mrf.mxu0
    %v11433 = vadd.f32 %v11368, %v11432
    %v11434 = vpop.f32.mrf.mxu0
    %v11435 = vadd.f32 %v11368, %v11434
    %11436 = vmatmul.bf16.gmra.mxu0 %v11320
    %v11437 = vpop.f32.mrf.mxu0
    %v11438 = vadd.f32 %v11368, %v11437
    %v11439 = vpop.f32.mrf.mxu0
    %v11440 = vadd.f32 %v11368, %v11439
    %11441 = vmatmul.bf16.gmra.mxu0 %v11321
    %v11442 = vpop.f32.mrf.mxu0
    %v11443 = vadd.f32 %v11368, %v11442
    %v11444 = vpop.f32.mrf.mxu0
    %v11445 = vadd.f32 %v11368, %v11444
    %11446 = vmatmul.bf16.gmra.mxu0 %v11322
    %v11447 = vpop.f32.mrf.mxu0
    %v11448 = vadd.f32 %v11368, %v11447
    %v11449 = vpop.f32.mrf.mxu0
    %v11450 = vadd.f32 %v11368, %v11449
    %11451 = vmatmul.bf16.gmra.mxu0 %v11323
    %v11452 = vpop.f32.mrf.mxu0
    %v11453 = vadd.f32 %v11368, %v11452
    %v11454 = vpop.f32.mrf.mxu0
    %v11455 = vadd.f32 %v11368, %v11454
    %11456 = vmatmul.bf16.gmra.mxu0 %v11324
    %v11457 = vpop.f32.mrf.mxu0
    %v11458 = vadd.f32 %v11368, %v11457
    %v11459 = vpop.f32.mrf.mxu0
    %v11460 = vadd.f32 %v11368, %v11459
    %11461 = vmatmul.bf16.gmra.mxu0 %v11325
    %v11462 = vpop.f32.mrf.mxu0
    %v11463 = vadd.f32 %v11368, %v11462
    %v11464 = vpop.f32.mrf.mxu0
    %v11465 = vadd.f32 %v11368, %v11464
    %11466 = vmatmul.bf16.gmra.mxu0 %v11326
    %v11467 = vpop.f32.mrf.mxu0
    %v11468 = vadd.f32 %v11368, %v11467
    %v11469 = vpop.f32.mrf.mxu0
    %v11470 = vadd.f32 %v11368, %v11469
    %11471 = vmatmul.bf16.gmra.mxu0 %v11327
    %v11472 = vpop.f32.mrf.mxu0
    %v11473 = vadd.f32 %v11368, %v11472
    %v11474 = vpop.f32.mrf.mxu0
    %v11475 = vadd.f32 %v11368, %v11474
    %11476 = vmatmul.bf16.gmra.mxu0 %v11328
    %v11477 = vpop.f32.mrf.mxu0
    %v11478 = vadd.f32 %v11368, %v11477
    %v11479 = vpop.f32.mrf.mxu0
    %v11480 = vadd.f32 %v11368, %v11479
    %11481 = vmatmul.bf16.gmra.mxu0 %v11329
    %v11482 = vpop.f32.mrf.mxu0
    %v11483 = vadd.f32 %v11368, %v11482
    %v11484 = vpop.f32.mrf.mxu0
    %v11485 = vadd.f32 %v11368, %v11484
    %11486 = vmatmul.bf16.gmra.mxu0 %v11330
    %v11487 = vpop.f32.mrf.mxu0
    %v11488 = vadd.f32 %v11368, %v11487
    %v11489 = vpop.f32.mrf.mxu0
    %v11490 = vadd.f32 %v11368, %v11489
    %11491 = vmatmul.bf16.gmra.mxu0 %v11331
    %v11492 = vpop.f32.mrf.mxu0
    %v11493 = vadd.f32 %v11368, %v11492
    %v11494 = vpop.f32.mrf.mxu0
    %v11495 = vadd.f32 %v11368, %v11494
    %11496 = vmatmul.bf16.gmra.mxu0 %v11332
    %v11497 = vpop.f32.mrf.mxu0
    %v11498 = vadd.f32 %v11368, %v11497
    %v11499 = vpop.f32.mrf.mxu0
    %v11500 = vadd.f32 %v11368, %v11499
    %11501 = vmatmul.bf16.gmra.mxu0 %v11333
    %v11502 = vpop.f32.mrf.mxu0
    %v11503 = vadd.f32 %v11368, %v11502
    %v11504 = vpop.f32.mrf.mxu0
    %v11505 = vadd.f32 %v11368, %v11504
    %11506 = vmatmul.bf16.gmra.mxu0 %v11334
    %v11507 = vpop.f32.mrf.mxu0
    %v11508 = vadd.f32 %v11368, %v11507
    %v11509 = vpop.f32.mrf.mxu0
    %v11510 = vadd.f32 %v11368, %v11509
    %11511 = vmatmul.bf16.gmra.mxu0 %v11335
    %v11512 = vpop.f32.mrf.mxu0
    %v11513 = vadd.f32 %v11368, %v11512
    %v11514 = vpop.f32.mrf.mxu0
    %v11515 = vadd.f32 %v11368, %v11514
    %11516 = vmatmul.bf16.gmra.mxu0 %v11336
    %v11517 = vpop.f32.mrf.mxu0
    %v11518 = vadd.f32 %v11368, %v11517
    %v11519 = vpop.f32.mrf.mxu0
    %v11520 = vadd.f32 %v11368, %v11519
    %11521 = vmatmul.bf16.gmra.mxu0 %v11337
    %v11522 = vpop.f32.mrf.mxu0
    %v11523 = vadd.f32 %v11368, %v11522
    %v11524 = vpop.f32.mrf.mxu0
    %v11525 = vadd.f32 %v11368, %v11524
    %11526 = vmatmul.bf16.gmra.mxu0 %v11338
    %v11527 = vpop.f32.mrf.mxu0
    %v11528 = vadd.f32 %v11368, %v11527
    %v11529 = vpop.f32.mrf.mxu0
    %v11530 = vadd.f32 %v11368, %v11529
    %11531 = vmatmul.bf16.gmra.mxu0 %v11339
    %v11532 = vpop.f32.mrf.mxu0
    %v11533 = vadd.f32 %v11368, %v11532
    %v11534 = vpop.f32.mrf.mxu0
    %v11535 = vadd.f32 %v11368, %v11534
    %11536 = vmatmul.bf16.gmra.mxu0 %v11340
    %v11537 = vpop.f32.mrf.mxu0
    %v11538 = vadd.f32 %v11368, %v11537
    %v11539 = vpop.f32.mrf.mxu0
    %v11540 = vadd.f32 %v11368, %v11539
    %11541 = vmatmul.bf16.gmra.mxu0 %v11341
    %v11542 = vpop.f32.mrf.mxu0
    %v11543 = vadd.f32 %v11368, %v11542
    %v11544 = vpop.f32.mrf.mxu0
    %v11545 = vadd.f32 %v11368, %v11544
    %11546 = vmatmul.bf16.gmra.mxu0 %v11342
    %v11547 = vpop.f32.mrf.mxu0
    %v11548 = vadd.f32 %v11368, %v11547
    %v11549 = vpop.f32.mrf.mxu0
    %v11550 = vadd.f32 %v11368, %v11549
    %11551 = vmatmul.bf16.gmra.mxu0 %v11343
    %v11552 = vpop.f32.mrf.mxu0
    %v11553 = vadd.f32 %v11368, %v11552
    %v11554 = vpop.f32.mrf.mxu0
    %v11555 = vadd.f32 %v11368, %v11554
    %11556 = vmatmul.bf16.gmra.mxu0 %v11344
    %v11557 = vpop.f32.mrf.mxu0
    %v11558 = vadd.f32 %v11368, %v11557
    %v11559 = vpop.f32.mrf.mxu0
    %v11560 = vadd.f32 %v11368, %v11559
    %11561 = vmatmul.bf16.gmra.mxu0 %v11345
    %v11562 = vpop.f32.mrf.mxu0
    %v11563 = vadd.f32 %v11368, %v11562
    %v11564 = vpop.f32.mrf.mxu0
    %v11565 = vadd.f32 %v11368, %v11564
    %11566 = vmatmul.bf16.gmra.mxu0 %v11346
    %v11567 = vpop.f32.mrf.mxu0
    %v11568 = vadd.f32 %v11368, %v11567
    %v11569 = vpop.f32.mrf.mxu0
    %v11570 = vadd.f32 %v11368, %v11569
    %11571 = vmatmul.bf16.gmra.mxu0 %v11347
    %v11572 = vpop.f32.mrf.mxu0
    %v11573 = vadd.f32 %v11368, %v11572
    %v11574 = vpop.f32.mrf.mxu0
    %v11575 = vadd.f32 %v11368, %v11574
    %11576 = vmatmul.bf16.gmra.mxu0 %v11348
    %v11577 = vpop.f32.mrf.mxu0
    %v11578 = vadd.f32 %v11368, %v11577
    %v11579 = vpop.f32.mrf.mxu0
    %v11580 = vadd.f32 %v11368, %v11579
    %11581 = vmatmul.bf16.gmra.mxu0 %v11349
    %v11582 = vpop.f32.mrf.mxu0
    %v11583 = vadd.f32 %v11368, %v11582
    %v11584 = vpop.f32.mrf.mxu0
    %v11585 = vadd.f32 %v11368, %v11584
    %11586 = vdwg.mxu0
    %v11587 = vtanh.pop %v11428
    %v11588 = vtanh.pop %v11430
    %v11589 = vtanh.pop %v11433
    %v11590 = vtanh.pop %v11435
    %v11591 = vtanh.pop %v11438
    %v11592 = vtanh.pop %v11440
    %v11593 = vtanh.pop %v11443
    %v11594 = vtanh.pop %v11445
    %v11595 = vtanh.pop %v11448
    %v11596 = vtanh.pop %v11450
    %v11597 = vtanh.pop %v11453
    %v11598 = vtanh.pop %v11455
    %v11599 = vtanh.pop %v11458
    %v11600 = vtanh.pop %v11460
    %v11601 = vtanh.pop %v11463
    %v11602 = vtanh.pop %v11465
    %v11603 = vtanh.pop %v11468
    %v11604 = vtanh.pop %v11470
    %v11605 = vtanh.pop %v11473
    %v11606 = vtanh.pop %v11475
    %v11607 = vtanh.pop %v11478
    %v11608 = vtanh.pop %v11480
    %v11609 = vtanh.pop %v11483
    %v11610 = vtanh.pop %v11485
    %v11611 = vtanh.pop %v11488
    %v11612 = vtanh.pop %v11490
    %v11613 = vtanh.pop %v11493
    %v11614 = vtanh.pop %v11495
    %v11615 = vtanh.pop %v11498
    %v11616 = vtanh.pop %v11500
    %v11617 = vtanh.pop %v11503
    %v11618 = vtanh.pop %v11505
    %v11619 = vtanh.pop %v11508
    %v11620 = vtanh.pop %v11510
    %v11621 = vtanh.pop %v11513
    %v11622 = vtanh.pop %v11515
    %v11623 = vtanh.pop %v11518
    %v11624 = vtanh.pop %v11520
    %v11625 = vtanh.pop %v11523
    %v11626 = vtanh.pop %v11525
    %v11627 = vtanh.pop %v11528
    %v11628 = vtanh.pop %v11530
    %v11629 = vtanh.pop %v11533
    %v11630 = vtanh.pop %v11535
    %v11631 = vtanh.pop %v11538
    %v11632 = vtanh.pop %v11540
    %v11633 = vtanh.pop %v11543
    %v11634 = vtanh.pop %v11545
    %v11635 = vtanh.pop %v11548
    %v11636 = vtanh.pop %v11550
    %v11637 = vtanh.pop %v11553
    %v11638 = vtanh.pop %v11555
    %v11639 = vtanh.pop %v11558
    %v11640 = vtanh.pop %v11560
    %v11641 = vtanh.pop %v11563
    %v11642 = vtanh.pop %v11565
    %v11643 = vtanh.pop %v11568
    %v11644 = vtanh.pop %v11570
    %v11645 = vtanh.pop %v11573
    %v11646 = vtanh.pop %v11575
    %v11647 = vtanh.pop %v11578
    %v11648 = vtanh.pop %v11580
    %v11649 = vtanh.pop %v11583
    %v11650 = vtanh.pop %v11585
    %11651 = vst [vmem:[%s9] sm:$0xff] %v11587
    %11652 = vst [vmem:[%s9 + $0x8] sm:$0xff] %v11588
    %11653 = vst [vmem:[%s9 + $0x10] sm:$0xff] %v11589
    %11654 = vst [vmem:[%s9 + $0x18] sm:$0xff] %v11590
    %11655 = vst [vmem:[%s9 + $0x20] sm:$0xff] %v11591
    %11656 = vst [vmem:[%s9 + $0x28] sm:$0xff] %v11592
    %11657 = vst [vmem:[%s9 + $0x30] sm:$0xff] %v11593
    %11658 = vst [vmem:[%s9 + $0x38] sm:$0xff] %v11594
    %11659 = vst [vmem:[%s9 + $0x40] sm:$0xff] %v11595
    %11660 = vst [vmem:[%s9 + $0x48] sm:$0xff] %v11596
    %11661 = vst [vmem:[%s9 + $0x50] sm:$0xff] %v11597
    %11662 = vst [vmem:[%s9 + $0x58] sm:$0xff] %v11598
    %11663 = vst [vmem:[%s9 + $0x60] sm:$0xff] %v11599
    %11664 = vst [vmem:[%s9 + $0x68] sm:$0xff] %v11600
    %11665 = vst [vmem:[%s9 + $0x70] sm:$0xff] %v11601
    %11666 = vst [vmem:[%s9 + $0x78] sm:$0xff] %v11602
    %11667 = vst [vmem:[%s9 + $0x80] sm:$0xff] %v11603
    %11668 = vst [vmem:[%s9 + $0x88] sm:$0xff] %v11604
    %11669 = vst [vmem:[%s9 + $0x90] sm:$0xff] %v11605
    %11670 = vst [vmem:[%s9 + $0x98] sm:$0xff] %v11606
    %11671 = vst [vmem:[%s9 + $0xa0] sm:$0xff] %v11607
    %11672 = vst [vmem:[%s9 + $0xa8] sm:$0xff] %v11608
    %11673 = vst [vmem:[%s9 + $0xb0] sm:$0xff] %v11609
    %11674 = vst [vmem:[%s9 + $0xb8] sm:$0xff] %v11610
    %11675 = vst [vmem:[%s9 + $0xc0] sm:$0xff] %v11611
    %11676 = vst [vmem:[%s9 + $0xc8] sm:$0xff] %v11612
    %11677 = vst [vmem:[%s9 + $0xd0] sm:$0xff] %v11613
    %11678 = vst [vmem:[%s9 + $0xd8] sm:$0xff] %v11614
    %11679 = vst [vmem:[%s9 + $0xe0] sm:$0xff] %v11615
    %11680 = vst [vmem:[%s9 + $0xe8] sm:$0xff] %v11616
    %11681 = vst [vmem:[%s9 + $0xf0] sm:$0xff] %v11617
    %11682 = vst [vmem:[%s9 + $0xf8] sm:$0xff] %v11618
    %11683 = vst [vmem:[%s9 + $0x100] sm:$0xff] %v11619
    %11684 = vst [vmem:[%s9 + $0x108] sm:$0xff] %v11620
    %11685 = vst [vmem:[%s9 + $0x110] sm:$0xff] %v11621
    %11686 = vst [vmem:[%s9 + $0x118] sm:$0xff] %v11622
    %11687 = vst [vmem:[%s9 + $0x120] sm:$0xff] %v11623
    %11688 = vst [vmem:[%s9 + $0x128] sm:$0xff] %v11624
    %11689 = vst [vmem:[%s9 + $0x130] sm:$0xff] %v11625
    %11690 = vst [vmem:[%s9 + $0x138] sm:$0xff] %v11626
    %11691 = vst [vmem:[%s9 + $0x140] sm:$0xff] %v11627
    %11692 = vst [vmem:[%s9 + $0x148] sm:$0xff] %v11628
    %11693 = vst [vmem:[%s9 + $0x150] sm:$0xff] %v11629
    %11694 = vst [vmem:[%s9 + $0x158] sm:$0xff] %v11630
    %11695 = vst [vmem:[%s9 + $0x160] sm:$0xff] %v11631
    %11696 = vst [vmem:[%s9 + $0x168] sm:$0xff] %v11632
    %11697 = vst [vmem:[%s9 + $0x170] sm:$0xff] %v11633
    %11698 = vst [vmem:[%s9 + $0x178] sm:$0xff] %v11634
    %11699 = vst [vmem:[%s9 + $0x180] sm:$0xff] %v11635
    %11700 = vst [vmem:[%s9 + $0x188] sm:$0xff] %v11636
    %11701 = vst [vmem:[%s9 + $0x190] sm:$0xff] %v11637
    %11702 = vst [vmem:[%s9 + $0x198] sm:$0xff] %v11638
    %11703 = vst [vmem:[%s9 + $0x1a0] sm:$0xff] %v11639
    %11704 = vst [vmem:[%s9 + $0x1a8] sm:$0xff] %v11640
    %11705 = vst [vmem:[%s9 + $0x1b0] sm:$0xff] %v11641
    %11706 = vst [vmem:[%s9 + $0x1b8] sm:$0xff] %v11642
    %11707 = vst [vmem:[%s9 + $0x1c0] sm:$0xff] %v11643
    %11708 = vst [vmem:[%s9 + $0x1c8] sm:$0xff] %v11644
    %11709 = vst [vmem:[%s9 + $0x1d0] sm:$0xff] %v11645
    %11710 = vst [vmem:[%s9 + $0x1d8] sm:$0xff] %v11646
    %11711 = vst [vmem:[%s9 + $0x1e0] sm:$0xff] %v11647
    %11712 = vst [vmem:[%s9 + $0x1e8] sm:$0xff] %v11648
    %11713 = vst [vmem:[%s9 + $0x1f0] sm:$0xff] %v11649
    %11714 = vst [vmem:[%s9 + $0x1f8] sm:$0xff] %v11650
    // Predicated region
    $region54: #{decoder_forward.1} parent=1 // pred_check
      _
    $region55: #{decoder_forward.1} parent=1 // pred_check_branch
      %11716 = sbr.rel (0) target = $region57
    $region56: #{decoder_forward.1} parent=1 // pred_region
      _
    $region57: #{decoder_forward.1} parent=1 // pred_fallthru
      _
    // Predicated region
    $region58: #{decoder_forward.1} parent=1 // pred_check
      _
    $region59: #{decoder_forward.1} parent=1 // pred_check_branch
      %11718 = sbr.rel (0) target = $region61
    $region60: #{decoder_forward.1} parent=1 // pred_region
      _
    $region61: #{decoder_forward.1} parent=1 // pred_fallthru
      _
    %11719 = vsyncpa [#allocation11], 1
    %11720 = vsyncpa [#allocation13], 1
    %11721 = vsyncpa [#allocation16], 1
  %11722 = vsyncmov [#allocation9]
  %s11723 = vpop.sfrf %11722
  %p11724 = scmp.eq.s32.totalorder %s11723, 0
  %p11725 = pneg %p11724
  %11727 = shalt.err (%p11725)
  %s11728 = scalar_lea.sflag [#allocation9], 1
  %11729 = vsyncmov %s11728
  %s11730 = vpop.sfrf %11729
  %p11731 = scmp.eq.s32.totalorder %s11730, 0
  %p11732 = pneg %p11731
  %11734 = shalt.err (%p11732)
  %s11735 = scalar_lea.sflag [#allocation9], 2
  %11736 = vsyncmov %s11735
  %s11737 = vpop.sfrf %11736
  %p11738 = scmp.eq.s32.totalorder %s11737, 0
  %p11739 = pneg %p11738
  %11741 = shalt.err (%p11739)
  %s11742 = scalar_lea.sflag [#allocation9], 3
  %11743 = vsyncmov %s11742
  %s11744 = vpop.sfrf %11743
  %p11745 = scmp.eq.s32.totalorder %s11744, 0
  %p11746 = pneg %p11745
  %11748 = shalt.err (%p11746)

</llo_original>
